<compile_context>
chip_gen: v7x
topology: tpu7x:2x2x1
jax: 0.10.0
libtpu: 0.0.40
codegen_flags: <defaults>
</compile_context>

<pallas_src>
import functools
import math

import jax
import jax.numpy as jnp
from jax.experimental import pallas as pl
from jax.experimental.pallas import tpu as pltpu

_SQRT2 = math.sqrt(2.0)
_VMEM_LIMIT = 48 * 1024 * 1024   # fits v7x's 64 MiB physical VMEM with headroom


def _round_up(x, m):
    return ((x + m - 1) // m) * m


def _cdiv(a, b):
    return -(-a // b)


def _gelu(x):
    # exact gelu (erf), same as torch F.gelu / nn.GELU() defaults
    return 0.5 * x * (1.0 + jax.lax.erf(x / _SQRT2))


# ---------------------------------------------------------------------------
# Tiled GEMM with fused bias epilogue (bf16 operands, f32 accumulation)
# ---------------------------------------------------------------------------

def _gemm_kernel(a_ref, w_ref, b_ref, o_ref, acc_ref):
    k = pl.program_id(2)

    @pl.when(k == 0)
    def _init():
        acc_ref[...] = jnp.zeros_like(acc_ref)

    acc_ref[...] += jnp.dot(a_ref[...].astype(jnp.bfloat16),
                            w_ref[...].astype(jnp.bfloat16),
                            preferred_element_type=jnp.float32)

    @pl.when(k == pl.num_programs(2) - 1)
    def _flush():
        o_ref[...] = (acc_ref[...] + b_ref[...]).astype(o_ref.dtype)


def matmul_bias(a, w, b, tm_max=512, tn_max=256, tk_max=1024):
    """a (M, K) @ w (K, N) + b, tiled over an (M, N, K) grid.

    N is zero-padded to a 128 multiple (lane-dense stores).  K is only padded
    when it does not fit a single tk block (K=9 / K=C*F GEMMs stay unpadded).
    """
    M, K = a.shape
    K2, N = w.shape
    assert K == K2
    tm = min(tm_max, _round_up(M, 8))
    tn = min(tn_max, _round_up(N, 128))
    tk = K if K <= tk_max else tk_max
    Mp, Np, Kp = _round_up(M, tm), _round_up(N, tn), _round_up(K, tk)

    a_p = jnp.pad(a, ((0, Mp - M), (0, Kp - K)))
    w_p = jnp.pad(w, ((0, Kp - K), (0, Np - N)))
    b_p = jnp.pad(b.reshape(1, -1), ((0, 0), (0, Np - N)))

    out = pl.pallas_call(
        _gemm_kernel,
        out_shape=jax.ShapeDtypeStruct((Mp, Np), jnp.float32),
        grid=(Mp // tm, Np // tn, Kp // tk),
        in_specs=[
            pl.BlockSpec((tm, tk), lambda i, j, k: (i, k)),
            pl.BlockSpec((tk, tn), lambda i, j, k: (k, j)),
            pl.BlockSpec((1, tn), lambda i, j, k: (0, j)),
        ],
        out_specs=pl.BlockSpec((tm, tn), lambda i, j, k: (i, j)),
        scratch_shapes=[pltpu.VMEM((tm, tn), jnp.float32)],
        compiler_params=pltpu.CompilerParams(
            dimension_semantics=("parallel", "parallel", "arbitrary"),
            vmem_limit_bytes=_VMEM_LIMIT),
    )(a_p, w_p, b_p)
    return out[:M, :N]


# ---------------------------------------------------------------------------
# LayerNorm + GELU fused as a prologue into a GEMM (whole-K)
# ---------------------------------------------------------------------------

def _ln_gelu_gemm_kernel(x_ref, g_ref, beta_ref, w_ref, bias_ref, o_ref, xg_ref,
                         *, eps):
    j = pl.program_id(1)

    @pl.when(j == 0)
    def _():  # LN + GELU once per row tile, cached (bf16) for every N tile
        x = x_ref[...]
        mean = jnp.mean(x, axis=-1, keepdims=True)
        var = jnp.mean(jnp.square(x - mean), axis=-1, keepdims=True)
        y = (x - mean) * jax.lax.rsqrt(var + eps) * g_ref[...] + beta_ref[...]
        xg_ref[...] = _gelu(y).astype(xg_ref.dtype)

    o_ref[...] = (jnp.dot(xg_ref[...], w_ref[...].astype(jnp.bfloat16),
                          preferred_element_type=jnp.float32)
                  + bias_ref[...]).astype(o_ref.dtype)


def ln_gelu_matmul_pallas(x, gamma, beta, w, b, eps=1e-5,
                          tm_max=512, tn_max=256):
    """LayerNorm(last dim) -> GELU -> x @ w + b, one kernel (K whole)."""
    M, K = x.shape
    K2, N = w.shape
    assert K == K2
    tm = min(tm_max, _round_up(M, 8))
    tn = min(tn_max, _round_up(N, 128))
    Mp, Np = _round_up(M, tm), _round_up(N, tn)
    x_p = jnp.pad(x, ((0, Mp - M), (0, 0)))
    w_p = jnp.pad(w, ((0, 0), (0, Np - N)))
    b_p = jnp.pad(b.reshape(1, -1), ((0, 0), (0, Np - N)))

    out = pl.pallas_call(
        functools.partial(_ln_gelu_gemm_kernel, eps=eps),
        out_shape=jax.ShapeDtypeStruct((Mp, Np), jnp.float32),
        grid=(Mp // tm, Np // tn),
        in_specs=[
            pl.BlockSpec((tm, K), lambda i, j: (i, 0)),
            pl.BlockSpec((1, K), lambda i, j: (0, 0)),
            pl.BlockSpec((1, K), lambda i, j: (0, 0)),
            pl.BlockSpec((K, tn), lambda i, j: (0, j)),
            pl.BlockSpec((1, tn), lambda i, j: (0, j)),
        ],
        out_specs=pl.BlockSpec((tm, tn), lambda i, j: (i, j)),
        scratch_shapes=[pltpu.VMEM((tm, K), jnp.bfloat16)],
        compiler_params=pltpu.CompilerParams(
            dimension_semantics=("parallel", "arbitrary"),
            vmem_limit_bytes=_VMEM_LIMIT),
    )(x_p, gamma.reshape(1, K), beta.reshape(1, K), w_p, b_p)
    return out[:M, :N]


# ---------------------------------------------------------------------------
# CNNLayerNorm + GELU (channels-last, reduce over F sublanes, lane-tiled)
# ---------------------------------------------------------------------------

def _cnn_ln_gelu_kernel(x_ref, g_ref, b_ref, o_ref, *, eps):
    x = x_ref[...]                                        # (1, F, Lc)
    mean = jnp.mean(x, axis=1, keepdims=True)
    var = jnp.mean(jnp.square(x - mean), axis=1, keepdims=True)
    y = (x - mean) * jax.lax.rsqrt(var + eps) * g_ref[...] + b_ref[...]
    o_ref[...] = _gelu(y).astype(o_ref.dtype)


def cnn_ln_gelu_pallas(x_cl, gamma, beta, eps=1e-5, lane_tile_max=4096):
    """x_cl: (B, F, T, C) channels-last; LayerNorm over F, then GELU."""
    B, F, T, C = x_cl.shape
    L = T * C
    x3 = x_cl.reshape(B, F, L)
    if L <= lane_tile_max:
        Lc, Lp = L, L
    else:
        Lc = lane_tile_max                                # multiple of 128
        Lp = _round_up(L, Lc)
        x3 = jnp.pad(x3, ((0, 0), (0, 0), (0, Lp - L)))
    out = pl.pallas_call(
        functools.partial(_cnn_ln_gelu_kernel, eps=eps),
        out_shape=jax.ShapeDtypeStruct((B, F, Lp), jnp.float32),
        grid=(B, Lp // Lc),
        in_specs=[
            pl.BlockSpec((1, F, Lc), lambda b, t: (b, 0, t)),
            pl.BlockSpec((1, F, 1), lambda b, t: (0, 0, 0)),
            pl.BlockSpec((1, F, 1), lambda b, t: (0, 0, 0)),
        ],
        out_specs=pl.BlockSpec((1, F, Lc), lambda b, t: (b, 0, t)),
        compiler_params=pltpu.CompilerParams(
            dimension_semantics=("parallel", "parallel"),
            vmem_limit_bytes=_VMEM_LIMIT),
    )(x3, gamma.reshape(1, F, 1), beta.reshape(1, F, 1))
    if Lp != L:
        out = out[:, :, :L]
    return out.reshape(B, F, T, C)


# ---------------------------------------------------------------------------
# Direct 3x3 / stride-1 / pad-1 conv (halo'd tiles, 9 shifted matmuls in VMEM)
# ---------------------------------------------------------------------------

def _conv3x3_kernel(x_ref, w_ref, b_ref, *rest, Fh, Tc, Cout, has_residual):
    if has_residual:
        res_ref, o_ref, acc_ref = rest
    else:
        o_ref, acc_ref = rest
    acc_ref[...] = jnp.zeros_like(acc_ref)
    for kh in range(3):
        for kw in range(3):
            xs = x_ref[0, kh:kh + Fh, kw:kw + Tc, :]      # (Fh, Tc, Cin)
            xs = xs.reshape(Fh * Tc, xs.shape[-1]).astype(jnp.bfloat16)
            wk = w_ref[kh * 3 + kw].astype(jnp.bfloat16)  # (Cin, Cout)
            acc_ref[...] += jnp.dot(xs, wk, preferred_element_type=jnp.float32)
    out = acc_ref[...] + b_ref[...]
    if has_residual:
        out = out + res_ref[0].reshape(Fh * Tc, Cout)
    o_ref[0] = out.reshape(Fh, Tc, Cout).astype(o_ref.dtype)


def conv3x3_s1_pallas(x_cl, w9, b, residual=None, t_tile_max=256):
    """Direct 3x3, stride-1, pad-1 conv in channels-last (B, F, T, C) layout.

    No im2col: each grid step DMAs one halo'd (F+2, Tc+2, Cin) tile to VMEM
    and accumulates 9 shifted bf16 matmuls into an f32 VMEM accumulator; bias
    and the optional residual add are fused into the epilogue.
    """
    B, F, T, Cin = x_cl.shape
    Cout = w9.shape[-1]
    Tc = min(_round_up(T, 8), _round_up(t_tile_max, 8))   # multiple of 8
    n_t = _cdiv(T, Tc)
    Tp = n_t * Tc

    xp = jnp.pad(x_cl, ((0, 0), (1, 1), (1, 1), (0, 0)))  # conv halo
    if Tp != T:
        xp = jnp.pad(xp, ((0, 0), (0, 0), (0, Tp - T), (0, 0)))
    if n_t == 1:
        xt = xp                                           # (B, F+2, Tc+2, C)
    else:  # overlapping (halo'd) time tiles -> (B*n_t, F+2, Tc+2, C)
        idx = jnp.arange(n_t)[:, None] * Tc + jnp.arange(Tc + 2)[None, :]
        xt = jnp.moveaxis(xp[:, :, idx, :], 2, 1).reshape(
            B * n_t, F + 2, Tc + 2, Cin)

    ins = [xt, w9, b.reshape(1, Cout)]
    in_specs = [
        pl.BlockSpec((1, F + 2, Tc + 2, Cin),
                     lambda bi, ti: (bi * n_t + ti, 0, 0, 0)),
        pl.BlockSpec((9, Cin, Cout), lambda bi, ti: (0, 0, 0)),
        pl.BlockSpec((1, Cout), lambda bi, ti: (0, 0)),
    ]
    has_res = residual is not None
    if has_res:
        res_p = residual if Tp == T else jnp.pad(
            residual, ((0, 0), (0, 0), (0, Tp - T), (0, 0)))
        ins.append(res_p)
        in_specs.append(pl.BlockSpec((1, F, Tc, Cout),
                                     lambda bi, ti: (bi, 0, ti, 0)))

    out = pl.pallas_call(
        functools.partial(_conv3x3_kernel, Fh=F, Tc=Tc, Cout=Cout,
                          has_residual=has_res),
        out_shape=jax.ShapeDtypeStruct((B, F, Tp, Cout), jnp.float32),
        grid=(B, n_t),
        in_specs=in_specs,
        out_specs=pl.BlockSpec((1, F, Tc, Cout), lambda bi, ti: (bi, 0, ti, 0)),
        scratch_shapes=[pltpu.VMEM((F * Tc, Cout), jnp.float32)],
        compiler_params=pltpu.CompilerParams(
            dimension_semantics=("parallel", "parallel"),
            vmem_limit_bytes=_VMEM_LIMIT),
    )(*ins)
    return out if Tp == T else out[:, :, :T, :]


# ---------------------------------------------------------------------------
# Bidirectional GRU scan: chunked time, lane-aligned gates, index-map reversal
# ---------------------------------------------------------------------------

def _bigru_scan_kernel(proj_ref, whh_ref, bhh_ref, o_ref, h_ref,
                       *, hp, chunk, t_valid, need_mask):
    d = pl.program_id(0)          # direction: 0 = forward, 1 = backward
    c = pl.program_id(1)          # chunk visitation index
    n_chunks = pl.num_programs(1)

    @pl.when(c == 0)
    def _():
        h_ref[...] = jnp.zeros_like(h_ref)

    blk = c * (1 - d) + (n_chunks - 1 - c) * d            # time block loaded
    whh = whh_ref[0].astype(jnp.bfloat16)                 # (hp, 3*hp)
    bhh = bhh_ref[0]                                      # (1, 3*hp)

    def step(s, h):
        li = s * (1 - d) + (chunk - 1 - s) * d            # local time index
        gi = proj_ref[li]                                 # (B, 3*hp), has b_ih
        gh = jnp.dot(h.astype(jnp.bfloat16), whh,
                     preferred_element_type=jnp.float32) + bhh
        r = jax.nn.sigmoid(gi[:, :hp] + gh[:, :hp])
        z = jax.nn.sigmoid(gi[:, hp:2 * hp] + gh[:, hp:2 * hp])
        n = jnp.tanh(gi[:, 2 * hp:] + r * gh[:, 2 * hp:])
        h_new = (1.0 - z) * n + z * h
        if need_mask:                                     # only when T padded
            gt = blk * chunk + li
            m = (gt < t_valid).astype(jnp.float32)
            h_new = m * h_new + (1.0 - m) * h
        o_ref[li] = h_new.astype(o_ref.dtype)
        return h_new

    unroll = True if chunk <= 16 else 4
    h_ref[...] = jax.lax.fori_loop(0, chunk, step, h_ref[...], unroll=unroll)


def bigru_scan_pallas(proj, whh_cat, bhh_cat, hp, chunk_max=64,
                      vmem_budget_bytes=6 * 1024 * 1024):
    """proj: (T, B, 6*hp) fused fwd/bwd input projections (b_ih included).
    whh_cat: (2, hp, 3*hp); bhh_cat: (2, 1, 3*hp).
    Returns (T, B, 2*hp): [..., :hp] = forward, [..., hp:] = backward."""
    Tt, B, _ = proj.shape
    # size the time chunk so the double-buffered proj + out blocks fit budget
    per_step = B * 4 * hp * 4
    chunk = max(1, min(chunk_max, Tt, vmem_budget_bytes // (2 * per_step)))
    n_chunks = _cdiv(Tt, chunk)
    Tp = n_chunks * chunk
    if Tp != Tt:
        proj = jnp.pad(proj, ((0, Tp - Tt), (0, 0), (0, 0)))

    def time_blk(d, c):
        return c * (1 - d) + (n_chunks - 1 - c) * d       # reversed for bwd

    out = pl.pallas_call(
        functools.partial(_bigru_scan_kernel, hp=hp, chunk=chunk,
                          t_valid=Tt, need_mask=(Tp != Tt)),
        out_shape=jax.ShapeDtypeStruct((Tp, B, 2 * hp), jnp.float32),
        grid=(2, n_chunks),
        in_specs=[
            pl.BlockSpec((chunk, B, 3 * hp),
                         lambda d, c: (time_blk(d, c), 0, d)),
            pl.BlockSpec((1, hp, 3 * hp), lambda d, c: (d, 0, 0)),
            pl.BlockSpec((1, 1, 3 * hp), lambda d, c: (d, 0, 0)),
        ],
        out_specs=pl.BlockSpec((chunk, B, hp),
                               lambda d, c: (time_blk(d, c), 0, d)),
        scratch_shapes=[pltpu.VMEM((B, hp), jnp.float32)],
        compiler_params=pltpu.CompilerParams(
            dimension_semantics=("parallel", "arbitrary"),
            vmem_limit_bytes=_VMEM_LIMIT),
    )(proj, whh_cat, bhh_cat)
    return out[:Tt]


# ---------------------------------------------------------------------------
# Fused classifier MLP: Linear -> GELU -> Linear (GELU staged in bf16 VMEM)
# ---------------------------------------------------------------------------

def _mlp_kernel(x_ref, w1_ref, b1_ref, w2_ref, b2_ref, o_ref, h_ref):
    h = jnp.dot(x_ref[...].astype(jnp.bfloat16),
                w1_ref[...].astype(jnp.bfloat16),
                preferred_element_type=jnp.float32) + b1_ref[...]
    h_ref[...] = _gelu(h).astype(h_ref.dtype)
    o = jnp.dot(h_ref[...], w2_ref[...].astype(jnp.bfloat16),
                preferred_element_type=jnp.float32) + b2_ref[...]
    o_ref[...] = o.astype(o_ref.dtype)


def fused_mlp_pallas(x, w1, b1, w2, b2, tm_max=128):
    M, K = x.shape
    _, Hd = w1.shape
    _, N = w2.shape
    Hp = _round_up(Hd, 128)
    Np = _round_up(N, 128)
    tm = min(tm_max, _round_up(M, 8))
    Mp = _round_up(M, tm)
    x_p = jnp.pad(x, ((0, Mp - M), (0, 0)))
    w1_p = jnp.pad(w1, ((0, 0), (0, Hp - Hd)))
    b1_p = jnp.pad(b1.reshape(1, -1), ((0, 0), (0, Hp - Hd)))
    w2_p = jnp.pad(w2, ((0, Hp - Hd), (0, Np - N)))
    b2_p = jnp.pad(b2.reshape(1, -1), ((0, 0), (0, Np - N)))

    out = pl.pallas_call(
        _mlp_kernel,
        out_shape=jax.ShapeDtypeStruct((Mp, Np), jnp.float32),
        grid=(Mp // tm,),
        in_specs=[
            pl.BlockSpec((tm, K), lambda i: (i, 0)),
            pl.BlockSpec((K, Hp), lambda i: (0, 0)),
            pl.BlockSpec((1, Hp), lambda i: (0, 0)),
            pl.BlockSpec((Hp, Np), lambda i: (0, 0)),
            pl.BlockSpec((1, Np), lambda i: (0, 0)),
        ],
        out_specs=pl.BlockSpec((tm, Np), lambda i: (i, 0)),
        scratch_shapes=[pltpu.VMEM((tm, Hp), jnp.bfloat16)],
        compiler_params=pltpu.CompilerParams(
            dimension_semantics=("parallel",),
            vmem_limit_bytes=_VMEM_LIMIT),
    )(x_p, w1_p, b1_p, w2_p, b2_p)
    return out[:M, :N]


# ---------------------------------------------------------------------------
# Model building blocks (channels-last CNN trunk + GRU stack + classifier)
# ---------------------------------------------------------------------------

def conv2d_stem_cl(x, wf, b, stride, padding):
    """Stride-2 stem Conv2d (Cin=1) via im2col + GEMM (K=9, unpadded)."""
    B, Hin, Win, Cin = x.shape
    Cout = wf.shape[1]
    KH = KW = 3
    xp = jnp.pad(x, ((0, 0), (padding, padding), (padding, padding), (0, 0)))
    Hout = (Hin + 2 * padding - KH) // stride + 1
    Wout = (Win + 2 * padding - KW) // stride + 1
    cols = [xp[:, kh:kh + stride * Hout:stride, kw:kw + stride * Wout:stride, :]
            for kh in range(KH) for kw in range(KW)]
    patches = jnp.concatenate(cols, axis=-1).reshape(B * Hout * Wout,
                                                     KH * KW * Cin)
    out = matmul_bias(patches, wf, b, tm_max=1024)
    return out.reshape(B, Hout, Wout, Cout)


def residual_cnn_cl(x, p):
    """ResidualCNN block, channels-last (B, F, T, C); dropout = identity."""
    y = cnn_ln_gelu_pallas(x, p["ln1_g"], p["ln1_b"])
    y = conv3x3_s1_pallas(y, p["cnn1_w9"], p["cnn1_b"])
    y = cnn_ln_gelu_pallas(y, p["ln2_g"], p["ln2_b"])
    y = conv3x3_s1_pallas(y, p["cnn2_w9"], p["cnn2_b"], residual=x)
    return y


def bidirectional_gru_block(x, p, hidden, batch_first):
    """LayerNorm -> GELU -> bidirectional GRU (dropout = identity).

    Faithful to the PyTorch module: layers i>0 use batch_first=False but still
    receive (B, T, D), so the GRU scans over the batch axis.
    """
    hp = p["whh_cat"].shape[1]
    xs = x.transpose(1, 0, 2) if batch_first else x
    Tt, Bb, D = xs.shape
    proj = ln_gelu_matmul_pallas(xs.reshape(Tt * Bb, D), p["ln_g"], p["ln_b"],
                                 p["w_cat"], p["b_cat"])
    proj = proj.reshape(Tt, Bb, 6 * hp)
    out = bigru_scan_pallas(proj, p["whh_cat"], p["bhh_cat"], hp)
    if hp == hidden:          # already [fwd | bwd] concatenated, no extra pass
        y = out
    else:                     # small rnn_dim: strip gate-lane padding
        y = jnp.concatenate([out[..., :hidden], out[..., hp:hp + hidden]],
                            axis=-1)
    if batch_first:
        y = y.transpose(1, 0, 2)
    return y


def speech_recognition_forward(x, params, rnn_dim):
    """x: (B, 1, n_feats, time) NCHW, as in the PyTorch module."""
    B = x.shape[0]
    x_cl = x.transpose(0, 2, 3, 1)                            # (B, F, T, 1)
    y = conv2d_stem_cl(x_cl, params["cnn_wf"], params["cnn_b"],
                       stride=2, padding=1)
    for p in params["rescnn"]:
        y = residual_cnn_cl(y, p)
    _, F, T, C = y.shape
    # matches torch: x.view(B, C*F, T).transpose(1, 2) -> features ordered (c, f)
    y = y.transpose(0, 2, 3, 1).reshape(B * T, C * F)
    y = matmul_bias(y, params["fc_wt"], params["fc_b"])
    y = y.reshape(B, T, rnn_dim)
    for i, p in enumerate(params["birnn"]):
        y = bidirectional_gru_block(y, p, rnn_dim, batch_first=(i == 0))
    d0, d1, D = y.shape
    out = fused_mlp_pallas(y.reshape(d0 * d1, D), params["cls_w1t"],
                           params["cls_b1"], params["cls_w2t"], params["cls_b2"])
    return out.reshape(d0, d1, -1)


# ---------------------------------------------------------------------------
# Parameters: torch-layout init + one-time kernel-layout preparation
# ---------------------------------------------------------------------------

def init_params(key, n_cnn_layers, n_rnn_layers, rnn_dim, n_class, n_feats):
    feats = n_feats // 2
    keys = iter(jax.random.split(key, 256))

    def w(shape, scale=0.1):
        return jax.random.normal(next(keys), shape, jnp.float32) * scale

    params = {
        "cnn_w": w((32, 1, 3, 3)), "cnn_b": w((32,)),
        "fc_w": w((rnn_dim, feats * 32)), "fc_b": w((rnn_dim,)),
        "rescnn": [], "birnn": [],
    }
    for _ in range(n_cnn_layers):
        params["rescnn"].append({
            "cnn1_w": w((32, 32, 3, 3)), "cnn1_b": w((32,)),
            "cnn2_w": w((32, 32, 3, 3)), "cnn2_b": w((32,)),
            "ln1_g": jnp.ones((feats,), jnp.float32),
            "ln1_b": jnp.zeros((feats,), jnp.float32),
            "ln2_g": jnp.ones((feats,), jnp.float32),
            "ln2_b": jnp.zeros((feats,), jnp.float32),
        })
    for i in range(n_rnn_layers):
        d_in = rnn_dim if i == 0 else rnn_dim * 2
        params["birnn"].append({
            "ln_g": jnp.ones((d_in,), jnp.float32),
            "ln_b": jnp.zeros((d_in,), jnp.float32),
            "w_ih": w((3 * rnn_dim, d_in)), "b_ih": w((3 * rnn_dim,)),
            "w_hh": w((3 * rnn_dim, rnn_dim)), "b_hh": w((3 * rnn_dim,)),
            "w_ih_r": w((3 * rnn_dim, d_in)), "b_ih_r": w((3 * rnn_dim,)),
            "w_hh_r": w((3 * rnn_dim, rnn_dim)), "b_hh_r": w((3 * rnn_dim,)),
        })
    params["cls_w1"] = w((rnn_dim, 2 * rnn_dim)); params["cls_b1"] = w((rnn_dim,))
    params["cls_w2"] = w((n_class, rnn_dim));     params["cls_b2"] = w((n_class,))
    return params


def _pad_gates_cols(w_t, H, hp):
    """(D, 3H) -> (D, 3*hp): gate g's H columns placed at g*hp (lane aligned)."""
    D = w_t.shape[0]
    out = jnp.zeros((D, 3 * hp), w_t.dtype)
    for g in range(3):
        out = out.at[:, g * hp:g * hp + H].set(w_t[:, g * H:(g + 1) * H])
    return out


def _pad_gates_vec(v, H, hp):
    out = jnp.zeros((3 * hp,), v.dtype)
    for g in range(3):
        out = out.at[g * hp:g * hp + H].set(v[g * H:(g + 1) * H])
    return out


def prepare_params(raw, rnn_dim):
    """One-time re-layout of torch-shaped weights into kernel-friendly forms."""
    H = rnn_dim
    hp = _round_up(rnn_dim, 128)

    def conv_w9(w):   # (Cout, Cin, 3, 3) -> (9, Cin, Cout), tap order (kh, kw)
        return w.transpose(2, 3, 1, 0).reshape(9, w.shape[1], w.shape[0])

    def conv_wf(w):   # (Cout, Cin, 3, 3) -> (9*Cin, Cout), rows (kh, kw, ci)
        return w.transpose(2, 3, 1, 0).reshape(-1, w.shape[0])

    p = {
        "cnn_wf": conv_wf(raw["cnn_w"]), "cnn_b": raw["cnn_b"],
        "fc_wt": raw["fc_w"].T, "fc_b": raw["fc_b"],
        "cls_w1t": raw["cls_w1"].T, "cls_b1": raw["cls_b1"],
        "cls_w2t": raw["cls_w2"].T, "cls_b2": raw["cls_b2"],
        "rescnn": [], "birnn": [],
    }
    for r in raw["rescnn"]:
        p["rescnn"].append({
            "cnn1_w9": conv_w9(r["cnn1_w"]), "cnn1_b": r["cnn1_b"],
            "cnn2_w9": conv_w9(r["cnn2_w"]), "cnn2_b": r["cnn2_b"],
            "ln1_g": r["ln1_g"], "ln1_b": r["ln1_b"],
            "ln2_g": r["ln2_g"], "ln2_b": r["ln2_b"],
        })
    for r in raw["birnn"]:
        w_cat = jnp.concatenate(
            [_pad_gates_cols(r["w_ih"].T, H, hp),
             _pad_gates_cols(r["w_ih_r"].T, H, hp)], axis=-1)      # (D, 6*hp)
        b_cat = jnp.concatenate(
            [_pad_gates_vec(r["b_ih"], H, hp),
             _pad_gates_vec(r["b_ih_r"], H, hp)])                  # (6*hp,)
        whh_cat = jnp.stack(
            [_pad_gates_cols(jnp.pad(r["w_hh"].T, ((0, hp - H), (0, 0))), H, hp),
             _pad_gates_cols(jnp.pad(r["w_hh_r"].T, ((0, hp - H), (0, 0))), H, hp)])
        bhh_cat = jnp.stack(
            [_pad_gates_vec(r["b_hh"], H, hp).reshape(1, -1),
             _pad_gates_vec(r["b_hh_r"], H, hp).reshape(1, -1)])   # (2, 1, 3*hp)
        p["birnn"].append({
            "ln_g": r["ln_g"], "ln_b": r["ln_b"],
            "w_cat": w_cat, "b_cat": b_cat,
            "whh_cat": whh_cat, "bhh_cat": bhh_cat,
        })
    return p


if __name__ == "__main__":
    # Small config: n_cnn_layers=2, n_rnn_layers=2, rnn_dim=32, n_class=10, n_feats=16
    n_cnn_layers, n_rnn_layers, rnn_dim, n_class, n_feats = 2, 2, 32, 10, 16

    key = jax.random.PRNGKey(0)
    pkey, xkey = jax.random.split(key)
    raw = init_params(pkey, n_cnn_layers, n_rnn_layers, rnn_dim, n_class, n_feats)
    params = prepare_params(raw, rnn_dim)

    # Input spectrogram, NCHW: (batch=2, channels=1, n_feats=16, time=16)
    x = jax.random.normal(xkey, (2, 1, n_feats, 16), jnp.float32)

    fwd = jax.jit(functools.partial(speech_recognition_forward, rnn_dim=rnn_dim))
    out = fwd(x, params)
    jax.block_until_ready(out)
    assert out.shape == (2, 8, n_class), out.shape
    assert bool(jnp.all(jnp.isfinite(out)))
    print("KERNEL_OK")
</pallas_src>

<mosaic_0001>
module attributes {stable_mosaic.version = 11 : i64} {
  func.func @_gemm_kernel(%arg0: i32, %arg1: i32, %arg2: i32, %arg3: memref<128x9xf32, #tpu.memory_space<vmem>>, %arg4: memref<9x128xf32, #tpu.memory_space<vmem>>, %arg5: memref<1x128xf32, #tpu.memory_space<vmem>>, %arg6: memref<128x128xf32, #tpu.memory_space<vmem>>, %arg7: memref<128x128xf32, #tpu.memory_space<vmem>>) attributes {dimension_semantics = [#tpu.dimension_semantics<parallel>, #tpu.dimension_semantics<parallel>, #tpu.dimension_semantics<arbitrary>], iteration_bounds = array<i64: 1, 1, 1>, scalar_prefetch = 0 : i64, scratch_operands = 1 : i64, tpu.core_type = #tpu.core_type<tc>, window_params = [{transform_indices = @transform_0, window_bounds = array<i64: 128, 9>}, {transform_indices = @transform_1, window_bounds = array<i64: 9, 128>}, {transform_indices = @transform_2, window_bounds = array<i64: 1, 128>}, {transform_indices = @transform_3, window_bounds = array<i64: 128, 128>}]} {
    %c0_i32 = arith.constant 0 : i32
    %0 = arith.cmpi eq, %arg2, %c0_i32 : i32
    %1 = arith.extui %0 : i1 to i32
    %c0_i32_0 = arith.constant 0 : i32
    %2 = arith.cmpi ne, %1, %c0_i32_0 : i32
    scf.if %2 {
      %cst_10 = arith.constant 0.000000e+00 : f32
      %14 = vector.broadcast %cst_10 : f32 to vector<128x128xf32>
      %c0_11 = arith.constant 0 : index
      %c0_12 = arith.constant 0 : index
      %15 = vector.load %arg7[%c0_11, %c0_12] : memref<128x128xf32, #tpu.memory_space<vmem>>, vector<128x128xf32>
      tpu.vector_store %arg7[%c0_11, %c0_12], %14 {strides = array<i32>} : memref<128x128xf32, #tpu.memory_space<vmem>>, vector<128x128xf32>,
    } else {
    }
    %c0 = arith.constant 0 : index
    %c0_1 = arith.constant 0 : index
    %3 = vector.load %arg7[%c0, %c0_1] : memref<128x128xf32, #tpu.memory_space<vmem>>, vector<128x128xf32>
    %c0_2 = arith.constant 0 : index
    %c0_3 = arith.constant 0 : index
    %4 = vector.load %arg3[%c0_2, %c0_3] : memref<128x9xf32, #tpu.memory_space<vmem>>, vector<128x9xf32>
    %5 = arith.truncf %4 : vector<128x9xf32> to vector<128x9xbf16>
    %c0_4 = arith.constant 0 : index
    %c0_5 = arith.constant 0 : index
    %6 = vector.load %arg4[%c0_4, %c0_5] : memref<9x128xf32, #tpu.memory_space<vmem>>, vector<9x128xf32>
    %7 = arith.truncf %6 : vector<9x128xf32> to vector<9x128xbf16>
    %cst = arith.constant dense<0.000000e+00> : vector<128x128xf32>
    %8 = tpu.matmul %5, %7, %cst {dimension_numbers = #tpu.dot_dimension_numbers<[1], [0], [0], [1], [0, 0, 1, 1], [], []>} : vector<128x9xbf16>, vector<9x128xbf16>, vector<128x128xf32> -> vector<128x128xf32>
    %9 = arith.addf %3, %8 : vector<128x128xf32>
    %c0_6 = arith.constant 0 : index
    %c0_7 = arith.constant 0 : index
    %10 = vector.load %arg7[%c0_6, %c0_7] : memref<128x128xf32, #tpu.memory_space<vmem>>, vector<128x128xf32>
    tpu.vector_store %arg7[%c0_6, %c0_7], %9 {strides = array<i32>} : memref<128x128xf32, #tpu.memory_space<vmem>>, vector<128x128xf32>,
    %c0_i32_8 = arith.constant 0 : i32
    %11 = arith.cmpi eq, %arg2, %c0_i32_8 : i32
    %12 = arith.extui %11 : i1 to i32
    %c0_i32_9 = arith.constant 0 : i32
    %13 = arith.cmpi ne, %12, %c0_i32_9 : i32
    scf.if %13 {
      %c0_10 = arith.constant 0 : index
      %c0_11 = arith.constant 0 : index
      %14 = vector.load %arg7[%c0_10, %c0_11] : memref<128x128xf32, #tpu.memory_space<vmem>>, vector<128x128xf32>
      %c0_12 = arith.constant 0 : index
      %c0_13 = arith.constant 0 : index
      %15 = vector.load %arg5[%c0_12, %c0_13] : memref<1x128xf32, #tpu.memory_space<vmem>>, vector<1x128xf32>
      %16 = vector.broadcast %15 : vector<1x128xf32> to vector<128x128xf32>
      %17 = arith.addf %14, %16 : vector<128x128xf32>
      %c0_14 = arith.constant 0 : index
      %c0_15 = arith.constant 0 : index
      %18 = vector.load %arg6[%c0_14, %c0_15] : memref<128x128xf32, #tpu.memory_space<vmem>>, vector<128x128xf32>
      tpu.vector_store %arg6[%c0_14, %c0_15], %17 {strides = array<i32>} : memref<128x128xf32, #tpu.memory_space<vmem>>, vector<128x128xf32>,
    } else {
    }
    return
  }
  func.func @transform_0(%arg0: i32, %arg1: i32, %arg2: i32) -> (i32, i32) {
    %c0_i32 = arith.constant 0 : i32
    return %arg0, %arg2 : i32, i32
  }
  func.func @transform_1(%arg0: i32, %arg1: i32, %arg2: i32) -> (i32, i32) {
    %c0_i32 = arith.constant 0 : i32
    return %arg2, %arg1 : i32, i32
  }
  func.func @transform_2(%arg0: i32, %arg1: i32, %arg2: i32) -> (i32, i32) {
    %c0_i32 = arith.constant 0 : i32
    %c0_i32_0 = arith.constant 0 : i32
    return %c0_i32, %arg1 : i32, i32
  }
  func.func @transform_3(%arg0: i32, %arg1: i32, %arg2: i32) -> (i32, i32) {
    %c0_i32 = arith.constant 0 : i32
    return %arg0, %arg1 : i32, i32
  }
}

module attributes {stable_mosaic.version = 11 : i64} {
  func.func @_cnn_ln_gelu_kernel(%arg0: i32, %arg1: i32, %arg2: memref<1x8x256xf32, #tpu.memory_space<vmem>>, %arg3: memref<1x8x1xf32, #tpu.memory_space<vmem>>, %arg4: memref<1x8x1xf32, #tpu.memory_space<vmem>>, %arg5: memref<1x8x256xf32, #tpu.memory_space<vmem>>) attributes {dimension_semantics = [#tpu.dimension_semantics<parallel>, #tpu.dimension_semantics<parallel>], iteration_bounds = array<i64: 2, 1>, scalar_prefetch = 0 : i64, scratch_operands = 0 : i64, tpu.core_type = #tpu.core_type<tc>, window_params = [{transform_indices = @transform_0, window_bounds = array<i64: 1, 8, 256>}, {pipeline_mode = #tpu.pipeline_mode<synchronous>, transform_indices = @transform_1, window_bounds = array<i64: 1, 8, 1>}, {pipeline_mode = #tpu.pipeline_mode<synchronous>, transform_indices = @transform_2, window_bounds = array<i64: 1, 8, 1>}, {transform_indices = @transform_3, window_bounds = array<i64: 1, 8, 256>}]} {
    %c0 = arith.constant 0 : index
    %c0_0 = arith.constant 0 : index
    %c0_1 = arith.constant 0 : index
    %0 = vector.load %arg2[%c0, %c0_0, %c0_1] : memref<1x8x256xf32, #tpu.memory_space<vmem>>, vector<1x8x256xf32>
    %cst = arith.constant dense<0.000000e+00> : vector<1x256xf32>
    %1 = vector.multi_reduction <add>, %0, %cst [1] : vector<1x8x256xf32> to vector<1x256xf32>
    %2 = vector.shape_cast %1 : vector<1x256xf32> to vector<1x1x256xf32>
    %cst_2 = arith.constant 8.000000e+00 : f32
    %3 = vector.broadcast %cst_2 : f32 to vector<1x1x256xf32>
    %4 = arith.divf %2, %3 : vector<1x1x256xf32>
    %5 = vector.broadcast %4 : vector<1x1x256xf32> to vector<1x8x256xf32>
    %6 = arith.subf %0, %5 : vector<1x8x256xf32>
    %7 = arith.mulf %6, %6 : vector<1x8x256xf32>
    %cst_3 = arith.constant dense<0.000000e+00> : vector<1x256xf32>
    %8 = vector.multi_reduction <add>, %7, %cst_3 [1] : vector<1x8x256xf32> to vector<1x256xf32>
    %9 = vector.shape_cast %8 : vector<1x256xf32> to vector<1x1x256xf32>
    %cst_4 = arith.constant 8.000000e+00 : f32
    %10 = vector.broadcast %cst_4 : f32 to vector<1x1x256xf32>
    %11 = arith.divf %9, %10 : vector<1x1x256xf32>
    %12 = vector.broadcast %4 : vector<1x1x256xf32> to vector<1x8x256xf32>
    %13 = arith.subf %0, %12 : vector<1x8x256xf32>
    %cst_5 = arith.constant 9.99999974E-6 : f32
    %14 = vector.broadcast %cst_5 : f32 to vector<1x1x256xf32>
    %15 = arith.addf %11, %14 : vector<1x1x256xf32>
    %16 = math.rsqrt %15 : vector<1x1x256xf32>
    %17 = vector.broadcast %16 : vector<1x1x256xf32> to vector<1x8x256xf32>
    %18 = arith.mulf %13, %17 : vector<1x8x256xf32>
    %c0_6 = arith.constant 0 : index
    %c0_7 = arith.constant 0 : index
    %c0_8 = arith.constant 0 : index
    %19 = vector.load %arg3[%c0_6, %c0_7, %c0_8] : memref<1x8x1xf32, #tpu.memory_space<vmem>>, vector<1x8x1xf32>
    %20 = vector.broadcast %19 : vector<1x8x1xf32> to vector<1x8x256xf32>
    %21 = arith.mulf %18, %20 : vector<1x8x256xf32>
    %c0_9 = arith.constant 0 : index
    %c0_10 = arith.constant 0 : index
    %c0_11 = arith.constant 0 : index
    %22 = vector.load %arg4[%c0_9, %c0_10, %c0_11] : memref<1x8x1xf32, #tpu.memory_space<vmem>>, vector<1x8x1xf32>
    %23 = vector.broadcast %22 : vector<1x8x1xf32> to vector<1x8x256xf32>
    %24 = arith.addf %21, %23 : vector<1x8x256xf32>
    %cst_12 = arith.constant 5.000000e-01 : f32
    %25 = vector.broadcast %cst_12 : f32 to vector<1x8x256xf32>
    %26 = arith.mulf %25, %24 : vector<1x8x256xf32>
    %cst_13 = arith.constant 1.41421354 : f32
    %27 = vector.broadcast %cst_13 : f32 to vector<1x8x256xf32>
    %28 = arith.divf %24, %27 : vector<1x8x256xf32>
    %29 = math.erf %28 : vector<1x8x256xf32>
    %cst_14 = arith.constant 1.000000e+00 : f32
    %30 = vector.broadcast %cst_14 : f32 to vector<1x8x256xf32>
    %31 = arith.addf %30, %29 : vector<1x8x256xf32>
    %32 = arith.mulf %26, %31 : vector<1x8x256xf32>
    %c0_15 = arith.constant 0 : index
    %c0_16 = arith.constant 0 : index
    %c0_17 = arith.constant 0 : index
    %33 = vector.load %arg5[%c0_15, %c0_16, %c0_17] : memref<1x8x256xf32, #tpu.memory_space<vmem>>, vector<1x8x256xf32>
    tpu.vector_store %arg5[%c0_15, %c0_16, %c0_17], %32 {strides = array<i32>} : memref<1x8x256xf32, #tpu.memory_space<vmem>>, vector<1x8x256xf32>,
    return
  }
  func.func @transform_0(%arg0: i32, %arg1: i32) -> (i32, i32, i32) {
    %c0_i32 = arith.constant 0 : i32
    %c0_i32_0 = arith.constant 0 : i32
    return %arg0, %c0_i32, %arg1 : i32, i32, i32
  }
  func.func @transform_1(%arg0: i32, %arg1: i32) -> (i32, i32, i32) {
    %c0_i32 = arith.constant 0 : i32
    %c0_i32_0 = arith.constant 0 : i32
    %c0_i32_1 = arith.constant 0 : i32
    %c0_i32_2 = arith.constant 0 : i32
    return %c0_i32, %c0_i32_0, %c0_i32_1 : i32, i32, i32
  }
  func.func @transform_2(%arg0: i32, %arg1: i32) -> (i32, i32, i32) {
    %c0_i32 = arith.constant 0 : i32
    %c0_i32_0 = arith.constant 0 : i32
    %c0_i32_1 = arith.constant 0 : i32
    %c0_i32_2 = arith.constant 0 : i32
    return %c0_i32, %c0_i32_0, %c0_i32_1 : i32, i32, i32
  }
  func.func @transform_3(%arg0: i32, %arg1: i32) -> (i32, i32, i32) {
    %c0_i32 = arith.constant 0 : i32
    %c0_i32_0 = arith.constant 0 : i32
    return %arg0, %c0_i32, %arg1 : i32, i32, i32
  }
}

module attributes {stable_mosaic.version = 11 : i64} {
  func.func @_conv3x3_kernel(%arg0: i32, %arg1: i32, %arg2: memref<1x10x10x32xf32, #tpu.memory_space<vmem>>, %arg3: memref<9x32x32xf32, #tpu.memory_space<vmem>>, %arg4: memref<1x32xf32, #tpu.memory_space<vmem>>, %arg5: memref<1x8x8x32xf32, #tpu.memory_space<vmem>>, %arg6: memref<64x32xf32, #tpu.memory_space<vmem>>) attributes {dimension_semantics = [#tpu.dimension_semantics<parallel>, #tpu.dimension_semantics<parallel>], iteration_bounds = array<i64: 2, 1>, scalar_prefetch = 0 : i64, scratch_operands = 1 : i64, tpu.core_type = #tpu.core_type<tc>, window_params = [{transform_indices = @transform_0, window_bounds = array<i64: 1, 10, 10, 32>}, {pipeline_mode = #tpu.pipeline_mode<synchronous>, transform_indices = @transform_1, window_bounds = array<i64: 9, 32, 32>}, {pipeline_mode = #tpu.pipeline_mode<synchronous>, transform_indices = @transform_2, window_bounds = array<i64: 1, 32>}, {transform_indices = @transform_3, window_bounds = array<i64: 1, 8, 8, 32>}]} {
    %cst = arith.constant 0.000000e+00 : f32
    %0 = vector.broadcast %cst : f32 to vector<64x32xf32>
    %c0 = arith.constant 0 : index
    %c0_0 = arith.constant 0 : index
    %1 = vector.load %arg6[%c0, %c0_0] : memref<64x32xf32, #tpu.memory_space<vmem>>, vector<64x32xf32>
    tpu.vector_store %arg6[%c0, %c0_0], %0 {strides = array<i32>} : memref<64x32xf32, #tpu.memory_space<vmem>>, vector<64x32xf32>,
    %c0_1 = arith.constant 0 : index
    %c0_2 = arith.constant 0 : index
    %c0_3 = arith.constant 0 : index
    %c0_4 = arith.constant 0 : index
    %2 = vector.load %arg2[%c0_1, %c0_2, %c0_3, %c0_4] : memref<1x10x10x32xf32, #tpu.memory_space<vmem>>, vector<1x8x8x32xf32>
    %3 = vector.shape_cast %2 : vector<1x8x8x32xf32> to vector<8x8x32xf32>
    %4 = vector.shape_cast %3 : vector<8x8x32xf32> to vector<64x32xf32>
    %5 = arith.truncf %4 : vector<64x32xf32> to vector<64x32xbf16>
    %c0_5 = arith.constant 0 : index
    %c0_6 = arith.constant 0 : index
    %c0_7 = arith.constant 0 : index
    %6 = vector.load %arg3[%c0_5, %c0_6, %c0_7] : memref<9x32x32xf32, #tpu.memory_space<vmem>>, vector<1x32x32xf32>
    %7 = vector.shape_cast %6 : vector<1x32x32xf32> to vector<32x32xf32>
    %8 = arith.truncf %7 : vector<32x32xf32> to vector<32x32xbf16>
    %c0_8 = arith.constant 0 : index
    %c0_9 = arith.constant 0 : index
    %9 = vector.load %arg6[%c0_8, %c0_9] : memref<64x32xf32, #tpu.memory_space<vmem>>, vector<64x32xf32>
    %cst_10 = arith.constant dense<0.000000e+00> : vector<64x32xf32>
    %10 = tpu.matmul %5, %8, %cst_10 {dimension_numbers = #tpu.dot_dimension_numbers<[1], [0], [0], [1], [0, 0, 1, 1], [], []>} : vector<64x32xbf16>, vector<32x32xbf16>, vector<64x32xf32> -> vector<64x32xf32>
    %11 = arith.addf %9, %10 : vector<64x32xf32>
    %c0_11 = arith.constant 0 : index
    %c0_12 = arith.constant 0 : index
    %12 = vector.load %arg6[%c0_11, %c0_12] : memref<64x32xf32, #tpu.memory_space<vmem>>, vector<64x32xf32>
    tpu.vector_store %arg6[%c0_11, %c0_12], %11 {strides = array<i32>} : memref<64x32xf32, #tpu.memory_space<vmem>>, vector<64x32xf32>,
    %c0_13 = arith.constant 0 : index
    %c0_14 = arith.constant 0 : index
    %c1 = arith.constant 1 : index
    %c0_15 = arith.constant 0 : index
    %13 = vector.load %arg2[%c0_13, %c0_14, %c1, %c0_15] : memref<1x10x10x32xf32, #tpu.memory_space<vmem>>, vector<1x8x8x32xf32>
    %14 = vector.shape_cast %13 : vector<1x8x8x32xf32> to vector<8x8x32xf32>
    %15 = vector.shape_cast %14 : vector<8x8x32xf32> to vector<64x32xf32>
    %16 = arith.truncf %15 : vector<64x32xf32> to vector<64x32xbf16>
    %c1_16 = arith.constant 1 : index
    %c0_17 = arith.constant 0 : index
    %c0_18 = arith.constant 0 : index
    %17 = vector.load %arg3[%c1_16, %c0_17, %c0_18] : memref<9x32x32xf32, #tpu.memory_space<vmem>>, vector<1x32x32xf32>
    %18 = vector.shape_cast %17 : vector<1x32x32xf32> to vector<32x32xf32>
    %19 = arith.truncf %18 : vector<32x32xf32> to vector<32x32xbf16>
    %c0_19 = arith.constant 0 : index
    %c0_20 = arith.constant 0 : index
    %20 = vector.load %arg6[%c0_19, %c0_20] : memref<64x32xf32, #tpu.memory_space<vmem>>, vector<64x32xf32>
    %cst_21 = arith.constant dense<0.000000e+00> : vector<64x32xf32>
    %21 = tpu.matmul %16, %19, %cst_21 {dimension_numbers = #tpu.dot_dimension_numbers<[1], [0], [0], [1], [0, 0, 1, 1], [], []>} : vector<64x32xbf16>, vector<32x32xbf16>, vector<64x32xf32> -> vector<64x32xf32>
    %22 = arith.addf %20, %21 : vector<64x32xf32>
    %c0_22 = arith.constant 0 : index
    %c0_23 = arith.constant 0 : index
    %23 = vector.load %arg6[%c0_22, %c0_23] : memref<64x32xf32, #tpu.memory_space<vmem>>, vector<64x32xf32>
    tpu.vector_store %arg6[%c0_22, %c0_23], %22 {strides = array<i32>} : memref<64x32xf32, #tpu.memory_space<vmem>>, vector<64x32xf32>,
    %c0_24 = arith.constant 0 : index
    %c0_25 = arith.constant 0 : index
    %c2 = arith.constant 2 : index
    %c0_26 = arith.constant 0 : index
    %24 = vector.load %arg2[%c0_24, %c0_25, %c2, %c0_26] : memref<1x10x10x32xf32, #tpu.memory_space<vmem>>, vector<1x8x8x32xf32>
    %25 = vector.shape_cast %24 : vector<1x8x8x32xf32> to vector<8x8x32xf32>
    %26 = vector.shape_cast %25 : vector<8x8x32xf32> to vector<64x32xf32>
    %27 = arith.truncf %26 : vector<64x32xf32> to vector<64x32xbf16>
    %c2_27 = arith.constant 2 : index
    %c0_28 = arith.constant 0 : index
    %c0_29 = arith.constant 0 : index
    %28 = vector.load %arg3[%c2_27, %c0_28, %c0_29] : memref<9x32x32xf32, #tpu.memory_space<vmem>>, vector<1x32x32xf32>
    %29 = vector.shape_cast %28 : vector<1x32x32xf32> to vector<32x32xf32>
    %30 = arith.truncf %29 : vector<32x32xf32> to vector<32x32xbf16>
    %c0_30 = arith.constant 0 : index
    %c0_31 = arith.constant 0 : index
    %31 = vector.load %arg6[%c0_30, %c0_31] : memref<64x32xf32, #tpu.memory_space<vmem>>, vector<64x32xf32>
    %cst_32 = arith.constant dense<0.000000e+00> : vector<64x32xf32>
    %32 = tpu.matmul %27, %30, %cst_32 {dimension_numbers = #tpu.dot_dimension_numbers<[1], [0], [0], [1], [0, 0, 1, 1], [], []>} : vector<64x32xbf16>, vector<32x32xbf16>, vector<64x32xf32> -> vector<64x32xf32>
    %33 = arith.addf %31, %32 : vector<64x32xf32>
    %c0_33 = arith.constant 0 : index
    %c0_34 = arith.constant 0 : index
    %34 = vector.load %arg6[%c0_33, %c0_34] : memref<64x32xf32, #tpu.memory_space<vmem>>, vector<64x32xf32>
    tpu.vector_store %arg6[%c0_33, %c0_34], %33 {strides = array<i32>} : memref<64x32xf32, #tpu.memory_space<vmem>>, vector<64x32xf32>,
    %c0_35 = arith.constant 0 : index
    %c1_36 = arith.constant 1 : index
    %c0_37 = arith.constant 0 : index
    %c0_38 = arith.constant 0 : index
    %35 = vector.load %arg2[%c0_35, %c1_36, %c0_37, %c0_38] : memref<1x10x10x32xf32, #tpu.memory_space<vmem>>, vector<1x8x8x32xf32>
    %36 = vector.shape_cast %35 : vector<1x8x8x32xf32> to vector<8x8x32xf32>
    %37 = vector.shape_cast %36 : vector<8x8x32xf32> to vector<64x32xf32>
    %38 = arith.truncf %37 : vector<64x32xf32> to vector<64x32xbf16>
    %c3 = arith.constant 3 : index
    %c0_39 = arith.constant 0 : index
    %c0_40 = arith.constant 0 : index
    %39 = vector.load %arg3[%c3, %c0_39, %c0_40] : memref<9x32x32xf32, #tpu.memory_space<vmem>>, vector<1x32x32xf32>
    %40 = vector.shape_cast %39 : vector<1x32x32xf32> to vector<32x32xf32>
    %41 = arith.truncf %40 : vector<32x32xf32> to vector<32x32xbf16>
    %c0_41 = arith.constant 0 : index
    %c0_42 = arith.constant 0 : index
    %42 = vector.load %arg6[%c0_41, %c0_42] : memref<64x32xf32, #tpu.memory_space<vmem>>, vector<64x32xf32>
    %cst_43 = arith.constant dense<0.000000e+00> : vector<64x32xf32>
    %43 = tpu.matmul %38, %41, %cst_43 {dimension_numbers = #tpu.dot_dimension_numbers<[1], [0], [0], [1], [0, 0, 1, 1], [], []>} : vector<64x32xbf16>, vector<32x32xbf16>, vector<64x32xf32> -> vector<64x32xf32>
    %44 = arith.addf %42, %43 : vector<64x32xf32>
    %c0_44 = arith.constant 0 : index
    %c0_45 = arith.constant 0 : index
    %45 = vector.load %arg6[%c0_44, %c0_45] : memref<64x32xf32, #tpu.memory_space<vmem>>, vector<64x32xf32>
    tpu.vector_store %arg6[%c0_44, %c0_45], %44 {strides = array<i32>} : memref<64x32xf32, #tpu.memory_space<vmem>>, vector<64x32xf32>,
    %c0_46 = arith.constant 0 : index
    %c1_47 = arith.constant 1 : index
    %c1_48 = arith.constant 1 : index
    %c0_49 = arith.constant 0 : index
    %46 = vector.load %arg2[%c0_46, %c1_47, %c1_48, %c0_49] : memref<1x10x10x32xf32, #tpu.memory_space<vmem>>, vector<1x8x8x32xf32>
    %47 = vector.shape_cast %46 : vector<1x8x8x32xf32> to vector<8x8x32xf32>
    %48 = vector.shape_cast %47 : vector<8x8x32xf32> to vector<64x32xf32>
    %49 = arith.truncf %48 : vector<64x32xf32> to vector<64x32xbf16>
    %c4 = arith.constant 4 : index
    %c0_50 = arith.constant 0 : index
    %c0_51 = arith.constant 0 : index
    %50 = vector.load %arg3[%c4, %c0_50, %c0_51] : memref<9x32x32xf32, #tpu.memory_space<vmem>>, vector<1x32x32xf32>
    %51 = vector.shape_cast %50 : vector<1x32x32xf32> to vector<32x32xf32>
    %52 = arith.truncf %51 : vector<32x32xf32> to vector<32x32xbf16>
    %c0_52 = arith.constant 0 : index
    %c0_53 = arith.constant 0 : index
    %53 = vector.load %arg6[%c0_52, %c0_53] : memref<64x32xf32, #tpu.memory_space<vmem>>, vector<64x32xf32>
    %cst_54 = arith.constant dense<0.000000e+00> : vector<64x32xf32>
    %54 = tpu.matmul %49, %52, %cst_54 {dimension_numbers = #tpu.dot_dimension_numbers<[1], [0], [0], [1], [0, 0, 1, 1], [], []>} : vector<64x32xbf16>, vector<32x32xbf16>, vector<64x32xf32> -> vector<64x32xf32>
    %55 = arith.addf %53, %54 : vector<64x32xf32>
    %c0_55 = arith.constant 0 : index
    %c0_56 = arith.constant 0 : index
    %56 = vector.load %arg6[%c0_55, %c0_56] : memref<64x32xf32, #tpu.memory_space<vmem>>, vector<64x32xf32>
    tpu.vector_store %arg6[%c0_55, %c0_56], %55 {strides = array<i32>} : memref<64x32xf32, #tpu.memory_space<vmem>>, vector<64x32xf32>,
    %c0_57 = arith.constant 0 : index
    %c1_58 = arith.constant 1 : index
    %c2_59 = arith.constant 2 : index
    %c0_60 = arith.constant 0 : index
    %57 = vector.load %arg2[%c0_57, %c1_58, %c2_59, %c0_60] : memref<1x10x10x32xf32, #tpu.memory_space<vmem>>, vector<1x8x8x32xf32>
    %58 = vector.shape_cast %57 : vector<1x8x8x32xf32> to vector<8x8x32xf32>
    %59 = vector.shape_cast %58 : vector<8x8x32xf32> to vector<64x32xf32>
    %60 = arith.truncf %59 : vector<64x32xf32> to vector<64x32xbf16>
    %c5 = arith.constant 5 : index
    %c0_61 = arith.constant 0 : index
    %c0_62 = arith.constant 0 : index
    %61 = vector.load %arg3[%c5, %c0_61, %c0_62] : memref<9x32x32xf32, #tpu.memory_space<vmem>>, vector<1x32x32xf32>
    %62 = vector.shape_cast %61 : vector<1x32x32xf32> to vector<32x32xf32>
    %63 = arith.truncf %62 : vector<32x32xf32> to vector<32x32xbf16>
    %c0_63 = arith.constant 0 : index
    %c0_64 = arith.constant 0 : index
    %64 = vector.load %arg6[%c0_63, %c0_64] : memref<64x32xf32, #tpu.memory_space<vmem>>, vector<64x32xf32>
    %cst_65 = arith.constant dense<0.000000e+00> : vector<64x32xf32>
    %65 = tpu.matmul %60, %63, %cst_65 {dimension_numbers = #tpu.dot_dimension_numbers<[1], [0], [0], [1], [0, 0, 1, 1], [], []>} : vector<64x32xbf16>, vector<32x32xbf16>, vector<64x32xf32> -> vector<64x32xf32>
    %66 = arith.addf %64, %65 : vector<64x32xf32>
    %c0_66 = arith.constant 0 : index
    %c0_67 = arith.constant 0 : index
    %67 = vector.load %arg6[%c0_66, %c0_67] : memref<64x32xf32, #tpu.memory_space<vmem>>, vector<64x32xf32>
    tpu.vector_store %arg6[%c0_66, %c0_67], %66 {strides = array<i32>} : memref<64x32xf32, #tpu.memory_space<vmem>>, vector<64x32xf32>,
    %c0_68 = arith.constant 0 : index
    %c2_69 = arith.constant 2 : index
    %c0_70 = arith.constant 0 : index
    %c0_71 = arith.constant 0 : index
    %68 = vector.load %arg2[%c0_68, %c2_69, %c0_70, %c0_71] : memref<1x10x10x32xf32, #tpu.memory_space<vmem>>, vector<1x8x8x32xf32>
    %69 = vector.shape_cast %68 : vector<1x8x8x32xf32> to vector<8x8x32xf32>
    %70 = vector.shape_cast %69 : vector<8x8x32xf32> to vector<64x32xf32>
    %71 = arith.truncf %70 : vector<64x32xf32> to vector<64x32xbf16>
    %c6 = arith.constant 6 : index
    %c0_72 = arith.constant 0 : index
    %c0_73 = arith.constant 0 : index
    %72 = vector.load %arg3[%c6, %c0_72, %c0_73] : memref<9x32x32xf32, #tpu.memory_space<vmem>>, vector<1x32x32xf32>
    %73 = vector.shape_cast %72 : vector<1x32x32xf32> to vector<32x32xf32>
    %74 = arith.truncf %73 : vector<32x32xf32> to vector<32x32xbf16>
    %c0_74 = arith.constant 0 : index
    %c0_75 = arith.constant 0 : index
    %75 = vector.load %arg6[%c0_74, %c0_75] : memref<64x32xf32, #tpu.memory_space<vmem>>, vector<64x32xf32>
    %cst_76 = arith.constant dense<0.000000e+00> : vector<64x32xf32>
    %76 = tpu.matmul %71, %74, %cst_76 {dimension_numbers = #tpu.dot_dimension_numbers<[1], [0], [0], [1], [0, 0, 1, 1], [], []>} : vector<64x32xbf16>, vector<32x32xbf16>, vector<64x32xf32> -> vector<64x32xf32>
    %77 = arith.addf %75, %76 : vector<64x32xf32>
    %c0_77 = arith.constant 0 : index
    %c0_78 = arith.constant 0 : index
    %78 = vector.load %arg6[%c0_77, %c0_78] : memref<64x32xf32, #tpu.memory_space<vmem>>, vector<64x32xf32>
    tpu.vector_store %arg6[%c0_77, %c0_78], %77 {strides = array<i32>} : memref<64x32xf32, #tpu.memory_space<vmem>>, vector<64x32xf32>,
    %c0_79 = arith.constant 0 : index
    %c2_80 = arith.constant 2 : index
    %c1_81 = arith.constant 1 : index
    %c0_82 = arith.constant 0 : index
    %79 = vector.load %arg2[%c0_79, %c2_80, %c1_81, %c0_82] : memref<1x10x10x32xf32, #tpu.memory_space<vmem>>, vector<1x8x8x32xf32>
    %80 = vector.shape_cast %79 : vector<1x8x8x32xf32> to vector<8x8x32xf32>
    %81 = vector.shape_cast %80 : vector<8x8x32xf32> to vector<64x32xf32>
    %82 = arith.truncf %81 : vector<64x32xf32> to vector<64x32xbf16>
    %c7 = arith.constant 7 : index
    %c0_83 = arith.constant 0 : index
    %c0_84 = arith.constant 0 : index
    %83 = vector.load %arg3[%c7, %c0_83, %c0_84] : memref<9x32x32xf32, #tpu.memory_space<vmem>>, vector<1x32x32xf32>
    %84 = vector.shape_cast %83 : vector<1x32x32xf32> to vector<32x32xf32>
    %85 = arith.truncf %84 : vector<32x32xf32> to vector<32x32xbf16>
    %c0_85 = arith.constant 0 : index
    %c0_86 = arith.constant 0 : index
    %86 = vector.load %arg6[%c0_85, %c0_86] : memref<64x32xf32, #tpu.memory_space<vmem>>, vector<64x32xf32>
    %cst_87 = arith.constant dense<0.000000e+00> : vector<64x32xf32>
    %87 = tpu.matmul %82, %85, %cst_87 {dimension_numbers = #tpu.dot_dimension_numbers<[1], [0], [0], [1], [0, 0, 1, 1], [], []>} : vector<64x32xbf16>, vector<32x32xbf16>, vector<64x32xf32> -> vector<64x32xf32>
    %88 = arith.addf %86, %87 : vector<64x32xf32>
    %c0_88 = arith.constant 0 : index
    %c0_89 = arith.constant 0 : index
    %89 = vector.load %arg6[%c0_88, %c0_89] : memref<64x32xf32, #tpu.memory_space<vmem>>, vector<64x32xf32>
    tpu.vector_store %arg6[%c0_88, %c0_89], %88 {strides = array<i32>} : memref<64x32xf32, #tpu.memory_space<vmem>>, vector<64x32xf32>,
    %c0_90 = arith.constant 0 : index
    %c2_91 = arith.constant 2 : index
    %c2_92 = arith.constant 2 : index
    %c0_93 = arith.constant 0 : index
    %90 = vector.load %arg2[%c0_90, %c2_91, %c2_92, %c0_93] : memref<1x10x10x32xf32, #tpu.memory_space<vmem>>, vector<1x8x8x32xf32>
    %91 = vector.shape_cast %90 : vector<1x8x8x32xf32> to vector<8x8x32xf32>
    %92 = vector.shape_cast %91 : vector<8x8x32xf32> to vector<64x32xf32>
    %93 = arith.truncf %92 : vector<64x32xf32> to vector<64x32xbf16>
    %c8 = arith.constant 8 : index
    %c0_94 = arith.constant 0 : index
    %c0_95 = arith.constant 0 : index
    %94 = vector.load %arg3[%c8, %c0_94, %c0_95] : memref<9x32x32xf32, #tpu.memory_space<vmem>>, vector<1x32x32xf32>
    %95 = vector.shape_cast %94 : vector<1x32x32xf32> to vector<32x32xf32>
    %96 = arith.truncf %95 : vector<32x32xf32> to vector<32x32xbf16>
    %c0_96 = arith.constant 0 : index
    %c0_97 = arith.constant 0 : index
    %97 = vector.load %arg6[%c0_96, %c0_97] : memref<64x32xf32, #tpu.memory_space<vmem>>, vector<64x32xf32>
    %cst_98 = arith.constant dense<0.000000e+00> : vector<64x32xf32>
    %98 = tpu.matmul %93, %96, %cst_98 {dimension_numbers = #tpu.dot_dimension_numbers<[1], [0], [0], [1], [0, 0, 1, 1], [], []>} : vector<64x32xbf16>, vector<32x32xbf16>, vector<64x32xf32> -> vector<64x32xf32>
    %99 = arith.addf %97, %98 : vector<64x32xf32>
    %c0_99 = arith.constant 0 : index
    %c0_100 = arith.constant 0 : index
    %100 = vector.load %arg6[%c0_99, %c0_100] : memref<64x32xf32, #tpu.memory_space<vmem>>, vector<64x32xf32>
    tpu.vector_store %arg6[%c0_99, %c0_100], %99 {strides = array<i32>} : memref<64x32xf32, #tpu.memory_space<vmem>>, vector<64x32xf32>,
    %c0_101 = arith.constant 0 : index
    %c0_102 = arith.constant 0 : index
    %101 = vector.load %arg6[%c0_101, %c0_102] : memref<64x32xf32, #tpu.memory_space<vmem>>, vector<64x32xf32>
    %c0_103 = arith.constant 0 : index
    %c0_104 = arith.constant 0 : index
    %102 = vector.load %arg4[%c0_103, %c0_104] : memref<1x32xf32, #tpu.memory_space<vmem>>, vector<1x32xf32>
    %103 = vector.broadcast %102 : vector<1x32xf32> to vector<64x32xf32>
    %104 = arith.addf %101, %103 : vector<64x32xf32>
    %105 = vector.shape_cast %104 : vector<64x32xf32> to vector<8x8x32xf32>
    %c0_105 = arith.constant 0 : index
    %c0_106 = arith.constant 0 : index
    %c0_107 = arith.constant 0 : index
    %c0_108 = arith.constant 0 : index
    %106 = vector.load %arg5[%c0_105, %c0_106, %c0_107, %c0_108] : memref<1x8x8x32xf32, #tpu.memory_space<vmem>>, vector<1x8x8x32xf32>
    %107 = vector.shape_cast %106 : vector<1x8x8x32xf32> to vector<8x8x32xf32>
    %108 = vector.shape_cast %105 : vector<8x8x32xf32> to vector<1x8x8x32xf32>
    tpu.vector_store %arg5[%c0_105, %c0_106, %c0_107, %c0_108], %108 {strides = array<i32>} : memref<1x8x8x32xf32, #tpu.memory_space<vmem>>, vector<1x8x8x32xf32>,
    return
  }
  func.func @transform_0(%arg0: i32, %arg1: i32) -> (i32, i32, i32, i32) {
    %c1_i32 = arith.constant 1 : i32
    %0 = arith.muli %arg0, %c1_i32 : i32
    %1 = arith.addi %0, %arg1 : i32
    %c0_i32 = arith.constant 0 : i32
    %c0_i32_0 = arith.constant 0 : i32
    %c0_i32_1 = arith.constant 0 : i32
    %c0_i32_2 = arith.constant 0 : i32
    return %1, %c0_i32, %c0_i32_0, %c0_i32_1 : i32, i32, i32, i32
  }
  func.func @transform_1(%arg0: i32, %arg1: i32) -> (i32, i32, i32) {
    %c0_i32 = arith.constant 0 : i32
    %c0_i32_0 = arith.constant 0 : i32
    %c0_i32_1 = arith.constant 0 : i32
    %c0_i32_2 = arith.constant 0 : i32
    return %c0_i32, %c0_i32_0, %c0_i32_1 : i32, i32, i32
  }
  func.func @transform_2(%arg0: i32, %arg1: i32) -> (i32, i32) {
    %c0_i32 = arith.constant 0 : i32
    %c0_i32_0 = arith.constant 0 : i32
    %c0_i32_1 = arith.constant 0 : i32
    return %c0_i32, %c0_i32_0 : i32, i32
  }
  func.func @transform_3(%arg0: i32, %arg1: i32) -> (i32, i32, i32, i32) {
    %c0_i32 = arith.constant 0 : i32
    %c0_i32_0 = arith.constant 0 : i32
    %c0_i32_1 = arith.constant 0 : i32
    return %arg0, %c0_i32, %arg1, %c0_i32_0 : i32, i32, i32, i32
  }
}

module attributes {stable_mosaic.version = 11 : i64} {
  func.func @_conv3x3_kernel(%arg0: i32, %arg1: i32, %arg2: memref<1x10x10x32xf32, #tpu.memory_space<vmem>>, %arg3: memref<9x32x32xf32, #tpu.memory_space<vmem>>, %arg4: memref<1x32xf32, #tpu.memory_space<vmem>>, %arg5: memref<1x8x8x32xf32, #tpu.memory_space<vmem>>, %arg6: memref<1x8x8x32xf32, #tpu.memory_space<vmem>>, %arg7: memref<64x32xf32, #tpu.memory_space<vmem>>) attributes {dimension_semantics = [#tpu.dimension_semantics<parallel>, #tpu.dimension_semantics<parallel>], iteration_bounds = array<i64: 2, 1>, scalar_prefetch = 0 : i64, scratch_operands = 1 : i64, tpu.core_type = #tpu.core_type<tc>, window_params = [{transform_indices = @transform_0, window_bounds = array<i64: 1, 10, 10, 32>}, {pipeline_mode = #tpu.pipeline_mode<synchronous>, transform_indices = @transform_1, window_bounds = array<i64: 9, 32, 32>}, {pipeline_mode = #tpu.pipeline_mode<synchronous>, transform_indices = @transform_2, window_bounds = array<i64: 1, 32>}, {transform_indices = @transform_3, window_bounds = array<i64: 1, 8, 8, 32>}, {transform_indices = @transform_4, window_bounds = array<i64: 1, 8, 8, 32>}]} {
    %cst = arith.constant 0.000000e+00 : f32
    %0 = vector.broadcast %cst : f32 to vector<64x32xf32>
    %c0 = arith.constant 0 : index
    %c0_0 = arith.constant 0 : index
    %1 = vector.load %arg7[%c0, %c0_0] : memref<64x32xf32, #tpu.memory_space<vmem>>, vector<64x32xf32>
    tpu.vector_store %arg7[%c0, %c0_0], %0 {strides = array<i32>} : memref<64x32xf32, #tpu.memory_space<vmem>>, vector<64x32xf32>,
    %c0_1 = arith.constant 0 : index
    %c0_2 = arith.constant 0 : index
    %c0_3 = arith.constant 0 : index
    %c0_4 = arith.constant 0 : index
    %2 = vector.load %arg2[%c0_1, %c0_2, %c0_3, %c0_4] : memref<1x10x10x32xf32, #tpu.memory_space<vmem>>, vector<1x8x8x32xf32>
    %3 = vector.shape_cast %2 : vector<1x8x8x32xf32> to vector<8x8x32xf32>
    %4 = vector.shape_cast %3 : vector<8x8x32xf32> to vector<64x32xf32>
    %5 = arith.truncf %4 : vector<64x32xf32> to vector<64x32xbf16>
    %c0_5 = arith.constant 0 : index
    %c0_6 = arith.constant 0 : index
    %c0_7 = arith.constant 0 : index
    %6 = vector.load %arg3[%c0_5, %c0_6, %c0_7] : memref<9x32x32xf32, #tpu.memory_space<vmem>>, vector<1x32x32xf32>
    %7 = vector.shape_cast %6 : vector<1x32x32xf32> to vector<32x32xf32>
    %8 = arith.truncf %7 : vector<32x32xf32> to vector<32x32xbf16>
    %c0_8 = arith.constant 0 : index
    %c0_9 = arith.constant 0 : index
    %9 = vector.load %arg7[%c0_8, %c0_9] : memref<64x32xf32, #tpu.memory_space<vmem>>, vector<64x32xf32>
    %cst_10 = arith.constant dense<0.000000e+00> : vector<64x32xf32>
    %10 = tpu.matmul %5, %8, %cst_10 {dimension_numbers = #tpu.dot_dimension_numbers<[1], [0], [0], [1], [0, 0, 1, 1], [], []>} : vector<64x32xbf16>, vector<32x32xbf16>, vector<64x32xf32> -> vector<64x32xf32>
    %11 = arith.addf %9, %10 : vector<64x32xf32>
    %c0_11 = arith.constant 0 : index
    %c0_12 = arith.constant 0 : index
    %12 = vector.load %arg7[%c0_11, %c0_12] : memref<64x32xf32, #tpu.memory_space<vmem>>, vector<64x32xf32>
    tpu.vector_store %arg7[%c0_11, %c0_12], %11 {strides = array<i32>} : memref<64x32xf32, #tpu.memory_space<vmem>>, vector<64x32xf32>,
    %c0_13 = arith.constant 0 : index
    %c0_14 = arith.constant 0 : index
    %c1 = arith.constant 1 : index
    %c0_15 = arith.constant 0 : index
    %13 = vector.load %arg2[%c0_13, %c0_14, %c1, %c0_15] : memref<1x10x10x32xf32, #tpu.memory_space<vmem>>, vector<1x8x8x32xf32>
    %14 = vector.shape_cast %13 : vector<1x8x8x32xf32> to vector<8x8x32xf32>
    %15 = vector.shape_cast %14 : vector<8x8x32xf32> to vector<64x32xf32>
    %16 = arith.truncf %15 : vector<64x32xf32> to vector<64x32xbf16>
    %c1_16 = arith.constant 1 : index
    %c0_17 = arith.constant 0 : index
    %c0_18 = arith.constant 0 : index
    %17 = vector.load %arg3[%c1_16, %c0_17, %c0_18] : memref<9x32x32xf32, #tpu.memory_space<vmem>>, vector<1x32x32xf32>
    %18 = vector.shape_cast %17 : vector<1x32x32xf32> to vector<32x32xf32>
    %19 = arith.truncf %18 : vector<32x32xf32> to vector<32x32xbf16>
    %c0_19 = arith.constant 0 : index
    %c0_20 = arith.constant 0 : index
    %20 = vector.load %arg7[%c0_19, %c0_20] : memref<64x32xf32, #tpu.memory_space<vmem>>, vector<64x32xf32>
    %cst_21 = arith.constant dense<0.000000e+00> : vector<64x32xf32>
    %21 = tpu.matmul %16, %19, %cst_21 {dimension_numbers = #tpu.dot_dimension_numbers<[1], [0], [0], [1], [0, 0, 1, 1], [], []>} : vector<64x32xbf16>, vector<32x32xbf16>, vector<64x32xf32> -> vector<64x32xf32>
    %22 = arith.addf %20, %21 : vector<64x32xf32>
    %c0_22 = arith.constant 0 : index
    %c0_23 = arith.constant 0 : index
    %23 = vector.load %arg7[%c0_22, %c0_23] : memref<64x32xf32, #tpu.memory_space<vmem>>, vector<64x32xf32>
    tpu.vector_store %arg7[%c0_22, %c0_23], %22 {strides = array<i32>} : memref<64x32xf32, #tpu.memory_space<vmem>>, vector<64x32xf32>,
    %c0_24 = arith.constant 0 : index
    %c0_25 = arith.constant 0 : index
    %c2 = arith.constant 2 : index
    %c0_26 = arith.constant 0 : index
    %24 = vector.load %arg2[%c0_24, %c0_25, %c2, %c0_26] : memref<1x10x10x32xf32, #tpu.memory_space<vmem>>, vector<1x8x8x32xf32>
    %25 = vector.shape_cast %24 : vector<1x8x8x32xf32> to vector<8x8x32xf32>
    %26 = vector.shape_cast %25 : vector<8x8x32xf32> to vector<64x32xf32>
    %27 = arith.truncf %26 : vector<64x32xf32> to vector<64x32xbf16>
    %c2_27 = arith.constant 2 : index
    %c0_28 = arith.constant 0 : index
    %c0_29 = arith.constant 0 : index
    %28 = vector.load %arg3[%c2_27, %c0_28, %c0_29] : memref<9x32x32xf32, #tpu.memory_space<vmem>>, vector<1x32x32xf32>
    %29 = vector.shape_cast %28 : vector<1x32x32xf32> to vector<32x32xf32>
    %30 = arith.truncf %29 : vector<32x32xf32> to vector<32x32xbf16>
    %c0_30 = arith.constant 0 : index
    %c0_31 = arith.constant 0 : index
    %31 = vector.load %arg7[%c0_30, %c0_31] : memref<64x32xf32, #tpu.memory_space<vmem>>, vector<64x32xf32>
    %cst_32 = arith.constant dense<0.000000e+00> : vector<64x32xf32>
    %32 = tpu.matmul %27, %30, %cst_32 {dimension_numbers = #tpu.dot_dimension_numbers<[1], [0], [0], [1], [0, 0, 1, 1], [], []>} : vector<64x32xbf16>, vector<32x32xbf16>, vector<64x32xf32> -> vector<64x32xf32>
    %33 = arith.addf %31, %32 : vector<64x32xf32>
    %c0_33 = arith.constant 0 : index
    %c0_34 = arith.constant 0 : index
    %34 = vector.load %arg7[%c0_33, %c0_34] : memref<64x32xf32, #tpu.memory_space<vmem>>, vector<64x32xf32>
    tpu.vector_store %arg7[%c0_33, %c0_34], %33 {strides = array<i32>} : memref<64x32xf32, #tpu.memory_space<vmem>>, vector<64x32xf32>,
    %c0_35 = arith.constant 0 : index
    %c1_36 = arith.constant 1 : index
    %c0_37 = arith.constant 0 : index
    %c0_38 = arith.constant 0 : index
    %35 = vector.load %arg2[%c0_35, %c1_36, %c0_37, %c0_38] : memref<1x10x10x32xf32, #tpu.memory_space<vmem>>, vector<1x8x8x32xf32>
    %36 = vector.shape_cast %35 : vector<1x8x8x32xf32> to vector<8x8x32xf32>
    %37 = vector.shape_cast %36 : vector<8x8x32xf32> to vector<64x32xf32>
    %38 = arith.truncf %37 : vector<64x32xf32> to vector<64x32xbf16>
    %c3 = arith.constant 3 : index
    %c0_39 = arith.constant 0 : index
    %c0_40 = arith.constant 0 : index
    %39 = vector.load %arg3[%c3, %c0_39, %c0_40] : memref<9x32x32xf32, #tpu.memory_space<vmem>>, vector<1x32x32xf32>
    %40 = vector.shape_cast %39 : vector<1x32x32xf32> to vector<32x32xf32>
    %41 = arith.truncf %40 : vector<32x32xf32> to vector<32x32xbf16>
    %c0_41 = arith.constant 0 : index
    %c0_42 = arith.constant 0 : index
    %42 = vector.load %arg7[%c0_41, %c0_42] : memref<64x32xf32, #tpu.memory_space<vmem>>, vector<64x32xf32>
    %cst_43 = arith.constant dense<0.000000e+00> : vector<64x32xf32>
    %43 = tpu.matmul %38, %41, %cst_43 {dimension_numbers = #tpu.dot_dimension_numbers<[1], [0], [0], [1], [0, 0, 1, 1], [], []>} : vector<64x32xbf16>, vector<32x32xbf16>, vector<64x32xf32> -> vector<64x32xf32>
    %44 = arith.addf %42, %43 : vector<64x32xf32>
    %c0_44 = arith.constant 0 : index
    %c0_45 = arith.constant 0 : index
    %45 = vector.load %arg7[%c0_44, %c0_45] : memref<64x32xf32, #tpu.memory_space<vmem>>, vector<64x32xf32>
    tpu.vector_store %arg7[%c0_44, %c0_45], %44 {strides = array<i32>} : memref<64x32xf32, #tpu.memory_space<vmem>>, vector<64x32xf32>,
    %c0_46 = arith.constant 0 : index
    %c1_47 = arith.constant 1 : index
    %c1_48 = arith.constant 1 : index
    %c0_49 = arith.constant 0 : index
    %46 = vector.load %arg2[%c0_46, %c1_47, %c1_48, %c0_49] : memref<1x10x10x32xf32, #tpu.memory_space<vmem>>, vector<1x8x8x32xf32>
    %47 = vector.shape_cast %46 : vector<1x8x8x32xf32> to vector<8x8x32xf32>
    %48 = vector.shape_cast %47 : vector<8x8x32xf32> to vector<64x32xf32>
    %49 = arith.truncf %48 : vector<64x32xf32> to vector<64x32xbf16>
    %c4 = arith.constant 4 : index
    %c0_50 = arith.constant 0 : index
    %c0_51 = arith.constant 0 : index
    %50 = vector.load %arg3[%c4, %c0_50, %c0_51] : memref<9x32x32xf32, #tpu.memory_space<vmem>>, vector<1x32x32xf32>
    %51 = vector.shape_cast %50 : vector<1x32x32xf32> to vector<32x32xf32>
    %52 = arith.truncf %51 : vector<32x32xf32> to vector<32x32xbf16>
    %c0_52 = arith.constant 0 : index
    %c0_53 = arith.constant 0 : index
    %53 = vector.load %arg7[%c0_52, %c0_53] : memref<64x32xf32, #tpu.memory_space<vmem>>, vector<64x32xf32>
    %cst_54 = arith.constant dense<0.000000e+00> : vector<64x32xf32>
    %54 = tpu.matmul %49, %52, %cst_54 {dimension_numbers = #tpu.dot_dimension_numbers<[1], [0], [0], [1], [0, 0, 1, 1], [], []>} : vector<64x32xbf16>, vector<32x32xbf16>, vector<64x32xf32> -> vector<64x32xf32>
    %55 = arith.addf %53, %54 : vector<64x32xf32>
    %c0_55 = arith.constant 0 : index
    %c0_56 = arith.constant 0 : index
    %56 = vector.load %arg7[%c0_55, %c0_56] : memref<64x32xf32, #tpu.memory_space<vmem>>, vector<64x32xf32>
    tpu.vector_store %arg7[%c0_55, %c0_56], %55 {strides = array<i32>} : memref<64x32xf32, #tpu.memory_space<vmem>>, vector<64x32xf32>,
    %c0_57 = arith.constant 0 : index
    %c1_58 = arith.constant 1 : index
    %c2_59 = arith.constant 2 : index
    %c0_60 = arith.constant 0 : index
    %57 = vector.load %arg2[%c0_57, %c1_58, %c2_59, %c0_60] : memref<1x10x10x32xf32, #tpu.memory_space<vmem>>, vector<1x8x8x32xf32>
    %58 = vector.shape_cast %57 : vector<1x8x8x32xf32> to vector<8x8x32xf32>
    %59 = vector.shape_cast %58 : vector<8x8x32xf32> to vector<64x32xf32>
    %60 = arith.truncf %59 : vector<64x32xf32> to vector<64x32xbf16>
    %c5 = arith.constant 5 : index
    %c0_61 = arith.constant 0 : index
    %c0_62 = arith.constant 0 : index
    %61 = vector.load %arg3[%c5, %c0_61, %c0_62] : memref<9x32x32xf32, #tpu.memory_space<vmem>>, vector<1x32x32xf32>
    %62 = vector.shape_cast %61 : vector<1x32x32xf32> to vector<32x32xf32>
    %63 = arith.truncf %62 : vector<32x32xf32> to vector<32x32xbf16>
    %c0_63 = arith.constant 0 : index
    %c0_64 = arith.constant 0 : index
    %64 = vector.load %arg7[%c0_63, %c0_64] : memref<64x32xf32, #tpu.memory_space<vmem>>, vector<64x32xf32>
    %cst_65 = arith.constant dense<0.000000e+00> : vector<64x32xf32>
    %65 = tpu.matmul %60, %63, %cst_65 {dimension_numbers = #tpu.dot_dimension_numbers<[1], [0], [0], [1], [0, 0, 1, 1], [], []>} : vector<64x32xbf16>, vector<32x32xbf16>, vector<64x32xf32> -> vector<64x32xf32>
    %66 = arith.addf %64, %65 : vector<64x32xf32>
    %c0_66 = arith.constant 0 : index
    %c0_67 = arith.constant 0 : index
    %67 = vector.load %arg7[%c0_66, %c0_67] : memref<64x32xf32, #tpu.memory_space<vmem>>, vector<64x32xf32>
    tpu.vector_store %arg7[%c0_66, %c0_67], %66 {strides = array<i32>} : memref<64x32xf32, #tpu.memory_space<vmem>>, vector<64x32xf32>,
    %c0_68 = arith.constant 0 : index
    %c2_69 = arith.constant 2 : index
    %c0_70 = arith.constant 0 : index
    %c0_71 = arith.constant 0 : index
    %68 = vector.load %arg2[%c0_68, %c2_69, %c0_70, %c0_71] : memref<1x10x10x32xf32, #tpu.memory_space<vmem>>, vector<1x8x8x32xf32>
    %69 = vector.shape_cast %68 : vector<1x8x8x32xf32> to vector<8x8x32xf32>
    %70 = vector.shape_cast %69 : vector<8x8x32xf32> to vector<64x32xf32>
    %71 = arith.truncf %70 : vector<64x32xf32> to vector<64x32xbf16>
    %c6 = arith.constant 6 : index
    %c0_72 = arith.constant 0 : index
    %c0_73 = arith.constant 0 : index
    %72 = vector.load %arg3[%c6, %c0_72, %c0_73] : memref<9x32x32xf32, #tpu.memory_space<vmem>>, vector<1x32x32xf32>
    %73 = vector.shape_cast %72 : vector<1x32x32xf32> to vector<32x32xf32>
    %74 = arith.truncf %73 : vector<32x32xf32> to vector<32x32xbf16>
    %c0_74 = arith.constant 0 : index
    %c0_75 = arith.constant 0 : index
    %75 = vector.load %arg7[%c0_74, %c0_75] : memref<64x32xf32, #tpu.memory_space<vmem>>, vector<64x32xf32>
    %cst_76 = arith.constant dense<0.000000e+00> : vector<64x32xf32>
    %76 = tpu.matmul %71, %74, %cst_76 {dimension_numbers = #tpu.dot_dimension_numbers<[1], [0], [0], [1], [0, 0, 1, 1], [], []>} : vector<64x32xbf16>, vector<32x32xbf16>, vector<64x32xf32> -> vector<64x32xf32>
    %77 = arith.addf %75, %76 : vector<64x32xf32>
    %c0_77 = arith.constant 0 : index
    %c0_78 = arith.constant 0 : index
    %78 = vector.load %arg7[%c0_77, %c0_78] : memref<64x32xf32, #tpu.memory_space<vmem>>, vector<64x32xf32>
    tpu.vector_store %arg7[%c0_77, %c0_78], %77 {strides = array<i32>} : memref<64x32xf32, #tpu.memory_space<vmem>>, vector<64x32xf32>,
    %c0_79 = arith.constant 0 : index
    %c2_80 = arith.constant 2 : index
    %c1_81 = arith.constant 1 : index
    %c0_82 = arith.constant 0 : index
    %79 = vector.load %arg2[%c0_79, %c2_80, %c1_81, %c0_82] : memref<1x10x10x32xf32, #tpu.memory_space<vmem>>, vector<1x8x8x32xf32>
    %80 = vector.shape_cast %79 : vector<1x8x8x32xf32> to vector<8x8x32xf32>
    %81 = vector.shape_cast %80 : vector<8x8x32xf32> to vector<64x32xf32>
    %82 = arith.truncf %81 : vector<64x32xf32> to vector<64x32xbf16>
    %c7 = arith.constant 7 : index
    %c0_83 = arith.constant 0 : index
    %c0_84 = arith.constant 0 : index
    %83 = vector.load %arg3[%c7, %c0_83, %c0_84] : memref<9x32x32xf32, #tpu.memory_space<vmem>>, vector<1x32x32xf32>
    %84 = vector.shape_cast %83 : vector<1x32x32xf32> to vector<32x32xf32>
    %85 = arith.truncf %84 : vector<32x32xf32> to vector<32x32xbf16>
    %c0_85 = arith.constant 0 : index
    %c0_86 = arith.constant 0 : index
    %86 = vector.load %arg7[%c0_85, %c0_86] : memref<64x32xf32, #tpu.memory_space<vmem>>, vector<64x32xf32>
    %cst_87 = arith.constant dense<0.000000e+00> : vector<64x32xf32>
    %87 = tpu.matmul %82, %85, %cst_87 {dimension_numbers = #tpu.dot_dimension_numbers<[1], [0], [0], [1], [0, 0, 1, 1], [], []>} : vector<64x32xbf16>, vector<32x32xbf16>, vector<64x32xf32> -> vector<64x32xf32>
    %88 = arith.addf %86, %87 : vector<64x32xf32>
    %c0_88 = arith.constant 0 : index
    %c0_89 = arith.constant 0 : index
    %89 = vector.load %arg7[%c0_88, %c0_89] : memref<64x32xf32, #tpu.memory_space<vmem>>, vector<64x32xf32>
    tpu.vector_store %arg7[%c0_88, %c0_89], %88 {strides = array<i32>} : memref<64x32xf32, #tpu.memory_space<vmem>>, vector<64x32xf32>,
    %c0_90 = arith.constant 0 : index
    %c2_91 = arith.constant 2 : index
    %c2_92 = arith.constant 2 : index
    %c0_93 = arith.constant 0 : index
    %90 = vector.load %arg2[%c0_90, %c2_91, %c2_92, %c0_93] : memref<1x10x10x32xf32, #tpu.memory_space<vmem>>, vector<1x8x8x32xf32>
    %91 = vector.shape_cast %90 : vector<1x8x8x32xf32> to vector<8x8x32xf32>
    %92 = vector.shape_cast %91 : vector<8x8x32xf32> to vector<64x32xf32>
    %93 = arith.truncf %92 : vector<64x32xf32> to vector<64x32xbf16>
    %c8 = arith.constant 8 : index
    %c0_94 = arith.constant 0 : index
    %c0_95 = arith.constant 0 : index
    %94 = vector.load %arg3[%c8, %c0_94, %c0_95] : memref<9x32x32xf32, #tpu.memory_space<vmem>>, vector<1x32x32xf32>
    %95 = vector.shape_cast %94 : vector<1x32x32xf32> to vector<32x32xf32>
    %96 = arith.truncf %95 : vector<32x32xf32> to vector<32x32xbf16>
    %c0_96 = arith.constant 0 : index
    %c0_97 = arith.constant 0 : index
    %97 = vector.load %arg7[%c0_96, %c0_97] : memref<64x32xf32, #tpu.memory_space<vmem>>, vector<64x32xf32>
    %cst_98 = arith.constant dense<0.000000e+00> : vector<64x32xf32>
    %98 = tpu.matmul %93, %96, %cst_98 {dimension_numbers = #tpu.dot_dimension_numbers<[1], [0], [0], [1], [0, 0, 1, 1], [], []>} : vector<64x32xbf16>, vector<32x32xbf16>, vector<64x32xf32> -> vector<64x32xf32>
    %99 = arith.addf %97, %98 : vector<64x32xf32>
    %c0_99 = arith.constant 0 : index
    %c0_100 = arith.constant 0 : index
    %100 = vector.load %arg7[%c0_99, %c0_100] : memref<64x32xf32, #tpu.memory_space<vmem>>, vector<64x32xf32>
    tpu.vector_store %arg7[%c0_99, %c0_100], %99 {strides = array<i32>} : memref<64x32xf32, #tpu.memory_space<vmem>>, vector<64x32xf32>,
    %c0_101 = arith.constant 0 : index
    %c0_102 = arith.constant 0 : index
    %101 = vector.load %arg7[%c0_101, %c0_102] : memref<64x32xf32, #tpu.memory_space<vmem>>, vector<64x32xf32>
    %c0_103 = arith.constant 0 : index
    %c0_104 = arith.constant 0 : index
    %102 = vector.load %arg4[%c0_103, %c0_104] : memref<1x32xf32, #tpu.memory_space<vmem>>, vector<1x32xf32>
    %103 = vector.broadcast %102 : vector<1x32xf32> to vector<64x32xf32>
    %104 = arith.addf %101, %103 : vector<64x32xf32>
    %c0_105 = arith.constant 0 : index
    %c0_106 = arith.constant 0 : index
    %c0_107 = arith.constant 0 : index
    %c0_108 = arith.constant 0 : index
    %105 = vector.load %arg5[%c0_105, %c0_106, %c0_107, %c0_108] : memref<1x8x8x32xf32, #tpu.memory_space<vmem>>, vector<1x8x8x32xf32>
    %106 = vector.shape_cast %105 : vector<1x8x8x32xf32> to vector<8x8x32xf32>
    %107 = vector.shape_cast %106 : vector<8x8x32xf32> to vector<64x32xf32>
    %108 = arith.addf %104, %107 : vector<64x32xf32>
    %109 = vector.shape_cast %108 : vector<64x32xf32> to vector<8x8x32xf32>
    %c0_109 = arith.constant 0 : index
    %c0_110 = arith.constant 0 : index
    %c0_111 = arith.constant 0 : index
    %c0_112 = arith.constant 0 : index
    %110 = vector.load %arg6[%c0_109, %c0_110, %c0_111, %c0_112] : memref<1x8x8x32xf32, #tpu.memory_space<vmem>>, vector<1x8x8x32xf32>
    %111 = vector.shape_cast %110 : vector<1x8x8x32xf32> to vector<8x8x32xf32>
    %112 = vector.shape_cast %109 : vector<8x8x32xf32> to vector<1x8x8x32xf32>
    tpu.vector_store %arg6[%c0_109, %c0_110, %c0_111, %c0_112], %112 {strides = array<i32>} : memref<1x8x8x32xf32, #tpu.memory_space<vmem>>, vector<1x8x8x32xf32>,
    return
  }
  func.func @transform_0(%arg0: i32, %arg1: i32) -> (i32, i32, i32, i32) {
    %c1_i32 = arith.constant 1 : i32
    %0 = arith.muli %arg0, %c1_i32 : i32
    %1 = arith.addi %0, %arg1 : i32
    %c0_i32 = arith.constant 0 : i32
    %c0_i32_0 = arith.constant 0 : i32
    %c0_i32_1 = arith.constant 0 : i32
    %c0_i32_2 = arith.constant 0 : i32
    return %1, %c0_i32, %c0_i32_0, %c0_i32_1 : i32, i32, i32, i32
  }
  func.func @transform_1(%arg0: i32, %arg1: i32) -> (i32, i32, i32) {
    %c0_i32 = arith.constant 0 : i32
    %c0_i32_0 = arith.constant 0 : i32
    %c0_i32_1 = arith.constant 0 : i32
    %c0_i32_2 = arith.constant 0 : i32
    return %c0_i32, %c0_i32_0, %c0_i32_1 : i32, i32, i32
  }
  func.func @transform_2(%arg0: i32, %arg1: i32) -> (i32, i32) {
    %c0_i32 = arith.constant 0 : i32
    %c0_i32_0 = arith.constant 0 : i32
    %c0_i32_1 = arith.constant 0 : i32
    return %c0_i32, %c0_i32_0 : i32, i32
  }
  func.func @transform_3(%arg0: i32, %arg1: i32) -> (i32, i32, i32, i32) {
    %c0_i32 = arith.constant 0 : i32
    %c0_i32_0 = arith.constant 0 : i32
    %c0_i32_1 = arith.constant 0 : i32
    return %arg0, %c0_i32, %arg1, %c0_i32_0 : i32, i32, i32, i32
  }
  func.func @transform_4(%arg0: i32, %arg1: i32) -> (i32, i32, i32, i32) {
    %c0_i32 = arith.constant 0 : i32
    %c0_i32_0 = arith.constant 0 : i32
    %c0_i32_1 = arith.constant 0 : i32
    return %arg0, %c0_i32, %arg1, %c0_i32_0 : i32, i32, i32, i32
  }
}

module attributes {stable_mosaic.version = 11 : i64} {
  func.func @_gemm_kernel(%arg0: i32, %arg1: i32, %arg2: i32, %arg3: memref<16x256xf32, #tpu.memory_space<vmem>>, %arg4: memref<256x128xf32, #tpu.memory_space<vmem>>, %arg5: memref<1x128xf32, #tpu.memory_space<vmem>>, %arg6: memref<16x128xf32, #tpu.memory_space<vmem>>, %arg7: memref<16x128xf32, #tpu.memory_space<vmem>>) attributes {dimension_semantics = [#tpu.dimension_semantics<parallel>, #tpu.dimension_semantics<parallel>, #tpu.dimension_semantics<arbitrary>], iteration_bounds = array<i64: 1, 1, 1>, scalar_prefetch = 0 : i64, scratch_operands = 1 : i64, tpu.core_type = #tpu.core_type<tc>, window_params = [{transform_indices = @transform_0, window_bounds = array<i64: 16, 256>}, {transform_indices = @transform_1, window_bounds = array<i64: 256, 128>}, {transform_indices = @transform_2, window_bounds = array<i64: 1, 128>}, {transform_indices = @transform_3, window_bounds = array<i64: 16, 128>}]} {
    %c0_i32 = arith.constant 0 : i32
    %0 = arith.cmpi eq, %arg2, %c0_i32 : i32
    %1 = arith.extui %0 : i1 to i32
    %c0_i32_0 = arith.constant 0 : i32
    %2 = arith.cmpi ne, %1, %c0_i32_0 : i32
    scf.if %2 {
      %cst_10 = arith.constant 0.000000e+00 : f32
      %14 = vector.broadcast %cst_10 : f32 to vector<16x128xf32>
      %c0_11 = arith.constant 0 : index
      %c0_12 = arith.constant 0 : index
      %15 = vector.load %arg7[%c0_11, %c0_12] : memref<16x128xf32, #tpu.memory_space<vmem>>, vector<16x128xf32>
      tpu.vector_store %arg7[%c0_11, %c0_12], %14 {strides = array<i32>} : memref<16x128xf32, #tpu.memory_space<vmem>>, vector<16x128xf32>,
    } else {
    }
    %c0 = arith.constant 0 : index
    %c0_1 = arith.constant 0 : index
    %3 = vector.load %arg7[%c0, %c0_1] : memref<16x128xf32, #tpu.memory_space<vmem>>, vector<16x128xf32>
    %c0_2 = arith.constant 0 : index
    %c0_3 = arith.constant 0 : index
    %4 = vector.load %arg3[%c0_2, %c0_3] : memref<16x256xf32, #tpu.memory_space<vmem>>, vector<16x256xf32>
    %5 = arith.truncf %4 : vector<16x256xf32> to vector<16x256xbf16>
    %c0_4 = arith.constant 0 : index
    %c0_5 = arith.constant 0 : index
    %6 = vector.load %arg4[%c0_4, %c0_5] : memref<256x128xf32, #tpu.memory_space<vmem>>, vector<256x128xf32>
    %7 = arith.truncf %6 : vector<256x128xf32> to vector<256x128xbf16>
    %cst = arith.constant dense<0.000000e+00> : vector<16x128xf32>
    %8 = tpu.matmul %5, %7, %cst {dimension_numbers = #tpu.dot_dimension_numbers<[1], [0], [0], [1], [0, 0, 1, 1], [], []>} : vector<16x256xbf16>, vector<256x128xbf16>, vector<16x128xf32> -> vector<16x128xf32>
    %9 = arith.addf %3, %8 : vector<16x128xf32>
    %c0_6 = arith.constant 0 : index
    %c0_7 = arith.constant 0 : index
    %10 = vector.load %arg7[%c0_6, %c0_7] : memref<16x128xf32, #tpu.memory_space<vmem>>, vector<16x128xf32>
    tpu.vector_store %arg7[%c0_6, %c0_7], %9 {strides = array<i32>} : memref<16x128xf32, #tpu.memory_space<vmem>>, vector<16x128xf32>,
    %c0_i32_8 = arith.constant 0 : i32
    %11 = arith.cmpi eq, %arg2, %c0_i32_8 : i32
    %12 = arith.extui %11 : i1 to i32
    %c0_i32_9 = arith.constant 0 : i32
    %13 = arith.cmpi ne, %12, %c0_i32_9 : i32
    scf.if %13 {
      %c0_10 = arith.constant 0 : index
      %c0_11 = arith.constant 0 : index
      %14 = vector.load %arg7[%c0_10, %c0_11] : memref<16x128xf32, #tpu.memory_space<vmem>>, vector<16x128xf32>
      %c0_12 = arith.constant 0 : index
      %c0_13 = arith.constant 0 : index
      %15 = vector.load %arg5[%c0_12, %c0_13] : memref<1x128xf32, #tpu.memory_space<vmem>>, vector<1x128xf32>
      %16 = vector.broadcast %15 : vector<1x128xf32> to vector<16x128xf32>
      %17 = arith.addf %14, %16 : vector<16x128xf32>
      %c0_14 = arith.constant 0 : index
      %c0_15 = arith.constant 0 : index
      %18 = vector.load %arg6[%c0_14, %c0_15] : memref<16x128xf32, #tpu.memory_space<vmem>>, vector<16x128xf32>
      tpu.vector_store %arg6[%c0_14, %c0_15], %17 {strides = array<i32>} : memref<16x128xf32, #tpu.memory_space<vmem>>, vector<16x128xf32>,
    } else {
    }
    return
  }
  func.func @transform_0(%arg0: i32, %arg1: i32, %arg2: i32) -> (i32, i32) {
    %c0_i32 = arith.constant 0 : i32
    return %arg0, %arg2 : i32, i32
  }
  func.func @transform_1(%arg0: i32, %arg1: i32, %arg2: i32) -> (i32, i32) {
    %c0_i32 = arith.constant 0 : i32
    return %arg2, %arg1 : i32, i32
  }
  func.func @transform_2(%arg0: i32, %arg1: i32, %arg2: i32) -> (i32, i32) {
    %c0_i32 = arith.constant 0 : i32
    %c0_i32_0 = arith.constant 0 : i32
    return %c0_i32, %arg1 : i32, i32
  }
  func.func @transform_3(%arg0: i32, %arg1: i32, %arg2: i32) -> (i32, i32) {
    %c0_i32 = arith.constant 0 : i32
    return %arg0, %arg1 : i32, i32
  }
}

module attributes {stable_mosaic.version = 11 : i64} {
  func.func @_ln_gelu_gemm_kernel(%arg0: i32, %arg1: i32, %arg2: memref<16x32xf32, #tpu.memory_space<vmem>>, %arg3: memref<1x32xf32, #tpu.memory_space<vmem>>, %arg4: memref<1x32xf32, #tpu.memory_space<vmem>>, %arg5: memref<32x256xf32, #tpu.memory_space<vmem>>, %arg6: memref<1x256xf32, #tpu.memory_space<vmem>>, %arg7: memref<16x256xf32, #tpu.memory_space<vmem>>, %arg8: memref<16x32xbf16, #tpu.memory_space<vmem>>) attributes {dimension_semantics = [#tpu.dimension_semantics<parallel>, #tpu.dimension_semantics<arbitrary>], iteration_bounds = array<i64: 1, 3>, scalar_prefetch = 0 : i64, scratch_operands = 1 : i64, tpu.core_type = #tpu.core_type<tc>, window_params = [{transform_indices = @transform_0, window_bounds = array<i64: 16, 32>}, {pipeline_mode = #tpu.pipeline_mode<synchronous>, transform_indices = @transform_1, window_bounds = array<i64: 1, 32>}, {pipeline_mode = #tpu.pipeline_mode<synchronous>, transform_indices = @transform_2, window_bounds = array<i64: 1, 32>}, {transform_indices = @transform_3, window_bounds = array<i64: 32, 256>}, {transform_indices = @transform_4, window_bounds = array<i64: 1, 256>}, {transform_indices = @transform_5, window_bounds = array<i64: 16, 256>}]} {
    %c0_i32 = arith.constant 0 : i32
    %0 = arith.cmpi eq, %arg1, %c0_i32 : i32
    %1 = arith.extui %0 : i1 to i32
    %c0_i32_0 = arith.constant 0 : i32
    %2 = arith.cmpi ne, %1, %c0_i32_0 : i32
    scf.if %2 {
      %c0_8 = arith.constant 0 : index
      %c0_9 = arith.constant 0 : index
      %11 = vector.load %arg2[%c0_8, %c0_9] : memref<16x32xf32, #tpu.memory_space<vmem>>, vector<16x32xf32>
      %cst_10 = arith.constant dense<0.000000e+00> : vector<16xf32>
      %12 = vector.multi_reduction <add>, %11, %cst_10 [1] : vector<16x32xf32> to vector<16xf32>
      %13 = vector.shape_cast %12 : vector<16xf32> to vector<16x1xf32>
      %cst_11 = arith.constant 3.200000e+01 : f32
      %14 = vector.broadcast %cst_11 : f32 to vector<16x1xf32>
      %15 = arith.divf %13, %14 : vector<16x1xf32>
      %16 = vector.broadcast %15 : vector<16x1xf32> to vector<16x32xf32>
      %17 = arith.subf %11, %16 : vector<16x32xf32>
      %18 = arith.mulf %17, %17 : vector<16x32xf32>
      %cst_12 = arith.constant dense<0.000000e+00> : vector<16xf32>
      %19 = vector.multi_reduction <add>, %18, %cst_12 [1] : vector<16x32xf32> to vector<16xf32>
      %20 = vector.shape_cast %19 : vector<16xf32> to vector<16x1xf32>
      %cst_13 = arith.constant 3.200000e+01 : f32
      %21 = vector.broadcast %cst_13 : f32 to vector<16x1xf32>
      %22 = arith.divf %20, %21 : vector<16x1xf32>
      %23 = vector.broadcast %15 : vector<16x1xf32> to vector<16x32xf32>
      %24 = arith.subf %11, %23 : vector<16x32xf32>
      %cst_14 = arith.constant 9.99999974E-6 : f32
      %25 = vector.broadcast %cst_14 : f32 to vector<16x1xf32>
      %26 = arith.addf %22, %25 : vector<16x1xf32>
      %27 = math.rsqrt %26 : vector<16x1xf32>
      %28 = vector.broadcast %27 : vector<16x1xf32> to vector<16x32xf32>
      %29 = arith.mulf %24, %28 : vector<16x32xf32>
      %c0_15 = arith.constant 0 : index
      %c0_16 = arith.constant 0 : index
      %30 = vector.load %arg3[%c0_15, %c0_16] : memref<1x32xf32, #tpu.memory_space<vmem>>, vector<1x32xf32>
      %31 = vector.broadcast %30 : vector<1x32xf32> to vector<16x32xf32>
      %32 = arith.mulf %29, %31 : vector<16x32xf32>
      %c0_17 = arith.constant 0 : index
      %c0_18 = arith.constant 0 : index
      %33 = vector.load %arg4[%c0_17, %c0_18] : memref<1x32xf32, #tpu.memory_space<vmem>>, vector<1x32xf32>
      %34 = vector.broadcast %33 : vector<1x32xf32> to vector<16x32xf32>
      %35 = arith.addf %32, %34 : vector<16x32xf32>
      %cst_19 = arith.constant 5.000000e-01 : f32
      %36 = vector.broadcast %cst_19 : f32 to vector<16x32xf32>
      %37 = arith.mulf %36, %35 : vector<16x32xf32>
      %cst_20 = arith.constant 1.41421354 : f32
      %38 = vector.broadcast %cst_20 : f32 to vector<16x32xf32>
      %39 = arith.divf %35, %38 : vector<16x32xf32>
      %40 = math.erf %39 : vector<16x32xf32>
      %cst_21 = arith.constant 1.000000e+00 : f32
      %41 = vector.broadcast %cst_21 : f32 to vector<16x32xf32>
      %42 = arith.addf %41, %40 : vector<16x32xf32>
      %43 = arith.mulf %37, %42 : vector<16x32xf32>
      %44 = arith.truncf %43 : vector<16x32xf32> to vector<16x32xbf16>
      %c0_22 = arith.constant 0 : index
      %c0_23 = arith.constant 0 : index
      %45 = vector.load %arg8[%c0_22, %c0_23] : memref<16x32xbf16, #tpu.memory_space<vmem>>, vector<16x32xbf16>
      tpu.vector_store %arg8[%c0_22, %c0_23], %44 {strides = array<i32>} : memref<16x32xbf16, #tpu.memory_space<vmem>>, vector<16x32xbf16>,
    } else {
    }
    %c0 = arith.constant 0 : index
    %c0_1 = arith.constant 0 : index
    %3 = vector.load %arg8[%c0, %c0_1] : memref<16x32xbf16, #tpu.memory_space<vmem>>, vector<16x32xbf16>
    %c0_2 = arith.constant 0 : index
    %c0_3 = arith.constant 0 : index
    %4 = vector.load %arg5[%c0_2, %c0_3] : memref<32x256xf32, #tpu.memory_space<vmem>>, vector<32x256xf32>
    %5 = arith.truncf %4 : vector<32x256xf32> to vector<32x256xbf16>
    %cst = arith.constant dense<0.000000e+00> : vector<16x256xf32>
    %6 = tpu.matmul %3, %5, %cst {dimension_numbers = #tpu.dot_dimension_numbers<[1], [0], [0], [1], [0, 0, 1, 1], [], []>} : vector<16x32xbf16>, vector<32x256xbf16>, vector<16x256xf32> -> vector<16x256xf32>
    %c0_4 = arith.constant 0 : index
    %c0_5 = arith.constant 0 : index
    %7 = vector.load %arg6[%c0_4, %c0_5] : memref<1x256xf32, #tpu.memory_space<vmem>>, vector<1x256xf32>
    %8 = vector.broadcast %7 : vector<1x256xf32> to vector<16x256xf32>
    %9 = arith.addf %6, %8 : vector<16x256xf32>
    %c0_6 = arith.constant 0 : index
    %c0_7 = arith.constant 0 : index
    %10 = vector.load %arg7[%c0_6, %c0_7] : memref<16x256xf32, #tpu.memory_space<vmem>>, vector<16x256xf32>
    tpu.vector_store %arg7[%c0_6, %c0_7], %9 {strides = array<i32>} : memref<16x256xf32, #tpu.memory_space<vmem>>, vector<16x256xf32>,
    return
  }
  func.func @transform_0(%arg0: i32, %arg1: i32) -> (i32, i32) {
    %c0_i32 = arith.constant 0 : i32
    %c0_i32_0 = arith.constant 0 : i32
    return %arg0, %c0_i32 : i32, i32
  }
  func.func @transform_1(%arg0: i32, %arg1: i32) -> (i32, i32) {
    %c0_i32 = arith.constant 0 : i32
    %c0_i32_0 = arith.constant 0 : i32
    %c0_i32_1 = arith.constant 0 : i32
    return %c0_i32, %c0_i32_0 : i32, i32
  }
  func.func @transform_2(%arg0: i32, %arg1: i32) -> (i32, i32) {
    %c0_i32 = arith.constant 0 : i32
    %c0_i32_0 = arith.constant 0 : i32
    %c0_i32_1 = arith.constant 0 : i32
    return %c0_i32, %c0_i32_0 : i32, i32
  }
  func.func @transform_3(%arg0: i32, %arg1: i32) -> (i32, i32) {
    %c0_i32 = arith.constant 0 : i32
    %c0_i32_0 = arith.constant 0 : i32
    return %c0_i32, %arg1 : i32, i32
  }
  func.func @transform_4(%arg0: i32, %arg1: i32) -> (i32, i32) {
    %c0_i32 = arith.constant 0 : i32
    %c0_i32_0 = arith.constant 0 : i32
    return %c0_i32, %arg1 : i32, i32
  }
  func.func @transform_5(%arg0: i32, %arg1: i32) -> (i32, i32) {
    %c0_i32 = arith.constant 0 : i32
    return %arg0, %arg1 : i32, i32
  }
}

module attributes {stable_mosaic.version = 11 : i64} {
  func.func @_bigru_scan_kernel(%arg0: i32, %arg1: i32, %arg2: memref<2x8x384xf32, #tpu.memory_space<vmem>>, %arg3: memref<1x128x384xf32, #tpu.memory_space<vmem>>, %arg4: memref<1x1x384xf32, #tpu.memory_space<vmem>>, %arg5: memref<2x8x128xf32, #tpu.memory_space<vmem>>, %arg6: memref<8x128xf32, #tpu.memory_space<vmem>>) attributes {dimension_semantics = [#tpu.dimension_semantics<parallel>, #tpu.dimension_semantics<arbitrary>], iteration_bounds = array<i64: 2, 1>, scalar_prefetch = 0 : i64, scratch_operands = 1 : i64, tpu.core_type = #tpu.core_type<tc>, window_params = [{transform_indices = @transform_0, window_bounds = array<i64: 2, 8, 384>}, {transform_indices = @transform_1, window_bounds = array<i64: 1, 128, 384>}, {transform_indices = @transform_2, window_bounds = array<i64: 1, 1, 384>}, {transform_indices = @transform_3, window_bounds = array<i64: 2, 8, 128>}]} {
    %c0_i32 = arith.constant 0 : i32
    %0 = arith.cmpi eq, %arg1, %c0_i32 : i32
    %1 = arith.extui %0 : i1 to i32
    %c0_i32_0 = arith.constant 0 : i32
    %2 = arith.cmpi ne, %1, %c0_i32_0 : i32
    scf.if %2 {
      %cst_30 = arith.constant 0.000000e+00 : f32
      %94 = vector.broadcast %cst_30 : f32 to vector<8x128xf32>
      %c0_31 = arith.constant 0 : index
      %c0_32 = arith.constant 0 : index
      %95 = vector.load %arg6[%c0_31, %c0_32] : memref<8x128xf32, #tpu.memory_space<vmem>>, vector<8x128xf32>
      tpu.vector_store %arg6[%c0_31, %c0_32], %94 {strides = array<i32>} : memref<8x128xf32, #tpu.memory_space<vmem>>, vector<8x128xf32>,
    } else {
    }
    %c0 = arith.constant 0 : index
    %c0_1 = arith.constant 0 : index
    %c0_2 = arith.constant 0 : index
    %3 = vector.load %arg3[%c0, %c0_1, %c0_2] : memref<1x128x384xf32, #tpu.memory_space<vmem>>, vector<1x128x384xf32>
    %4 = vector.shape_cast %3 : vector<1x128x384xf32> to vector<128x384xf32>
    %5 = arith.truncf %4 : vector<128x384xf32> to vector<128x384xbf16>
    %c0_3 = arith.constant 0 : index
    %c0_4 = arith.constant 0 : index
    %c0_5 = arith.constant 0 : index
    %6 = vector.load %arg4[%c0_3, %c0_4, %c0_5] : memref<1x1x384xf32, #tpu.memory_space<vmem>>, vector<1x1x384xf32>
    %7 = vector.shape_cast %6 : vector<1x1x384xf32> to vector<1x384xf32>
    %c0_6 = arith.constant 0 : index
    %c0_7 = arith.constant 0 : index
    %8 = vector.load %arg6[%c0_6, %c0_7] : memref<8x128xf32, #tpu.memory_space<vmem>>, vector<8x128xf32>
    %c0_i32_8 = arith.constant 0 : i32
    %c1_i32 = arith.constant 1 : i32
    %9 = arith.subi %c1_i32, %arg0 : i32
    %10 = arith.muli %c0_i32_8, %9 : i32
    %c1_i32_9 = arith.constant 1 : i32
    %11 = arith.subi %c1_i32_9, %c0_i32_8 : i32
    %12 = arith.muli %11, %arg0 : i32
    %13 = arith.addi %10, %12 : i32
    %14 = arith.index_cast %13 : i32 to index
    %c0_10 = arith.constant 0 : index
    %c0_11 = arith.constant 0 : index
    %15 = vector.load %arg2[%14, %c0_10, %c0_11] : memref<2x8x384xf32, #tpu.memory_space<vmem>>, vector<1x8x384xf32>
    %16 = vector.shape_cast %15 : vector<1x8x384xf32> to vector<8x384xf32>
    %17 = arith.truncf %8 : vector<8x128xf32> to vector<8x128xbf16>
    %cst = arith.constant dense<0.000000e+00> : vector<8x384xf32>
    %18 = tpu.matmul %17, %5, %cst {dimension_numbers = #tpu.dot_dimension_numbers<[1], [0], [0], [1], [0, 0, 1, 1], [], []>} : vector<8x128xbf16>, vector<128x384xbf16>, vector<8x384xf32> -> vector<8x384xf32>
    %19 = vector.broadcast %7 : vector<1x384xf32> to vector<8x384xf32>
    %20 = arith.addf %18, %19 : vector<8x384xf32>
    %21 = vector.extract_strided_slice %16 {offsets = [0, 0], sizes = [8, 128], strides = [1, 1]} : vector<8x384xf32> to vector<8x128xf32>
    %22 = vector.extract_strided_slice %20 {offsets = [0, 0], sizes = [8, 128], strides = [1, 1]} : vector<8x384xf32> to vector<8x128xf32>
    %23 = arith.addf %21, %22 : vector<8x128xf32>
    %24 = arith.negf %23 : vector<8x128xf32>
    %25 = math.exp %24 : vector<8x128xf32>
    %cst_12 = arith.constant 1.000000e+00 : f32
    %26 = vector.broadcast %cst_12 : f32 to vector<8x128xf32>
    %27 = arith.addf %26, %25 : vector<8x128xf32>
    %28 = arith.divf %26, %27 : vector<8x128xf32>
    %29 = vector.extract_strided_slice %16 {offsets = [0, 128], sizes = [8, 128], strides = [1, 1]} : vector<8x384xf32> to vector<8x128xf32>
    %30 = vector.extract_strided_slice %20 {offsets = [0, 128], sizes = [8, 128], strides = [1, 1]} : vector<8x384xf32> to vector<8x128xf32>
    %31 = arith.addf %29, %30 : vector<8x128xf32>
    %32 = arith.negf %31 : vector<8x128xf32>
    %33 = math.exp %32 : vector<8x128xf32>
    %cst_13 = arith.constant 1.000000e+00 : f32
    %34 = vector.broadcast %cst_13 : f32 to vector<8x128xf32>
    %35 = arith.addf %34, %33 : vector<8x128xf32>
    %36 = arith.divf %34, %35 : vector<8x128xf32>
    %37 = vector.extract_strided_slice %16 {offsets = [0, 256], sizes = [8, 128], strides = [1, 1]} : vector<8x384xf32> to vector<8x128xf32>
    %38 = vector.extract_strided_slice %20 {offsets = [0, 256], sizes = [8, 128], strides = [1, 1]} : vector<8x384xf32> to vector<8x128xf32>
    %39 = arith.mulf %28, %38 : vector<8x128xf32>
    %40 = arith.addf %37, %39 : vector<8x128xf32>
    %41 = math.tanh %40 : vector<8x128xf32>
    %cst_14 = arith.constant 1.000000e+00 : f32
    %42 = vector.broadcast %cst_14 : f32 to vector<8x128xf32>
    %43 = arith.subf %42, %36 : vector<8x128xf32>
    %44 = arith.mulf %43, %41 : vector<8x128xf32>
    %45 = arith.mulf %36, %8 : vector<8x128xf32>
    %46 = arith.addf %44, %45 : vector<8x128xf32>
    %47 = arith.index_cast %13 : i32 to index
    %c0_15 = arith.constant 0 : index
    %c0_16 = arith.constant 0 : index
    %48 = vector.load %arg5[%47, %c0_15, %c0_16] : memref<2x8x128xf32, #tpu.memory_space<vmem>>, vector<1x8x128xf32>
    %49 = vector.shape_cast %48 : vector<1x8x128xf32> to vector<8x128xf32>
    %50 = vector.shape_cast %46 : vector<8x128xf32> to vector<1x8x128xf32>
    tpu.vector_store %arg5[%47, %c0_15, %c0_16], %50 {strides = array<i32>} : memref<2x8x128xf32, #tpu.memory_space<vmem>>, vector<1x8x128xf32>,
    %c1_i32_17 = arith.constant 1 : i32
    %c1_i32_18 = arith.constant 1 : i32
    %51 = arith.subi %c1_i32_18, %arg0 : i32
    %52 = arith.muli %c1_i32_17, %51 : i32
    %c1_i32_19 = arith.constant 1 : i32
    %53 = arith.subi %c1_i32_19, %c1_i32_17 : i32
    %54 = arith.muli %53, %arg0 : i32
    %55 = arith.addi %52, %54 : i32
    %56 = arith.index_cast %55 : i32 to index
    %c0_20 = arith.constant 0 : index
    %c0_21 = arith.constant 0 : index
    %57 = vector.load %arg2[%56, %c0_20, %c0_21] : memref<2x8x384xf32, #tpu.memory_space<vmem>>, vector<1x8x384xf32>
    %58 = vector.shape_cast %57 : vector<1x8x384xf32> to vector<8x384xf32>
    %59 = arith.truncf %46 : vector<8x128xf32> to vector<8x128xbf16>
    %cst_22 = arith.constant dense<0.000000e+00> : vector<8x384xf32>
    %60 = tpu.matmul %59, %5, %cst_22 {dimension_numbers = #tpu.dot_dimension_numbers<[1], [0], [0], [1], [0, 0, 1, 1], [], []>} : vector<8x128xbf16>, vector<128x384xbf16>, vector<8x384xf32> -> vector<8x384xf32>
    %61 = vector.broadcast %7 : vector<1x384xf32> to vector<8x384xf32>
    %62 = arith.addf %60, %61 : vector<8x384xf32>
    %63 = vector.extract_strided_slice %58 {offsets = [0, 0], sizes = [8, 128], strides = [1, 1]} : vector<8x384xf32> to vector<8x128xf32>
    %64 = vector.extract_strided_slice %62 {offsets = [0, 0], sizes = [8, 128], strides = [1, 1]} : vector<8x384xf32> to vector<8x128xf32>
    %65 = arith.addf %63, %64 : vector<8x128xf32>
    %66 = arith.negf %65 : vector<8x128xf32>
    %67 = math.exp %66 : vector<8x128xf32>
    %cst_23 = arith.constant 1.000000e+00 : f32
    %68 = vector.broadcast %cst_23 : f32 to vector<8x128xf32>
    %69 = arith.addf %68, %67 : vector<8x128xf32>
    %70 = arith.divf %68, %69 : vector<8x128xf32>
    %71 = vector.extract_strided_slice %58 {offsets = [0, 128], sizes = [8, 128], strides = [1, 1]} : vector<8x384xf32> to vector<8x128xf32>
    %72 = vector.extract_strided_slice %62 {offsets = [0, 128], sizes = [8, 128], strides = [1, 1]} : vector<8x384xf32> to vector<8x128xf32>
    %73 = arith.addf %71, %72 : vector<8x128xf32>
    %74 = arith.negf %73 : vector<8x128xf32>
    %75 = math.exp %74 : vector<8x128xf32>
    %cst_24 = arith.constant 1.000000e+00 : f32
    %76 = vector.broadcast %cst_24 : f32 to vector<8x128xf32>
    %77 = arith.addf %76, %75 : vector<8x128xf32>
    %78 = arith.divf %76, %77 : vector<8x128xf32>
    %79 = vector.extract_strided_slice %58 {offsets = [0, 256], sizes = [8, 128], strides = [1, 1]} : vector<8x384xf32> to vector<8x128xf32>
    %80 = vector.extract_strided_slice %62 {offsets = [0, 256], sizes = [8, 128], strides = [1, 1]} : vector<8x384xf32> to vector<8x128xf32>
    %81 = arith.mulf %70, %80 : vector<8x128xf32>
    %82 = arith.addf %79, %81 : vector<8x128xf32>
    %83 = math.tanh %82 : vector<8x128xf32>
    %cst_25 = arith.constant 1.000000e+00 : f32
    %84 = vector.broadcast %cst_25 : f32 to vector<8x128xf32>
    %85 = arith.subf %84, %78 : vector<8x128xf32>
    %86 = arith.mulf %85, %83 : vector<8x128xf32>
    %87 = arith.mulf %78, %46 : vector<8x128xf32>
    %88 = arith.addf %86, %87 : vector<8x128xf32>
    %89 = arith.index_cast %55 : i32 to index
    %c0_26 = arith.constant 0 : index
    %c0_27 = arith.constant 0 : index
    %90 = vector.load %arg5[%89, %c0_26, %c0_27] : memref<2x8x128xf32, #tpu.memory_space<vmem>>, vector<1x8x128xf32>
    %91 = vector.shape_cast %90 : vector<1x8x128xf32> to vector<8x128xf32>
    %92 = vector.shape_cast %88 : vector<8x128xf32> to vector<1x8x128xf32>
    tpu.vector_store %arg5[%89, %c0_26, %c0_27], %92 {strides = array<i32>} : memref<2x8x128xf32, #tpu.memory_space<vmem>>, vector<1x8x128xf32>,
    %c2_i32 = arith.constant 2 : i32
    %c0_28 = arith.constant 0 : index
    %c0_29 = arith.constant 0 : index
    %93 = vector.load %arg6[%c0_28, %c0_29] : memref<8x128xf32, #tpu.memory_space<vmem>>, vector<8x128xf32>
    tpu.vector_store %arg6[%c0_28, %c0_29], %88 {strides = array<i32>} : memref<8x128xf32, #tpu.memory_space<vmem>>, vector<8x128xf32>,
    return
  }
  func.func @transform_0(%arg0: i32, %arg1: i32) -> (i32, i32, i32) {
    %c1_i32 = arith.constant 1 : i32
    %0 = arith.subi %c1_i32, %arg0 : i32
    %1 = arith.muli %arg1, %0 : i32
    %c0_i32 = arith.constant 0 : i32
    %2 = arith.subi %c0_i32, %arg1 : i32
    %3 = arith.muli %2, %arg0 : i32
    %4 = arith.addi %1, %3 : i32
    %c0_i32_0 = arith.constant 0 : i32
    %c0_i32_1 = arith.constant 0 : i32
    return %4, %c0_i32_0, %arg0 : i32, i32, i32
  }
  func.func @transform_1(%arg0: i32, %arg1: i32) -> (i32, i32, i32) {
    %c0_i32 = arith.constant 0 : i32
    %c0_i32_0 = arith.constant 0 : i32
    %c0_i32_1 = arith.constant 0 : i32
    return %arg0, %c0_i32, %c0_i32_0 : i32, i32, i32
  }
  func.func @transform_2(%arg0: i32, %arg1: i32) -> (i32, i32, i32) {
    %c0_i32 = arith.constant 0 : i32
    %c0_i32_0 = arith.constant 0 : i32
    %c0_i32_1 = arith.constant 0 : i32
    return %arg0, %c0_i32, %c0_i32_0 : i32, i32, i32
  }
  func.func @transform_3(%arg0: i32, %arg1: i32) -> (i32, i32, i32) {
    %c1_i32 = arith.constant 1 : i32
    %0 = arith.subi %c1_i32, %arg0 : i32
    %1 = arith.muli %arg1, %0 : i32
    %c0_i32 = arith.constant 0 : i32
    %2 = arith.subi %c0_i32, %arg1 : i32
    %3 = arith.muli %2, %arg0 : i32
    %4 = arith.addi %1, %3 : i32
    %c0_i32_0 = arith.constant 0 : i32
    %c0_i32_1 = arith.constant 0 : i32
    return %4, %c0_i32_0, %arg0 : i32, i32, i32
  }
}

module attributes {stable_mosaic.version = 11 : i64} {
  func.func @_ln_gelu_gemm_kernel(%arg0: i32, %arg1: i32, %arg2: memref<16x64xf32, #tpu.memory_space<vmem>>, %arg3: memref<1x64xf32, #tpu.memory_space<vmem>>, %arg4: memref<1x64xf32, #tpu.memory_space<vmem>>, %arg5: memref<64x256xf32, #tpu.memory_space<vmem>>, %arg6: memref<1x256xf32, #tpu.memory_space<vmem>>, %arg7: memref<16x256xf32, #tpu.memory_space<vmem>>, %arg8: memref<16x64xbf16, #tpu.memory_space<vmem>>) attributes {dimension_semantics = [#tpu.dimension_semantics<parallel>, #tpu.dimension_semantics<arbitrary>], iteration_bounds = array<i64: 1, 3>, scalar_prefetch = 0 : i64, scratch_operands = 1 : i64, tpu.core_type = #tpu.core_type<tc>, window_params = [{transform_indices = @transform_0, window_bounds = array<i64: 16, 64>}, {pipeline_mode = #tpu.pipeline_mode<synchronous>, transform_indices = @transform_1, window_bounds = array<i64: 1, 64>}, {pipeline_mode = #tpu.pipeline_mode<synchronous>, transform_indices = @transform_2, window_bounds = array<i64: 1, 64>}, {transform_indices = @transform_3, window_bounds = array<i64: 64, 256>}, {transform_indices = @transform_4, window_bounds = array<i64: 1, 256>}, {transform_indices = @transform_5, window_bounds = array<i64: 16, 256>}]} {
    %c0_i32 = arith.constant 0 : i32
    %0 = arith.cmpi eq, %arg1, %c0_i32 : i32
    %1 = arith.extui %0 : i1 to i32
    %c0_i32_0 = arith.constant 0 : i32
    %2 = arith.cmpi ne, %1, %c0_i32_0 : i32
    scf.if %2 {
      %c0_8 = arith.constant 0 : index
      %c0_9 = arith.constant 0 : index
      %11 = vector.load %arg2[%c0_8, %c0_9] : memref<16x64xf32, #tpu.memory_space<vmem>>, vector<16x64xf32>
      %cst_10 = arith.constant dense<0.000000e+00> : vector<16xf32>
      %12 = vector.multi_reduction <add>, %11, %cst_10 [1] : vector<16x64xf32> to vector<16xf32>
      %13 = vector.shape_cast %12 : vector<16xf32> to vector<16x1xf32>
      %cst_11 = arith.constant 6.400000e+01 : f32
      %14 = vector.broadcast %cst_11 : f32 to vector<16x1xf32>
      %15 = arith.divf %13, %14 : vector<16x1xf32>
      %16 = vector.broadcast %15 : vector<16x1xf32> to vector<16x64xf32>
      %17 = arith.subf %11, %16 : vector<16x64xf32>
      %18 = arith.mulf %17, %17 : vector<16x64xf32>
      %cst_12 = arith.constant dense<0.000000e+00> : vector<16xf32>
      %19 = vector.multi_reduction <add>, %18, %cst_12 [1] : vector<16x64xf32> to vector<16xf32>
      %20 = vector.shape_cast %19 : vector<16xf32> to vector<16x1xf32>
      %cst_13 = arith.constant 6.400000e+01 : f32
      %21 = vector.broadcast %cst_13 : f32 to vector<16x1xf32>
      %22 = arith.divf %20, %21 : vector<16x1xf32>
      %23 = vector.broadcast %15 : vector<16x1xf32> to vector<16x64xf32>
      %24 = arith.subf %11, %23 : vector<16x64xf32>
      %cst_14 = arith.constant 9.99999974E-6 : f32
      %25 = vector.broadcast %cst_14 : f32 to vector<16x1xf32>
      %26 = arith.addf %22, %25 : vector<16x1xf32>
      %27 = math.rsqrt %26 : vector<16x1xf32>
      %28 = vector.broadcast %27 : vector<16x1xf32> to vector<16x64xf32>
      %29 = arith.mulf %24, %28 : vector<16x64xf32>
      %c0_15 = arith.constant 0 : index
      %c0_16 = arith.constant 0 : index
      %30 = vector.load %arg3[%c0_15, %c0_16] : memref<1x64xf32, #tpu.memory_space<vmem>>, vector<1x64xf32>
      %31 = vector.broadcast %30 : vector<1x64xf32> to vector<16x64xf32>
      %32 = arith.mulf %29, %31 : vector<16x64xf32>
      %c0_17 = arith.constant 0 : index
      %c0_18 = arith.constant 0 : index
      %33 = vector.load %arg4[%c0_17, %c0_18] : memref<1x64xf32, #tpu.memory_space<vmem>>, vector<1x64xf32>
      %34 = vector.broadcast %33 : vector<1x64xf32> to vector<16x64xf32>
      %35 = arith.addf %32, %34 : vector<16x64xf32>
      %cst_19 = arith.constant 5.000000e-01 : f32
      %36 = vector.broadcast %cst_19 : f32 to vector<16x64xf32>
      %37 = arith.mulf %36, %35 : vector<16x64xf32>
      %cst_20 = arith.constant 1.41421354 : f32
      %38 = vector.broadcast %cst_20 : f32 to vector<16x64xf32>
      %39 = arith.divf %35, %38 : vector<16x64xf32>
      %40 = math.erf %39 : vector<16x64xf32>
      %cst_21 = arith.constant 1.000000e+00 : f32
      %41 = vector.broadcast %cst_21 : f32 to vector<16x64xf32>
      %42 = arith.addf %41, %40 : vector<16x64xf32>
      %43 = arith.mulf %37, %42 : vector<16x64xf32>
      %44 = arith.truncf %43 : vector<16x64xf32> to vector<16x64xbf16>
      %c0_22 = arith.constant 0 : index
      %c0_23 = arith.constant 0 : index
      %45 = vector.load %arg8[%c0_22, %c0_23] : memref<16x64xbf16, #tpu.memory_space<vmem>>, vector<16x64xbf16>
      tpu.vector_store %arg8[%c0_22, %c0_23], %44 {strides = array<i32>} : memref<16x64xbf16, #tpu.memory_space<vmem>>, vector<16x64xbf16>,
    } else {
    }
    %c0 = arith.constant 0 : index
    %c0_1 = arith.constant 0 : index
    %3 = vector.load %arg8[%c0, %c0_1] : memref<16x64xbf16, #tpu.memory_space<vmem>>, vector<16x64xbf16>
    %c0_2 = arith.constant 0 : index
    %c0_3 = arith.constant 0 : index
    %4 = vector.load %arg5[%c0_2, %c0_3] : memref<64x256xf32, #tpu.memory_space<vmem>>, vector<64x256xf32>
    %5 = arith.truncf %4 : vector<64x256xf32> to vector<64x256xbf16>
    %cst = arith.constant dense<0.000000e+00> : vector<16x256xf32>
    %6 = tpu.matmul %3, %5, %cst {dimension_numbers = #tpu.dot_dimension_numbers<[1], [0], [0], [1], [0, 0, 1, 1], [], []>} : vector<16x64xbf16>, vector<64x256xbf16>, vector<16x256xf32> -> vector<16x256xf32>
    %c0_4 = arith.constant 0 : index
    %c0_5 = arith.constant 0 : index
    %7 = vector.load %arg6[%c0_4, %c0_5] : memref<1x256xf32, #tpu.memory_space<vmem>>, vector<1x256xf32>
    %8 = vector.broadcast %7 : vector<1x256xf32> to vector<16x256xf32>
    %9 = arith.addf %6, %8 : vector<16x256xf32>
    %c0_6 = arith.constant 0 : index
    %c0_7 = arith.constant 0 : index
    %10 = vector.load %arg7[%c0_6, %c0_7] : memref<16x256xf32, #tpu.memory_space<vmem>>, vector<16x256xf32>
    tpu.vector_store %arg7[%c0_6, %c0_7], %9 {strides = array<i32>} : memref<16x256xf32, #tpu.memory_space<vmem>>, vector<16x256xf32>,
    return
  }
  func.func @transform_0(%arg0: i32, %arg1: i32) -> (i32, i32) {
    %c0_i32 = arith.constant 0 : i32
    %c0_i32_0 = arith.constant 0 : i32
    return %arg0, %c0_i32 : i32, i32
  }
  func.func @transform_1(%arg0: i32, %arg1: i32) -> (i32, i32) {
    %c0_i32 = arith.constant 0 : i32
    %c0_i32_0 = arith.constant 0 : i32
    %c0_i32_1 = arith.constant 0 : i32
    return %c0_i32, %c0_i32_0 : i32, i32
  }
  func.func @transform_2(%arg0: i32, %arg1: i32) -> (i32, i32) {
    %c0_i32 = arith.constant 0 : i32
    %c0_i32_0 = arith.constant 0 : i32
    %c0_i32_1 = arith.constant 0 : i32
    return %c0_i32, %c0_i32_0 : i32, i32
  }
  func.func @transform_3(%arg0: i32, %arg1: i32) -> (i32, i32) {
    %c0_i32 = arith.constant 0 : i32
    %c0_i32_0 = arith.constant 0 : i32
    return %c0_i32, %arg1 : i32, i32
  }
  func.func @transform_4(%arg0: i32, %arg1: i32) -> (i32, i32) {
    %c0_i32 = arith.constant 0 : i32
    %c0_i32_0 = arith.constant 0 : i32
    return %c0_i32, %arg1 : i32, i32
  }
  func.func @transform_5(%arg0: i32, %arg1: i32) -> (i32, i32) {
    %c0_i32 = arith.constant 0 : i32
    return %arg0, %arg1 : i32, i32
  }
}

module attributes {stable_mosaic.version = 11 : i64} {
  func.func @_bigru_scan_kernel(%arg0: i32, %arg1: i32, %arg2: memref<8x2x384xf32, #tpu.memory_space<vmem>>, %arg3: memref<1x128x384xf32, #tpu.memory_space<vmem>>, %arg4: memref<1x1x384xf32, #tpu.memory_space<vmem>>, %arg5: memref<8x2x128xf32, #tpu.memory_space<vmem>>, %arg6: memref<2x128xf32, #tpu.memory_space<vmem>>) attributes {dimension_semantics = [#tpu.dimension_semantics<parallel>, #tpu.dimension_semantics<arbitrary>], iteration_bounds = array<i64: 2, 1>, scalar_prefetch = 0 : i64, scratch_operands = 1 : i64, tpu.core_type = #tpu.core_type<tc>, window_params = [{transform_indices = @transform_0, window_bounds = array<i64: 8, 2, 384>}, {transform_indices = @transform_1, window_bounds = array<i64: 1, 128, 384>}, {transform_indices = @transform_2, window_bounds = array<i64: 1, 1, 384>}, {transform_indices = @transform_3, window_bounds = array<i64: 8, 2, 128>}]} {
    %c0_i32 = arith.constant 0 : i32
    %0 = arith.cmpi eq, %arg1, %c0_i32 : i32
    %1 = arith.extui %0 : i1 to i32
    %c0_i32_0 = arith.constant 0 : i32
    %2 = arith.cmpi ne, %1, %c0_i32_0 : i32
    scf.if %2 {
      %cst_90 = arith.constant 0.000000e+00 : f32
      %346 = vector.broadcast %cst_90 : f32 to vector<2x128xf32>
      %c0_91 = arith.constant 0 : index
      %c0_92 = arith.constant 0 : index
      %347 = vector.load %arg6[%c0_91, %c0_92] : memref<2x128xf32, #tpu.memory_space<vmem>>, vector<2x128xf32>
      tpu.vector_store %arg6[%c0_91, %c0_92], %346 {strides = array<i32>} : memref<2x128xf32, #tpu.memory_space<vmem>>, vector<2x128xf32>,
    } else {
    }
    %c0 = arith.constant 0 : index
    %c0_1 = arith.constant 0 : index
    %c0_2 = arith.constant 0 : index
    %3 = vector.load %arg3[%c0, %c0_1, %c0_2] : memref<1x128x384xf32, #tpu.memory_space<vmem>>, vector<1x128x384xf32>
    %4 = vector.shape_cast %3 : vector<1x128x384xf32> to vector<128x384xf32>
    %5 = arith.truncf %4 : vector<128x384xf32> to vector<128x384xbf16>
    %c0_3 = arith.constant 0 : index
    %c0_4 = arith.constant 0 : index
    %c0_5 = arith.constant 0 : index
    %6 = vector.load %arg4[%c0_3, %c0_4, %c0_5] : memref<1x1x384xf32, #tpu.memory_space<vmem>>, vector<1x1x384xf32>
    %7 = vector.shape_cast %6 : vector<1x1x384xf32> to vector<1x384xf32>
    %c0_6 = arith.constant 0 : index
    %c0_7 = arith.constant 0 : index
    %8 = vector.load %arg6[%c0_6, %c0_7] : memref<2x128xf32, #tpu.memory_space<vmem>>, vector<2x128xf32>
    %c0_i32_8 = arith.constant 0 : i32
    %c1_i32 = arith.constant 1 : i32
    %9 = arith.subi %c1_i32, %arg0 : i32
    %10 = arith.muli %c0_i32_8, %9 : i32
    %c7_i32 = arith.constant 7 : i32
    %11 = arith.subi %c7_i32, %c0_i32_8 : i32
    %12 = arith.muli %11, %arg0 : i32
    %13 = arith.addi %10, %12 : i32
    %14 = arith.index_cast %13 : i32 to index
    %c0_9 = arith.constant 0 : index
    %c0_10 = arith.constant 0 : index
    %15 = vector.load %arg2[%14, %c0_9, %c0_10] : memref<8x2x384xf32, #tpu.memory_space<vmem>>, vector<1x2x384xf32>
    %16 = vector.shape_cast %15 : vector<1x2x384xf32> to vector<2x384xf32>
    %17 = arith.truncf %8 : vector<2x128xf32> to vector<2x128xbf16>
    %cst = arith.constant dense<0.000000e+00> : vector<2x384xf32>
    %18 = tpu.matmul %17, %5, %cst {dimension_numbers = #tpu.dot_dimension_numbers<[1], [0], [0], [1], [0, 0, 1, 1], [], []>} : vector<2x128xbf16>, vector<128x384xbf16>, vector<2x384xf32> -> vector<2x384xf32>
    %19 = vector.broadcast %7 : vector<1x384xf32> to vector<2x384xf32>
    %20 = arith.addf %18, %19 : vector<2x384xf32>
    %21 = vector.extract_strided_slice %16 {offsets = [0, 0], sizes = [2, 128], strides = [1, 1]} : vector<2x384xf32> to vector<2x128xf32>
    %22 = vector.extract_strided_slice %20 {offsets = [0, 0], sizes = [2, 128], strides = [1, 1]} : vector<2x384xf32> to vector<2x128xf32>
    %23 = arith.addf %21, %22 : vector<2x128xf32>
    %24 = arith.negf %23 : vector<2x128xf32>
    %25 = math.exp %24 : vector<2x128xf32>
    %cst_11 = arith.constant 1.000000e+00 : f32
    %26 = vector.broadcast %cst_11 : f32 to vector<2x128xf32>
    %27 = arith.addf %26, %25 : vector<2x128xf32>
    %28 = arith.divf %26, %27 : vector<2x128xf32>
    %29 = vector.extract_strided_slice %16 {offsets = [0, 128], sizes = [2, 128], strides = [1, 1]} : vector<2x384xf32> to vector<2x128xf32>
    %30 = vector.extract_strided_slice %20 {offsets = [0, 128], sizes = [2, 128], strides = [1, 1]} : vector<2x384xf32> to vector<2x128xf32>
    %31 = arith.addf %29, %30 : vector<2x128xf32>
    %32 = arith.negf %31 : vector<2x128xf32>
    %33 = math.exp %32 : vector<2x128xf32>
    %cst_12 = arith.constant 1.000000e+00 : f32
    %34 = vector.broadcast %cst_12 : f32 to vector<2x128xf32>
    %35 = arith.addf %34, %33 : vector<2x128xf32>
    %36 = arith.divf %34, %35 : vector<2x128xf32>
    %37 = vector.extract_strided_slice %16 {offsets = [0, 256], sizes = [2, 128], strides = [1, 1]} : vector<2x384xf32> to vector<2x128xf32>
    %38 = vector.extract_strided_slice %20 {offsets = [0, 256], sizes = [2, 128], strides = [1, 1]} : vector<2x384xf32> to vector<2x128xf32>
    %39 = arith.mulf %28, %38 : vector<2x128xf32>
    %40 = arith.addf %37, %39 : vector<2x128xf32>
    %41 = math.tanh %40 : vector<2x128xf32>
    %cst_13 = arith.constant 1.000000e+00 : f32
    %42 = vector.broadcast %cst_13 : f32 to vector<2x128xf32>
    %43 = arith.subf %42, %36 : vector<2x128xf32>
    %44 = arith.mulf %43, %41 : vector<2x128xf32>
    %45 = arith.mulf %36, %8 : vector<2x128xf32>
    %46 = arith.addf %44, %45 : vector<2x128xf32>
    %47 = arith.index_cast %13 : i32 to index
    %c0_14 = arith.constant 0 : index
    %c0_15 = arith.constant 0 : index
    %48 = vector.load %arg5[%47, %c0_14, %c0_15] : memref<8x2x128xf32, #tpu.memory_space<vmem>>, vector<1x2x128xf32>
    %49 = vector.shape_cast %48 : vector<1x2x128xf32> to vector<2x128xf32>
    %50 = vector.shape_cast %46 : vector<2x128xf32> to vector<1x2x128xf32>
    tpu.vector_store %arg5[%47, %c0_14, %c0_15], %50 {strides = array<i32>} : memref<8x2x128xf32, #tpu.memory_space<vmem>>, vector<1x2x128xf32>,
    %c1_i32_16 = arith.constant 1 : i32
    %c1_i32_17 = arith.constant 1 : i32
    %51 = arith.subi %c1_i32_17, %arg0 : i32
    %52 = arith.muli %c1_i32_16, %51 : i32
    %c7_i32_18 = arith.constant 7 : i32
    %53 = arith.subi %c7_i32_18, %c1_i32_16 : i32
    %54 = arith.muli %53, %arg0 : i32
    %55 = arith.addi %52, %54 : i32
    %56 = arith.index_cast %55 : i32 to index
    %c0_19 = arith.constant 0 : index
    %c0_20 = arith.constant 0 : index
    %57 = vector.load %arg2[%56, %c0_19, %c0_20] : memref<8x2x384xf32, #tpu.memory_space<vmem>>, vector<1x2x384xf32>
    %58 = vector.shape_cast %57 : vector<1x2x384xf32> to vector<2x384xf32>
    %59 = arith.truncf %46 : vector<2x128xf32> to vector<2x128xbf16>
    %cst_21 = arith.constant dense<0.000000e+00> : vector<2x384xf32>
    %60 = tpu.matmul %59, %5, %cst_21 {dimension_numbers = #tpu.dot_dimension_numbers<[1], [0], [0], [1], [0, 0, 1, 1], [], []>} : vector<2x128xbf16>, vector<128x384xbf16>, vector<2x384xf32> -> vector<2x384xf32>
    %61 = vector.broadcast %7 : vector<1x384xf32> to vector<2x384xf32>
    %62 = arith.addf %60, %61 : vector<2x384xf32>
    %63 = vector.extract_strided_slice %58 {offsets = [0, 0], sizes = [2, 128], strides = [1, 1]} : vector<2x384xf32> to vector<2x128xf32>
    %64 = vector.extract_strided_slice %62 {offsets = [0, 0], sizes = [2, 128], strides = [1, 1]} : vector<2x384xf32> to vector<2x128xf32>
    %65 = arith.addf %63, %64 : vector<2x128xf32>
    %66 = arith.negf %65 : vector<2x128xf32>
    %67 = math.exp %66 : vector<2x128xf32>
    %cst_22 = arith.constant 1.000000e+00 : f32
    %68 = vector.broadcast %cst_22 : f32 to vector<2x128xf32>
    %69 = arith.addf %68, %67 : vector<2x128xf32>
    %70 = arith.divf %68, %69 : vector<2x128xf32>
    %71 = vector.extract_strided_slice %58 {offsets = [0, 128], sizes = [2, 128], strides = [1, 1]} : vector<2x384xf32> to vector<2x128xf32>
    %72 = vector.extract_strided_slice %62 {offsets = [0, 128], sizes = [2, 128], strides = [1, 1]} : vector<2x384xf32> to vector<2x128xf32>
    %73 = arith.addf %71, %72 : vector<2x128xf32>
    %74 = arith.negf %73 : vector<2x128xf32>
    %75 = math.exp %74 : vector<2x128xf32>
    %cst_23 = arith.constant 1.000000e+00 : f32
    %76 = vector.broadcast %cst_23 : f32 to vector<2x128xf32>
    %77 = arith.addf %76, %75 : vector<2x128xf32>
    %78 = arith.divf %76, %77 : vector<2x128xf32>
    %79 = vector.extract_strided_slice %58 {offsets = [0, 256], sizes = [2, 128], strides = [1, 1]} : vector<2x384xf32> to vector<2x128xf32>
    %80 = vector.extract_strided_slice %62 {offsets = [0, 256], sizes = [2, 128], strides = [1, 1]} : vector<2x384xf32> to vector<2x128xf32>
    %81 = arith.mulf %70, %80 : vector<2x128xf32>
    %82 = arith.addf %79, %81 : vector<2x128xf32>
    %83 = math.tanh %82 : vector<2x128xf32>
    %cst_24 = arith.constant 1.000000e+00 : f32
    %84 = vector.broadcast %cst_24 : f32 to vector<2x128xf32>
    %85 = arith.subf %84, %78 : vector<2x128xf32>
    %86 = arith.mulf %85, %83 : vector<2x128xf32>
    %87 = arith.mulf %78, %46 : vector<2x128xf32>
    %88 = arith.addf %86, %87 : vector<2x128xf32>
    %89 = arith.index_cast %55 : i32 to index
    %c0_25 = arith.constant 0 : index
    %c0_26 = arith.constant 0 : index
    %90 = vector.load %arg5[%89, %c0_25, %c0_26] : memref<8x2x128xf32, #tpu.memory_space<vmem>>, vector<1x2x128xf32>
    %91 = vector.shape_cast %90 : vector<1x2x128xf32> to vector<2x128xf32>
    %92 = vector.shape_cast %88 : vector<2x128xf32> to vector<1x2x128xf32>
    tpu.vector_store %arg5[%89, %c0_25, %c0_26], %92 {strides = array<i32>} : memref<8x2x128xf32, #tpu.memory_space<vmem>>, vector<1x2x128xf32>,
    %c2_i32 = arith.constant 2 : i32
    %c1_i32_27 = arith.constant 1 : i32
    %93 = arith.subi %c1_i32_27, %arg0 : i32
    %94 = arith.muli %c2_i32, %93 : i32
    %c7_i32_28 = arith.constant 7 : i32
    %95 = arith.subi %c7_i32_28, %c2_i32 : i32
    %96 = arith.muli %95, %arg0 : i32
    %97 = arith.addi %94, %96 : i32
    %98 = arith.index_cast %97 : i32 to index
    %c0_29 = arith.constant 0 : index
    %c0_30 = arith.constant 0 : index
    %99 = vector.load %arg2[%98, %c0_29, %c0_30] : memref<8x2x384xf32, #tpu.memory_space<vmem>>, vector<1x2x384xf32>
    %100 = vector.shape_cast %99 : vector<1x2x384xf32> to vector<2x384xf32>
    %101 = arith.truncf %88 : vector<2x128xf32> to vector<2x128xbf16>
    %cst_31 = arith.constant dense<0.000000e+00> : vector<2x384xf32>
    %102 = tpu.matmul %101, %5, %cst_31 {dimension_numbers = #tpu.dot_dimension_numbers<[1], [0], [0], [1], [0, 0, 1, 1], [], []>} : vector<2x128xbf16>, vector<128x384xbf16>, vector<2x384xf32> -> vector<2x384xf32>
    %103 = vector.broadcast %7 : vector<1x384xf32> to vector<2x384xf32>
    %104 = arith.addf %102, %103 : vector<2x384xf32>
    %105 = vector.extract_strided_slice %100 {offsets = [0, 0], sizes = [2, 128], strides = [1, 1]} : vector<2x384xf32> to vector<2x128xf32>
    %106 = vector.extract_strided_slice %104 {offsets = [0, 0], sizes = [2, 128], strides = [1, 1]} : vector<2x384xf32> to vector<2x128xf32>
    %107 = arith.addf %105, %106 : vector<2x128xf32>
    %108 = arith.negf %107 : vector<2x128xf32>
    %109 = math.exp %108 : vector<2x128xf32>
    %cst_32 = arith.constant 1.000000e+00 : f32
    %110 = vector.broadcast %cst_32 : f32 to vector<2x128xf32>
    %111 = arith.addf %110, %109 : vector<2x128xf32>
    %112 = arith.divf %110, %111 : vector<2x128xf32>
    %113 = vector.extract_strided_slice %100 {offsets = [0, 128], sizes = [2, 128], strides = [1, 1]} : vector<2x384xf32> to vector<2x128xf32>
    %114 = vector.extract_strided_slice %104 {offsets = [0, 128], sizes = [2, 128], strides = [1, 1]} : vector<2x384xf32> to vector<2x128xf32>
    %115 = arith.addf %113, %114 : vector<2x128xf32>
    %116 = arith.negf %115 : vector<2x128xf32>
    %117 = math.exp %116 : vector<2x128xf32>
    %cst_33 = arith.constant 1.000000e+00 : f32
    %118 = vector.broadcast %cst_33 : f32 to vector<2x128xf32>
    %119 = arith.addf %118, %117 : vector<2x128xf32>
    %120 = arith.divf %118, %119 : vector<2x128xf32>
    %121 = vector.extract_strided_slice %100 {offsets = [0, 256], sizes = [2, 128], strides = [1, 1]} : vector<2x384xf32> to vector<2x128xf32>
    %122 = vector.extract_strided_slice %104 {offsets = [0, 256], sizes = [2, 128], strides = [1, 1]} : vector<2x384xf32> to vector<2x128xf32>
    %123 = arith.mulf %112, %122 : vector<2x128xf32>
    %124 = arith.addf %121, %123 : vector<2x128xf32>
    %125 = math.tanh %124 : vector<2x128xf32>
    %cst_34 = arith.constant 1.000000e+00 : f32
    %126 = vector.broadcast %cst_34 : f32 to vector<2x128xf32>
    %127 = arith.subf %126, %120 : vector<2x128xf32>
    %128 = arith.mulf %127, %125 : vector<2x128xf32>
    %129 = arith.mulf %120, %88 : vector<2x128xf32>
    %130 = arith.addf %128, %129 : vector<2x128xf32>
    %131 = arith.index_cast %97 : i32 to index
    %c0_35 = arith.constant 0 : index
    %c0_36 = arith.constant 0 : index
    %132 = vector.load %arg5[%131, %c0_35, %c0_36] : memref<8x2x128xf32, #tpu.memory_space<vmem>>, vector<1x2x128xf32>
    %133 = vector.shape_cast %132 : vector<1x2x128xf32> to vector<2x128xf32>
    %134 = vector.shape_cast %130 : vector<2x128xf32> to vector<1x2x128xf32>
    tpu.vector_store %arg5[%131, %c0_35, %c0_36], %134 {strides = array<i32>} : memref<8x2x128xf32, #tpu.memory_space<vmem>>, vector<1x2x128xf32>,
    %c3_i32 = arith.constant 3 : i32
    %c1_i32_37 = arith.constant 1 : i32
    %135 = arith.subi %c1_i32_37, %arg0 : i32
    %136 = arith.muli %c3_i32, %135 : i32
    %c7_i32_38 = arith.constant 7 : i32
    %137 = arith.subi %c7_i32_38, %c3_i32 : i32
    %138 = arith.muli %137, %arg0 : i32
    %139 = arith.addi %136, %138 : i32
    %140 = arith.index_cast %139 : i32 to index
    %c0_39 = arith.constant 0 : index
    %c0_40 = arith.constant 0 : index
    %141 = vector.load %arg2[%140, %c0_39, %c0_40] : memref<8x2x384xf32, #tpu.memory_space<vmem>>, vector<1x2x384xf32>
    %142 = vector.shape_cast %141 : vector<1x2x384xf32> to vector<2x384xf32>
    %143 = arith.truncf %130 : vector<2x128xf32> to vector<2x128xbf16>
    %cst_41 = arith.constant dense<0.000000e+00> : vector<2x384xf32>
    %144 = tpu.matmul %143, %5, %cst_41 {dimension_numbers = #tpu.dot_dimension_numbers<[1], [0], [0], [1], [0, 0, 1, 1], [], []>} : vector<2x128xbf16>, vector<128x384xbf16>, vector<2x384xf32> -> vector<2x384xf32>
    %145 = vector.broadcast %7 : vector<1x384xf32> to vector<2x384xf32>
    %146 = arith.addf %144, %145 : vector<2x384xf32>
    %147 = vector.extract_strided_slice %142 {offsets = [0, 0], sizes = [2, 128], strides = [1, 1]} : vector<2x384xf32> to vector<2x128xf32>
    %148 = vector.extract_strided_slice %146 {offsets = [0, 0], sizes = [2, 128], strides = [1, 1]} : vector<2x384xf32> to vector<2x128xf32>
    %149 = arith.addf %147, %148 : vector<2x128xf32>
    %150 = arith.negf %149 : vector<2x128xf32>
    %151 = math.exp %150 : vector<2x128xf32>
    %cst_42 = arith.constant 1.000000e+00 : f32
    %152 = vector.broadcast %cst_42 : f32 to vector<2x128xf32>
    %153 = arith.addf %152, %151 : vector<2x128xf32>
    %154 = arith.divf %152, %153 : vector<2x128xf32>
    %155 = vector.extract_strided_slice %142 {offsets = [0, 128], sizes = [2, 128], strides = [1, 1]} : vector<2x384xf32> to vector<2x128xf32>
    %156 = vector.extract_strided_slice %146 {offsets = [0, 128], sizes = [2, 128], strides = [1, 1]} : vector<2x384xf32> to vector<2x128xf32>
    %157 = arith.addf %155, %156 : vector<2x128xf32>
    %158 = arith.negf %157 : vector<2x128xf32>
    %159 = math.exp %158 : vector<2x128xf32>
    %cst_43 = arith.constant 1.000000e+00 : f32
    %160 = vector.broadcast %cst_43 : f32 to vector<2x128xf32>
    %161 = arith.addf %160, %159 : vector<2x128xf32>
    %162 = arith.divf %160, %161 : vector<2x128xf32>
    %163 = vector.extract_strided_slice %142 {offsets = [0, 256], sizes = [2, 128], strides = [1, 1]} : vector<2x384xf32> to vector<2x128xf32>
    %164 = vector.extract_strided_slice %146 {offsets = [0, 256], sizes = [2, 128], strides = [1, 1]} : vector<2x384xf32> to vector<2x128xf32>
    %165 = arith.mulf %154, %164 : vector<2x128xf32>
    %166 = arith.addf %163, %165 : vector<2x128xf32>
    %167 = math.tanh %166 : vector<2x128xf32>
    %cst_44 = arith.constant 1.000000e+00 : f32
    %168 = vector.broadcast %cst_44 : f32 to vector<2x128xf32>
    %169 = arith.subf %168, %162 : vector<2x128xf32>
    %170 = arith.mulf %169, %167 : vector<2x128xf32>
    %171 = arith.mulf %162, %130 : vector<2x128xf32>
    %172 = arith.addf %170, %171 : vector<2x128xf32>
    %173 = arith.index_cast %139 : i32 to index
    %c0_45 = arith.constant 0 : index
    %c0_46 = arith.constant 0 : index
    %174 = vector.load %arg5[%173, %c0_45, %c0_46] : memref<8x2x128xf32, #tpu.memory_space<vmem>>, vector<1x2x128xf32>
    %175 = vector.shape_cast %174 : vector<1x2x128xf32> to vector<2x128xf32>
    %176 = vector.shape_cast %172 : vector<2x128xf32> to vector<1x2x128xf32>
    tpu.vector_store %arg5[%173, %c0_45, %c0_46], %176 {strides = array<i32>} : memref<8x2x128xf32, #tpu.memory_space<vmem>>, vector<1x2x128xf32>,
    %c4_i32 = arith.constant 4 : i32
    %c1_i32_47 = arith.constant 1 : i32
    %177 = arith.subi %c1_i32_47, %arg0 : i32
    %178 = arith.muli %c4_i32, %177 : i32
    %c7_i32_48 = arith.constant 7 : i32
    %179 = arith.subi %c7_i32_48, %c4_i32 : i32
    %180 = arith.muli %179, %arg0 : i32
    %181 = arith.addi %178, %180 : i32
    %182 = arith.index_cast %181 : i32 to index
    %c0_49 = arith.constant 0 : index
    %c0_50 = arith.constant 0 : index
    %183 = vector.load %arg2[%182, %c0_49, %c0_50] : memref<8x2x384xf32, #tpu.memory_space<vmem>>, vector<1x2x384xf32>
    %184 = vector.shape_cast %183 : vector<1x2x384xf32> to vector<2x384xf32>
    %185 = arith.truncf %172 : vector<2x128xf32> to vector<2x128xbf16>
    %cst_51 = arith.constant dense<0.000000e+00> : vector<2x384xf32>
    %186 = tpu.matmul %185, %5, %cst_51 {dimension_numbers = #tpu.dot_dimension_numbers<[1], [0], [0], [1], [0, 0, 1, 1], [], []>} : vector<2x128xbf16>, vector<128x384xbf16>, vector<2x384xf32> -> vector<2x384xf32>
    %187 = vector.broadcast %7 : vector<1x384xf32> to vector<2x384xf32>
    %188 = arith.addf %186, %187 : vector<2x384xf32>
    %189 = vector.extract_strided_slice %184 {offsets = [0, 0], sizes = [2, 128], strides = [1, 1]} : vector<2x384xf32> to vector<2x128xf32>
    %190 = vector.extract_strided_slice %188 {offsets = [0, 0], sizes = [2, 128], strides = [1, 1]} : vector<2x384xf32> to vector<2x128xf32>
    %191 = arith.addf %189, %190 : vector<2x128xf32>
    %192 = arith.negf %191 : vector<2x128xf32>
    %193 = math.exp %192 : vector<2x128xf32>
    %cst_52 = arith.constant 1.000000e+00 : f32
    %194 = vector.broadcast %cst_52 : f32 to vector<2x128xf32>
    %195 = arith.addf %194, %193 : vector<2x128xf32>
    %196 = arith.divf %194, %195 : vector<2x128xf32>
    %197 = vector.extract_strided_slice %184 {offsets = [0, 128], sizes = [2, 128], strides = [1, 1]} : vector<2x384xf32> to vector<2x128xf32>
    %198 = vector.extract_strided_slice %188 {offsets = [0, 128], sizes = [2, 128], strides = [1, 1]} : vector<2x384xf32> to vector<2x128xf32>
    %199 = arith.addf %197, %198 : vector<2x128xf32>
    %200 = arith.negf %199 : vector<2x128xf32>
    %201 = math.exp %200 : vector<2x128xf32>
    %cst_53 = arith.constant 1.000000e+00 : f32
    %202 = vector.broadcast %cst_53 : f32 to vector<2x128xf32>
    %203 = arith.addf %202, %201 : vector<2x128xf32>
    %204 = arith.divf %202, %203 : vector<2x128xf32>
    %205 = vector.extract_strided_slice %184 {offsets = [0, 256], sizes = [2, 128], strides = [1, 1]} : vector<2x384xf32> to vector<2x128xf32>
    %206 = vector.extract_strided_slice %188 {offsets = [0, 256], sizes = [2, 128], strides = [1, 1]} : vector<2x384xf32> to vector<2x128xf32>
    %207 = arith.mulf %196, %206 : vector<2x128xf32>
    %208 = arith.addf %205, %207 : vector<2x128xf32>
    %209 = math.tanh %208 : vector<2x128xf32>
    %cst_54 = arith.constant 1.000000e+00 : f32
    %210 = vector.broadcast %cst_54 : f32 to vector<2x128xf32>
    %211 = arith.subf %210, %204 : vector<2x128xf32>
    %212 = arith.mulf %211, %209 : vector<2x128xf32>
    %213 = arith.mulf %204, %172 : vector<2x128xf32>
    %214 = arith.addf %212, %213 : vector<2x128xf32>
    %215 = arith.index_cast %181 : i32 to index
    %c0_55 = arith.constant 0 : index
    %c0_56 = arith.constant 0 : index
    %216 = vector.load %arg5[%215, %c0_55, %c0_56] : memref<8x2x128xf32, #tpu.memory_space<vmem>>, vector<1x2x128xf32>
    %217 = vector.shape_cast %216 : vector<1x2x128xf32> to vector<2x128xf32>
    %218 = vector.shape_cast %214 : vector<2x128xf32> to vector<1x2x128xf32>
    tpu.vector_store %arg5[%215, %c0_55, %c0_56], %218 {strides = array<i32>} : memref<8x2x128xf32, #tpu.memory_space<vmem>>, vector<1x2x128xf32>,
    %c5_i32 = arith.constant 5 : i32
    %c1_i32_57 = arith.constant 1 : i32
    %219 = arith.subi %c1_i32_57, %arg0 : i32
    %220 = arith.muli %c5_i32, %219 : i32
    %c7_i32_58 = arith.constant 7 : i32
    %221 = arith.subi %c7_i32_58, %c5_i32 : i32
    %222 = arith.muli %221, %arg0 : i32
    %223 = arith.addi %220, %222 : i32
    %224 = arith.index_cast %223 : i32 to index
    %c0_59 = arith.constant 0 : index
    %c0_60 = arith.constant 0 : index
    %225 = vector.load %arg2[%224, %c0_59, %c0_60] : memref<8x2x384xf32, #tpu.memory_space<vmem>>, vector<1x2x384xf32>
    %226 = vector.shape_cast %225 : vector<1x2x384xf32> to vector<2x384xf32>
    %227 = arith.truncf %214 : vector<2x128xf32> to vector<2x128xbf16>
    %cst_61 = arith.constant dense<0.000000e+00> : vector<2x384xf32>
    %228 = tpu.matmul %227, %5, %cst_61 {dimension_numbers = #tpu.dot_dimension_numbers<[1], [0], [0], [1], [0, 0, 1, 1], [], []>} : vector<2x128xbf16>, vector<128x384xbf16>, vector<2x384xf32> -> vector<2x384xf32>
    %229 = vector.broadcast %7 : vector<1x384xf32> to vector<2x384xf32>
    %230 = arith.addf %228, %229 : vector<2x384xf32>
    %231 = vector.extract_strided_slice %226 {offsets = [0, 0], sizes = [2, 128], strides = [1, 1]} : vector<2x384xf32> to vector<2x128xf32>
    %232 = vector.extract_strided_slice %230 {offsets = [0, 0], sizes = [2, 128], strides = [1, 1]} : vector<2x384xf32> to vector<2x128xf32>
    %233 = arith.addf %231, %232 : vector<2x128xf32>
    %234 = arith.negf %233 : vector<2x128xf32>
    %235 = math.exp %234 : vector<2x128xf32>
    %cst_62 = arith.constant 1.000000e+00 : f32
    %236 = vector.broadcast %cst_62 : f32 to vector<2x128xf32>
    %237 = arith.addf %236, %235 : vector<2x128xf32>
    %238 = arith.divf %236, %237 : vector<2x128xf32>
    %239 = vector.extract_strided_slice %226 {offsets = [0, 128], sizes = [2, 128], strides = [1, 1]} : vector<2x384xf32> to vector<2x128xf32>
    %240 = vector.extract_strided_slice %230 {offsets = [0, 128], sizes = [2, 128], strides = [1, 1]} : vector<2x384xf32> to vector<2x128xf32>
    %241 = arith.addf %239, %240 : vector<2x128xf32>
    %242 = arith.negf %241 : vector<2x128xf32>
    %243 = math.exp %242 : vector<2x128xf32>
    %cst_63 = arith.constant 1.000000e+00 : f32
    %244 = vector.broadcast %cst_63 : f32 to vector<2x128xf32>
    %245 = arith.addf %244, %243 : vector<2x128xf32>
    %246 = arith.divf %244, %245 : vector<2x128xf32>
    %247 = vector.extract_strided_slice %226 {offsets = [0, 256], sizes = [2, 128], strides = [1, 1]} : vector<2x384xf32> to vector<2x128xf32>
    %248 = vector.extract_strided_slice %230 {offsets = [0, 256], sizes = [2, 128], strides = [1, 1]} : vector<2x384xf32> to vector<2x128xf32>
    %249 = arith.mulf %238, %248 : vector<2x128xf32>
    %250 = arith.addf %247, %249 : vector<2x128xf32>
    %251 = math.tanh %250 : vector<2x128xf32>
    %cst_64 = arith.constant 1.000000e+00 : f32
    %252 = vector.broadcast %cst_64 : f32 to vector<2x128xf32>
    %253 = arith.subf %252, %246 : vector<2x128xf32>
    %254 = arith.mulf %253, %251 : vector<2x128xf32>
    %255 = arith.mulf %246, %214 : vector<2x128xf32>
    %256 = arith.addf %254, %255 : vector<2x128xf32>
    %257 = arith.index_cast %223 : i32 to index
    %c0_65 = arith.constant 0 : index
    %c0_66 = arith.constant 0 : index
    %258 = vector.load %arg5[%257, %c0_65, %c0_66] : memref<8x2x128xf32, #tpu.memory_space<vmem>>, vector<1x2x128xf32>
    %259 = vector.shape_cast %258 : vector<1x2x128xf32> to vector<2x128xf32>
    %260 = vector.shape_cast %256 : vector<2x128xf32> to vector<1x2x128xf32>
    tpu.vector_store %arg5[%257, %c0_65, %c0_66], %260 {strides = array<i32>} : memref<8x2x128xf32, #tpu.memory_space<vmem>>, vector<1x2x128xf32>,
    %c6_i32 = arith.constant 6 : i32
    %c1_i32_67 = arith.constant 1 : i32
    %261 = arith.subi %c1_i32_67, %arg0 : i32
    %262 = arith.muli %c6_i32, %261 : i32
    %c7_i32_68 = arith.constant 7 : i32
    %263 = arith.subi %c7_i32_68, %c6_i32 : i32
    %264 = arith.muli %263, %arg0 : i32
    %265 = arith.addi %262, %264 : i32
    %266 = arith.index_cast %265 : i32 to index
    %c0_69 = arith.constant 0 : index
    %c0_70 = arith.constant 0 : index
    %267 = vector.load %arg2[%266, %c0_69, %c0_70] : memref<8x2x384xf32, #tpu.memory_space<vmem>>, vector<1x2x384xf32>
    %268 = vector.shape_cast %267 : vector<1x2x384xf32> to vector<2x384xf32>
    %269 = arith.truncf %256 : vector<2x128xf32> to vector<2x128xbf16>
    %cst_71 = arith.constant dense<0.000000e+00> : vector<2x384xf32>
    %270 = tpu.matmul %269, %5, %cst_71 {dimension_numbers = #tpu.dot_dimension_numbers<[1], [0], [0], [1], [0, 0, 1, 1], [], []>} : vector<2x128xbf16>, vector<128x384xbf16>, vector<2x384xf32> -> vector<2x384xf32>
    %271 = vector.broadcast %7 : vector<1x384xf32> to vector<2x384xf32>
    %272 = arith.addf %270, %271 : vector<2x384xf32>
    %273 = vector.extract_strided_slice %268 {offsets = [0, 0], sizes = [2, 128], strides = [1, 1]} : vector<2x384xf32> to vector<2x128xf32>
    %274 = vector.extract_strided_slice %272 {offsets = [0, 0], sizes = [2, 128], strides = [1, 1]} : vector<2x384xf32> to vector<2x128xf32>
    %275 = arith.addf %273, %274 : vector<2x128xf32>
    %276 = arith.negf %275 : vector<2x128xf32>
    %277 = math.exp %276 : vector<2x128xf32>
    %cst_72 = arith.constant 1.000000e+00 : f32
    %278 = vector.broadcast %cst_72 : f32 to vector<2x128xf32>
    %279 = arith.addf %278, %277 : vector<2x128xf32>
    %280 = arith.divf %278, %279 : vector<2x128xf32>
    %281 = vector.extract_strided_slice %268 {offsets = [0, 128], sizes = [2, 128], strides = [1, 1]} : vector<2x384xf32> to vector<2x128xf32>
    %282 = vector.extract_strided_slice %272 {offsets = [0, 128], sizes = [2, 128], strides = [1, 1]} : vector<2x384xf32> to vector<2x128xf32>
    %283 = arith.addf %281, %282 : vector<2x128xf32>
    %284 = arith.negf %283 : vector<2x128xf32>
    %285 = math.exp %284 : vector<2x128xf32>
    %cst_73 = arith.constant 1.000000e+00 : f32
    %286 = vector.broadcast %cst_73 : f32 to vector<2x128xf32>
    %287 = arith.addf %286, %285 : vector<2x128xf32>
    %288 = arith.divf %286, %287 : vector<2x128xf32>
    %289 = vector.extract_strided_slice %268 {offsets = [0, 256], sizes = [2, 128], strides = [1, 1]} : vector<2x384xf32> to vector<2x128xf32>
    %290 = vector.extract_strided_slice %272 {offsets = [0, 256], sizes = [2, 128], strides = [1, 1]} : vector<2x384xf32> to vector<2x128xf32>
    %291 = arith.mulf %280, %290 : vector<2x128xf32>
    %292 = arith.addf %289, %291 : vector<2x128xf32>
    %293 = math.tanh %292 : vector<2x128xf32>
    %cst_74 = arith.constant 1.000000e+00 : f32
    %294 = vector.broadcast %cst_74 : f32 to vector<2x128xf32>
    %295 = arith.subf %294, %288 : vector<2x128xf32>
    %296 = arith.mulf %295, %293 : vector<2x128xf32>
    %297 = arith.mulf %288, %256 : vector<2x128xf32>
    %298 = arith.addf %296, %297 : vector<2x128xf32>
    %299 = arith.index_cast %265 : i32 to index
    %c0_75 = arith.constant 0 : index
    %c0_76 = arith.constant 0 : index
    %300 = vector.load %arg5[%299, %c0_75, %c0_76] : memref<8x2x128xf32, #tpu.memory_space<vmem>>, vector<1x2x128xf32>
    %301 = vector.shape_cast %300 : vector<1x2x128xf32> to vector<2x128xf32>
    %302 = vector.shape_cast %298 : vector<2x128xf32> to vector<1x2x128xf32>
    tpu.vector_store %arg5[%299, %c0_75, %c0_76], %302 {strides = array<i32>} : memref<8x2x128xf32, #tpu.memory_space<vmem>>, vector<1x2x128xf32>,
    %c7_i32_77 = arith.constant 7 : i32
    %c1_i32_78 = arith.constant 1 : i32
    %303 = arith.subi %c1_i32_78, %arg0 : i32
    %304 = arith.muli %c7_i32_77, %303 : i32
    %c7_i32_79 = arith.constant 7 : i32
    %305 = arith.subi %c7_i32_79, %c7_i32_77 : i32
    %306 = arith.muli %305, %arg0 : i32
    %307 = arith.addi %304, %306 : i32
    %308 = arith.index_cast %307 : i32 to index
    %c0_80 = arith.constant 0 : index
    %c0_81 = arith.constant 0 : index
    %309 = vector.load %arg2[%308, %c0_80, %c0_81] : memref<8x2x384xf32, #tpu.memory_space<vmem>>, vector<1x2x384xf32>
    %310 = vector.shape_cast %309 : vector<1x2x384xf32> to vector<2x384xf32>
    %311 = arith.truncf %298 : vector<2x128xf32> to vector<2x128xbf16>
    %cst_82 = arith.constant dense<0.000000e+00> : vector<2x384xf32>
    %312 = tpu.matmul %311, %5, %cst_82 {dimension_numbers = #tpu.dot_dimension_numbers<[1], [0], [0], [1], [0, 0, 1, 1], [], []>} : vector<2x128xbf16>, vector<128x384xbf16>, vector<2x384xf32> -> vector<2x384xf32>
    %313 = vector.broadcast %7 : vector<1x384xf32> to vector<2x384xf32>
    %314 = arith.addf %312, %313 : vector<2x384xf32>
    %315 = vector.extract_strided_slice %310 {offsets = [0, 0], sizes = [2, 128], strides = [1, 1]} : vector<2x384xf32> to vector<2x128xf32>
    %316 = vector.extract_strided_slice %314 {offsets = [0, 0], sizes = [2, 128], strides = [1, 1]} : vector<2x384xf32> to vector<2x128xf32>
    %317 = arith.addf %315, %316 : vector<2x128xf32>
    %318 = arith.negf %317 : vector<2x128xf32>
    %319 = math.exp %318 : vector<2x128xf32>
    %cst_83 = arith.constant 1.000000e+00 : f32
    %320 = vector.broadcast %cst_83 : f32 to vector<2x128xf32>
    %321 = arith.addf %320, %319 : vector<2x128xf32>
    %322 = arith.divf %320, %321 : vector<2x128xf32>
    %323 = vector.extract_strided_slice %310 {offsets = [0, 128], sizes = [2, 128], strides = [1, 1]} : vector<2x384xf32> to vector<2x128xf32>
    %324 = vector.extract_strided_slice %314 {offsets = [0, 128], sizes = [2, 128], strides = [1, 1]} : vector<2x384xf32> to vector<2x128xf32>
    %325 = arith.addf %323, %324 : vector<2x128xf32>
    %326 = arith.negf %325 : vector<2x128xf32>
    %327 = math.exp %326 : vector<2x128xf32>
    %cst_84 = arith.constant 1.000000e+00 : f32
    %328 = vector.broadcast %cst_84 : f32 to vector<2x128xf32>
    %329 = arith.addf %328, %327 : vector<2x128xf32>
    %330 = arith.divf %328, %329 : vector<2x128xf32>
    %331 = vector.extract_strided_slice %310 {offsets = [0, 256], sizes = [2, 128], strides = [1, 1]} : vector<2x384xf32> to vector<2x128xf32>
    %332 = vector.extract_strided_slice %314 {offsets = [0, 256], sizes = [2, 128], strides = [1, 1]} : vector<2x384xf32> to vector<2x128xf32>
    %333 = arith.mulf %322, %332 : vector<2x128xf32>
    %334 = arith.addf %331, %333 : vector<2x128xf32>
    %335 = math.tanh %334 : vector<2x128xf32>
    %cst_85 = arith.constant 1.000000e+00 : f32
    %336 = vector.broadcast %cst_85 : f32 to vector<2x128xf32>
    %337 = arith.subf %336, %330 : vector<2x128xf32>
    %338 = arith.mulf %337, %335 : vector<2x128xf32>
    %339 = arith.mulf %330, %298 : vector<2x128xf32>
    %340 = arith.addf %338, %339 : vector<2x128xf32>
    %341 = arith.index_cast %307 : i32 to index
    %c0_86 = arith.constant 0 : index
    %c0_87 = arith.constant 0 : index
    %342 = vector.load %arg5[%341, %c0_86, %c0_87] : memref<8x2x128xf32, #tpu.memory_space<vmem>>, vector<1x2x128xf32>
    %343 = vector.shape_cast %342 : vector<1x2x128xf32> to vector<2x128xf32>
    %344 = vector.shape_cast %340 : vector<2x128xf32> to vector<1x2x128xf32>
    tpu.vector_store %arg5[%341, %c0_86, %c0_87], %344 {strides = array<i32>} : memref<8x2x128xf32, #tpu.memory_space<vmem>>, vector<1x2x128xf32>,
    %c8_i32 = arith.constant 8 : i32
    %c0_88 = arith.constant 0 : index
    %c0_89 = arith.constant 0 : index
    %345 = vector.load %arg6[%c0_88, %c0_89] : memref<2x128xf32, #tpu.memory_space<vmem>>, vector<2x128xf32>
    tpu.vector_store %arg6[%c0_88, %c0_89], %340 {strides = array<i32>} : memref<2x128xf32, #tpu.memory_space<vmem>>, vector<2x128xf32>,
    return
  }
  func.func @transform_0(%arg0: i32, %arg1: i32) -> (i32, i32, i32) {
    %c1_i32 = arith.constant 1 : i32
    %0 = arith.subi %c1_i32, %arg0 : i32
    %1 = arith.muli %arg1, %0 : i32
    %c0_i32 = arith.constant 0 : i32
    %2 = arith.subi %c0_i32, %arg1 : i32
    %3 = arith.muli %2, %arg0 : i32
    %4 = arith.addi %1, %3 : i32
    %c0_i32_0 = arith.constant 0 : i32
    %c0_i32_1 = arith.constant 0 : i32
    return %4, %c0_i32_0, %arg0 : i32, i32, i32
  }
  func.func @transform_1(%arg0: i32, %arg1: i32) -> (i32, i32, i32) {
    %c0_i32 = arith.constant 0 : i32
    %c0_i32_0 = arith.constant 0 : i32
    %c0_i32_1 = arith.constant 0 : i32
    return %arg0, %c0_i32, %c0_i32_0 : i32, i32, i32
  }
  func.func @transform_2(%arg0: i32, %arg1: i32) -> (i32, i32, i32) {
    %c0_i32 = arith.constant 0 : i32
    %c0_i32_0 = arith.constant 0 : i32
    %c0_i32_1 = arith.constant 0 : i32
    return %arg0, %c0_i32, %c0_i32_0 : i32, i32, i32
  }
  func.func @transform_3(%arg0: i32, %arg1: i32) -> (i32, i32, i32) {
    %c1_i32 = arith.constant 1 : i32
    %0 = arith.subi %c1_i32, %arg0 : i32
    %1 = arith.muli %arg1, %0 : i32
    %c0_i32 = arith.constant 0 : i32
    %2 = arith.subi %c0_i32, %arg1 : i32
    %3 = arith.muli %2, %arg0 : i32
    %4 = arith.addi %1, %3 : i32
    %c0_i32_0 = arith.constant 0 : i32
    %c0_i32_1 = arith.constant 0 : i32
    return %4, %c0_i32_0, %arg0 : i32, i32, i32
  }
}

module attributes {stable_mosaic.version = 11 : i64} {
  func.func @_mlp_kernel(%arg0: i32, %arg1: memref<16x64xf32, #tpu.memory_space<vmem>>, %arg2: memref<64x128xf32, #tpu.memory_space<vmem>>, %arg3: memref<1x128xf32, #tpu.memory_space<vmem>>, %arg4: memref<128x128xf32, #tpu.memory_space<vmem>>, %arg5: memref<1x128xf32, #tpu.memory_space<vmem>>, %arg6: memref<16x128xf32, #tpu.memory_space<vmem>>, %arg7: memref<16x128xbf16, #tpu.memory_space<vmem>>) attributes {dimension_semantics = [#tpu.dimension_semantics<parallel>], iteration_bounds = array<i64: 1>, scalar_prefetch = 0 : i64, scratch_operands = 1 : i64, tpu.core_type = #tpu.core_type<tc>, window_params = [{transform_indices = @transform_0, window_bounds = array<i64: 16, 64>}, {pipeline_mode = #tpu.pipeline_mode<synchronous>, transform_indices = @transform_1, window_bounds = array<i64: 64, 128>}, {pipeline_mode = #tpu.pipeline_mode<synchronous>, transform_indices = @transform_2, window_bounds = array<i64: 1, 128>}, {pipeline_mode = #tpu.pipeline_mode<synchronous>, transform_indices = @transform_3, window_bounds = array<i64: 128, 128>}, {pipeline_mode = #tpu.pipeline_mode<synchronous>, transform_indices = @transform_4, window_bounds = array<i64: 1, 128>}, {transform_indices = @transform_5, window_bounds = array<i64: 16, 128>}]} {
    %c0 = arith.constant 0 : index
    %c0_0 = arith.constant 0 : index
    %0 = vector.load %arg1[%c0, %c0_0] : memref<16x64xf32, #tpu.memory_space<vmem>>, vector<16x64xf32>
    %1 = arith.truncf %0 : vector<16x64xf32> to vector<16x64xbf16>
    %c0_1 = arith.constant 0 : index
    %c0_2 = arith.constant 0 : index
    %2 = vector.load %arg2[%c0_1, %c0_2] : memref<64x128xf32, #tpu.memory_space<vmem>>, vector<64x128xf32>
    %3 = arith.truncf %2 : vector<64x128xf32> to vector<64x128xbf16>
    %cst = arith.constant dense<0.000000e+00> : vector<16x128xf32>
    %4 = tpu.matmul %1, %3, %cst {dimension_numbers = #tpu.dot_dimension_numbers<[1], [0], [0], [1], [0, 0, 1, 1], [], []>} : vector<16x64xbf16>, vector<64x128xbf16>, vector<16x128xf32> -> vector<16x128xf32>
    %c0_3 = arith.constant 0 : index
    %c0_4 = arith.constant 0 : index
    %5 = vector.load %arg3[%c0_3, %c0_4] : memref<1x128xf32, #tpu.memory_space<vmem>>, vector<1x128xf32>
    %6 = vector.broadcast %5 : vector<1x128xf32> to vector<16x128xf32>
    %7 = arith.addf %4, %6 : vector<16x128xf32>
    %cst_5 = arith.constant 5.000000e-01 : f32
    %8 = vector.broadcast %cst_5 : f32 to vector<16x128xf32>
    %9 = arith.mulf %8, %7 : vector<16x128xf32>
    %cst_6 = arith.constant 1.41421354 : f32
    %10 = vector.broadcast %cst_6 : f32 to vector<16x128xf32>
    %11 = arith.divf %7, %10 : vector<16x128xf32>
    %12 = math.erf %11 : vector<16x128xf32>
    %cst_7 = arith.constant 1.000000e+00 : f32
    %13 = vector.broadcast %cst_7 : f32 to vector<16x128xf32>
    %14 = arith.addf %13, %12 : vector<16x128xf32>
    %15 = arith.mulf %9, %14 : vector<16x128xf32>
    %16 = arith.truncf %15 : vector<16x128xf32> to vector<16x128xbf16>
    %c0_8 = arith.constant 0 : index
    %c0_9 = arith.constant 0 : index
    %17 = vector.load %arg7[%c0_8, %c0_9] : memref<16x128xbf16, #tpu.memory_space<vmem>>, vector<16x128xbf16>
    tpu.vector_store %arg7[%c0_8, %c0_9], %16 {strides = array<i32>} : memref<16x128xbf16, #tpu.memory_space<vmem>>, vector<16x128xbf16>,
    %c0_10 = arith.constant 0 : index
    %c0_11 = arith.constant 0 : index
    %18 = vector.load %arg7[%c0_10, %c0_11] : memref<16x128xbf16, #tpu.memory_space<vmem>>, vector<16x128xbf16>
    %c0_12 = arith.constant 0 : index
    %c0_13 = arith.constant 0 : index
    %19 = vector.load %arg4[%c0_12, %c0_13] : memref<128x128xf32, #tpu.memory_space<vmem>>, vector<128x128xf32>
    %20 = arith.truncf %19 : vector<128x128xf32> to vector<128x128xbf16>
    %cst_14 = arith.constant dense<0.000000e+00> : vector<16x128xf32>
    %21 = tpu.matmul %18, %20, %cst_14 {dimension_numbers = #tpu.dot_dimension_numbers<[1], [0], [0], [1], [0, 0, 1, 1], [], []>} : vector<16x128xbf16>, vector<128x128xbf16>, vector<16x128xf32> -> vector<16x128xf32>
    %c0_15 = arith.constant 0 : index
    %c0_16 = arith.constant 0 : index
    %22 = vector.load %arg5[%c0_15, %c0_16] : memref<1x128xf32, #tpu.memory_space<vmem>>, vector<1x128xf32>
    %23 = vector.broadcast %22 : vector<1x128xf32> to vector<16x128xf32>
    %24 = arith.addf %21, %23 : vector<16x128xf32>
    %c0_17 = arith.constant 0 : index
    %c0_18 = arith.constant 0 : index
    %25 = vector.load %arg6[%c0_17, %c0_18] : memref<16x128xf32, #tpu.memory_space<vmem>>, vector<16x128xf32>
    tpu.vector_store %arg6[%c0_17, %c0_18], %24 {strides = array<i32>} : memref<16x128xf32, #tpu.memory_space<vmem>>, vector<16x128xf32>,
    return
  }
  func.func @transform_0(%arg0: i32) -> (i32, i32) {
    %c0_i32 = arith.constant 0 : i32
    %c0_i32_0 = arith.constant 0 : i32
    return %arg0, %c0_i32 : i32, i32
  }
  func.func @transform_1(%arg0: i32) -> (i32, i32) {
    %c0_i32 = arith.constant 0 : i32
    %c0_i32_0 = arith.constant 0 : i32
    %c0_i32_1 = arith.constant 0 : i32
    return %c0_i32, %c0_i32_0 : i32, i32
  }
  func.func @transform_2(%arg0: i32) -> (i32, i32) {
    %c0_i32 = arith.constant 0 : i32
    %c0_i32_0 = arith.constant 0 : i32
    %c0_i32_1 = arith.constant 0 : i32
    return %c0_i32, %c0_i32_0 : i32, i32
  }
  func.func @transform_3(%arg0: i32) -> (i32, i32) {
    %c0_i32 = arith.constant 0 : i32
    %c0_i32_0 = arith.constant 0 : i32
    %c0_i32_1 = arith.constant 0 : i32
    return %c0_i32, %c0_i32_0 : i32, i32
  }
  func.func @transform_4(%arg0: i32) -> (i32, i32) {
    %c0_i32 = arith.constant 0 : i32
    %c0_i32_0 = arith.constant 0 : i32
    %c0_i32_1 = arith.constant 0 : i32
    return %c0_i32, %c0_i32_0 : i32, i32
  }
  func.func @transform_5(%arg0: i32) -> (i32, i32) {
    %c0_i32 = arith.constant 0 : i32
    %c0_i32_0 = arith.constant 0 : i32
    return %arg0, %c0_i32 : i32, i32
  }
}

</mosaic_0001>

<llo_original>
// kernel: speech_recognition_forward.16
$region0: #{speech_recognition_forward.16}
  #allocation0 [shape = 'u32[]', space=smem, size = 0x4, offset = 0x4, fixed_abs, tag = 'smem constant byte address 0x4 - core index']
  #allocation1 [shape = 'u32[144,128]{1,0:T(1,128)}', space=vmem, size = 0x12000, scoped, tag = 'internal scratch']
  %s0 = inlined_call_operand.vmem [shape: f32[2,8,256], index: 0, kind: input, shape index: {}]
  %s1 = inlined_call_operand.vmem [shape: f32[1,8,1], index: 1, kind: input, shape index: {}]
  %s2 = inlined_call_operand.vmem [shape: f32[1,8,1], index: 2, kind: input, shape index: {}]
  %s3 = inlined_call_operand.vmem [shape: f32[2,8,256], index: 3, kind: output, shape index: {}]
  %s4 = sld [smem:[#allocation0]]
  $region45: #{speech_recognition_forward.16} parent=0
    _
  %s6 = ssub.s32 1, %s4
  %s7 = scalar_select 0, %s6, %s4
  loop: start=0, step=1, limit=4
  $region2: #{speech_recognition_forward.16} parent=0 // loop_pre_header
    _
  $region3: #{speech_recognition_forward.16} parent=0 // loop_header
    %s9 = sphi 0, %s13
    %p10 = scmp.ge.s32.totalorder %s9, 4
    %s16 = sphi 0, %s28
    %s17 = sphi 0, %s24
    %s18 = sphi 0, %s16
    %s19 = sphi 0, %s17
    %s20 = sphi 0, %s18
    %s21 = sphi 0, %s19
    %s33 = sphi 0, %s35
    %s36 = sphi 0, %s33
    %s37 = sphi 0, %s36
    %s53 = sphi 0, %s37
    %s57 = sphi 0, %s57
    %s59 = sphi 0, %s57
    %s60 = sphi 0, %s59
    %s74 = sphi 0, %s60
    %s78 = sphi 0, %s78
    %s80 = sphi 0, %s78
    %s81 = sphi 0, %s80
    %s95 = sphi 0, %s81
    %s103 = sphi 0, %s105
    %s106 = sphi 0, %s103
    %s107 = sphi 0, %s106
    %s123 = sphi 0, %s107
  $region4: #{speech_recognition_forward.16} parent=0 // loop_header_branch
    %12 = sbr.rel (%p10) target = $region8
  $region5: #{speech_recognition_forward.16} parent=0 // loop_body
    %s14 = ssub.s32 %s9, 1
    %s15 = ssub.s32 %s9, 2
    %s22 = sadd.s32 1, %s17
    %p23 = scmp.ge.s32.totalorder %s22, 1
    %s24 = scalar_select %p23, 0, %s22
    %s25 = sadd.s32 1, %s16
    %s26 = scalar_select %p23, %s25, %s16
    %p27 = scmp.ge.s32.totalorder %s26, 2
    %s28 = scalar_select %p27, 0, %s26
    %s29 = ssub.s32 %s16, %s28
    %s30 = ssub.s32 %s17, %s24
    %s31 = sor.u32 %s29, %s30
    %p32 = scmp.eq.s32.totalorder %s31, 0
    %s34 = sadd.s32 %s33, 1
    %s35 = scalar_select %p32, %s33, %s34
    %p38 = pneg %p32
    %p39 = scmp.eq.s32.totalorder %s9, 1
    %p40 = por %p38, %p39
    %p41 = scmp.ne.s32.totalorder %s33, %s36
    %p42 = scmp.eq.s32.totalorder %s9, 0
    %p43 = por %p41, %p42
    %p44 = scmp.ne.s32.totalorder %s33, %s36
    %p45 = scmp.eq.s32.totalorder %s14, 1
    %p46 = por %p44, %p45
    %p47 = scmp.ne.s32.totalorder %s36, %s37
    %p48 = scmp.eq.s32.totalorder %s14, 0
    %p49 = por %p47, %p48
    %p50 = scmp.ne.s32.totalorder %s36, %s37
    %p51 = scmp.eq.s32.totalorder %s15, 1
    %p52 = por %p50, %p51
    %p54 = scmp.ne.s32.totalorder %s37, %s53
    %p55 = scmp.eq.s32.totalorder %s15, 0
    %p56 = por %p54, %p55
    %s58 = sadd.s32 %s57, 1
    %p61 = scmp.eq.s32.totalorder %s9, 1
    %p62 = scmp.ne.s32.totalorder %s57, %s59
    %p63 = scmp.eq.s32.totalorder %s9, 0
    %p64 = por %p62, %p63
    %p65 = scmp.ne.s32.totalorder %s57, %s59
    %p66 = scmp.eq.s32.totalorder %s14, 1
    %p67 = por %p65, %p66
    %p68 = scmp.ne.s32.totalorder %s59, %s60
    %p69 = scmp.eq.s32.totalorder %s14, 0
    %p70 = por %p68, %p69
    %p71 = scmp.ne.s32.totalorder %s59, %s60
    %p72 = scmp.eq.s32.totalorder %s15, 1
    %p73 = por %p71, %p72
    %p75 = scmp.ne.s32.totalorder %s60, %s74
    %p76 = scmp.eq.s32.totalorder %s15, 0
    %p77 = por %p75, %p76
    %s79 = sadd.s32 %s78, 1
    %p82 = scmp.eq.s32.totalorder %s9, 1
    %p83 = scmp.ne.s32.totalorder %s78, %s80
    %p84 = scmp.eq.s32.totalorder %s9, 0
    %p85 = por %p83, %p84
    %p86 = scmp.ne.s32.totalorder %s78, %s80
    %p87 = scmp.eq.s32.totalorder %s14, 1
    %p88 = por %p86, %p87
    %p89 = scmp.ne.s32.totalorder %s80, %s81
    %p90 = scmp.eq.s32.totalorder %s14, 0
    %p91 = por %p89, %p90
    %p92 = scmp.ne.s32.totalorder %s80, %s81
    %p93 = scmp.eq.s32.totalorder %s15, 1
    %p94 = por %p92, %p93
    %p96 = scmp.ne.s32.totalorder %s81, %s95
    %p97 = scmp.eq.s32.totalorder %s15, 0
    %p98 = por %p96, %p97
    %s99 = ssub.s32 %s16, %s28
    %s100 = ssub.s32 %s17, %s24
    %s101 = sor.u32 %s99, %s100
    %p102 = scmp.eq.s32.totalorder %s101, 0
    %s104 = sadd.s32 %s103, 1
    %s105 = scalar_select %p102, %s103, %s104
    %p108 = pneg %p102
    %p109 = scmp.eq.s32.totalorder %s9, 1
    %p110 = por %p108, %p109
    %p111 = scmp.ne.s32.totalorder %s103, %s106
    %p112 = scmp.eq.s32.totalorder %s9, 0
    %p113 = por %p111, %p112
    %p114 = scmp.ne.s32.totalorder %s103, %s106
    %p115 = scmp.eq.s32.totalorder %s14, 1
    %p116 = por %p114, %p115
    %p117 = scmp.ne.s32.totalorder %s106, %s107
    %p118 = scmp.eq.s32.totalorder %s14, 0
    %p119 = por %p117, %p118
    %p120 = scmp.ne.s32.totalorder %s106, %s107
    %p121 = scmp.eq.s32.totalorder %s15, 1
    %p122 = por %p120, %p121
    %p124 = scmp.ne.s32.totalorder %s107, %s123
    %p125 = scmp.eq.s32.totalorder %s15, 0
    %p126 = por %p124, %p125
    %p127 = scmp.le.s32.totalorder 1, %s9
    %p128 = scmp.lt.s32.totalorder %s9, 3
    %p129 = pnand %p127, %p128
    %p130 = pneg %p129
    // Predicated region
    $region9: #{speech_recognition_forward.16} parent=5 // pred_check
      _
    $region10: #{speech_recognition_forward.16} parent=5 // pred_check_branch
      %132 = sbr.rel (%p129) target = $region12
    $region11: #{speech_recognition_forward.16} parent=5 // pred_region
      %s133 = ssub.s32 %s9, 1
      // Predicated region
      $region13: #{speech_recognition_forward.16} parent=11 // pred_check
        %p134 = pneg %p70
      $region14: #{speech_recognition_forward.16} parent=11 // pred_check_branch
        %136 = sbr.rel (%p134) target = $region16
      $region15: #{speech_recognition_forward.16} parent=11 // pred_region
        _
      $region16: #{speech_recognition_forward.16} parent=11 // pred_fallthru
        _
      // Predicated region
      $region17: #{speech_recognition_forward.16} parent=11 // pred_check
        %p137 = pneg %p91
      $region18: #{speech_recognition_forward.16} parent=11 // pred_check_branch
        %139 = sbr.rel (%p137) target = $region20
      $region19: #{speech_recognition_forward.16} parent=11 // pred_region
        _
      $region20: #{speech_recognition_forward.16} parent=11 // pred_fallthru
        _
    $region12: #{speech_recognition_forward.16} parent=5 // pred_fallthru
      _
    %p140 = scmp.lt.s32.totalorder %s9, 2
    // Predicated region
    $region21: #{speech_recognition_forward.16} parent=5 // pred_check
      %p141 = pneg %p140
    $region22: #{speech_recognition_forward.16} parent=5 // pred_check_branch
      %143 = sbr.rel (%p141) target = $region24
    $region23: #{speech_recognition_forward.16} parent=5 // pred_region
      // Predicated region
      $region25: #{speech_recognition_forward.16} parent=23 // pred_check
        %p144 = pneg %p43
      $region26: #{speech_recognition_forward.16} parent=23 // pred_check_branch
        %146 = sbr.rel (%p144) target = $region28
      $region27: #{speech_recognition_forward.16} parent=23 // pred_region
        %s147 = smul.u32 2, %s17
        %p148 = scmp.lt.s32.totalorder %s16, 1
        %s149 = scalar_select %p148, %s16, 1
        %p150 = scmp.lt.s32.totalorder %s147, 1
        %s151 = scalar_select %p150, %s147, 1
        %s152 = smul.addr %s149, 2
        %s153 = sadd.s32 %s151, %s152
        %s154 = smul.addr %s153, 8
        %s155 = scalar_lea.vmem %s0, %s154
        %s156 = smul.u32 2, %s17
      $region28: #{speech_recognition_forward.16} parent=23 // pred_fallthru
        _
    $region24: #{speech_recognition_forward.16} parent=5 // pred_fallthru
      _
    %p157 = scmp.le.s32.totalorder 1, %s9
    %p158 = scmp.lt.s32.totalorder %s9, 3
    %p159 = pnand %p157, %p158
    %p160 = pneg %p159
    // Predicated region
    $region29: #{speech_recognition_forward.16} parent=5 // pred_check
      _
    $region30: #{speech_recognition_forward.16} parent=5 // pred_check_branch
      %162 = sbr.rel (%p159) target = $region32
    $region31: #{speech_recognition_forward.16} parent=5 // pred_region
      %s163 = ssub.s32 %s9, 1
      %s164 = smul.u32 2, %s19
      %p165 = scmp.lt.s32.totalorder %s18, 1
      %s166 = scalar_select %p165, %s18, 1
      %p167 = scmp.lt.s32.totalorder %s164, 1
      %s168 = scalar_select %p167, %s164, 1
      %s169 = smul.addr %s166, 2
      %s170 = sadd.s32 %s168, %s169
      %s171 = smul.addr %s170, 8
      %s172 = scalar_lea.vmem %s0, %s171
      %p173 = pneg %p49
      %p174 = pneg %p46
      %p175 = pneg %p70
      %p176 = pneg %p67
      %p177 = pneg %p91
      %p178 = pneg %p88
      %p179 = pneg %p119
      %p180 = pneg %p116
      %s181 = smul.u32 2, %s19
      %p182 = scmp.lt.s32.totalorder %s18, 1
      %s183 = scalar_select %p182, %s18, 1
      %p184 = scmp.lt.s32.totalorder %s181, 1
      %s185 = scalar_select %p184, %s181, 1
      %s186 = smul.addr %s183, 2
      %s187 = sadd.s32 %s185, %s186
      %s188 = smul.addr %s187, 8
      %s189 = scalar_lea.vmem %s3, %s188
      %s190 = smul.u32 2, %s19
      %p191 = scmp.lt.s32.totalorder %s18, 1
      %s192 = scalar_select %p191, %s18, 1
      %p193 = scmp.lt.s32.totalorder %s190, 1
      %s194 = scalar_select %p193, %s190, 1
      %s195 = smul.addr %s192, 2
      %s196 = sadd.s32 %s194, %s195
      %s197 = smul.addr %s196, 8
      %s198 = scalar_lea.vmem %s0, %s197
      %s199 = smul.u32 2, %s19
      %s200 = smul.u32 2, %s19
      %p201 = scmp.lt.s32.totalorder %s18, 1
      %s202 = scalar_select %p201, %s18, 1
      %p203 = scmp.lt.s32.totalorder %s200, 1
      %s204 = scalar_select %p203, %s200, 1
      %s205 = smul.addr %s202, 2
      %s206 = sadd.s32 %s204, %s205
      %s207 = smul.addr %s206, 8
      %s208 = scalar_lea.vmem %s3, %s207
      %s209 = smul.u32 2, %s19
      %v210 = vld [vmem:[%s198] sm:$0xff]
      %v211 = vld [vmem:[%s198 + $0x8] sm:$0xff]
      %v212 = vrot.slane %v210, 4
      %v213 = vadd.f32 %v210, %v212
      %v214 = vrot.slane %v213, 2
      %v215 = vadd.f32 %v213, %v214
      %v216 = vrot.slane %v215, 1
      %v217 = vadd.f32 %v215, %v216
      %v218 = vrot.slane %v211, 4
      %v219 = vadd.f32 %v211, %v218
      %v220 = vrot.slane %v219, 2
      %v221 = vadd.f32 %v219, %v220
      %v222 = vrot.slane %v221, 1
      %v223 = vadd.f32 %v221, %v222
      %v224 = vrcp.pop 8.0
      %v225 = vmul.f32 %v217, %v224
      %v226 = vmul.f32 %v223, %v224
      %v227 = vsub.f32 %v210, %v225
      %v228 = vsub.f32 %v211, %v226
      %v229 = vmul.f32 %v227, %v227
      %v230 = vmul.f32 %v228, %v228
      %v231 = vrot.slane %v229, 4
      %v232 = vadd.f32 %v229, %v231
      %v233 = vrot.slane %v232, 2
      %v234 = vadd.f32 %v232, %v233
      %v235 = vrot.slane %v234, 1
      %v236 = vadd.f32 %v234, %v235
      %v237 = vrot.slane %v230, 4
      %v238 = vadd.f32 %v230, %v237
      %v239 = vrot.slane %v238, 2
      %v240 = vadd.f32 %v238, %v239
      %v241 = vrot.slane %v240, 1
      %v242 = vadd.f32 %v240, %v241
      %v243 = vmul.f32 %v236, %v224
      %v244 = vmul.f32 %v242, %v224
      %v245 = vadd.f32 %v243, 1e-05
      %v246 = vadd.f32 %v244, 1e-05
      %v247 = vrsqrt.pop %v245
      %v248 = vrsqrt.pop %v246
      %v249 = vmul.f32 %v227, %v247
      %v250 = vmul.f32 %v228, %v248
      %v251 = vld [vmem:[%s1] sm:$0xff]
      %253 = vset.pattern.permute.xlu0 0
      %254 = vperm.xlu0 %253, %v251
      %v255 = vpop.permute.xlu0 %254
      %v257 = vmul.f32 %v249, %v255
      %v258 = vmul.f32 %v250, %v255
      %v259 = vld [vmem:[%s2] sm:$0xff]
      %261 = vset.pattern.permute.xlu0 0
      %262 = vperm.xlu0 %261, %v259
      %v263 = vpop.permute.xlu0 %262
      %v265 = vadd.f32 %v257, %v263
      %v266 = vadd.f32 %v258, %v263
      %v267 = vmul.f32 %v265, 0.5
      %v268 = vmul.f32 %v266, 0.5
      %v269 = vrcp.pop 1.4142135
      %v270 = vmul.f32 %v265, %v269
      %v271 = vmul.f32 %v266, %v269
      %v272 = verf.f32.pop %v270
      %v273 = verf.f32.pop %v271
      %v274 = vadd.f32 %v272, 1.0
      %v275 = vadd.f32 %v273, 1.0
      %v276 = vmul.f32 %v267, %v274
      %v277 = vmul.f32 %v268, %v275
      %278 = vst [vmem:[%s208] sm:$0xff] %v276
      %279 = vst [vmem:[%s208 + $0x8] sm:$0xff] %v277
      %s280 = smul.u32 2, %s19
      %p281 = scmp.lt.s32.totalorder %s18, 1
      %s282 = scalar_select %p281, %s18, 1
      %p283 = scmp.lt.s32.totalorder %s280, 1
      %s284 = scalar_select %p283, %s280, 1
      %s285 = smul.addr %s282, 2
      %s286 = sadd.s32 %s284, %s285
      %s287 = smul.addr %s286, 8
      %s288 = scalar_lea.vmem %s3, %s287
      // Predicated region
      $region33: #{speech_recognition_forward.16} parent=31 // pred_check
        %p289 = pneg %p116
      $region34: #{speech_recognition_forward.16} parent=31 // pred_check_branch
        %291 = sbr.rel (%p289) target = $region36
      $region35: #{speech_recognition_forward.16} parent=31 // pred_region
        %s292 = smul.u32 2, %s19
      $region36: #{speech_recognition_forward.16} parent=31 // pred_fallthru
        _
    $region32: #{speech_recognition_forward.16} parent=5 // pred_fallthru
      _
    %p293 = scmp.le.s32.totalorder 2, %s9
    // Predicated region
    $region37: #{speech_recognition_forward.16} parent=5 // pred_check
      %p294 = pneg %p293
    $region38: #{speech_recognition_forward.16} parent=5 // pred_check_branch
      %296 = sbr.rel (%p294) target = $region40
    $region39: #{speech_recognition_forward.16} parent=5 // pred_region
      %s297 = ssub.s32 %s9, 2
      // Predicated region
      $region41: #{speech_recognition_forward.16} parent=39 // pred_check
        %p298 = pneg %p122
      $region42: #{speech_recognition_forward.16} parent=39 // pred_check_branch
        %300 = sbr.rel (%p298) target = $region44
      $region43: #{speech_recognition_forward.16} parent=39 // pred_region
        %s301 = smul.u32 2, %s21
        %p302 = scmp.lt.s32.totalorder %s20, 1
        %s303 = scalar_select %p302, %s20, 1
        %p304 = scmp.lt.s32.totalorder %s301, 1
        %s305 = scalar_select %p304, %s301, 1
        %s306 = smul.addr %s303, 2
        %s307 = sadd.s32 %s305, %s306
        %s308 = smul.addr %s307, 8
        %s309 = scalar_lea.vmem %s3, %s308
      $region44: #{speech_recognition_forward.16} parent=39 // pred_fallthru
        _
    $region40: #{speech_recognition_forward.16} parent=5 // pred_fallthru
      _
  $region6: #{speech_recognition_forward.16} parent=0 // loop_footer
    %s13 = sadd.s32 1, %s9
  $region7: #{speech_recognition_forward.16} parent=0 // loop_footer_branch
    %8 = sbr.rel target = $region3
  $region8: #{speech_recognition_forward.16} parent=0 // loop_exit
    _

// kernel: speech_recognition_forward.15
$region0: #{speech_recognition_forward.15}
  #allocation0 [shape = 'u32[]', space=smem, size = 0x4, offset = 0x4, fixed_abs, tag = 'smem constant byte address 0x4 - core index']
  #allocation1 [shape = 'u32[144,128]{1,0:T(1,128)}', space=vmem, size = 0x12000, scoped, tag = 'internal scratch']
  #allocation2 [shape = 'f32[128,128]{1,0:T(8,128)}', space=vmem, size = 0x10000, scoped, tag = 'scratch operand']
  %s0 = inlined_call_operand.vmem [shape: f32[128,9], index: 0, kind: input, shape index: {}]
  %s1 = inlined_call_operand.vmem [shape: f32[9,128], index: 1, kind: input, shape index: {}]
  %s2 = inlined_call_operand.vmem [shape: f32[1,128], index: 2, kind: input, shape index: {}]
  %s3 = inlined_call_operand.vmem [shape: f32[128,128], index: 3, kind: output, shape index: {}]
  %s4 = sld [smem:[#allocation0]]
  $region30: #{speech_recognition_forward.15} parent=0
    _
  %s6 = ssub.s32 1, %s4
  %s7 = scalar_select 0, %s6, %s4
  // Predicated region
  $region2: #{speech_recognition_forward.15} parent=0 // pred_check
    _
  $region3: #{speech_recognition_forward.15} parent=0 // pred_check_branch
    %9 = sbr.rel (0) target = $region5
  $region4: #{speech_recognition_forward.15} parent=0 // pred_region
    _
  $region5: #{speech_recognition_forward.15} parent=0 // pred_fallthru
    _
  // Predicated region
  $region6: #{speech_recognition_forward.15} parent=0 // pred_check
    _
  $region7: #{speech_recognition_forward.15} parent=0 // pred_check_branch
    %11 = sbr.rel (0) target = $region9
  $region8: #{speech_recognition_forward.15} parent=0 // pred_region
    _
  $region9: #{speech_recognition_forward.15} parent=0 // pred_fallthru
    _
  // Predicated region
  $region10: #{speech_recognition_forward.15} parent=0 // pred_check
    _
  $region11: #{speech_recognition_forward.15} parent=0 // pred_check_branch
    %13 = sbr.rel (0) target = $region13
  $region12: #{speech_recognition_forward.15} parent=0 // pred_region
    _
  $region13: #{speech_recognition_forward.15} parent=0 // pred_fallthru
    _
  %p15 = scmp.eq.s32.totalorder 0, 0
  // Predicated region
  $region14: #{speech_recognition_forward.15} parent=0 // pred_check
    %p16 = pneg %p15
  $region15: #{speech_recognition_forward.15} parent=0 // pred_check_branch
    %18 = sbr.rel (%p16) target = $region17
  $region16: #{speech_recognition_forward.15} parent=0 // pred_region
    %19 = vst [vmem:[#allocation2] sm:$0xff] 0.0
    %20 = vst [vmem:[#allocation2 + $0x8] sm:$0xff] 0.0
    %21 = vst [vmem:[#allocation2 + $0x10] sm:$0xff] 0.0
    %22 = vst [vmem:[#allocation2 + $0x18] sm:$0xff] 0.0
    %23 = vst [vmem:[#allocation2 + $0x20] sm:$0xff] 0.0
    %24 = vst [vmem:[#allocation2 + $0x28] sm:$0xff] 0.0
    %25 = vst [vmem:[#allocation2 + $0x30] sm:$0xff] 0.0
    %26 = vst [vmem:[#allocation2 + $0x38] sm:$0xff] 0.0
    %27 = vst [vmem:[#allocation2 + $0x40] sm:$0xff] 0.0
    %28 = vst [vmem:[#allocation2 + $0x48] sm:$0xff] 0.0
    %29 = vst [vmem:[#allocation2 + $0x50] sm:$0xff] 0.0
    %30 = vst [vmem:[#allocation2 + $0x58] sm:$0xff] 0.0
    %31 = vst [vmem:[#allocation2 + $0x60] sm:$0xff] 0.0
    %32 = vst [vmem:[#allocation2 + $0x68] sm:$0xff] 0.0
    %33 = vst [vmem:[#allocation2 + $0x70] sm:$0xff] 0.0
    %34 = vst [vmem:[#allocation2 + $0x78] sm:$0xff] 0.0
  $region17: #{speech_recognition_forward.15} parent=0 // pred_fallthru
    _
  %v35 = vld [vmem:[#allocation2] sm:$0xff]
  %v36 = vld [vmem:[#allocation2 + $0x8] sm:$0xff]
  %v37 = vld [vmem:[#allocation2 + $0x10] sm:$0xff]
  %v38 = vld [vmem:[#allocation2 + $0x18] sm:$0xff]
  %v39 = vld [vmem:[#allocation2 + $0x20] sm:$0xff]
  %v40 = vld [vmem:[#allocation2 + $0x28] sm:$0xff]
  %v41 = vld [vmem:[#allocation2 + $0x30] sm:$0xff]
  %v42 = vld [vmem:[#allocation2 + $0x38] sm:$0xff]
  %v43 = vld [vmem:[#allocation2 + $0x40] sm:$0xff]
  %v44 = vld [vmem:[#allocation2 + $0x48] sm:$0xff]
  %v45 = vld [vmem:[#allocation2 + $0x50] sm:$0xff]
  %v46 = vld [vmem:[#allocation2 + $0x58] sm:$0xff]
  %v47 = vld [vmem:[#allocation2 + $0x60] sm:$0xff]
  %v48 = vld [vmem:[#allocation2 + $0x68] sm:$0xff]
  %v49 = vld [vmem:[#allocation2 + $0x70] sm:$0xff]
  %v50 = vld [vmem:[#allocation2 + $0x78] sm:$0xff]
  %v51 = vld [vmem:[%s0] sm:$0xff]
  %v52 = vld [vmem:[%s0 + $0x8] sm:$0xff]
  %v53 = vld [vmem:[%s0 + $0x10] sm:$0xff]
  %v54 = vld [vmem:[%s0 + $0x18] sm:$0xff]
  %v55 = vld [vmem:[%s0 + $0x20] sm:$0xff]
  %v56 = vld [vmem:[%s0 + $0x28] sm:$0xff]
  %v57 = vld [vmem:[%s0 + $0x30] sm:$0xff]
  %v58 = vld [vmem:[%s0 + $0x38] sm:$0xff]
  %v59 = vld [vmem:[%s0 + $0x40] sm:$0xff]
  %v60 = vld [vmem:[%s0 + $0x48] sm:$0xff]
  %v61 = vld [vmem:[%s0 + $0x50] sm:$0xff]
  %v62 = vld [vmem:[%s0 + $0x58] sm:$0xff]
  %v63 = vld [vmem:[%s0 + $0x60] sm:$0xff]
  %v64 = vld [vmem:[%s0 + $0x68] sm:$0xff]
  %v65 = vld [vmem:[%s0 + $0x70] sm:$0xff]
  %v66 = vld [vmem:[%s0 + $0x78] sm:$0xff]
  %v67 = vpack.c.bf16 %v52, %v51
  %v68 = vpack.c.bf16 %v54, %v53
  %v69 = vpack.c.bf16 %v56, %v55
  %v70 = vpack.c.bf16 %v58, %v57
  %v71 = vpack.c.bf16 %v60, %v59
  %v72 = vpack.c.bf16 %v62, %v61
  %v73 = vpack.c.bf16 %v64, %v63
  %v74 = vpack.c.bf16 %v66, %v65
  %v75 = vld [vmem:[%s1] sm:$0xff]
  %v76 = vld [vmem:[%s1 + $0x8] sm:$0x1]
  %v77 = vpack.c.bf16 %v76, %v75
  %vm78 = vcmask 72704
  %v80 = vsel %vm78, %v67, 0
  %v83 = vsel %vm78, %v68, 0
  %v86 = vsel %vm78, %v69, 0
  %v89 = vsel %vm78, %v70, 0
  %v92 = vsel %vm78, %v71, 0
  %v95 = vsel %vm78, %v72, 0
  %v98 = vsel %vm78, %v73, 0
  %v101 = vsel %vm78, %v74, 0
  %vm103 = vcmask 1043456
  %vm104 = vcmask 1044480
  %v105 = vsel %vm103, 4294967295, 65535
  %v106 = vsel %vm104, %v105, 0
  %v108 = vand.u32 %v77, %v106
  %110 = vmatprep.subr.bf16.mxu0 0
  %111 = vmatpush1.bf16.msra.mxu0 %v108
  %112 = vmatprep.subr.bf16.mxu0 0
  %113 = vmatpush1.bf16.msra.mxu0 0
  %114 = vmatprep.subr.bf16.mxu0 0
  %115 = vmatpush1.bf16.msra.mxu0 0
  %116 = vmatprep.subr.bf16.mxu0 0
  %117 = vmatpush1.bf16.msra.mxu0 0
  %118 = vmatprep.subr.bf16.mxu0 0
  %119 = vmatpush1.bf16.msra.mxu0 0
  %120 = vmatprep.subr.bf16.mxu0 0
  %121 = vmatpush1.bf16.msra.mxu0 0
  %122 = vmatprep.subr.bf16.mxu0 0
  %123 = vmatpush1.bf16.msra.mxu0 0
  %124 = vmatprep.subr.bf16.mxu0 0
  %125 = vmatpush1.bf16.msra.mxu0 0
  %126 = vmatprep.subr.bf16.mxu0 0
  %127 = vmatpush1.bf16.msra.mxu0 0
  %128 = vmatprep.subr.bf16.mxu0 0
  %129 = vmatpush1.bf16.msra.mxu0 0
  %130 = vmatprep.subr.bf16.mxu0 0
  %131 = vmatpush1.bf16.msra.mxu0 0
  %132 = vmatprep.subr.bf16.mxu0 0
  %133 = vmatpush1.bf16.msra.mxu0 0
  %134 = vmatprep.subr.bf16.mxu0 0
  %135 = vmatpush1.bf16.msra.mxu0 0
  %136 = vmatprep.subr.bf16.mxu0 0
  %137 = vmatpush1.bf16.msra.mxu0 0
  %138 = vmatprep.subr.bf16.mxu0 0
  %139 = vmatpush1.bf16.msra.mxu0 0
  %140 = vmatprep.subr.bf16.mxu0 0
  %141 = vmatpush1.bf16.msra.mxu0 0
  %142 = vmatprep.mubr.bf16.mxu0 0
  %143 = vmatmul.mubr.bf16.gmra.mrb[0].mxu0 %v80
  %v144 = vpop.f32.mrb[0].mxu0
  %v145 = vadd.f32 0.0, %v144
  %v146 = vpop.f32.mrb[0].mxu0
  %v147 = vpop.f32.mrb[0].mxu0
  %v148 = vadd.f32 0.0, %v147
  %v149 = vpop.f32.mrb[0].mxu0
  %150 = vmatprep.mubr.bf16.mxu0 0
  %151 = vmatmul.mubr.bf16.gmra.mrb[0].mxu0 %v83
  %v152 = vpop.f32.mrb[0].mxu0
  %v153 = vadd.f32 0.0, %v152
  %v154 = vpop.f32.mrb[0].mxu0
  %v155 = vpop.f32.mrb[0].mxu0
  %v156 = vadd.f32 0.0, %v155
  %v157 = vpop.f32.mrb[0].mxu0
  %158 = vmatprep.mubr.bf16.mxu0 0
  %159 = vmatmul.mubr.bf16.gmra.mrb[0].mxu0 %v86
  %v160 = vpop.f32.mrb[0].mxu0
  %v161 = vadd.f32 0.0, %v160
  %v162 = vpop.f32.mrb[0].mxu0
  %v163 = vpop.f32.mrb[0].mxu0
  %v164 = vadd.f32 0.0, %v163
  %v165 = vpop.f32.mrb[0].mxu0
  %166 = vmatprep.mubr.bf16.mxu0 0
  %167 = vmatmul.mubr.bf16.gmra.mrb[0].mxu0 %v89
  %v168 = vpop.f32.mrb[0].mxu0
  %v169 = vadd.f32 0.0, %v168
  %v170 = vpop.f32.mrb[0].mxu0
  %v171 = vpop.f32.mrb[0].mxu0
  %v172 = vadd.f32 0.0, %v171
  %v173 = vpop.f32.mrb[0].mxu0
  %174 = vmatprep.mubr.bf16.mxu0 0
  %175 = vmatmul.mubr.bf16.gmra.mrb[0].mxu0 %v92
  %v176 = vpop.f32.mrb[0].mxu0
  %v177 = vadd.f32 0.0, %v176
  %v178 = vpop.f32.mrb[0].mxu0
  %v179 = vpop.f32.mrb[0].mxu0
  %v180 = vadd.f32 0.0, %v179
  %v181 = vpop.f32.mrb[0].mxu0
  %182 = vmatprep.mubr.bf16.mxu0 0
  %183 = vmatmul.mubr.bf16.gmra.mrb[0].mxu0 %v95
  %v184 = vpop.f32.mrb[0].mxu0
  %v185 = vadd.f32 0.0, %v184
  %v186 = vpop.f32.mrb[0].mxu0
  %v187 = vpop.f32.mrb[0].mxu0
  %v188 = vadd.f32 0.0, %v187
  %v189 = vpop.f32.mrb[0].mxu0
  %190 = vmatprep.mubr.bf16.mxu0 0
  %191 = vmatmul.mubr.bf16.gmra.mrb[0].mxu0 %v98
  %v192 = vpop.f32.mrb[0].mxu0
  %v193 = vadd.f32 0.0, %v192
  %v194 = vpop.f32.mrb[0].mxu0
  %v195 = vpop.f32.mrb[0].mxu0
  %v196 = vadd.f32 0.0, %v195
  %v197 = vpop.f32.mrb[0].mxu0
  %198 = vmatprep.mubr.bf16.mxu0 0
  %199 = vmatmul.mubr.bf16.gmra.mrb[0].mxu0 %v101
  %v200 = vpop.f32.mrb[0].mxu0
  %v201 = vadd.f32 0.0, %v200
  %v202 = vpop.f32.mrb[0].mxu0
  %v203 = vpop.f32.mrb[0].mxu0
  %v204 = vadd.f32 0.0, %v203
  %v205 = vpop.f32.mrb[0].mxu0
  %206 = vdwg.mxu0
  %v207 = vadd.f32 %v35, %v145
  %v208 = vadd.f32 %v36, %v148
  %v209 = vadd.f32 %v37, %v153
  %v210 = vadd.f32 %v38, %v156
  %v211 = vadd.f32 %v39, %v161
  %v212 = vadd.f32 %v40, %v164
  %v213 = vadd.f32 %v41, %v169
  %v214 = vadd.f32 %v42, %v172
  %v215 = vadd.f32 %v43, %v177
  %v216 = vadd.f32 %v44, %v180
  %v217 = vadd.f32 %v45, %v185
  %v218 = vadd.f32 %v46, %v188
  %v219 = vadd.f32 %v47, %v193
  %v220 = vadd.f32 %v48, %v196
  %v221 = vadd.f32 %v49, %v201
  %v222 = vadd.f32 %v50, %v204
  %223 = vst [vmem:[#allocation2] sm:$0xff] %v207
  %224 = vst [vmem:[#allocation2 + $0x8] sm:$0xff] %v208
  %225 = vst [vmem:[#allocation2 + $0x10] sm:$0xff] %v209
  %226 = vst [vmem:[#allocation2 + $0x18] sm:$0xff] %v210
  %227 = vst [vmem:[#allocation2 + $0x20] sm:$0xff] %v211
  %228 = vst [vmem:[#allocation2 + $0x28] sm:$0xff] %v212
  %229 = vst [vmem:[#allocation2 + $0x30] sm:$0xff] %v213
  %230 = vst [vmem:[#allocation2 + $0x38] sm:$0xff] %v214
  %231 = vst [vmem:[#allocation2 + $0x40] sm:$0xff] %v215
  %232 = vst [vmem:[#allocation2 + $0x48] sm:$0xff] %v216
  %233 = vst [vmem:[#allocation2 + $0x50] sm:$0xff] %v217
  %234 = vst [vmem:[#allocation2 + $0x58] sm:$0xff] %v218
  %235 = vst [vmem:[#allocation2 + $0x60] sm:$0xff] %v219
  %236 = vst [vmem:[#allocation2 + $0x68] sm:$0xff] %v220
  %237 = vst [vmem:[#allocation2 + $0x70] sm:$0xff] %v221
  %238 = vst [vmem:[#allocation2 + $0x78] sm:$0xff] %v222
  // Predicated region
  $region18: #{speech_recognition_forward.15} parent=0 // pred_check
    %p239 = pneg %p15
  $region19: #{speech_recognition_forward.15} parent=0 // pred_check_branch
    %241 = sbr.rel (%p239) target = $region21
  $region20: #{speech_recognition_forward.15} parent=0 // pred_region
    %v242 = vld [vmem:[#allocation2] sm:$0xff]
    %v243 = vld [vmem:[#allocation2 + $0x8] sm:$0xff]
    %v244 = vld [vmem:[#allocation2 + $0x10] sm:$0xff]
    %v245 = vld [vmem:[#allocation2 + $0x18] sm:$0xff]
    %v246 = vld [vmem:[#allocation2 + $0x20] sm:$0xff]
    %v247 = vld [vmem:[#allocation2 + $0x28] sm:$0xff]
    %v248 = vld [vmem:[#allocation2 + $0x30] sm:$0xff]
    %v249 = vld [vmem:[#allocation2 + $0x38] sm:$0xff]
    %v250 = vld [vmem:[#allocation2 + $0x40] sm:$0xff]
    %v251 = vld [vmem:[#allocation2 + $0x48] sm:$0xff]
    %v252 = vld [vmem:[#allocation2 + $0x50] sm:$0xff]
    %v253 = vld [vmem:[#allocation2 + $0x58] sm:$0xff]
    %v254 = vld [vmem:[#allocation2 + $0x60] sm:$0xff]
    %v255 = vld [vmem:[#allocation2 + $0x68] sm:$0xff]
    %v256 = vld [vmem:[#allocation2 + $0x70] sm:$0xff]
    %v257 = vld [vmem:[#allocation2 + $0x78] sm:$0xff]
    %v258 = vld [vmem:[%s2] sm:$0x1]
    %v260 = vlaneseq
    %v261 = vshrl.u32 %v260, 7
    %v262 = vsub.s32 0, %v261
    %v263 = vrot.slane %v258, %v262
    %v265 = vadd.f32 %v242, %v263
    %v266 = vadd.f32 %v243, %v263
    %v267 = vadd.f32 %v244, %v263
    %v268 = vadd.f32 %v245, %v263
    %v269 = vadd.f32 %v246, %v263
    %v270 = vadd.f32 %v247, %v263
    %v271 = vadd.f32 %v248, %v263
    %v272 = vadd.f32 %v249, %v263
    %v273 = vadd.f32 %v250, %v263
    %v274 = vadd.f32 %v251, %v263
    %v275 = vadd.f32 %v252, %v263
    %v276 = vadd.f32 %v253, %v263
    %v277 = vadd.f32 %v254, %v263
    %v278 = vadd.f32 %v255, %v263
    %v279 = vadd.f32 %v256, %v263
    %v280 = vadd.f32 %v257, %v263
    %281 = vst [vmem:[%s3] sm:$0xff] %v265
    %282 = vst [vmem:[%s3 + $0x8] sm:$0xff] %v266
    %283 = vst [vmem:[%s3 + $0x10] sm:$0xff] %v267
    %284 = vst [vmem:[%s3 + $0x18] sm:$0xff] %v268
    %285 = vst [vmem:[%s3 + $0x20] sm:$0xff] %v269
    %286 = vst [vmem:[%s3 + $0x28] sm:$0xff] %v270
    %287 = vst [vmem:[%s3 + $0x30] sm:$0xff] %v271
    %288 = vst [vmem:[%s3 + $0x38] sm:$0xff] %v272
    %289 = vst [vmem:[%s3 + $0x40] sm:$0xff] %v273
    %290 = vst [vmem:[%s3 + $0x48] sm:$0xff] %v274
    %291 = vst [vmem:[%s3 + $0x50] sm:$0xff] %v275
    %292 = vst [vmem:[%s3 + $0x58] sm:$0xff] %v276
    %293 = vst [vmem:[%s3 + $0x60] sm:$0xff] %v277
    %294 = vst [vmem:[%s3 + $0x68] sm:$0xff] %v278
    %295 = vst [vmem:[%s3 + $0x70] sm:$0xff] %v279
    %296 = vst [vmem:[%s3 + $0x78] sm:$0xff] %v280
  $region21: #{speech_recognition_forward.15} parent=0 // pred_fallthru
    _
  // Predicated region
  $region22: #{speech_recognition_forward.15} parent=0 // pred_check
    _
  $region23: #{speech_recognition_forward.15} parent=0 // pred_check_branch
    %298 = sbr.rel (0) target = $region25
  $region24: #{speech_recognition_forward.15} parent=0 // pred_region
    _
  $region25: #{speech_recognition_forward.15} parent=0 // pred_fallthru
    _
  // Predicated region
  $region26: #{speech_recognition_forward.15} parent=0 // pred_check
    _
  $region27: #{speech_recognition_forward.15} parent=0 // pred_check_branch
    %300 = sbr.rel (0) target = $region29
  $region28: #{speech_recognition_forward.15} parent=0 // pred_region
    _
  $region29: #{speech_recognition_forward.15} parent=0 // pred_fallthru
    _

// kernel: speech_recognition_forward.17
$region0: #{speech_recognition_forward.17}
  #allocation0 [shape = 'u32[]', space=smem, size = 0x4, offset = 0x4, fixed_abs, tag = 'smem constant byte address 0x4 - core index']
  #allocation1 [shape = 'u32[144,128]{1,0:T(1,128)}', space=vmem, size = 0x12000, scoped, tag = 'internal scratch']
  #allocation2 [shape = 'f32[64,32]{1,0:T(8,128)}', space=vmem, size = 0x8000, scoped, tag = 'scratch operand']
  %s0 = inlined_call_operand.vmem [shape: f32[2,10,10,32], index: 0, kind: input, shape index: {}]
  %s1 = inlined_call_operand.vmem [shape: f32[9,32,32], index: 1, kind: input, shape index: {}]
  %s2 = inlined_call_operand.vmem [shape: f32[1,32], index: 2, kind: input, shape index: {}]
  %s3 = inlined_call_operand.vmem [shape: f32[2,8,8,32], index: 3, kind: output, shape index: {}]
  %s4 = sld [smem:[#allocation0]]
  $region45: #{speech_recognition_forward.17} parent=0
    _
  %s6 = ssub.s32 1, %s4
  %s7 = scalar_select 0, %s6, %s4
  loop: start=0, step=1, limit=4
  $region2: #{speech_recognition_forward.17} parent=0 // loop_pre_header
    _
  $region3: #{speech_recognition_forward.17} parent=0 // loop_header
    %s9 = sphi 0, %s13
    %p10 = scmp.ge.s32.totalorder %s9, 4
    %s16 = sphi 0, %s28
    %s17 = sphi 0, %s24
    %s18 = sphi 0, %s16
    %s19 = sphi 0, %s17
    %s20 = sphi 0, %s18
    %s21 = sphi 0, %s19
    %s33 = sphi 0, %s35
    %s36 = sphi 0, %s33
    %s37 = sphi 0, %s36
    %s53 = sphi 0, %s37
    %s57 = sphi 0, %s57
    %s59 = sphi 0, %s57
    %s60 = sphi 0, %s59
    %s74 = sphi 0, %s60
    %s78 = sphi 0, %s78
    %s80 = sphi 0, %s78
    %s81 = sphi 0, %s80
    %s95 = sphi 0, %s81
    %s103 = sphi 0, %s105
    %s106 = sphi 0, %s103
    %s107 = sphi 0, %s106
    %s123 = sphi 0, %s107
  $region4: #{speech_recognition_forward.17} parent=0 // loop_header_branch
    %12 = sbr.rel (%p10) target = $region8
  $region5: #{speech_recognition_forward.17} parent=0 // loop_body
    %s14 = ssub.s32 %s9, 1
    %s15 = ssub.s32 %s9, 2
    %s22 = sadd.s32 1, %s17
    %p23 = scmp.ge.s32.totalorder %s22, 1
    %s24 = scalar_select %p23, 0, %s22
    %s25 = sadd.s32 1, %s16
    %s26 = scalar_select %p23, %s25, %s16
    %p27 = scmp.ge.s32.totalorder %s26, 2
    %s28 = scalar_select %p27, 0, %s26
    %s29 = sadd.s32 %s16, %s17
    %s30 = sadd.s32 %s28, %s24
    %s31 = ssub.s32 %s29, %s30
    %p32 = scmp.eq.s32.totalorder %s31, 0
    %s34 = sadd.s32 %s33, 1
    %s35 = scalar_select %p32, %s33, %s34
    %p38 = pneg %p32
    %p39 = scmp.eq.s32.totalorder %s9, 1
    %p40 = por %p38, %p39
    %p41 = scmp.ne.s32.totalorder %s33, %s36
    %p42 = scmp.eq.s32.totalorder %s9, 0
    %p43 = por %p41, %p42
    %p44 = scmp.ne.s32.totalorder %s33, %s36
    %p45 = scmp.eq.s32.totalorder %s14, 1
    %p46 = por %p44, %p45
    %p47 = scmp.ne.s32.totalorder %s36, %s37
    %p48 = scmp.eq.s32.totalorder %s14, 0
    %p49 = por %p47, %p48
    %p50 = scmp.ne.s32.totalorder %s36, %s37
    %p51 = scmp.eq.s32.totalorder %s15, 1
    %p52 = por %p50, %p51
    %p54 = scmp.ne.s32.totalorder %s37, %s53
    %p55 = scmp.eq.s32.totalorder %s15, 0
    %p56 = por %p54, %p55
    %s58 = sadd.s32 %s57, 1
    %p61 = scmp.eq.s32.totalorder %s9, 1
    %p62 = scmp.ne.s32.totalorder %s57, %s59
    %p63 = scmp.eq.s32.totalorder %s9, 0
    %p64 = por %p62, %p63
    %p65 = scmp.ne.s32.totalorder %s57, %s59
    %p66 = scmp.eq.s32.totalorder %s14, 1
    %p67 = por %p65, %p66
    %p68 = scmp.ne.s32.totalorder %s59, %s60
    %p69 = scmp.eq.s32.totalorder %s14, 0
    %p70 = por %p68, %p69
    %p71 = scmp.ne.s32.totalorder %s59, %s60
    %p72 = scmp.eq.s32.totalorder %s15, 1
    %p73 = por %p71, %p72
    %p75 = scmp.ne.s32.totalorder %s60, %s74
    %p76 = scmp.eq.s32.totalorder %s15, 0
    %p77 = por %p75, %p76
    %s79 = sadd.s32 %s78, 1
    %p82 = scmp.eq.s32.totalorder %s9, 1
    %p83 = scmp.ne.s32.totalorder %s78, %s80
    %p84 = scmp.eq.s32.totalorder %s9, 0
    %p85 = por %p83, %p84
    %p86 = scmp.ne.s32.totalorder %s78, %s80
    %p87 = scmp.eq.s32.totalorder %s14, 1
    %p88 = por %p86, %p87
    %p89 = scmp.ne.s32.totalorder %s80, %s81
    %p90 = scmp.eq.s32.totalorder %s14, 0
    %p91 = por %p89, %p90
    %p92 = scmp.ne.s32.totalorder %s80, %s81
    %p93 = scmp.eq.s32.totalorder %s15, 1
    %p94 = por %p92, %p93
    %p96 = scmp.ne.s32.totalorder %s81, %s95
    %p97 = scmp.eq.s32.totalorder %s15, 0
    %p98 = por %p96, %p97
    %s99 = ssub.s32 %s16, %s28
    %s100 = ssub.s32 %s17, %s24
    %s101 = sor.u32 %s99, %s100
    %p102 = scmp.eq.s32.totalorder %s101, 0
    %s104 = sadd.s32 %s103, 1
    %s105 = scalar_select %p102, %s103, %s104
    %p108 = pneg %p102
    %p109 = scmp.eq.s32.totalorder %s9, 1
    %p110 = por %p108, %p109
    %p111 = scmp.ne.s32.totalorder %s103, %s106
    %p112 = scmp.eq.s32.totalorder %s9, 0
    %p113 = por %p111, %p112
    %p114 = scmp.ne.s32.totalorder %s103, %s106
    %p115 = scmp.eq.s32.totalorder %s14, 1
    %p116 = por %p114, %p115
    %p117 = scmp.ne.s32.totalorder %s106, %s107
    %p118 = scmp.eq.s32.totalorder %s14, 0
    %p119 = por %p117, %p118
    %p120 = scmp.ne.s32.totalorder %s106, %s107
    %p121 = scmp.eq.s32.totalorder %s15, 1
    %p122 = por %p120, %p121
    %p124 = scmp.ne.s32.totalorder %s107, %s123
    %p125 = scmp.eq.s32.totalorder %s15, 0
    %p126 = por %p124, %p125
    %p127 = scmp.le.s32.totalorder 1, %s9
    %p128 = scmp.lt.s32.totalorder %s9, 3
    %p129 = pnand %p127, %p128
    %p130 = pneg %p129
    // Predicated region
    $region9: #{speech_recognition_forward.17} parent=5 // pred_check
      _
    $region10: #{speech_recognition_forward.17} parent=5 // pred_check_branch
      %132 = sbr.rel (%p129) target = $region12
    $region11: #{speech_recognition_forward.17} parent=5 // pred_region
      %s133 = ssub.s32 %s9, 1
      // Predicated region
      $region13: #{speech_recognition_forward.17} parent=11 // pred_check
        %p134 = pneg %p70
      $region14: #{speech_recognition_forward.17} parent=11 // pred_check_branch
        %136 = sbr.rel (%p134) target = $region16
      $region15: #{speech_recognition_forward.17} parent=11 // pred_region
        _
      $region16: #{speech_recognition_forward.17} parent=11 // pred_fallthru
        _
      // Predicated region
      $region17: #{speech_recognition_forward.17} parent=11 // pred_check
        %p137 = pneg %p91
      $region18: #{speech_recognition_forward.17} parent=11 // pred_check_branch
        %139 = sbr.rel (%p137) target = $region20
      $region19: #{speech_recognition_forward.17} parent=11 // pred_region
        _
      $region20: #{speech_recognition_forward.17} parent=11 // pred_fallthru
        _
    $region12: #{speech_recognition_forward.17} parent=5 // pred_fallthru
      _
    %p140 = scmp.lt.s32.totalorder %s9, 2
    // Predicated region
    $region21: #{speech_recognition_forward.17} parent=5 // pred_check
      %p141 = pneg %p140
    $region22: #{speech_recognition_forward.17} parent=5 // pred_check_branch
      %143 = sbr.rel (%p141) target = $region24
    $region23: #{speech_recognition_forward.17} parent=5 // pred_region
      // Predicated region
      $region25: #{speech_recognition_forward.17} parent=23 // pred_check
        %p144 = pneg %p43
      $region26: #{speech_recognition_forward.17} parent=23 // pred_check_branch
        %146 = sbr.rel (%p144) target = $region28
      $region27: #{speech_recognition_forward.17} parent=23 // pred_region
        %s147 = sadd.s32 %s16, %s17
        %p148 = scmp.lt.s32.totalorder %s147, 1
        %s149 = scalar_select %p148, %s147, 1
        %s150 = smul.addr %s149, 20
        %s151 = smul.addr %s150, 8
        %s152 = scalar_lea.vmem %s0, %s151
        %s153 = sadd.s32 %s16, %s17
      $region28: #{speech_recognition_forward.17} parent=23 // pred_fallthru
        _
    $region24: #{speech_recognition_forward.17} parent=5 // pred_fallthru
      _
    %p154 = scmp.le.s32.totalorder 1, %s9
    %p155 = scmp.lt.s32.totalorder %s9, 3
    %p156 = pnand %p154, %p155
    %p157 = pneg %p156
    // Predicated region
    $region29: #{speech_recognition_forward.17} parent=5 // pred_check
      _
    $region30: #{speech_recognition_forward.17} parent=5 // pred_check_branch
      %159 = sbr.rel (%p156) target = $region32
    $region31: #{speech_recognition_forward.17} parent=5 // pred_region
      %s160 = ssub.s32 %s9, 1
      %s161 = sadd.s32 %s18, %s19
      %p162 = scmp.lt.s32.totalorder %s161, 1
      %s163 = scalar_select %p162, %s161, 1
      %s164 = smul.addr %s163, 20
      %s165 = smul.addr %s164, 8
      %s166 = scalar_lea.vmem %s0, %s165
      %p167 = pneg %p49
      %p168 = pneg %p46
      %p169 = pneg %p70
      %p170 = pneg %p67
      %p171 = pneg %p91
      %p172 = pneg %p88
      %p173 = pneg %p119
      %p174 = pneg %p116
      %p175 = scmp.lt.s32.totalorder %s18, 1
      %s176 = scalar_select %p175, %s18, 1
      %p177 = scmp.lt.s32.totalorder %s19, 0
      %s178 = scalar_select %p177, %s19, 0
      %s179 = smul.addr %s176, 8
      %s180 = sadd.s32 %s178, %s179
      %s181 = smul.addr %s180, 8
      %s182 = scalar_lea.vmem %s3, %s181
      %s183 = sadd.s32 %s18, %s19
      %p184 = scmp.lt.s32.totalorder %s183, 1
      %s185 = scalar_select %p184, %s183, 1
      %s186 = smul.addr %s185, 20
      %s187 = smul.addr %s186, 8
      %s188 = scalar_lea.vmem %s0, %s187
      %s189 = sadd.s32 %s18, %s19
      %p190 = scmp.lt.s32.totalorder %s18, 1
      %s191 = scalar_select %p190, %s18, 1
      %p192 = scmp.lt.s32.totalorder %s19, 0
      %s193 = scalar_select %p192, %s19, 0
      %s194 = smul.addr %s191, 8
      %s195 = sadd.s32 %s193, %s194
      %s196 = smul.addr %s195, 8
      %s197 = scalar_lea.vmem %s3, %s196
      %vm199 = vcmask 261120
      %200 = vst.msk [vmem:[#allocation2] sm:$0xff] %vm199, 0.0
      %201 = vst.msk [vmem:[#allocation2 + $0x8] sm:$0xff] %vm199, 0.0
      %202 = vst.msk [vmem:[#allocation2 + $0x10] sm:$0xff] %vm199, 0.0
      %203 = vst.msk [vmem:[#allocation2 + $0x18] sm:$0xff] %vm199, 0.0
      %204 = vst.msk [vmem:[#allocation2 + $0x20] sm:$0xff] %vm199, 0.0
      %205 = vst.msk [vmem:[#allocation2 + $0x28] sm:$0xff] %vm199, 0.0
      %206 = vst.msk [vmem:[#allocation2 + $0x30] sm:$0xff] %vm199, 0.0
      %207 = vst.msk [vmem:[#allocation2 + $0x38] sm:$0xff] %vm199, 0.0
      %v208 = vld [vmem:[%s188] sm:$0xff]
      %v209 = vld [vmem:[%s188 + $0x10] sm:$0xff]
      %v210 = vld [vmem:[%s188 + $0x20] sm:$0xff]
      %v211 = vld [vmem:[%s188 + $0x30] sm:$0xff]
      %v212 = vld [vmem:[%s188 + $0x40] sm:$0xff]
      %v213 = vld [vmem:[%s188 + $0x50] sm:$0xff]
      %v214 = vld [vmem:[%s188 + $0x60] sm:$0xff]
      %v215 = vld [vmem:[%s188 + $0x70] sm:$0xff]
      %v216 = vpack.c.bf16 %v209, %v208
      %v217 = vpack.c.bf16 %v211, %v210
      %v218 = vpack.c.bf16 %v213, %v212
      %v219 = vpack.c.bf16 %v215, %v214
      %v220 = vld [vmem:[%s1] sm:$0xff]
      %v221 = vld [vmem:[%s1 + $0x8] sm:$0xff]
      %v222 = vld [vmem:[%s1 + $0x10] sm:$0xff]
      %v223 = vld [vmem:[%s1 + $0x18] sm:$0xff]
      %v224 = vpack.c.bf16 %v221, %v220
      %v225 = vpack.c.bf16 %v223, %v222
      %v226 = vld [vmem:[#allocation2] sm:$0xff]
      %v227 = vld [vmem:[#allocation2 + $0x8] sm:$0xff]
      %v228 = vld [vmem:[#allocation2 + $0x10] sm:$0xff]
      %v229 = vld [vmem:[#allocation2 + $0x18] sm:$0xff]
      %v230 = vld [vmem:[#allocation2 + $0x20] sm:$0xff]
      %v231 = vld [vmem:[#allocation2 + $0x28] sm:$0xff]
      %v232 = vld [vmem:[#allocation2 + $0x30] sm:$0xff]
      %v233 = vld [vmem:[#allocation2 + $0x38] sm:$0xff]
      %v235 = vsel %vm199, %v216, 0
      %v238 = vsel %vm199, %v217, 0
      %v241 = vsel %vm199, %v218, 0
      %v244 = vsel %vm199, %v219, 0
      %246 = vmatprep.subr.bf16.mxu0 0
      %247 = vmatpush1.bf16.msra.mxu0 %v224
      %248 = vmatprep.subr.bf16.mxu0 0
      %249 = vmatpush1.bf16.msra.mxu0 %v225
      %250 = vmatprep.subr.bf16.mxu0 0
      %251 = vmatpush1.bf16.msra.mxu0 0
      %252 = vmatprep.subr.bf16.mxu0 0
      %253 = vmatpush1.bf16.msra.mxu0 0
      %254 = vmatprep.subr.bf16.mxu0 0
      %255 = vmatpush1.bf16.msra.mxu0 0
      %256 = vmatprep.subr.bf16.mxu0 0
      %257 = vmatpush1.bf16.msra.mxu0 0
      %258 = vmatprep.subr.bf16.mxu0 0
      %259 = vmatpush1.bf16.msra.mxu0 0
      %260 = vmatprep.subr.bf16.mxu0 0
      %261 = vmatpush1.bf16.msra.mxu0 0
      %262 = vmatprep.subr.bf16.mxu0 0
      %263 = vmatpush1.bf16.msra.mxu0 0
      %264 = vmatprep.subr.bf16.mxu0 0
      %265 = vmatpush1.bf16.msra.mxu0 0
      %266 = vmatprep.subr.bf16.mxu0 0
      %267 = vmatpush1.bf16.msra.mxu0 0
      %268 = vmatprep.subr.bf16.mxu0 0
      %269 = vmatpush1.bf16.msra.mxu0 0
      %270 = vmatprep.subr.bf16.mxu0 0
      %271 = vmatpush1.bf16.msra.mxu0 0
      %272 = vmatprep.subr.bf16.mxu0 0
      %273 = vmatpush1.bf16.msra.mxu0 0
      %274 = vmatprep.subr.bf16.mxu0 0
      %275 = vmatpush1.bf16.msra.mxu0 0
      %276 = vmatprep.subr.bf16.mxu0 0
      %277 = vmatpush1.bf16.msra.mxu0 0
      %278 = vmatprep.mubr.bf16.mxu0 0
      %279 = vmatmul.mubr.bf16.gmra.mrb[0].mxu0 %v235
      %v280 = vpop.f32.mrb[0].mxu0
      %v281 = vadd.f32 0.0, %v280
      %v282 = vpop.f32.mrb[0].mxu0
      %v283 = vpop.f32.mrb[0].mxu0
      %v284 = vadd.f32 0.0, %v283
      %v285 = vpop.f32.mrb[0].mxu0
      %286 = vmatprep.mubr.bf16.mxu0 0
      %287 = vmatmul.mubr.bf16.gmra.mrb[0].mxu0 %v238
      %v288 = vpop.f32.mrb[0].mxu0
      %v289 = vadd.f32 0.0, %v288
      %v290 = vpop.f32.mrb[0].mxu0
      %v291 = vpop.f32.mrb[0].mxu0
      %v292 = vadd.f32 0.0, %v291
      %v293 = vpop.f32.mrb[0].mxu0
      %294 = vmatprep.mubr.bf16.mxu0 0
      %295 = vmatmul.mubr.bf16.gmra.mrb[0].mxu0 %v241
      %v296 = vpop.f32.mrb[0].mxu0
      %v297 = vadd.f32 0.0, %v296
      %v298 = vpop.f32.mrb[0].mxu0
      %v299 = vpop.f32.mrb[0].mxu0
      %v300 = vadd.f32 0.0, %v299
      %v301 = vpop.f32.mrb[0].mxu0
      %302 = vmatprep.mubr.bf16.mxu0 0
      %303 = vmatmul.mubr.bf16.gmra.mrb[0].mxu0 %v244
      %v304 = vpop.f32.mrb[0].mxu0
      %v305 = vadd.f32 0.0, %v304
      %v306 = vpop.f32.mrb[0].mxu0
      %v307 = vpop.f32.mrb[0].mxu0
      %v308 = vadd.f32 0.0, %v307
      %v309 = vpop.f32.mrb[0].mxu0
      %310 = vdwg.mxu0
      %v311 = vadd.f32 %v226, %v281
      %v312 = vadd.f32 %v227, %v284
      %v313 = vadd.f32 %v228, %v289
      %v314 = vadd.f32 %v229, %v292
      %v315 = vadd.f32 %v230, %v297
      %v316 = vadd.f32 %v231, %v300
      %v317 = vadd.f32 %v232, %v305
      %v318 = vadd.f32 %v233, %v308
      %319 = vst.msk [vmem:[#allocation2] sm:$0xff] %vm199, %v311
      %320 = vst.msk [vmem:[#allocation2 + $0x8] sm:$0xff] %vm199, %v312
      %321 = vst.msk [vmem:[#allocation2 + $0x10] sm:$0xff] %vm199, %v313
      %322 = vst.msk [vmem:[#allocation2 + $0x18] sm:$0xff] %vm199, %v314
      %323 = vst.msk [vmem:[#allocation2 + $0x20] sm:$0xff] %vm199, %v315
      %324 = vst.msk [vmem:[#allocation2 + $0x28] sm:$0xff] %vm199, %v316
      %325 = vst.msk [vmem:[#allocation2 + $0x30] sm:$0xff] %vm199, %v317
      %326 = vst.msk [vmem:[#allocation2 + $0x38] sm:$0xff] %vm199, %v318
      %v327 = vld [vmem:[%s188 + $0x1] sm:$0xff]
      %v328 = vld [vmem:[%s188 + $0x11] sm:$0xff]
      %v329 = vld [vmem:[%s188 + $0x21] sm:$0xff]
      %v330 = vld [vmem:[%s188 + $0x31] sm:$0xff]
      %v331 = vld [vmem:[%s188 + $0x41] sm:$0xff]
      %v332 = vld [vmem:[%s188 + $0x51] sm:$0xff]
      %v333 = vld [vmem:[%s188 + $0x61] sm:$0xff]
      %v334 = vld [vmem:[%s188 + $0x71] sm:$0xff]
      %v335 = vpack.c.bf16 %v328, %v327
      %v336 = vpack.c.bf16 %v330, %v329
      %v337 = vpack.c.bf16 %v332, %v331
      %v338 = vpack.c.bf16 %v334, %v333
      %s339 = scalar_lea.vmem %s1, 32
      %v340 = vld [vmem:[%s339] sm:$0xff]
      %v341 = vld [vmem:[%s339 + $0x8] sm:$0xff]
      %v342 = vld [vmem:[%s339 + $0x10] sm:$0xff]
      %v343 = vld [vmem:[%s339 + $0x18] sm:$0xff]
      %v344 = vpack.c.bf16 %v341, %v340
      %v345 = vpack.c.bf16 %v343, %v342
      %v346 = vld [vmem:[#allocation2] sm:$0xff]
      %v347 = vld [vmem:[#allocation2 + $0x8] sm:$0xff]
      %v348 = vld [vmem:[#allocation2 + $0x10] sm:$0xff]
      %v349 = vld [vmem:[#allocation2 + $0x18] sm:$0xff]
      %v350 = vld [vmem:[#allocation2 + $0x20] sm:$0xff]
      %v351 = vld [vmem:[#allocation2 + $0x28] sm:$0xff]
      %v352 = vld [vmem:[#allocation2 + $0x30] sm:$0xff]
      %v353 = vld [vmem:[#allocation2 + $0x38] sm:$0xff]
      %v355 = vsel %vm199, %v335, 0
      %v358 = vsel %vm199, %v336, 0
      %v361 = vsel %vm199, %v337, 0
      %v364 = vsel %vm199, %v338, 0
      %366 = vmatprep.subr.bf16.mxu0 0
      %367 = vmatpush1.bf16.msra.mxu0 %v344
      %368 = vmatprep.subr.bf16.mxu0 0
      %369 = vmatpush1.bf16.msra.mxu0 %v345
      %370 = vmatprep.subr.bf16.mxu0 0
      %371 = vmatpush1.bf16.msra.mxu0 0
      %372 = vmatprep.subr.bf16.mxu0 0
      %373 = vmatpush1.bf16.msra.mxu0 0
      %374 = vmatprep.subr.bf16.mxu0 0
      %375 = vmatpush1.bf16.msra.mxu0 0
      %376 = vmatprep.subr.bf16.mxu0 0
      %377 = vmatpush1.bf16.msra.mxu0 0
      %378 = vmatprep.subr.bf16.mxu0 0
      %379 = vmatpush1.bf16.msra.mxu0 0
      %380 = vmatprep.subr.bf16.mxu0 0
      %381 = vmatpush1.bf16.msra.mxu0 0
      %382 = vmatprep.subr.bf16.mxu0 0
      %383 = vmatpush1.bf16.msra.mxu0 0
      %384 = vmatprep.subr.bf16.mxu0 0
      %385 = vmatpush1.bf16.msra.mxu0 0
      %386 = vmatprep.subr.bf16.mxu0 0
      %387 = vmatpush1.bf16.msra.mxu0 0
      %388 = vmatprep.subr.bf16.mxu0 0
      %389 = vmatpush1.bf16.msra.mxu0 0
      %390 = vmatprep.subr.bf16.mxu0 0
      %391 = vmatpush1.bf16.msra.mxu0 0
      %392 = vmatprep.subr.bf16.mxu0 0
      %393 = vmatpush1.bf16.msra.mxu0 0
      %394 = vmatprep.subr.bf16.mxu0 0
      %395 = vmatpush1.bf16.msra.mxu0 0
      %396 = vmatprep.subr.bf16.mxu0 0
      %397 = vmatpush1.bf16.msra.mxu0 0
      %398 = vmatprep.mubr.bf16.mxu0 0
      %399 = vmatmul.mubr.bf16.gmra.mrb[0].mxu0 %v355
      %v400 = vpop.f32.mrb[0].mxu0
      %v401 = vadd.f32 0.0, %v400
      %v402 = vpop.f32.mrb[0].mxu0
      %v403 = vpop.f32.mrb[0].mxu0
      %v404 = vadd.f32 0.0, %v403
      %v405 = vpop.f32.mrb[0].mxu0
      %406 = vmatprep.mubr.bf16.mxu0 0
      %407 = vmatmul.mubr.bf16.gmra.mrb[0].mxu0 %v358
      %v408 = vpop.f32.mrb[0].mxu0
      %v409 = vadd.f32 0.0, %v408
      %v410 = vpop.f32.mrb[0].mxu0
      %v411 = vpop.f32.mrb[0].mxu0
      %v412 = vadd.f32 0.0, %v411
      %v413 = vpop.f32.mrb[0].mxu0
      %414 = vmatprep.mubr.bf16.mxu0 0
      %415 = vmatmul.mubr.bf16.gmra.mrb[0].mxu0 %v361
      %v416 = vpop.f32.mrb[0].mxu0
      %v417 = vadd.f32 0.0, %v416
      %v418 = vpop.f32.mrb[0].mxu0
      %v419 = vpop.f32.mrb[0].mxu0
      %v420 = vadd.f32 0.0, %v419
      %v421 = vpop.f32.mrb[0].mxu0
      %422 = vmatprep.mubr.bf16.mxu0 0
      %423 = vmatmul.mubr.bf16.gmra.mrb[0].mxu0 %v364
      %v424 = vpop.f32.mrb[0].mxu0
      %v425 = vadd.f32 0.0, %v424
      %v426 = vpop.f32.mrb[0].mxu0
      %v427 = vpop.f32.mrb[0].mxu0
      %v428 = vadd.f32 0.0, %v427
      %v429 = vpop.f32.mrb[0].mxu0
      %430 = vdwg.mxu0
      %v431 = vadd.f32 %v346, %v401
      %v432 = vadd.f32 %v347, %v404
      %v433 = vadd.f32 %v348, %v409
      %v434 = vadd.f32 %v349, %v412
      %v435 = vadd.f32 %v350, %v417
      %v436 = vadd.f32 %v351, %v420
      %v437 = vadd.f32 %v352, %v425
      %v438 = vadd.f32 %v353, %v428
      %439 = vst.msk [vmem:[#allocation2] sm:$0xff] %vm199, %v431
      %440 = vst.msk [vmem:[#allocation2 + $0x8] sm:$0xff] %vm199, %v432
      %441 = vst.msk [vmem:[#allocation2 + $0x10] sm:$0xff] %vm199, %v433
      %442 = vst.msk [vmem:[#allocation2 + $0x18] sm:$0xff] %vm199, %v434
      %443 = vst.msk [vmem:[#allocation2 + $0x20] sm:$0xff] %vm199, %v435
      %444 = vst.msk [vmem:[#allocation2 + $0x28] sm:$0xff] %vm199, %v436
      %445 = vst.msk [vmem:[#allocation2 + $0x30] sm:$0xff] %vm199, %v437
      %446 = vst.msk [vmem:[#allocation2 + $0x38] sm:$0xff] %vm199, %v438
      %v447 = vld [vmem:[%s188 + $0x2] sm:$0xff]
      %v448 = vld [vmem:[%s188 + $0x12] sm:$0xff]
      %v449 = vld [vmem:[%s188 + $0x22] sm:$0xff]
      %v450 = vld [vmem:[%s188 + $0x32] sm:$0xff]
      %v451 = vld [vmem:[%s188 + $0x42] sm:$0xff]
      %v452 = vld [vmem:[%s188 + $0x52] sm:$0xff]
      %v453 = vld [vmem:[%s188 + $0x62] sm:$0xff]
      %v454 = vld [vmem:[%s188 + $0x72] sm:$0xff]
      %v455 = vpack.c.bf16 %v448, %v447
      %v456 = vpack.c.bf16 %v450, %v449
      %v457 = vpack.c.bf16 %v452, %v451
      %v458 = vpack.c.bf16 %v454, %v453
      %s459 = scalar_lea.vmem %s1, 64
      %v460 = vld [vmem:[%s459] sm:$0xff]
      %v461 = vld [vmem:[%s459 + $0x8] sm:$0xff]
      %v462 = vld [vmem:[%s459 + $0x10] sm:$0xff]
      %v463 = vld [vmem:[%s459 + $0x18] sm:$0xff]
      %v464 = vpack.c.bf16 %v461, %v460
      %v465 = vpack.c.bf16 %v463, %v462
      %v466 = vld [vmem:[#allocation2] sm:$0xff]
      %v467 = vld [vmem:[#allocation2 + $0x8] sm:$0xff]
      %v468 = vld [vmem:[#allocation2 + $0x10] sm:$0xff]
      %v469 = vld [vmem:[#allocation2 + $0x18] sm:$0xff]
      %v470 = vld [vmem:[#allocation2 + $0x20] sm:$0xff]
      %v471 = vld [vmem:[#allocation2 + $0x28] sm:$0xff]
      %v472 = vld [vmem:[#allocation2 + $0x30] sm:$0xff]
      %v473 = vld [vmem:[#allocation2 + $0x38] sm:$0xff]
      %v475 = vsel %vm199, %v455, 0
      %v478 = vsel %vm199, %v456, 0
      %v481 = vsel %vm199, %v457, 0
      %v484 = vsel %vm199, %v458, 0
      %486 = vmatprep.subr.bf16.mxu0 0
      %487 = vmatpush1.bf16.msra.mxu0 %v464
      %488 = vmatprep.subr.bf16.mxu0 0
      %489 = vmatpush1.bf16.msra.mxu0 %v465
      %490 = vmatprep.subr.bf16.mxu0 0
      %491 = vmatpush1.bf16.msra.mxu0 0
      %492 = vmatprep.subr.bf16.mxu0 0
      %493 = vmatpush1.bf16.msra.mxu0 0
      %494 = vmatprep.subr.bf16.mxu0 0
      %495 = vmatpush1.bf16.msra.mxu0 0
      %496 = vmatprep.subr.bf16.mxu0 0
      %497 = vmatpush1.bf16.msra.mxu0 0
      %498 = vmatprep.subr.bf16.mxu0 0
      %499 = vmatpush1.bf16.msra.mxu0 0
      %500 = vmatprep.subr.bf16.mxu0 0
      %501 = vmatpush1.bf16.msra.mxu0 0
      %502 = vmatprep.subr.bf16.mxu0 0
      %503 = vmatpush1.bf16.msra.mxu0 0
      %504 = vmatprep.subr.bf16.mxu0 0
      %505 = vmatpush1.bf16.msra.mxu0 0
      %506 = vmatprep.subr.bf16.mxu0 0
      %507 = vmatpush1.bf16.msra.mxu0 0
      %508 = vmatprep.subr.bf16.mxu0 0
      %509 = vmatpush1.bf16.msra.mxu0 0
      %510 = vmatprep.subr.bf16.mxu0 0
      %511 = vmatpush1.bf16.msra.mxu0 0
      %512 = vmatprep.subr.bf16.mxu0 0
      %513 = vmatpush1.bf16.msra.mxu0 0
      %514 = vmatprep.subr.bf16.mxu0 0
      %515 = vmatpush1.bf16.msra.mxu0 0
      %516 = vmatprep.subr.bf16.mxu0 0
      %517 = vmatpush1.bf16.msra.mxu0 0
      %518 = vmatprep.mubr.bf16.mxu0 0
      %519 = vmatmul.mubr.bf16.gmra.mrb[0].mxu0 %v475
      %v520 = vpop.f32.mrb[0].mxu0
      %v521 = vadd.f32 0.0, %v520
      %v522 = vpop.f32.mrb[0].mxu0
      %v523 = vpop.f32.mrb[0].mxu0
      %v524 = vadd.f32 0.0, %v523
      %v525 = vpop.f32.mrb[0].mxu0
      %526 = vmatprep.mubr.bf16.mxu0 0
      %527 = vmatmul.mubr.bf16.gmra.mrb[0].mxu0 %v478
      %v528 = vpop.f32.mrb[0].mxu0
      %v529 = vadd.f32 0.0, %v528
      %v530 = vpop.f32.mrb[0].mxu0
      %v531 = vpop.f32.mrb[0].mxu0
      %v532 = vadd.f32 0.0, %v531
      %v533 = vpop.f32.mrb[0].mxu0
      %534 = vmatprep.mubr.bf16.mxu0 0
      %535 = vmatmul.mubr.bf16.gmra.mrb[0].mxu0 %v481
      %v536 = vpop.f32.mrb[0].mxu0
      %v537 = vadd.f32 0.0, %v536
      %v538 = vpop.f32.mrb[0].mxu0
      %v539 = vpop.f32.mrb[0].mxu0
      %v540 = vadd.f32 0.0, %v539
      %v541 = vpop.f32.mrb[0].mxu0
      %542 = vmatprep.mubr.bf16.mxu0 0
      %543 = vmatmul.mubr.bf16.gmra.mrb[0].mxu0 %v484
      %v544 = vpop.f32.mrb[0].mxu0
      %v545 = vadd.f32 0.0, %v544
      %v546 = vpop.f32.mrb[0].mxu0
      %v547 = vpop.f32.mrb[0].mxu0
      %v548 = vadd.f32 0.0, %v547
      %v549 = vpop.f32.mrb[0].mxu0
      %550 = vdwg.mxu0
      %v551 = vadd.f32 %v466, %v521
      %v552 = vadd.f32 %v467, %v524
      %v553 = vadd.f32 %v468, %v529
      %v554 = vadd.f32 %v469, %v532
      %v555 = vadd.f32 %v470, %v537
      %v556 = vadd.f32 %v471, %v540
      %v557 = vadd.f32 %v472, %v545
      %v558 = vadd.f32 %v473, %v548
      %559 = vst.msk [vmem:[#allocation2] sm:$0xff] %vm199, %v551
      %560 = vst.msk [vmem:[#allocation2 + $0x8] sm:$0xff] %vm199, %v552
      %561 = vst.msk [vmem:[#allocation2 + $0x10] sm:$0xff] %vm199, %v553
      %562 = vst.msk [vmem:[#allocation2 + $0x18] sm:$0xff] %vm199, %v554
      %563 = vst.msk [vmem:[#allocation2 + $0x20] sm:$0xff] %vm199, %v555
      %564 = vst.msk [vmem:[#allocation2 + $0x28] sm:$0xff] %vm199, %v556
      %565 = vst.msk [vmem:[#allocation2 + $0x30] sm:$0xff] %vm199, %v557
      %566 = vst.msk [vmem:[#allocation2 + $0x38] sm:$0xff] %vm199, %v558
      %s567 = scalar_lea.vmem %s188, 16
      %v568 = vld [vmem:[%s567] sm:$0xff]
      %v569 = vld [vmem:[%s567 + $0x10] sm:$0xff]
      %v570 = vld [vmem:[%s567 + $0x20] sm:$0xff]
      %v571 = vld [vmem:[%s567 + $0x30] sm:$0xff]
      %v572 = vld [vmem:[%s567 + $0x40] sm:$0xff]
      %v573 = vld [vmem:[%s567 + $0x50] sm:$0xff]
      %v574 = vld [vmem:[%s567 + $0x60] sm:$0xff]
      %v575 = vld [vmem:[%s567 + $0x70] sm:$0xff]
      %v576 = vpack.c.bf16 %v569, %v568
      %v577 = vpack.c.bf16 %v571, %v570
      %v578 = vpack.c.bf16 %v573, %v572
      %v579 = vpack.c.bf16 %v575, %v574
      %s580 = scalar_lea.vmem %s1, 96
      %v581 = vld [vmem:[%s580] sm:$0xff]
      %v582 = vld [vmem:[%s580 + $0x8] sm:$0xff]
      %v583 = vld [vmem:[%s580 + $0x10] sm:$0xff]
      %v584 = vld [vmem:[%s580 + $0x18] sm:$0xff]
      %v585 = vpack.c.bf16 %v582, %v581
      %v586 = vpack.c.bf16 %v584, %v583
      %v587 = vld [vmem:[#allocation2] sm:$0xff]
      %v588 = vld [vmem:[#allocation2 + $0x8] sm:$0xff]
      %v589 = vld [vmem:[#allocation2 + $0x10] sm:$0xff]
      %v590 = vld [vmem:[#allocation2 + $0x18] sm:$0xff]
      %v591 = vld [vmem:[#allocation2 + $0x20] sm:$0xff]
      %v592 = vld [vmem:[#allocation2 + $0x28] sm:$0xff]
      %v593 = vld [vmem:[#allocation2 + $0x30] sm:$0xff]
      %v594 = vld [vmem:[#allocation2 + $0x38] sm:$0xff]
      %v596 = vsel %vm199, %v576, 0
      %v599 = vsel %vm199, %v577, 0
      %v602 = vsel %vm199, %v578, 0
      %v605 = vsel %vm199, %v579, 0
      %607 = vmatprep.subr.bf16.mxu0 0
      %608 = vmatpush1.bf16.msra.mxu0 %v585
      %609 = vmatprep.subr.bf16.mxu0 0
      %610 = vmatpush1.bf16.msra.mxu0 %v586
      %611 = vmatprep.subr.bf16.mxu0 0
      %612 = vmatpush1.bf16.msra.mxu0 0
      %613 = vmatprep.subr.bf16.mxu0 0
      %614 = vmatpush1.bf16.msra.mxu0 0
      %615 = vmatprep.subr.bf16.mxu0 0
      %616 = vmatpush1.bf16.msra.mxu0 0
      %617 = vmatprep.subr.bf16.mxu0 0
      %618 = vmatpush1.bf16.msra.mxu0 0
      %619 = vmatprep.subr.bf16.mxu0 0
      %620 = vmatpush1.bf16.msra.mxu0 0
      %621 = vmatprep.subr.bf16.mxu0 0
      %622 = vmatpush1.bf16.msra.mxu0 0
      %623 = vmatprep.subr.bf16.mxu0 0
      %624 = vmatpush1.bf16.msra.mxu0 0
      %625 = vmatprep.subr.bf16.mxu0 0
      %626 = vmatpush1.bf16.msra.mxu0 0
      %627 = vmatprep.subr.bf16.mxu0 0
      %628 = vmatpush1.bf16.msra.mxu0 0
      %629 = vmatprep.subr.bf16.mxu0 0
      %630 = vmatpush1.bf16.msra.mxu0 0
      %631 = vmatprep.subr.bf16.mxu0 0
      %632 = vmatpush1.bf16.msra.mxu0 0
      %633 = vmatprep.subr.bf16.mxu0 0
      %634 = vmatpush1.bf16.msra.mxu0 0
      %635 = vmatprep.subr.bf16.mxu0 0
      %636 = vmatpush1.bf16.msra.mxu0 0
      %637 = vmatprep.subr.bf16.mxu0 0
      %638 = vmatpush1.bf16.msra.mxu0 0
      %639 = vmatprep.mubr.bf16.mxu0 0
      %640 = vmatmul.mubr.bf16.gmra.mrb[0].mxu0 %v596
      %v641 = vpop.f32.mrb[0].mxu0
      %v642 = vadd.f32 0.0, %v641
      %v643 = vpop.f32.mrb[0].mxu0
      %v644 = vpop.f32.mrb[0].mxu0
      %v645 = vadd.f32 0.0, %v644
      %v646 = vpop.f32.mrb[0].mxu0
      %647 = vmatprep.mubr.bf16.mxu0 0
      %648 = vmatmul.mubr.bf16.gmra.mrb[0].mxu0 %v599
      %v649 = vpop.f32.mrb[0].mxu0
      %v650 = vadd.f32 0.0, %v649
      %v651 = vpop.f32.mrb[0].mxu0
      %v652 = vpop.f32.mrb[0].mxu0
      %v653 = vadd.f32 0.0, %v652
      %v654 = vpop.f32.mrb[0].mxu0
      %655 = vmatprep.mubr.bf16.mxu0 0
      %656 = vmatmul.mubr.bf16.gmra.mrb[0].mxu0 %v602
      %v657 = vpop.f32.mrb[0].mxu0
      %v658 = vadd.f32 0.0, %v657
      %v659 = vpop.f32.mrb[0].mxu0
      %v660 = vpop.f32.mrb[0].mxu0
      %v661 = vadd.f32 0.0, %v660
      %v662 = vpop.f32.mrb[0].mxu0
      %663 = vmatprep.mubr.bf16.mxu0 0
      %664 = vmatmul.mubr.bf16.gmra.mrb[0].mxu0 %v605
      %v665 = vpop.f32.mrb[0].mxu0
      %v666 = vadd.f32 0.0, %v665
      %v667 = vpop.f32.mrb[0].mxu0
      %v668 = vpop.f32.mrb[0].mxu0
      %v669 = vadd.f32 0.0, %v668
      %v670 = vpop.f32.mrb[0].mxu0
      %671 = vdwg.mxu0
      %v672 = vadd.f32 %v587, %v642
      %v673 = vadd.f32 %v588, %v645
      %v674 = vadd.f32 %v589, %v650
      %v675 = vadd.f32 %v590, %v653
      %v676 = vadd.f32 %v591, %v658
      %v677 = vadd.f32 %v592, %v661
      %v678 = vadd.f32 %v593, %v666
      %v679 = vadd.f32 %v594, %v669
      %680 = vst.msk [vmem:[#allocation2] sm:$0xff] %vm199, %v672
      %681 = vst.msk [vmem:[#allocation2 + $0x8] sm:$0xff] %vm199, %v673
      %682 = vst.msk [vmem:[#allocation2 + $0x10] sm:$0xff] %vm199, %v674
      %683 = vst.msk [vmem:[#allocation2 + $0x18] sm:$0xff] %vm199, %v675
      %684 = vst.msk [vmem:[#allocation2 + $0x20] sm:$0xff] %vm199, %v676
      %685 = vst.msk [vmem:[#allocation2 + $0x28] sm:$0xff] %vm199, %v677
      %686 = vst.msk [vmem:[#allocation2 + $0x30] sm:$0xff] %vm199, %v678
      %687 = vst.msk [vmem:[#allocation2 + $0x38] sm:$0xff] %vm199, %v679
      %v688 = vld [vmem:[%s567 + $0x1] sm:$0xff]
      %v689 = vld [vmem:[%s567 + $0x11] sm:$0xff]
      %v690 = vld [vmem:[%s567 + $0x21] sm:$0xff]
      %v691 = vld [vmem:[%s567 + $0x31] sm:$0xff]
      %v692 = vld [vmem:[%s567 + $0x41] sm:$0xff]
      %v693 = vld [vmem:[%s567 + $0x51] sm:$0xff]
      %v694 = vld [vmem:[%s567 + $0x61] sm:$0xff]
      %v695 = vld [vmem:[%s567 + $0x71] sm:$0xff]
      %v696 = vpack.c.bf16 %v689, %v688
      %v697 = vpack.c.bf16 %v691, %v690
      %v698 = vpack.c.bf16 %v693, %v692
      %v699 = vpack.c.bf16 %v695, %v694
      %s700 = scalar_lea.vmem %s1, 128
      %v701 = vld [vmem:[%s700] sm:$0xff]
      %v702 = vld [vmem:[%s700 + $0x8] sm:$0xff]
      %v703 = vld [vmem:[%s700 + $0x10] sm:$0xff]
      %v704 = vld [vmem:[%s700 + $0x18] sm:$0xff]
      %v705 = vpack.c.bf16 %v702, %v701
      %v706 = vpack.c.bf16 %v704, %v703
      %v707 = vld [vmem:[#allocation2] sm:$0xff]
      %v708 = vld [vmem:[#allocation2 + $0x8] sm:$0xff]
      %v709 = vld [vmem:[#allocation2 + $0x10] sm:$0xff]
      %v710 = vld [vmem:[#allocation2 + $0x18] sm:$0xff]
      %v711 = vld [vmem:[#allocation2 + $0x20] sm:$0xff]
      %v712 = vld [vmem:[#allocation2 + $0x28] sm:$0xff]
      %v713 = vld [vmem:[#allocation2 + $0x30] sm:$0xff]
      %v714 = vld [vmem:[#allocation2 + $0x38] sm:$0xff]
      %v716 = vsel %vm199, %v696, 0
      %v719 = vsel %vm199, %v697, 0
      %v722 = vsel %vm199, %v698, 0
      %v725 = vsel %vm199, %v699, 0
      %727 = vmatprep.subr.bf16.mxu0 0
      %728 = vmatpush1.bf16.msra.mxu0 %v705
      %729 = vmatprep.subr.bf16.mxu0 0
      %730 = vmatpush1.bf16.msra.mxu0 %v706
      %731 = vmatprep.subr.bf16.mxu0 0
      %732 = vmatpush1.bf16.msra.mxu0 0
      %733 = vmatprep.subr.bf16.mxu0 0
      %734 = vmatpush1.bf16.msra.mxu0 0
      %735 = vmatprep.subr.bf16.mxu0 0
      %736 = vmatpush1.bf16.msra.mxu0 0
      %737 = vmatprep.subr.bf16.mxu0 0
      %738 = vmatpush1.bf16.msra.mxu0 0
      %739 = vmatprep.subr.bf16.mxu0 0
      %740 = vmatpush1.bf16.msra.mxu0 0
      %741 = vmatprep.subr.bf16.mxu0 0
      %742 = vmatpush1.bf16.msra.mxu0 0
      %743 = vmatprep.subr.bf16.mxu0 0
      %744 = vmatpush1.bf16.msra.mxu0 0
      %745 = vmatprep.subr.bf16.mxu0 0
      %746 = vmatpush1.bf16.msra.mxu0 0
      %747 = vmatprep.subr.bf16.mxu0 0
      %748 = vmatpush1.bf16.msra.mxu0 0
      %749 = vmatprep.subr.bf16.mxu0 0
      %750 = vmatpush1.bf16.msra.mxu0 0
      %751 = vmatprep.subr.bf16.mxu0 0
      %752 = vmatpush1.bf16.msra.mxu0 0
      %753 = vmatprep.subr.bf16.mxu0 0
      %754 = vmatpush1.bf16.msra.mxu0 0
      %755 = vmatprep.subr.bf16.mxu0 0
      %756 = vmatpush1.bf16.msra.mxu0 0
      %757 = vmatprep.subr.bf16.mxu0 0
      %758 = vmatpush1.bf16.msra.mxu0 0
      %759 = vmatprep.mubr.bf16.mxu0 0
      %760 = vmatmul.mubr.bf16.gmra.mrb[0].mxu0 %v716
      %v761 = vpop.f32.mrb[0].mxu0
      %v762 = vadd.f32 0.0, %v761
      %v763 = vpop.f32.mrb[0].mxu0
      %v764 = vpop.f32.mrb[0].mxu0
      %v765 = vadd.f32 0.0, %v764
      %v766 = vpop.f32.mrb[0].mxu0
      %767 = vmatprep.mubr.bf16.mxu0 0
      %768 = vmatmul.mubr.bf16.gmra.mrb[0].mxu0 %v719
      %v769 = vpop.f32.mrb[0].mxu0
      %v770 = vadd.f32 0.0, %v769
      %v771 = vpop.f32.mrb[0].mxu0
      %v772 = vpop.f32.mrb[0].mxu0
      %v773 = vadd.f32 0.0, %v772
      %v774 = vpop.f32.mrb[0].mxu0
      %775 = vmatprep.mubr.bf16.mxu0 0
      %776 = vmatmul.mubr.bf16.gmra.mrb[0].mxu0 %v722
      %v777 = vpop.f32.mrb[0].mxu0
      %v778 = vadd.f32 0.0, %v777
      %v779 = vpop.f32.mrb[0].mxu0
      %v780 = vpop.f32.mrb[0].mxu0
      %v781 = vadd.f32 0.0, %v780
      %v782 = vpop.f32.mrb[0].mxu0
      %783 = vmatprep.mubr.bf16.mxu0 0
      %784 = vmatmul.mubr.bf16.gmra.mrb[0].mxu0 %v725
      %v785 = vpop.f32.mrb[0].mxu0
      %v786 = vadd.f32 0.0, %v785
      %v787 = vpop.f32.mrb[0].mxu0
      %v788 = vpop.f32.mrb[0].mxu0
      %v789 = vadd.f32 0.0, %v788
      %v790 = vpop.f32.mrb[0].mxu0
      %791 = vdwg.mxu0
      %v792 = vadd.f32 %v707, %v762
      %v793 = vadd.f32 %v708, %v765
      %v794 = vadd.f32 %v709, %v770
      %v795 = vadd.f32 %v710, %v773
      %v796 = vadd.f32 %v711, %v778
      %v797 = vadd.f32 %v712, %v781
      %v798 = vadd.f32 %v713, %v786
      %v799 = vadd.f32 %v714, %v789
      %800 = vst.msk [vmem:[#allocation2] sm:$0xff] %vm199, %v792
      %801 = vst.msk [vmem:[#allocation2 + $0x8] sm:$0xff] %vm199, %v793
      %802 = vst.msk [vmem:[#allocation2 + $0x10] sm:$0xff] %vm199, %v794
      %803 = vst.msk [vmem:[#allocation2 + $0x18] sm:$0xff] %vm199, %v795
      %804 = vst.msk [vmem:[#allocation2 + $0x20] sm:$0xff] %vm199, %v796
      %805 = vst.msk [vmem:[#allocation2 + $0x28] sm:$0xff] %vm199, %v797
      %806 = vst.msk [vmem:[#allocation2 + $0x30] sm:$0xff] %vm199, %v798
      %807 = vst.msk [vmem:[#allocation2 + $0x38] sm:$0xff] %vm199, %v799
      %v808 = vld [vmem:[%s567 + $0x2] sm:$0xff]
      %v809 = vld [vmem:[%s567 + $0x12] sm:$0xff]
      %v810 = vld [vmem:[%s567 + $0x22] sm:$0xff]
      %v811 = vld [vmem:[%s567 + $0x32] sm:$0xff]
      %v812 = vld [vmem:[%s567 + $0x42] sm:$0xff]
      %v813 = vld [vmem:[%s567 + $0x52] sm:$0xff]
      %v814 = vld [vmem:[%s567 + $0x62] sm:$0xff]
      %v815 = vld [vmem:[%s567 + $0x72] sm:$0xff]
      %v816 = vpack.c.bf16 %v809, %v808
      %v817 = vpack.c.bf16 %v811, %v810
      %v818 = vpack.c.bf16 %v813, %v812
      %v819 = vpack.c.bf16 %v815, %v814
      %s820 = scalar_lea.vmem %s1, 160
      %v821 = vld [vmem:[%s820] sm:$0xff]
      %v822 = vld [vmem:[%s820 + $0x8] sm:$0xff]
      %v823 = vld [vmem:[%s820 + $0x10] sm:$0xff]
      %v824 = vld [vmem:[%s820 + $0x18] sm:$0xff]
      %v825 = vpack.c.bf16 %v822, %v821
      %v826 = vpack.c.bf16 %v824, %v823
      %v827 = vld [vmem:[#allocation2] sm:$0xff]
      %v828 = vld [vmem:[#allocation2 + $0x8] sm:$0xff]
      %v829 = vld [vmem:[#allocation2 + $0x10] sm:$0xff]
      %v830 = vld [vmem:[#allocation2 + $0x18] sm:$0xff]
      %v831 = vld [vmem:[#allocation2 + $0x20] sm:$0xff]
      %v832 = vld [vmem:[#allocation2 + $0x28] sm:$0xff]
      %v833 = vld [vmem:[#allocation2 + $0x30] sm:$0xff]
      %v834 = vld [vmem:[#allocation2 + $0x38] sm:$0xff]
      %v836 = vsel %vm199, %v816, 0
      %v839 = vsel %vm199, %v817, 0
      %v842 = vsel %vm199, %v818, 0
      %v845 = vsel %vm199, %v819, 0
      %847 = vmatprep.subr.bf16.mxu0 0
      %848 = vmatpush1.bf16.msra.mxu0 %v825
      %849 = vmatprep.subr.bf16.mxu0 0
      %850 = vmatpush1.bf16.msra.mxu0 %v826
      %851 = vmatprep.subr.bf16.mxu0 0
      %852 = vmatpush1.bf16.msra.mxu0 0
      %853 = vmatprep.subr.bf16.mxu0 0
      %854 = vmatpush1.bf16.msra.mxu0 0
      %855 = vmatprep.subr.bf16.mxu0 0
      %856 = vmatpush1.bf16.msra.mxu0 0
      %857 = vmatprep.subr.bf16.mxu0 0
      %858 = vmatpush1.bf16.msra.mxu0 0
      %859 = vmatprep.subr.bf16.mxu0 0
      %860 = vmatpush1.bf16.msra.mxu0 0
      %861 = vmatprep.subr.bf16.mxu0 0
      %862 = vmatpush1.bf16.msra.mxu0 0
      %863 = vmatprep.subr.bf16.mxu0 0
      %864 = vmatpush1.bf16.msra.mxu0 0
      %865 = vmatprep.subr.bf16.mxu0 0
      %866 = vmatpush1.bf16.msra.mxu0 0
      %867 = vmatprep.subr.bf16.mxu0 0
      %868 = vmatpush1.bf16.msra.mxu0 0
      %869 = vmatprep.subr.bf16.mxu0 0
      %870 = vmatpush1.bf16.msra.mxu0 0
      %871 = vmatprep.subr.bf16.mxu0 0
      %872 = vmatpush1.bf16.msra.mxu0 0
      %873 = vmatprep.subr.bf16.mxu0 0
      %874 = vmatpush1.bf16.msra.mxu0 0
      %875 = vmatprep.subr.bf16.mxu0 0
      %876 = vmatpush1.bf16.msra.mxu0 0
      %877 = vmatprep.subr.bf16.mxu0 0
      %878 = vmatpush1.bf16.msra.mxu0 0
      %879 = vmatprep.mubr.bf16.mxu0 0
      %880 = vmatmul.mubr.bf16.gmra.mrb[0].mxu0 %v836
      %v881 = vpop.f32.mrb[0].mxu0
      %v882 = vadd.f32 0.0, %v881
      %v883 = vpop.f32.mrb[0].mxu0
      %v884 = vpop.f32.mrb[0].mxu0
      %v885 = vadd.f32 0.0, %v884
      %v886 = vpop.f32.mrb[0].mxu0
      %887 = vmatprep.mubr.bf16.mxu0 0
      %888 = vmatmul.mubr.bf16.gmra.mrb[0].mxu0 %v839
      %v889 = vpop.f32.mrb[0].mxu0
      %v890 = vadd.f32 0.0, %v889
      %v891 = vpop.f32.mrb[0].mxu0
      %v892 = vpop.f32.mrb[0].mxu0
      %v893 = vadd.f32 0.0, %v892
      %v894 = vpop.f32.mrb[0].mxu0
      %895 = vmatprep.mubr.bf16.mxu0 0
      %896 = vmatmul.mubr.bf16.gmra.mrb[0].mxu0 %v842
      %v897 = vpop.f32.mrb[0].mxu0
      %v898 = vadd.f32 0.0, %v897
      %v899 = vpop.f32.mrb[0].mxu0
      %v900 = vpop.f32.mrb[0].mxu0
      %v901 = vadd.f32 0.0, %v900
      %v902 = vpop.f32.mrb[0].mxu0
      %903 = vmatprep.mubr.bf16.mxu0 0
      %904 = vmatmul.mubr.bf16.gmra.mrb[0].mxu0 %v845
      %v905 = vpop.f32.mrb[0].mxu0
      %v906 = vadd.f32 0.0, %v905
      %v907 = vpop.f32.mrb[0].mxu0
      %v908 = vpop.f32.mrb[0].mxu0
      %v909 = vadd.f32 0.0, %v908
      %v910 = vpop.f32.mrb[0].mxu0
      %911 = vdwg.mxu0
      %v912 = vadd.f32 %v827, %v882
      %v913 = vadd.f32 %v828, %v885
      %v914 = vadd.f32 %v829, %v890
      %v915 = vadd.f32 %v830, %v893
      %v916 = vadd.f32 %v831, %v898
      %v917 = vadd.f32 %v832, %v901
      %v918 = vadd.f32 %v833, %v906
      %v919 = vadd.f32 %v834, %v909
      %920 = vst.msk [vmem:[#allocation2] sm:$0xff] %vm199, %v912
      %921 = vst.msk [vmem:[#allocation2 + $0x8] sm:$0xff] %vm199, %v913
      %922 = vst.msk [vmem:[#allocation2 + $0x10] sm:$0xff] %vm199, %v914
      %923 = vst.msk [vmem:[#allocation2 + $0x18] sm:$0xff] %vm199, %v915
      %924 = vst.msk [vmem:[#allocation2 + $0x20] sm:$0xff] %vm199, %v916
      %925 = vst.msk [vmem:[#allocation2 + $0x28] sm:$0xff] %vm199, %v917
      %926 = vst.msk [vmem:[#allocation2 + $0x30] sm:$0xff] %vm199, %v918
      %927 = vst.msk [vmem:[#allocation2 + $0x38] sm:$0xff] %vm199, %v919
      %s928 = scalar_lea.vmem %s188, 32
      %v929 = vld [vmem:[%s928] sm:$0xff]
      %v930 = vld [vmem:[%s928 + $0x10] sm:$0xff]
      %v931 = vld [vmem:[%s928 + $0x20] sm:$0xff]
      %v932 = vld [vmem:[%s928 + $0x30] sm:$0xff]
      %v933 = vld [vmem:[%s928 + $0x40] sm:$0xff]
      %v934 = vld [vmem:[%s928 + $0x50] sm:$0xff]
      %v935 = vld [vmem:[%s928 + $0x60] sm:$0xff]
      %v936 = vld [vmem:[%s928 + $0x70] sm:$0xff]
      %v937 = vpack.c.bf16 %v930, %v929
      %v938 = vpack.c.bf16 %v932, %v931
      %v939 = vpack.c.bf16 %v934, %v933
      %v940 = vpack.c.bf16 %v936, %v935
      %s941 = scalar_lea.vmem %s1, 192
      %v942 = vld [vmem:[%s941] sm:$0xff]
      %v943 = vld [vmem:[%s941 + $0x8] sm:$0xff]
      %v944 = vld [vmem:[%s941 + $0x10] sm:$0xff]
      %v945 = vld [vmem:[%s941 + $0x18] sm:$0xff]
      %v946 = vpack.c.bf16 %v943, %v942
      %v947 = vpack.c.bf16 %v945, %v944
      %v948 = vld [vmem:[#allocation2] sm:$0xff]
      %v949 = vld [vmem:[#allocation2 + $0x8] sm:$0xff]
      %v950 = vld [vmem:[#allocation2 + $0x10] sm:$0xff]
      %v951 = vld [vmem:[#allocation2 + $0x18] sm:$0xff]
      %v952 = vld [vmem:[#allocation2 + $0x20] sm:$0xff]
      %v953 = vld [vmem:[#allocation2 + $0x28] sm:$0xff]
      %v954 = vld [vmem:[#allocation2 + $0x30] sm:$0xff]
      %v955 = vld [vmem:[#allocation2 + $0x38] sm:$0xff]
      %v957 = vsel %vm199, %v937, 0
      %v960 = vsel %vm199, %v938, 0
      %v963 = vsel %vm199, %v939, 0
      %v966 = vsel %vm199, %v940, 0
      %968 = vmatprep.subr.bf16.mxu0 0
      %969 = vmatpush1.bf16.msra.mxu0 %v946
      %970 = vmatprep.subr.bf16.mxu0 0
      %971 = vmatpush1.bf16.msra.mxu0 %v947
      %972 = vmatprep.subr.bf16.mxu0 0
      %973 = vmatpush1.bf16.msra.mxu0 0
      %974 = vmatprep.subr.bf16.mxu0 0
      %975 = vmatpush1.bf16.msra.mxu0 0
      %976 = vmatprep.subr.bf16.mxu0 0
      %977 = vmatpush1.bf16.msra.mxu0 0
      %978 = vmatprep.subr.bf16.mxu0 0
      %979 = vmatpush1.bf16.msra.mxu0 0
      %980 = vmatprep.subr.bf16.mxu0 0
      %981 = vmatpush1.bf16.msra.mxu0 0
      %982 = vmatprep.subr.bf16.mxu0 0
      %983 = vmatpush1.bf16.msra.mxu0 0
      %984 = vmatprep.subr.bf16.mxu0 0
      %985 = vmatpush1.bf16.msra.mxu0 0
      %986 = vmatprep.subr.bf16.mxu0 0
      %987 = vmatpush1.bf16.msra.mxu0 0
      %988 = vmatprep.subr.bf16.mxu0 0
      %989 = vmatpush1.bf16.msra.mxu0 0
      %990 = vmatprep.subr.bf16.mxu0 0
      %991 = vmatpush1.bf16.msra.mxu0 0
      %992 = vmatprep.subr.bf16.mxu0 0
      %993 = vmatpush1.bf16.msra.mxu0 0
      %994 = vmatprep.subr.bf16.mxu0 0
      %995 = vmatpush1.bf16.msra.mxu0 0
      %996 = vmatprep.subr.bf16.mxu0 0
      %997 = vmatpush1.bf16.msra.mxu0 0
      %998 = vmatprep.subr.bf16.mxu0 0
      %999 = vmatpush1.bf16.msra.mxu0 0
      %1000 = vmatprep.mubr.bf16.mxu0 0
      %1001 = vmatmul.mubr.bf16.gmra.mrb[0].mxu0 %v957
      %v1002 = vpop.f32.mrb[0].mxu0
      %v1003 = vadd.f32 0.0, %v1002
      %v1004 = vpop.f32.mrb[0].mxu0
      %v1005 = vpop.f32.mrb[0].mxu0
      %v1006 = vadd.f32 0.0, %v1005
      %v1007 = vpop.f32.mrb[0].mxu0
      %1008 = vmatprep.mubr.bf16.mxu0 0
      %1009 = vmatmul.mubr.bf16.gmra.mrb[0].mxu0 %v960
      %v1010 = vpop.f32.mrb[0].mxu0
      %v1011 = vadd.f32 0.0, %v1010
      %v1012 = vpop.f32.mrb[0].mxu0
      %v1013 = vpop.f32.mrb[0].mxu0
      %v1014 = vadd.f32 0.0, %v1013
      %v1015 = vpop.f32.mrb[0].mxu0
      %1016 = vmatprep.mubr.bf16.mxu0 0
      %1017 = vmatmul.mubr.bf16.gmra.mrb[0].mxu0 %v963
      %v1018 = vpop.f32.mrb[0].mxu0
      %v1019 = vadd.f32 0.0, %v1018
      %v1020 = vpop.f32.mrb[0].mxu0
      %v1021 = vpop.f32.mrb[0].mxu0
      %v1022 = vadd.f32 0.0, %v1021
      %v1023 = vpop.f32.mrb[0].mxu0
      %1024 = vmatprep.mubr.bf16.mxu0 0
      %1025 = vmatmul.mubr.bf16.gmra.mrb[0].mxu0 %v966
      %v1026 = vpop.f32.mrb[0].mxu0
      %v1027 = vadd.f32 0.0, %v1026
      %v1028 = vpop.f32.mrb[0].mxu0
      %v1029 = vpop.f32.mrb[0].mxu0
      %v1030 = vadd.f32 0.0, %v1029
      %v1031 = vpop.f32.mrb[0].mxu0
      %1032 = vdwg.mxu0
      %v1033 = vadd.f32 %v948, %v1003
      %v1034 = vadd.f32 %v949, %v1006
      %v1035 = vadd.f32 %v950, %v1011
      %v1036 = vadd.f32 %v951, %v1014
      %v1037 = vadd.f32 %v952, %v1019
      %v1038 = vadd.f32 %v953, %v1022
      %v1039 = vadd.f32 %v954, %v1027
      %v1040 = vadd.f32 %v955, %v1030
      %1041 = vst.msk [vmem:[#allocation2] sm:$0xff] %vm199, %v1033
      %1042 = vst.msk [vmem:[#allocation2 + $0x8] sm:$0xff] %vm199, %v1034
      %1043 = vst.msk [vmem:[#allocation2 + $0x10] sm:$0xff] %vm199, %v1035
      %1044 = vst.msk [vmem:[#allocation2 + $0x18] sm:$0xff] %vm199, %v1036
      %1045 = vst.msk [vmem:[#allocation2 + $0x20] sm:$0xff] %vm199, %v1037
      %1046 = vst.msk [vmem:[#allocation2 + $0x28] sm:$0xff] %vm199, %v1038
      %1047 = vst.msk [vmem:[#allocation2 + $0x30] sm:$0xff] %vm199, %v1039
      %1048 = vst.msk [vmem:[#allocation2 + $0x38] sm:$0xff] %vm199, %v1040
      %v1049 = vld [vmem:[%s928 + $0x1] sm:$0xff]
      %v1050 = vld [vmem:[%s928 + $0x11] sm:$0xff]
      %v1051 = vld [vmem:[%s928 + $0x21] sm:$0xff]
      %v1052 = vld [vmem:[%s928 + $0x31] sm:$0xff]
      %v1053 = vld [vmem:[%s928 + $0x41] sm:$0xff]
      %v1054 = vld [vmem:[%s928 + $0x51] sm:$0xff]
      %v1055 = vld [vmem:[%s928 + $0x61] sm:$0xff]
      %v1056 = vld [vmem:[%s928 + $0x71] sm:$0xff]
      %v1057 = vpack.c.bf16 %v1050, %v1049
      %v1058 = vpack.c.bf16 %v1052, %v1051
      %v1059 = vpack.c.bf16 %v1054, %v1053
      %v1060 = vpack.c.bf16 %v1056, %v1055
      %s1061 = scalar_lea.vmem %s1, 224
      %v1062 = vld [vmem:[%s1061] sm:$0xff]
      %v1063 = vld [vmem:[%s1061 + $0x8] sm:$0xff]
      %v1064 = vld [vmem:[%s1061 + $0x10] sm:$0xff]
      %v1065 = vld [vmem:[%s1061 + $0x18] sm:$0xff]
      %v1066 = vpack.c.bf16 %v1063, %v1062
      %v1067 = vpack.c.bf16 %v1065, %v1064
      %v1068 = vld [vmem:[#allocation2] sm:$0xff]
      %v1069 = vld [vmem:[#allocation2 + $0x8] sm:$0xff]
      %v1070 = vld [vmem:[#allocation2 + $0x10] sm:$0xff]
      %v1071 = vld [vmem:[#allocation2 + $0x18] sm:$0xff]
      %v1072 = vld [vmem:[#allocation2 + $0x20] sm:$0xff]
      %v1073 = vld [vmem:[#allocation2 + $0x28] sm:$0xff]
      %v1074 = vld [vmem:[#allocation2 + $0x30] sm:$0xff]
      %v1075 = vld [vmem:[#allocation2 + $0x38] sm:$0xff]
      %v1077 = vsel %vm199, %v1057, 0
      %v1080 = vsel %vm199, %v1058, 0
      %v1083 = vsel %vm199, %v1059, 0
      %v1086 = vsel %vm199, %v1060, 0
      %1088 = vmatprep.subr.bf16.mxu0 0
      %1089 = vmatpush1.bf16.msra.mxu0 %v1066
      %1090 = vmatprep.subr.bf16.mxu0 0
      %1091 = vmatpush1.bf16.msra.mxu0 %v1067
      %1092 = vmatprep.subr.bf16.mxu0 0
      %1093 = vmatpush1.bf16.msra.mxu0 0
      %1094 = vmatprep.subr.bf16.mxu0 0
      %1095 = vmatpush1.bf16.msra.mxu0 0
      %1096 = vmatprep.subr.bf16.mxu0 0
      %1097 = vmatpush1.bf16.msra.mxu0 0
      %1098 = vmatprep.subr.bf16.mxu0 0
      %1099 = vmatpush1.bf16.msra.mxu0 0
      %1100 = vmatprep.subr.bf16.mxu0 0
      %1101 = vmatpush1.bf16.msra.mxu0 0
      %1102 = vmatprep.subr.bf16.mxu0 0
      %1103 = vmatpush1.bf16.msra.mxu0 0
      %1104 = vmatprep.subr.bf16.mxu0 0
      %1105 = vmatpush1.bf16.msra.mxu0 0
      %1106 = vmatprep.subr.bf16.mxu0 0
      %1107 = vmatpush1.bf16.msra.mxu0 0
      %1108 = vmatprep.subr.bf16.mxu0 0
      %1109 = vmatpush1.bf16.msra.mxu0 0
      %1110 = vmatprep.subr.bf16.mxu0 0
      %1111 = vmatpush1.bf16.msra.mxu0 0
      %1112 = vmatprep.subr.bf16.mxu0 0
      %1113 = vmatpush1.bf16.msra.mxu0 0
      %1114 = vmatprep.subr.bf16.mxu0 0
      %1115 = vmatpush1.bf16.msra.mxu0 0
      %1116 = vmatprep.subr.bf16.mxu0 0
      %1117 = vmatpush1.bf16.msra.mxu0 0
      %1118 = vmatprep.subr.bf16.mxu0 0
      %1119 = vmatpush1.bf16.msra.mxu0 0
      %1120 = vmatprep.mubr.bf16.mxu0 0
      %1121 = vmatmul.mubr.bf16.gmra.mrb[0].mxu0 %v1077
      %v1122 = vpop.f32.mrb[0].mxu0
      %v1123 = vadd.f32 0.0, %v1122
      %v1124 = vpop.f32.mrb[0].mxu0
      %v1125 = vpop.f32.mrb[0].mxu0
      %v1126 = vadd.f32 0.0, %v1125
      %v1127 = vpop.f32.mrb[0].mxu0
      %1128 = vmatprep.mubr.bf16.mxu0 0
      %1129 = vmatmul.mubr.bf16.gmra.mrb[0].mxu0 %v1080
      %v1130 = vpop.f32.mrb[0].mxu0
      %v1131 = vadd.f32 0.0, %v1130
      %v1132 = vpop.f32.mrb[0].mxu0
      %v1133 = vpop.f32.mrb[0].mxu0
      %v1134 = vadd.f32 0.0, %v1133
      %v1135 = vpop.f32.mrb[0].mxu0
      %1136 = vmatprep.mubr.bf16.mxu0 0
      %1137 = vmatmul.mubr.bf16.gmra.mrb[0].mxu0 %v1083
      %v1138 = vpop.f32.mrb[0].mxu0
      %v1139 = vadd.f32 0.0, %v1138
      %v1140 = vpop.f32.mrb[0].mxu0
      %v1141 = vpop.f32.mrb[0].mxu0
      %v1142 = vadd.f32 0.0, %v1141
      %v1143 = vpop.f32.mrb[0].mxu0
      %1144 = vmatprep.mubr.bf16.mxu0 0
      %1145 = vmatmul.mubr.bf16.gmra.mrb[0].mxu0 %v1086
      %v1146 = vpop.f32.mrb[0].mxu0
      %v1147 = vadd.f32 0.0, %v1146
      %v1148 = vpop.f32.mrb[0].mxu0
      %v1149 = vpop.f32.mrb[0].mxu0
      %v1150 = vadd.f32 0.0, %v1149
      %v1151 = vpop.f32.mrb[0].mxu0
      %1152 = vdwg.mxu0
      %v1153 = vadd.f32 %v1068, %v1123
      %v1154 = vadd.f32 %v1069, %v1126
      %v1155 = vadd.f32 %v1070, %v1131
      %v1156 = vadd.f32 %v1071, %v1134
      %v1157 = vadd.f32 %v1072, %v1139
      %v1158 = vadd.f32 %v1073, %v1142
      %v1159 = vadd.f32 %v1074, %v1147
      %v1160 = vadd.f32 %v1075, %v1150
      %1161 = vst.msk [vmem:[#allocation2] sm:$0xff] %vm199, %v1153
      %1162 = vst.msk [vmem:[#allocation2 + $0x8] sm:$0xff] %vm199, %v1154
      %1163 = vst.msk [vmem:[#allocation2 + $0x10] sm:$0xff] %vm199, %v1155
      %1164 = vst.msk [vmem:[#allocation2 + $0x18] sm:$0xff] %vm199, %v1156
      %1165 = vst.msk [vmem:[#allocation2 + $0x20] sm:$0xff] %vm199, %v1157
      %1166 = vst.msk [vmem:[#allocation2 + $0x28] sm:$0xff] %vm199, %v1158
      %1167 = vst.msk [vmem:[#allocation2 + $0x30] sm:$0xff] %vm199, %v1159
      %1168 = vst.msk [vmem:[#allocation2 + $0x38] sm:$0xff] %vm199, %v1160
      %v1169 = vld [vmem:[%s928 + $0x2] sm:$0xff]
      %v1170 = vld [vmem:[%s928 + $0x12] sm:$0xff]
      %v1171 = vld [vmem:[%s928 + $0x22] sm:$0xff]
      %v1172 = vld [vmem:[%s928 + $0x32] sm:$0xff]
      %v1173 = vld [vmem:[%s928 + $0x42] sm:$0xff]
      %v1174 = vld [vmem:[%s928 + $0x52] sm:$0xff]
      %v1175 = vld [vmem:[%s928 + $0x62] sm:$0xff]
      %v1176 = vld [vmem:[%s928 + $0x72] sm:$0xff]
      %v1177 = vpack.c.bf16 %v1170, %v1169
      %v1178 = vpack.c.bf16 %v1172, %v1171
      %v1179 = vpack.c.bf16 %v1174, %v1173
      %v1180 = vpack.c.bf16 %v1176, %v1175
      %s1181 = scalar_lea.vmem %s1, 256
      %v1182 = vld [vmem:[%s1181] sm:$0xff]
      %v1183 = vld [vmem:[%s1181 + $0x8] sm:$0xff]
      %v1184 = vld [vmem:[%s1181 + $0x10] sm:$0xff]
      %v1185 = vld [vmem:[%s1181 + $0x18] sm:$0xff]
      %v1186 = vpack.c.bf16 %v1183, %v1182
      %v1187 = vpack.c.bf16 %v1185, %v1184
      %v1188 = vld [vmem:[#allocation2] sm:$0xff]
      %v1189 = vld [vmem:[#allocation2 + $0x8] sm:$0xff]
      %v1190 = vld [vmem:[#allocation2 + $0x10] sm:$0xff]
      %v1191 = vld [vmem:[#allocation2 + $0x18] sm:$0xff]
      %v1192 = vld [vmem:[#allocation2 + $0x20] sm:$0xff]
      %v1193 = vld [vmem:[#allocation2 + $0x28] sm:$0xff]
      %v1194 = vld [vmem:[#allocation2 + $0x30] sm:$0xff]
      %v1195 = vld [vmem:[#allocation2 + $0x38] sm:$0xff]
      %v1197 = vsel %vm199, %v1177, 0
      %v1200 = vsel %vm199, %v1178, 0
      %v1203 = vsel %vm199, %v1179, 0
      %v1206 = vsel %vm199, %v1180, 0
      %1208 = vmatprep.subr.bf16.mxu0 0
      %1209 = vmatpush1.bf16.msra.mxu0 %v1186
      %1210 = vmatprep.subr.bf16.mxu0 0
      %1211 = vmatpush1.bf16.msra.mxu0 %v1187
      %1212 = vmatprep.subr.bf16.mxu0 0
      %1213 = vmatpush1.bf16.msra.mxu0 0
      %1214 = vmatprep.subr.bf16.mxu0 0
      %1215 = vmatpush1.bf16.msra.mxu0 0
      %1216 = vmatprep.subr.bf16.mxu0 0
      %1217 = vmatpush1.bf16.msra.mxu0 0
      %1218 = vmatprep.subr.bf16.mxu0 0
      %1219 = vmatpush1.bf16.msra.mxu0 0
      %1220 = vmatprep.subr.bf16.mxu0 0
      %1221 = vmatpush1.bf16.msra.mxu0 0
      %1222 = vmatprep.subr.bf16.mxu0 0
      %1223 = vmatpush1.bf16.msra.mxu0 0
      %1224 = vmatprep.subr.bf16.mxu0 0
      %1225 = vmatpush1.bf16.msra.mxu0 0
      %1226 = vmatprep.subr.bf16.mxu0 0
      %1227 = vmatpush1.bf16.msra.mxu0 0
      %1228 = vmatprep.subr.bf16.mxu0 0
      %1229 = vmatpush1.bf16.msra.mxu0 0
      %1230 = vmatprep.subr.bf16.mxu0 0
      %1231 = vmatpush1.bf16.msra.mxu0 0
      %1232 = vmatprep.subr.bf16.mxu0 0
      %1233 = vmatpush1.bf16.msra.mxu0 0
      %1234 = vmatprep.subr.bf16.mxu0 0
      %1235 = vmatpush1.bf16.msra.mxu0 0
      %1236 = vmatprep.subr.bf16.mxu0 0
      %1237 = vmatpush1.bf16.msra.mxu0 0
      %1238 = vmatprep.subr.bf16.mxu0 0
      %1239 = vmatpush1.bf16.msra.mxu0 0
      %1240 = vmatprep.mubr.bf16.mxu0 0
      %1241 = vmatmul.mubr.bf16.gmra.mrb[0].mxu0 %v1197
      %v1242 = vpop.f32.mrb[0].mxu0
      %v1243 = vadd.f32 0.0, %v1242
      %v1244 = vpop.f32.mrb[0].mxu0
      %v1245 = vpop.f32.mrb[0].mxu0
      %v1246 = vadd.f32 0.0, %v1245
      %v1247 = vpop.f32.mrb[0].mxu0
      %1248 = vmatprep.mubr.bf16.mxu0 0
      %1249 = vmatmul.mubr.bf16.gmra.mrb[0].mxu0 %v1200
      %v1250 = vpop.f32.mrb[0].mxu0
      %v1251 = vadd.f32 0.0, %v1250
      %v1252 = vpop.f32.mrb[0].mxu0
      %v1253 = vpop.f32.mrb[0].mxu0
      %v1254 = vadd.f32 0.0, %v1253
      %v1255 = vpop.f32.mrb[0].mxu0
      %1256 = vmatprep.mubr.bf16.mxu0 0
      %1257 = vmatmul.mubr.bf16.gmra.mrb[0].mxu0 %v1203
      %v1258 = vpop.f32.mrb[0].mxu0
      %v1259 = vadd.f32 0.0, %v1258
      %v1260 = vpop.f32.mrb[0].mxu0
      %v1261 = vpop.f32.mrb[0].mxu0
      %v1262 = vadd.f32 0.0, %v1261
      %v1263 = vpop.f32.mrb[0].mxu0
      %1264 = vmatprep.mubr.bf16.mxu0 0
      %1265 = vmatmul.mubr.bf16.gmra.mrb[0].mxu0 %v1206
      %v1266 = vpop.f32.mrb[0].mxu0
      %v1267 = vadd.f32 0.0, %v1266
      %v1268 = vpop.f32.mrb[0].mxu0
      %v1269 = vpop.f32.mrb[0].mxu0
      %v1270 = vadd.f32 0.0, %v1269
      %v1271 = vpop.f32.mrb[0].mxu0
      %1272 = vdwg.mxu0
      %v1273 = vadd.f32 %v1188, %v1243
      %v1274 = vadd.f32 %v1189, %v1246
      %v1275 = vadd.f32 %v1190, %v1251
      %v1276 = vadd.f32 %v1191, %v1254
      %v1277 = vadd.f32 %v1192, %v1259
      %v1278 = vadd.f32 %v1193, %v1262
      %v1279 = vadd.f32 %v1194, %v1267
      %v1280 = vadd.f32 %v1195, %v1270
      %1281 = vst.msk [vmem:[#allocation2] sm:$0xff] %vm199, %v1273
      %1282 = vst.msk [vmem:[#allocation2 + $0x8] sm:$0xff] %vm199, %v1274
      %1283 = vst.msk [vmem:[#allocation2 + $0x10] sm:$0xff] %vm199, %v1275
      %1284 = vst.msk [vmem:[#allocation2 + $0x18] sm:$0xff] %vm199, %v1276
      %1285 = vst.msk [vmem:[#allocation2 + $0x20] sm:$0xff] %vm199, %v1277
      %1286 = vst.msk [vmem:[#allocation2 + $0x28] sm:$0xff] %vm199, %v1278
      %1287 = vst.msk [vmem:[#allocation2 + $0x30] sm:$0xff] %vm199, %v1279
      %1288 = vst.msk [vmem:[#allocation2 + $0x38] sm:$0xff] %vm199, %v1280
      %v1289 = vld [vmem:[#allocation2] sm:$0xff]
      %v1290 = vld [vmem:[#allocation2 + $0x8] sm:$0xff]
      %v1291 = vld [vmem:[#allocation2 + $0x10] sm:$0xff]
      %v1292 = vld [vmem:[#allocation2 + $0x18] sm:$0xff]
      %v1293 = vld [vmem:[#allocation2 + $0x20] sm:$0xff]
      %v1294 = vld [vmem:[#allocation2 + $0x28] sm:$0xff]
      %v1295 = vld [vmem:[#allocation2 + $0x30] sm:$0xff]
      %v1296 = vld [vmem:[#allocation2 + $0x38] sm:$0xff]
      %v1297 = vld [vmem:[%s2] sm:$0x1]
      %v1299 = vlaneseq
      %v1300 = vshrl.u32 %v1299, 7
      %v1301 = vsub.s32 0, %v1300
      %v1302 = vrot.slane %v1297, %v1301
      %v1304 = vadd.f32 %v1289, %v1302
      %v1305 = vadd.f32 %v1290, %v1302
      %v1306 = vadd.f32 %v1291, %v1302
      %v1307 = vadd.f32 %v1292, %v1302
      %v1308 = vadd.f32 %v1293, %v1302
      %v1309 = vadd.f32 %v1294, %v1302
      %v1310 = vadd.f32 %v1295, %v1302
      %v1311 = vadd.f32 %v1296, %v1302
      %1312 = vst.msk [vmem:[%s197] sm:$0xff] %vm199, %v1304
      %1313 = vst.msk [vmem:[%s197 + $0x8] sm:$0xff] %vm199, %v1305
      %1314 = vst.msk [vmem:[%s197 + $0x10] sm:$0xff] %vm199, %v1306
      %1315 = vst.msk [vmem:[%s197 + $0x18] sm:$0xff] %vm199, %v1307
      %1316 = vst.msk [vmem:[%s197 + $0x20] sm:$0xff] %vm199, %v1308
      %1317 = vst.msk [vmem:[%s197 + $0x28] sm:$0xff] %vm199, %v1309
      %1318 = vst.msk [vmem:[%s197 + $0x30] sm:$0xff] %vm199, %v1310
      %1319 = vst.msk [vmem:[%s197 + $0x38] sm:$0xff] %vm199, %v1311
      %p1320 = scmp.lt.s32.totalorder %s18, 1
      %s1321 = scalar_select %p1320, %s18, 1
      %p1322 = scmp.lt.s32.totalorder %s19, 0
      %s1323 = scalar_select %p1322, %s19, 0
      %s1324 = smul.addr %s1321, 8
      %s1325 = sadd.s32 %s1323, %s1324
      %s1326 = smul.addr %s1325, 8
      %s1327 = scalar_lea.vmem %s3, %s1326
      // Predicated region
      $region33: #{speech_recognition_forward.17} parent=31 // pred_check
        %p1328 = pneg %p116
      $region34: #{speech_recognition_forward.17} parent=31 // pred_check_branch
        %1330 = sbr.rel (%p1328) target = $region36
      $region35: #{speech_recognition_forward.17} parent=31 // pred_region
        _
      $region36: #{speech_recognition_forward.17} parent=31 // pred_fallthru
        _
    $region32: #{speech_recognition_forward.17} parent=5 // pred_fallthru
      _
    %p1331 = scmp.le.s32.totalorder 2, %s9
    // Predicated region
    $region37: #{speech_recognition_forward.17} parent=5 // pred_check
      %p1332 = pneg %p1331
    $region38: #{speech_recognition_forward.17} parent=5 // pred_check_branch
      %1334 = sbr.rel (%p1332) target = $region40
    $region39: #{speech_recognition_forward.17} parent=5 // pred_region
      %s1335 = ssub.s32 %s9, 2
      // Predicated region
      $region41: #{speech_recognition_forward.17} parent=39 // pred_check
        %p1336 = pneg %p122
      $region42: #{speech_recognition_forward.17} parent=39 // pred_check_branch
        %1338 = sbr.rel (%p1336) target = $region44
      $region43: #{speech_recognition_forward.17} parent=39 // pred_region
        %p1339 = scmp.lt.s32.totalorder %s20, 1
        %s1340 = scalar_select %p1339, %s20, 1
        %p1341 = scmp.lt.s32.totalorder %s21, 0
        %s1342 = scalar_select %p1341, %s21, 0
        %s1343 = smul.addr %s1340, 8
        %s1344 = sadd.s32 %s1342, %s1343
        %s1345 = smul.addr %s1344, 8
        %s1346 = scalar_lea.vmem %s3, %s1345
      $region44: #{speech_recognition_forward.17} parent=39 // pred_fallthru
        _
    $region40: #{speech_recognition_forward.17} parent=5 // pred_fallthru
      _
  $region6: #{speech_recognition_forward.17} parent=0 // loop_footer
    %s13 = sadd.s32 1, %s9
  $region7: #{speech_recognition_forward.17} parent=0 // loop_footer_branch
    %8 = sbr.rel target = $region3
  $region8: #{speech_recognition_forward.17} parent=0 // loop_exit
    _

// kernel: speech_recognition_forward.24
$region0: #{speech_recognition_forward.24}
  #allocation0 [shape = 'u32[]', space=smem, size = 0x4, offset = 0x4, fixed_abs, tag = 'smem constant byte address 0x4 - core index']
  #allocation1 [shape = 'u32[144,128]{1,0:T(1,128)}', space=vmem, size = 0x12000, scoped, tag = 'internal scratch']
  #allocation2 [shape = 'f32[16,128]{1,0:T(8,128)}', space=vmem, size = 0x2000, scoped, tag = 'scratch operand']
  %s0 = inlined_call_operand.vmem [shape: f32[16,256], index: 0, kind: input, shape index: {}]
  %s1 = inlined_call_operand.vmem [shape: f32[256,128], index: 1, kind: input, shape index: {}]
  %s2 = inlined_call_operand.vmem [shape: f32[1,128], index: 2, kind: input, shape index: {}]
  %s3 = inlined_call_operand.vmem [shape: f32[16,128], index: 3, kind: output, shape index: {}]
  %s4 = sld [smem:[#allocation0]]
  $region30: #{speech_recognition_forward.24} parent=0
    _
  %s6 = ssub.s32 1, %s4
  %s7 = scalar_select 0, %s6, %s4
  // Predicated region
  $region2: #{speech_recognition_forward.24} parent=0 // pred_check
    _
  $region3: #{speech_recognition_forward.24} parent=0 // pred_check_branch
    %9 = sbr.rel (0) target = $region5
  $region4: #{speech_recognition_forward.24} parent=0 // pred_region
    _
  $region5: #{speech_recognition_forward.24} parent=0 // pred_fallthru
    _
  // Predicated region
  $region6: #{speech_recognition_forward.24} parent=0 // pred_check
    _
  $region7: #{speech_recognition_forward.24} parent=0 // pred_check_branch
    %11 = sbr.rel (0) target = $region9
  $region8: #{speech_recognition_forward.24} parent=0 // pred_region
    _
  $region9: #{speech_recognition_forward.24} parent=0 // pred_fallthru
    _
  // Predicated region
  $region10: #{speech_recognition_forward.24} parent=0 // pred_check
    _
  $region11: #{speech_recognition_forward.24} parent=0 // pred_check_branch
    %13 = sbr.rel (0) target = $region13
  $region12: #{speech_recognition_forward.24} parent=0 // pred_region
    _
  $region13: #{speech_recognition_forward.24} parent=0 // pred_fallthru
    _
  %p15 = scmp.eq.s32.totalorder 0, 0
  // Predicated region
  $region14: #{speech_recognition_forward.24} parent=0 // pred_check
    %p16 = pneg %p15
  $region15: #{speech_recognition_forward.24} parent=0 // pred_check_branch
    %18 = sbr.rel (%p16) target = $region17
  $region16: #{speech_recognition_forward.24} parent=0 // pred_region
    %19 = vst [vmem:[#allocation2] sm:$0xff] 0.0
    %20 = vst [vmem:[#allocation2 + $0x8] sm:$0xff] 0.0
  $region17: #{speech_recognition_forward.24} parent=0 // pred_fallthru
    _
  %v21 = vld [vmem:[#allocation2] sm:$0xff]
  %v22 = vld [vmem:[#allocation2 + $0x8] sm:$0xff]
  %v23 = vld [vmem:[%s0] sm:$0xff]
  %v24 = vld [vmem:[%s0 + $0x8] sm:$0xff]
  %v25 = vld [vmem:[%s0 + $0x10] sm:$0xff]
  %v26 = vld [vmem:[%s0 + $0x18] sm:$0xff]
  %v27 = vpack.c.bf16 %v25, %v23
  %v28 = vpack.c.bf16 %v26, %v24
  %v29 = vld [vmem:[%s1] sm:$0xff]
  %v30 = vld [vmem:[%s1 + $0x8] sm:$0xff]
  %v31 = vld [vmem:[%s1 + $0x10] sm:$0xff]
  %v32 = vld [vmem:[%s1 + $0x18] sm:$0xff]
  %v33 = vld [vmem:[%s1 + $0x20] sm:$0xff]
  %v34 = vld [vmem:[%s1 + $0x28] sm:$0xff]
  %v35 = vld [vmem:[%s1 + $0x30] sm:$0xff]
  %v36 = vld [vmem:[%s1 + $0x38] sm:$0xff]
  %v37 = vld [vmem:[%s1 + $0x40] sm:$0xff]
  %v38 = vld [vmem:[%s1 + $0x48] sm:$0xff]
  %v39 = vld [vmem:[%s1 + $0x50] sm:$0xff]
  %v40 = vld [vmem:[%s1 + $0x58] sm:$0xff]
  %v41 = vld [vmem:[%s1 + $0x60] sm:$0xff]
  %v42 = vld [vmem:[%s1 + $0x68] sm:$0xff]
  %v43 = vld [vmem:[%s1 + $0x70] sm:$0xff]
  %v44 = vld [vmem:[%s1 + $0x78] sm:$0xff]
  %v45 = vld [vmem:[%s1 + $0x80] sm:$0xff]
  %v46 = vld [vmem:[%s1 + $0x88] sm:$0xff]
  %v47 = vld [vmem:[%s1 + $0x90] sm:$0xff]
  %v48 = vld [vmem:[%s1 + $0x98] sm:$0xff]
  %v49 = vld [vmem:[%s1 + $0xa0] sm:$0xff]
  %v50 = vld [vmem:[%s1 + $0xa8] sm:$0xff]
  %v51 = vld [vmem:[%s1 + $0xb0] sm:$0xff]
  %v52 = vld [vmem:[%s1 + $0xb8] sm:$0xff]
  %v53 = vld [vmem:[%s1 + $0xc0] sm:$0xff]
  %v54 = vld [vmem:[%s1 + $0xc8] sm:$0xff]
  %v55 = vld [vmem:[%s1 + $0xd0] sm:$0xff]
  %v56 = vld [vmem:[%s1 + $0xd8] sm:$0xff]
  %v57 = vld [vmem:[%s1 + $0xe0] sm:$0xff]
  %v58 = vld [vmem:[%s1 + $0xe8] sm:$0xff]
  %v59 = vld [vmem:[%s1 + $0xf0] sm:$0xff]
  %v60 = vld [vmem:[%s1 + $0xf8] sm:$0xff]
  %v61 = vpack.c.bf16 %v30, %v29
  %v62 = vpack.c.bf16 %v32, %v31
  %v63 = vpack.c.bf16 %v34, %v33
  %v64 = vpack.c.bf16 %v36, %v35
  %v65 = vpack.c.bf16 %v38, %v37
  %v66 = vpack.c.bf16 %v40, %v39
  %v67 = vpack.c.bf16 %v42, %v41
  %v68 = vpack.c.bf16 %v44, %v43
  %v69 = vpack.c.bf16 %v46, %v45
  %v70 = vpack.c.bf16 %v48, %v47
  %v71 = vpack.c.bf16 %v50, %v49
  %v72 = vpack.c.bf16 %v52, %v51
  %v73 = vpack.c.bf16 %v54, %v53
  %v74 = vpack.c.bf16 %v56, %v55
  %v75 = vpack.c.bf16 %v58, %v57
  %v76 = vpack.c.bf16 %v60, %v59
  %77 = vmatprep.subr.bf16.mxu0 0
  %78 = vmatpush1.bf16.msra.mxu0 %v61
  %79 = vmatprep.subr.bf16.mxu0 0
  %80 = vmatpush1.bf16.msra.mxu0 %v62
  %81 = vmatprep.subr.bf16.mxu0 0
  %82 = vmatpush1.bf16.msra.mxu0 %v63
  %83 = vmatprep.subr.bf16.mxu0 0
  %84 = vmatpush1.bf16.msra.mxu0 %v64
  %85 = vmatprep.subr.bf16.mxu0 0
  %86 = vmatpush1.bf16.msra.mxu0 %v65
  %87 = vmatprep.subr.bf16.mxu0 0
  %88 = vmatpush1.bf16.msra.mxu0 %v66
  %89 = vmatprep.subr.bf16.mxu0 0
  %90 = vmatpush1.bf16.msra.mxu0 %v67
  %91 = vmatprep.subr.bf16.mxu0 0
  %92 = vmatpush1.bf16.msra.mxu0 %v68
  %93 = vmatprep.subr.bf16.mxu0 0
  %94 = vmatpush1.bf16.msra.mxu0 %v69
  %95 = vmatprep.subr.bf16.mxu0 0
  %96 = vmatpush1.bf16.msra.mxu0 %v70
  %97 = vmatprep.subr.bf16.mxu0 0
  %98 = vmatpush1.bf16.msra.mxu0 %v71
  %99 = vmatprep.subr.bf16.mxu0 0
  %100 = vmatpush1.bf16.msra.mxu0 %v72
  %101 = vmatprep.subr.bf16.mxu0 0
  %102 = vmatpush1.bf16.msra.mxu0 %v73
  %103 = vmatprep.subr.bf16.mxu0 0
  %104 = vmatpush1.bf16.msra.mxu0 %v74
  %105 = vmatprep.subr.bf16.mxu0 0
  %106 = vmatpush1.bf16.msra.mxu0 %v75
  %107 = vmatprep.subr.bf16.mxu0 0
  %108 = vmatpush1.bf16.msra.mxu0 %v76
  %109 = vmatprep.mubr.bf16.mxu0 %v28
  %110 = vmatmul.mubr.bf16.gmra.mrb[0].mxu0 %v27
  %v111 = vpop.f32.mrb[0].mxu0
  %v112 = vadd.f32 0.0, %v111
  %v113 = vpop.f32.mrb[0].mxu0
  %v114 = vpop.f32.mrb[0].mxu0
  %v115 = vadd.f32 0.0, %v114
  %v116 = vpop.f32.mrb[0].mxu0
  %117 = vdwg.mxu0
  %v118 = vadd.f32 %v21, %v112
  %v119 = vadd.f32 %v22, %v115
  %120 = vst [vmem:[#allocation2] sm:$0xff] %v118
  %121 = vst [vmem:[#allocation2 + $0x8] sm:$0xff] %v119
  // Predicated region
  $region18: #{speech_recognition_forward.24} parent=0 // pred_check
    %p122 = pneg %p15
  $region19: #{speech_recognition_forward.24} parent=0 // pred_check_branch
    %124 = sbr.rel (%p122) target = $region21
  $region20: #{speech_recognition_forward.24} parent=0 // pred_region
    %v125 = vld [vmem:[#allocation2] sm:$0xff]
    %v126 = vld [vmem:[#allocation2 + $0x8] sm:$0xff]
    %v127 = vld [vmem:[%s2] sm:$0x1]
    %v129 = vlaneseq
    %v130 = vshrl.u32 %v129, 7
    %v131 = vsub.s32 0, %v130
    %v132 = vrot.slane %v127, %v131
    %v134 = vadd.f32 %v125, %v132
    %v135 = vadd.f32 %v126, %v132
    %136 = vst [vmem:[%s3] sm:$0xff] %v134
    %137 = vst [vmem:[%s3 + $0x8] sm:$0xff] %v135
  $region21: #{speech_recognition_forward.24} parent=0 // pred_fallthru
    _
  // Predicated region
  $region22: #{speech_recognition_forward.24} parent=0 // pred_check
    _
  $region23: #{speech_recognition_forward.24} parent=0 // pred_check_branch
    %139 = sbr.rel (0) target = $region25
  $region24: #{speech_recognition_forward.24} parent=0 // pred_region
    _
  $region25: #{speech_recognition_forward.24} parent=0 // pred_fallthru
    _
  // Predicated region
  $region26: #{speech_recognition_forward.24} parent=0 // pred_check
    _
  $region27: #{speech_recognition_forward.24} parent=0 // pred_check_branch
    %141 = sbr.rel (0) target = $region29
  $region28: #{speech_recognition_forward.24} parent=0 // pred_region
    _
  $region29: #{speech_recognition_forward.24} parent=0 // pred_fallthru
    _

// kernel: speech_recognition_forward.19
$region0: #{speech_recognition_forward.19}
  #allocation0 [shape = 'u32[]', space=smem, size = 0x4, offset = 0x4, fixed_abs, tag = 'smem constant byte address 0x4 - core index']
  #allocation1 [shape = 'u32[144,128]{1,0:T(1,128)}', space=vmem, size = 0x12000, scoped, tag = 'internal scratch']
  #allocation2 [shape = 'f32[64,32]{1,0:T(8,128)}', space=vmem, size = 0x8000, scoped, tag = 'scratch operand']
  %s0 = inlined_call_operand.vmem [shape: f32[2,10,10,32], index: 0, kind: input, shape index: {}]
  %s1 = inlined_call_operand.vmem [shape: f32[9,32,32], index: 1, kind: input, shape index: {}]
  %s2 = inlined_call_operand.vmem [shape: f32[1,32], index: 2, kind: input, shape index: {}]
  %s3 = inlined_call_operand.vmem [shape: f32[2,8,8,32], index: 3, kind: input, shape index: {}]
  %s4 = inlined_call_operand.vmem [shape: f32[2,8,8,32], index: 4, kind: output, shape index: {}]
  %s5 = sld [smem:[#allocation0]]
  $region49: #{speech_recognition_forward.19} parent=0
    _
  %s7 = ssub.s32 1, %s5
  %s8 = scalar_select 0, %s7, %s5
  loop: start=0, step=1, limit=4
  $region2: #{speech_recognition_forward.19} parent=0 // loop_pre_header
    _
  $region3: #{speech_recognition_forward.19} parent=0 // loop_header
    %s10 = sphi 0, %s14
    %p11 = scmp.ge.s32.totalorder %s10, 4
    %s17 = sphi 0, %s29
    %s18 = sphi 0, %s25
    %s19 = sphi 0, %s17
    %s20 = sphi 0, %s18
    %s21 = sphi 0, %s19
    %s22 = sphi 0, %s20
    %s34 = sphi 0, %s36
    %s37 = sphi 0, %s34
    %s38 = sphi 0, %s37
    %s54 = sphi 0, %s38
    %s58 = sphi 0, %s58
    %s60 = sphi 0, %s58
    %s61 = sphi 0, %s60
    %s75 = sphi 0, %s61
    %s79 = sphi 0, %s79
    %s81 = sphi 0, %s79
    %s82 = sphi 0, %s81
    %s96 = sphi 0, %s82
    %s104 = sphi 0, %s106
    %s107 = sphi 0, %s104
    %s108 = sphi 0, %s107
    %s124 = sphi 0, %s108
    %s132 = sphi 0, %s134
    %s135 = sphi 0, %s132
    %s136 = sphi 0, %s135
    %s152 = sphi 0, %s136
  $region4: #{speech_recognition_forward.19} parent=0 // loop_header_branch
    %13 = sbr.rel (%p11) target = $region8
  $region5: #{speech_recognition_forward.19} parent=0 // loop_body
    %s15 = ssub.s32 %s10, 1
    %s16 = ssub.s32 %s10, 2
    %s23 = sadd.s32 1, %s18
    %p24 = scmp.ge.s32.totalorder %s23, 1
    %s25 = scalar_select %p24, 0, %s23
    %s26 = sadd.s32 1, %s17
    %s27 = scalar_select %p24, %s26, %s17
    %p28 = scmp.ge.s32.totalorder %s27, 2
    %s29 = scalar_select %p28, 0, %s27
    %s30 = sadd.s32 %s17, %s18
    %s31 = sadd.s32 %s29, %s25
    %s32 = ssub.s32 %s30, %s31
    %p33 = scmp.eq.s32.totalorder %s32, 0
    %s35 = sadd.s32 %s34, 1
    %s36 = scalar_select %p33, %s34, %s35
    %p39 = pneg %p33
    %p40 = scmp.eq.s32.totalorder %s10, 1
    %p41 = por %p39, %p40
    %p42 = scmp.ne.s32.totalorder %s34, %s37
    %p43 = scmp.eq.s32.totalorder %s10, 0
    %p44 = por %p42, %p43
    %p45 = scmp.ne.s32.totalorder %s34, %s37
    %p46 = scmp.eq.s32.totalorder %s15, 1
    %p47 = por %p45, %p46
    %p48 = scmp.ne.s32.totalorder %s37, %s38
    %p49 = scmp.eq.s32.totalorder %s15, 0
    %p50 = por %p48, %p49
    %p51 = scmp.ne.s32.totalorder %s37, %s38
    %p52 = scmp.eq.s32.totalorder %s16, 1
    %p53 = por %p51, %p52
    %p55 = scmp.ne.s32.totalorder %s38, %s54
    %p56 = scmp.eq.s32.totalorder %s16, 0
    %p57 = por %p55, %p56
    %s59 = sadd.s32 %s58, 1
    %p62 = scmp.eq.s32.totalorder %s10, 1
    %p63 = scmp.ne.s32.totalorder %s58, %s60
    %p64 = scmp.eq.s32.totalorder %s10, 0
    %p65 = por %p63, %p64
    %p66 = scmp.ne.s32.totalorder %s58, %s60
    %p67 = scmp.eq.s32.totalorder %s15, 1
    %p68 = por %p66, %p67
    %p69 = scmp.ne.s32.totalorder %s60, %s61
    %p70 = scmp.eq.s32.totalorder %s15, 0
    %p71 = por %p69, %p70
    %p72 = scmp.ne.s32.totalorder %s60, %s61
    %p73 = scmp.eq.s32.totalorder %s16, 1
    %p74 = por %p72, %p73
    %p76 = scmp.ne.s32.totalorder %s61, %s75
    %p77 = scmp.eq.s32.totalorder %s16, 0
    %p78 = por %p76, %p77
    %s80 = sadd.s32 %s79, 1
    %p83 = scmp.eq.s32.totalorder %s10, 1
    %p84 = scmp.ne.s32.totalorder %s79, %s81
    %p85 = scmp.eq.s32.totalorder %s10, 0
    %p86 = por %p84, %p85
    %p87 = scmp.ne.s32.totalorder %s79, %s81
    %p88 = scmp.eq.s32.totalorder %s15, 1
    %p89 = por %p87, %p88
    %p90 = scmp.ne.s32.totalorder %s81, %s82
    %p91 = scmp.eq.s32.totalorder %s15, 0
    %p92 = por %p90, %p91
    %p93 = scmp.ne.s32.totalorder %s81, %s82
    %p94 = scmp.eq.s32.totalorder %s16, 1
    %p95 = por %p93, %p94
    %p97 = scmp.ne.s32.totalorder %s82, %s96
    %p98 = scmp.eq.s32.totalorder %s16, 0
    %p99 = por %p97, %p98
    %s100 = ssub.s32 %s17, %s29
    %s101 = ssub.s32 %s18, %s25
    %s102 = sor.u32 %s100, %s101
    %p103 = scmp.eq.s32.totalorder %s102, 0
    %s105 = sadd.s32 %s104, 1
    %s106 = scalar_select %p103, %s104, %s105
    %p109 = pneg %p103
    %p110 = scmp.eq.s32.totalorder %s10, 1
    %p111 = por %p109, %p110
    %p112 = scmp.ne.s32.totalorder %s104, %s107
    %p113 = scmp.eq.s32.totalorder %s10, 0
    %p114 = por %p112, %p113
    %p115 = scmp.ne.s32.totalorder %s104, %s107
    %p116 = scmp.eq.s32.totalorder %s15, 1
    %p117 = por %p115, %p116
    %p118 = scmp.ne.s32.totalorder %s107, %s108
    %p119 = scmp.eq.s32.totalorder %s15, 0
    %p120 = por %p118, %p119
    %p121 = scmp.ne.s32.totalorder %s107, %s108
    %p122 = scmp.eq.s32.totalorder %s16, 1
    %p123 = por %p121, %p122
    %p125 = scmp.ne.s32.totalorder %s108, %s124
    %p126 = scmp.eq.s32.totalorder %s16, 0
    %p127 = por %p125, %p126
    %s128 = ssub.s32 %s17, %s29
    %s129 = ssub.s32 %s18, %s25
    %s130 = sor.u32 %s128, %s129
    %p131 = scmp.eq.s32.totalorder %s130, 0
    %s133 = sadd.s32 %s132, 1
    %s134 = scalar_select %p131, %s132, %s133
    %p137 = pneg %p131
    %p138 = scmp.eq.s32.totalorder %s10, 1
    %p139 = por %p137, %p138
    %p140 = scmp.ne.s32.totalorder %s132, %s135
    %p141 = scmp.eq.s32.totalorder %s10, 0
    %p142 = por %p140, %p141
    %p143 = scmp.ne.s32.totalorder %s132, %s135
    %p144 = scmp.eq.s32.totalorder %s15, 1
    %p145 = por %p143, %p144
    %p146 = scmp.ne.s32.totalorder %s135, %s136
    %p147 = scmp.eq.s32.totalorder %s15, 0
    %p148 = por %p146, %p147
    %p149 = scmp.ne.s32.totalorder %s135, %s136
    %p150 = scmp.eq.s32.totalorder %s16, 1
    %p151 = por %p149, %p150
    %p153 = scmp.ne.s32.totalorder %s136, %s152
    %p154 = scmp.eq.s32.totalorder %s16, 0
    %p155 = por %p153, %p154
    %p156 = scmp.le.s32.totalorder 1, %s10
    %p157 = scmp.lt.s32.totalorder %s10, 3
    %p158 = pnand %p156, %p157
    %p159 = pneg %p158
    // Predicated region
    $region9: #{speech_recognition_forward.19} parent=5 // pred_check
      _
    $region10: #{speech_recognition_forward.19} parent=5 // pred_check_branch
      %161 = sbr.rel (%p158) target = $region12
    $region11: #{speech_recognition_forward.19} parent=5 // pred_region
      %s162 = ssub.s32 %s10, 1
      // Predicated region
      $region13: #{speech_recognition_forward.19} parent=11 // pred_check
        %p163 = pneg %p71
      $region14: #{speech_recognition_forward.19} parent=11 // pred_check_branch
        %165 = sbr.rel (%p163) target = $region16
      $region15: #{speech_recognition_forward.19} parent=11 // pred_region
        _
      $region16: #{speech_recognition_forward.19} parent=11 // pred_fallthru
        _
      // Predicated region
      $region17: #{speech_recognition_forward.19} parent=11 // pred_check
        %p166 = pneg %p92
      $region18: #{speech_recognition_forward.19} parent=11 // pred_check_branch
        %168 = sbr.rel (%p166) target = $region20
      $region19: #{speech_recognition_forward.19} parent=11 // pred_region
        _
      $region20: #{speech_recognition_forward.19} parent=11 // pred_fallthru
        _
    $region12: #{speech_recognition_forward.19} parent=5 // pred_fallthru
      _
    %p169 = scmp.lt.s32.totalorder %s10, 2
    // Predicated region
    $region21: #{speech_recognition_forward.19} parent=5 // pred_check
      %p170 = pneg %p169
    $region22: #{speech_recognition_forward.19} parent=5 // pred_check_branch
      %172 = sbr.rel (%p170) target = $region24
    $region23: #{speech_recognition_forward.19} parent=5 // pred_region
      // Predicated region
      $region25: #{speech_recognition_forward.19} parent=23 // pred_check
        %p173 = pneg %p44
      $region26: #{speech_recognition_forward.19} parent=23 // pred_check_branch
        %175 = sbr.rel (%p173) target = $region28
      $region27: #{speech_recognition_forward.19} parent=23 // pred_region
        %s176 = sadd.s32 %s17, %s18
        %p177 = scmp.lt.s32.totalorder %s176, 1
        %s178 = scalar_select %p177, %s176, 1
        %s179 = smul.addr %s178, 20
        %s180 = smul.addr %s179, 8
        %s181 = scalar_lea.vmem %s0, %s180
        %s182 = sadd.s32 %s17, %s18
      $region28: #{speech_recognition_forward.19} parent=23 // pred_fallthru
        _
      // Predicated region
      $region29: #{speech_recognition_forward.19} parent=23 // pred_check
        %p183 = pneg %p114
      $region30: #{speech_recognition_forward.19} parent=23 // pred_check_branch
        %185 = sbr.rel (%p183) target = $region32
      $region31: #{speech_recognition_forward.19} parent=23 // pred_region
        %p186 = scmp.lt.s32.totalorder %s17, 1
        %s187 = scalar_select %p186, %s17, 1
        %p188 = scmp.lt.s32.totalorder %s18, 0
        %s189 = scalar_select %p188, %s18, 0
        %s190 = smul.addr %s187, 8
        %s191 = sadd.s32 %s189, %s190
        %s192 = smul.addr %s191, 8
        %s193 = scalar_lea.vmem %s3, %s192
      $region32: #{speech_recognition_forward.19} parent=23 // pred_fallthru
        _
    $region24: #{speech_recognition_forward.19} parent=5 // pred_fallthru
      _
    %p194 = scmp.le.s32.totalorder 1, %s10
    %p195 = scmp.lt.s32.totalorder %s10, 3
    %p196 = pnand %p194, %p195
    %p197 = pneg %p196
    // Predicated region
    $region33: #{speech_recognition_forward.19} parent=5 // pred_check
      _
    $region34: #{speech_recognition_forward.19} parent=5 // pred_check_branch
      %199 = sbr.rel (%p196) target = $region36
    $region35: #{speech_recognition_forward.19} parent=5 // pred_region
      %s200 = ssub.s32 %s10, 1
      %s201 = sadd.s32 %s19, %s20
      %p202 = scmp.lt.s32.totalorder %s201, 1
      %s203 = scalar_select %p202, %s201, 1
      %s204 = smul.addr %s203, 20
      %s205 = smul.addr %s204, 8
      %s206 = scalar_lea.vmem %s0, %s205
      %p207 = pneg %p50
      %p208 = pneg %p47
      %p209 = pneg %p71
      %p210 = pneg %p68
      %p211 = pneg %p92
      %p212 = pneg %p89
      %p213 = scmp.lt.s32.totalorder %s19, 1
      %s214 = scalar_select %p213, %s19, 1
      %p215 = scmp.lt.s32.totalorder %s20, 0
      %s216 = scalar_select %p215, %s20, 0
      %s217 = smul.addr %s214, 8
      %s218 = sadd.s32 %s216, %s217
      %s219 = smul.addr %s218, 8
      %s220 = scalar_lea.vmem %s3, %s219
      %p221 = pneg %p120
      %p222 = pneg %p117
      %p223 = pneg %p148
      %p224 = pneg %p145
      %p225 = scmp.lt.s32.totalorder %s19, 1
      %s226 = scalar_select %p225, %s19, 1
      %p227 = scmp.lt.s32.totalorder %s20, 0
      %s228 = scalar_select %p227, %s20, 0
      %s229 = smul.addr %s226, 8
      %s230 = sadd.s32 %s228, %s229
      %s231 = smul.addr %s230, 8
      %s232 = scalar_lea.vmem %s4, %s231
      %s233 = sadd.s32 %s19, %s20
      %p234 = scmp.lt.s32.totalorder %s233, 1
      %s235 = scalar_select %p234, %s233, 1
      %s236 = smul.addr %s235, 20
      %s237 = smul.addr %s236, 8
      %s238 = scalar_lea.vmem %s0, %s237
      %s239 = sadd.s32 %s19, %s20
      %p240 = scmp.lt.s32.totalorder %s19, 1
      %s241 = scalar_select %p240, %s19, 1
      %p242 = scmp.lt.s32.totalorder %s20, 0
      %s243 = scalar_select %p242, %s20, 0
      %s244 = smul.addr %s241, 8
      %s245 = sadd.s32 %s243, %s244
      %s246 = smul.addr %s245, 8
      %s247 = scalar_lea.vmem %s3, %s246
      %p248 = scmp.lt.s32.totalorder %s19, 1
      %s249 = scalar_select %p248, %s19, 1
      %p250 = scmp.lt.s32.totalorder %s20, 0
      %s251 = scalar_select %p250, %s20, 0
      %s252 = smul.addr %s249, 8
      %s253 = sadd.s32 %s251, %s252
      %s254 = smul.addr %s253, 8
      %s255 = scalar_lea.vmem %s4, %s254
      %vm257 = vcmask 261120
      %258 = vst.msk [vmem:[#allocation2] sm:$0xff] %vm257, 0.0
      %259 = vst.msk [vmem:[#allocation2 + $0x8] sm:$0xff] %vm257, 0.0
      %260 = vst.msk [vmem:[#allocation2 + $0x10] sm:$0xff] %vm257, 0.0
      %261 = vst.msk [vmem:[#allocation2 + $0x18] sm:$0xff] %vm257, 0.0
      %262 = vst.msk [vmem:[#allocation2 + $0x20] sm:$0xff] %vm257, 0.0
      %263 = vst.msk [vmem:[#allocation2 + $0x28] sm:$0xff] %vm257, 0.0
      %264 = vst.msk [vmem:[#allocation2 + $0x30] sm:$0xff] %vm257, 0.0
      %265 = vst.msk [vmem:[#allocation2 + $0x38] sm:$0xff] %vm257, 0.0
      %v266 = vld [vmem:[%s238] sm:$0xff]
      %v267 = vld [vmem:[%s238 + $0x10] sm:$0xff]
      %v268 = vld [vmem:[%s238 + $0x20] sm:$0xff]
      %v269 = vld [vmem:[%s238 + $0x30] sm:$0xff]
      %v270 = vld [vmem:[%s238 + $0x40] sm:$0xff]
      %v271 = vld [vmem:[%s238 + $0x50] sm:$0xff]
      %v272 = vld [vmem:[%s238 + $0x60] sm:$0xff]
      %v273 = vld [vmem:[%s238 + $0x70] sm:$0xff]
      %v274 = vpack.c.bf16 %v267, %v266
      %v275 = vpack.c.bf16 %v269, %v268
      %v276 = vpack.c.bf16 %v271, %v270
      %v277 = vpack.c.bf16 %v273, %v272
      %v278 = vld [vmem:[%s1] sm:$0xff]
      %v279 = vld [vmem:[%s1 + $0x8] sm:$0xff]
      %v280 = vld [vmem:[%s1 + $0x10] sm:$0xff]
      %v281 = vld [vmem:[%s1 + $0x18] sm:$0xff]
      %v282 = vpack.c.bf16 %v279, %v278
      %v283 = vpack.c.bf16 %v281, %v280
      %v284 = vld [vmem:[#allocation2] sm:$0xff]
      %v285 = vld [vmem:[#allocation2 + $0x8] sm:$0xff]
      %v286 = vld [vmem:[#allocation2 + $0x10] sm:$0xff]
      %v287 = vld [vmem:[#allocation2 + $0x18] sm:$0xff]
      %v288 = vld [vmem:[#allocation2 + $0x20] sm:$0xff]
      %v289 = vld [vmem:[#allocation2 + $0x28] sm:$0xff]
      %v290 = vld [vmem:[#allocation2 + $0x30] sm:$0xff]
      %v291 = vld [vmem:[#allocation2 + $0x38] sm:$0xff]
      %v293 = vsel %vm257, %v274, 0
      %v296 = vsel %vm257, %v275, 0
      %v299 = vsel %vm257, %v276, 0
      %v302 = vsel %vm257, %v277, 0
      %304 = vmatprep.subr.bf16.mxu0 0
      %305 = vmatpush1.bf16.msra.mxu0 %v282
      %306 = vmatprep.subr.bf16.mxu0 0
      %307 = vmatpush1.bf16.msra.mxu0 %v283
      %308 = vmatprep.subr.bf16.mxu0 0
      %309 = vmatpush1.bf16.msra.mxu0 0
      %310 = vmatprep.subr.bf16.mxu0 0
      %311 = vmatpush1.bf16.msra.mxu0 0
      %312 = vmatprep.subr.bf16.mxu0 0
      %313 = vmatpush1.bf16.msra.mxu0 0
      %314 = vmatprep.subr.bf16.mxu0 0
      %315 = vmatpush1.bf16.msra.mxu0 0
      %316 = vmatprep.subr.bf16.mxu0 0
      %317 = vmatpush1.bf16.msra.mxu0 0
      %318 = vmatprep.subr.bf16.mxu0 0
      %319 = vmatpush1.bf16.msra.mxu0 0
      %320 = vmatprep.subr.bf16.mxu0 0
      %321 = vmatpush1.bf16.msra.mxu0 0
      %322 = vmatprep.subr.bf16.mxu0 0
      %323 = vmatpush1.bf16.msra.mxu0 0
      %324 = vmatprep.subr.bf16.mxu0 0
      %325 = vmatpush1.bf16.msra.mxu0 0
      %326 = vmatprep.subr.bf16.mxu0 0
      %327 = vmatpush1.bf16.msra.mxu0 0
      %328 = vmatprep.subr.bf16.mxu0 0
      %329 = vmatpush1.bf16.msra.mxu0 0
      %330 = vmatprep.subr.bf16.mxu0 0
      %331 = vmatpush1.bf16.msra.mxu0 0
      %332 = vmatprep.subr.bf16.mxu0 0
      %333 = vmatpush1.bf16.msra.mxu0 0
      %334 = vmatprep.subr.bf16.mxu0 0
      %335 = vmatpush1.bf16.msra.mxu0 0
      %336 = vmatprep.mubr.bf16.mxu0 0
      %337 = vmatmul.mubr.bf16.gmra.mrb[0].mxu0 %v293
      %v338 = vpop.f32.mrb[0].mxu0
      %v339 = vadd.f32 0.0, %v338
      %v340 = vpop.f32.mrb[0].mxu0
      %v341 = vpop.f32.mrb[0].mxu0
      %v342 = vadd.f32 0.0, %v341
      %v343 = vpop.f32.mrb[0].mxu0
      %344 = vmatprep.mubr.bf16.mxu0 0
      %345 = vmatmul.mubr.bf16.gmra.mrb[0].mxu0 %v296
      %v346 = vpop.f32.mrb[0].mxu0
      %v347 = vadd.f32 0.0, %v346
      %v348 = vpop.f32.mrb[0].mxu0
      %v349 = vpop.f32.mrb[0].mxu0
      %v350 = vadd.f32 0.0, %v349
      %v351 = vpop.f32.mrb[0].mxu0
      %352 = vmatprep.mubr.bf16.mxu0 0
      %353 = vmatmul.mubr.bf16.gmra.mrb[0].mxu0 %v299
      %v354 = vpop.f32.mrb[0].mxu0
      %v355 = vadd.f32 0.0, %v354
      %v356 = vpop.f32.mrb[0].mxu0
      %v357 = vpop.f32.mrb[0].mxu0
      %v358 = vadd.f32 0.0, %v357
      %v359 = vpop.f32.mrb[0].mxu0
      %360 = vmatprep.mubr.bf16.mxu0 0
      %361 = vmatmul.mubr.bf16.gmra.mrb[0].mxu0 %v302
      %v362 = vpop.f32.mrb[0].mxu0
      %v363 = vadd.f32 0.0, %v362
      %v364 = vpop.f32.mrb[0].mxu0
      %v365 = vpop.f32.mrb[0].mxu0
      %v366 = vadd.f32 0.0, %v365
      %v367 = vpop.f32.mrb[0].mxu0
      %368 = vdwg.mxu0
      %v369 = vadd.f32 %v284, %v339
      %v370 = vadd.f32 %v285, %v342
      %v371 = vadd.f32 %v286, %v347
      %v372 = vadd.f32 %v287, %v350
      %v373 = vadd.f32 %v288, %v355
      %v374 = vadd.f32 %v289, %v358
      %v375 = vadd.f32 %v290, %v363
      %v376 = vadd.f32 %v291, %v366
      %377 = vst.msk [vmem:[#allocation2] sm:$0xff] %vm257, %v369
      %378 = vst.msk [vmem:[#allocation2 + $0x8] sm:$0xff] %vm257, %v370
      %379 = vst.msk [vmem:[#allocation2 + $0x10] sm:$0xff] %vm257, %v371
      %380 = vst.msk [vmem:[#allocation2 + $0x18] sm:$0xff] %vm257, %v372
      %381 = vst.msk [vmem:[#allocation2 + $0x20] sm:$0xff] %vm257, %v373
      %382 = vst.msk [vmem:[#allocation2 + $0x28] sm:$0xff] %vm257, %v374
      %383 = vst.msk [vmem:[#allocation2 + $0x30] sm:$0xff] %vm257, %v375
      %384 = vst.msk [vmem:[#allocation2 + $0x38] sm:$0xff] %vm257, %v376
      %v385 = vld [vmem:[%s238 + $0x1] sm:$0xff]
      %v386 = vld [vmem:[%s238 + $0x11] sm:$0xff]
      %v387 = vld [vmem:[%s238 + $0x21] sm:$0xff]
      %v388 = vld [vmem:[%s238 + $0x31] sm:$0xff]
      %v389 = vld [vmem:[%s238 + $0x41] sm:$0xff]
      %v390 = vld [vmem:[%s238 + $0x51] sm:$0xff]
      %v391 = vld [vmem:[%s238 + $0x61] sm:$0xff]
      %v392 = vld [vmem:[%s238 + $0x71] sm:$0xff]
      %v393 = vpack.c.bf16 %v386, %v385
      %v394 = vpack.c.bf16 %v388, %v387
      %v395 = vpack.c.bf16 %v390, %v389
      %v396 = vpack.c.bf16 %v392, %v391
      %s397 = scalar_lea.vmem %s1, 32
      %v398 = vld [vmem:[%s397] sm:$0xff]
      %v399 = vld [vmem:[%s397 + $0x8] sm:$0xff]
      %v400 = vld [vmem:[%s397 + $0x10] sm:$0xff]
      %v401 = vld [vmem:[%s397 + $0x18] sm:$0xff]
      %v402 = vpack.c.bf16 %v399, %v398
      %v403 = vpack.c.bf16 %v401, %v400
      %v404 = vld [vmem:[#allocation2] sm:$0xff]
      %v405 = vld [vmem:[#allocation2 + $0x8] sm:$0xff]
      %v406 = vld [vmem:[#allocation2 + $0x10] sm:$0xff]
      %v407 = vld [vmem:[#allocation2 + $0x18] sm:$0xff]
      %v408 = vld [vmem:[#allocation2 + $0x20] sm:$0xff]
      %v409 = vld [vmem:[#allocation2 + $0x28] sm:$0xff]
      %v410 = vld [vmem:[#allocation2 + $0x30] sm:$0xff]
      %v411 = vld [vmem:[#allocation2 + $0x38] sm:$0xff]
      %v413 = vsel %vm257, %v393, 0
      %v416 = vsel %vm257, %v394, 0
      %v419 = vsel %vm257, %v395, 0
      %v422 = vsel %vm257, %v396, 0
      %424 = vmatprep.subr.bf16.mxu0 0
      %425 = vmatpush1.bf16.msra.mxu0 %v402
      %426 = vmatprep.subr.bf16.mxu0 0
      %427 = vmatpush1.bf16.msra.mxu0 %v403
      %428 = vmatprep.subr.bf16.mxu0 0
      %429 = vmatpush1.bf16.msra.mxu0 0
      %430 = vmatprep.subr.bf16.mxu0 0
      %431 = vmatpush1.bf16.msra.mxu0 0
      %432 = vmatprep.subr.bf16.mxu0 0
      %433 = vmatpush1.bf16.msra.mxu0 0
      %434 = vmatprep.subr.bf16.mxu0 0
      %435 = vmatpush1.bf16.msra.mxu0 0
      %436 = vmatprep.subr.bf16.mxu0 0
      %437 = vmatpush1.bf16.msra.mxu0 0
      %438 = vmatprep.subr.bf16.mxu0 0
      %439 = vmatpush1.bf16.msra.mxu0 0
      %440 = vmatprep.subr.bf16.mxu0 0
      %441 = vmatpush1.bf16.msra.mxu0 0
      %442 = vmatprep.subr.bf16.mxu0 0
      %443 = vmatpush1.bf16.msra.mxu0 0
      %444 = vmatprep.subr.bf16.mxu0 0
      %445 = vmatpush1.bf16.msra.mxu0 0
      %446 = vmatprep.subr.bf16.mxu0 0
      %447 = vmatpush1.bf16.msra.mxu0 0
      %448 = vmatprep.subr.bf16.mxu0 0
      %449 = vmatpush1.bf16.msra.mxu0 0
      %450 = vmatprep.subr.bf16.mxu0 0
      %451 = vmatpush1.bf16.msra.mxu0 0
      %452 = vmatprep.subr.bf16.mxu0 0
      %453 = vmatpush1.bf16.msra.mxu0 0
      %454 = vmatprep.subr.bf16.mxu0 0
      %455 = vmatpush1.bf16.msra.mxu0 0
      %456 = vmatprep.mubr.bf16.mxu0 0
      %457 = vmatmul.mubr.bf16.gmra.mrb[0].mxu0 %v413
      %v458 = vpop.f32.mrb[0].mxu0
      %v459 = vadd.f32 0.0, %v458
      %v460 = vpop.f32.mrb[0].mxu0
      %v461 = vpop.f32.mrb[0].mxu0
      %v462 = vadd.f32 0.0, %v461
      %v463 = vpop.f32.mrb[0].mxu0
      %464 = vmatprep.mubr.bf16.mxu0 0
      %465 = vmatmul.mubr.bf16.gmra.mrb[0].mxu0 %v416
      %v466 = vpop.f32.mrb[0].mxu0
      %v467 = vadd.f32 0.0, %v466
      %v468 = vpop.f32.mrb[0].mxu0
      %v469 = vpop.f32.mrb[0].mxu0
      %v470 = vadd.f32 0.0, %v469
      %v471 = vpop.f32.mrb[0].mxu0
      %472 = vmatprep.mubr.bf16.mxu0 0
      %473 = vmatmul.mubr.bf16.gmra.mrb[0].mxu0 %v419
      %v474 = vpop.f32.mrb[0].mxu0
      %v475 = vadd.f32 0.0, %v474
      %v476 = vpop.f32.mrb[0].mxu0
      %v477 = vpop.f32.mrb[0].mxu0
      %v478 = vadd.f32 0.0, %v477
      %v479 = vpop.f32.mrb[0].mxu0
      %480 = vmatprep.mubr.bf16.mxu0 0
      %481 = vmatmul.mubr.bf16.gmra.mrb[0].mxu0 %v422
      %v482 = vpop.f32.mrb[0].mxu0
      %v483 = vadd.f32 0.0, %v482
      %v484 = vpop.f32.mrb[0].mxu0
      %v485 = vpop.f32.mrb[0].mxu0
      %v486 = vadd.f32 0.0, %v485
      %v487 = vpop.f32.mrb[0].mxu0
      %488 = vdwg.mxu0
      %v489 = vadd.f32 %v404, %v459
      %v490 = vadd.f32 %v405, %v462
      %v491 = vadd.f32 %v406, %v467
      %v492 = vadd.f32 %v407, %v470
      %v493 = vadd.f32 %v408, %v475
      %v494 = vadd.f32 %v409, %v478
      %v495 = vadd.f32 %v410, %v483
      %v496 = vadd.f32 %v411, %v486
      %497 = vst.msk [vmem:[#allocation2] sm:$0xff] %vm257, %v489
      %498 = vst.msk [vmem:[#allocation2 + $0x8] sm:$0xff] %vm257, %v490
      %499 = vst.msk [vmem:[#allocation2 + $0x10] sm:$0xff] %vm257, %v491
      %500 = vst.msk [vmem:[#allocation2 + $0x18] sm:$0xff] %vm257, %v492
      %501 = vst.msk [vmem:[#allocation2 + $0x20] sm:$0xff] %vm257, %v493
      %502 = vst.msk [vmem:[#allocation2 + $0x28] sm:$0xff] %vm257, %v494
      %503 = vst.msk [vmem:[#allocation2 + $0x30] sm:$0xff] %vm257, %v495
      %504 = vst.msk [vmem:[#allocation2 + $0x38] sm:$0xff] %vm257, %v496
      %v505 = vld [vmem:[%s238 + $0x2] sm:$0xff]
      %v506 = vld [vmem:[%s238 + $0x12] sm:$0xff]
      %v507 = vld [vmem:[%s238 + $0x22] sm:$0xff]
      %v508 = vld [vmem:[%s238 + $0x32] sm:$0xff]
      %v509 = vld [vmem:[%s238 + $0x42] sm:$0xff]
      %v510 = vld [vmem:[%s238 + $0x52] sm:$0xff]
      %v511 = vld [vmem:[%s238 + $0x62] sm:$0xff]
      %v512 = vld [vmem:[%s238 + $0x72] sm:$0xff]
      %v513 = vpack.c.bf16 %v506, %v505
      %v514 = vpack.c.bf16 %v508, %v507
      %v515 = vpack.c.bf16 %v510, %v509
      %v516 = vpack.c.bf16 %v512, %v511
      %s517 = scalar_lea.vmem %s1, 64
      %v518 = vld [vmem:[%s517] sm:$0xff]
      %v519 = vld [vmem:[%s517 + $0x8] sm:$0xff]
      %v520 = vld [vmem:[%s517 + $0x10] sm:$0xff]
      %v521 = vld [vmem:[%s517 + $0x18] sm:$0xff]
      %v522 = vpack.c.bf16 %v519, %v518
      %v523 = vpack.c.bf16 %v521, %v520
      %v524 = vld [vmem:[#allocation2] sm:$0xff]
      %v525 = vld [vmem:[#allocation2 + $0x8] sm:$0xff]
      %v526 = vld [vmem:[#allocation2 + $0x10] sm:$0xff]
      %v527 = vld [vmem:[#allocation2 + $0x18] sm:$0xff]
      %v528 = vld [vmem:[#allocation2 + $0x20] sm:$0xff]
      %v529 = vld [vmem:[#allocation2 + $0x28] sm:$0xff]
      %v530 = vld [vmem:[#allocation2 + $0x30] sm:$0xff]
      %v531 = vld [vmem:[#allocation2 + $0x38] sm:$0xff]
      %v533 = vsel %vm257, %v513, 0
      %v536 = vsel %vm257, %v514, 0
      %v539 = vsel %vm257, %v515, 0
      %v542 = vsel %vm257, %v516, 0
      %544 = vmatprep.subr.bf16.mxu0 0
      %545 = vmatpush1.bf16.msra.mxu0 %v522
      %546 = vmatprep.subr.bf16.mxu0 0
      %547 = vmatpush1.bf16.msra.mxu0 %v523
      %548 = vmatprep.subr.bf16.mxu0 0
      %549 = vmatpush1.bf16.msra.mxu0 0
      %550 = vmatprep.subr.bf16.mxu0 0
      %551 = vmatpush1.bf16.msra.mxu0 0
      %552 = vmatprep.subr.bf16.mxu0 0
      %553 = vmatpush1.bf16.msra.mxu0 0
      %554 = vmatprep.subr.bf16.mxu0 0
      %555 = vmatpush1.bf16.msra.mxu0 0
      %556 = vmatprep.subr.bf16.mxu0 0
      %557 = vmatpush1.bf16.msra.mxu0 0
      %558 = vmatprep.subr.bf16.mxu0 0
      %559 = vmatpush1.bf16.msra.mxu0 0
      %560 = vmatprep.subr.bf16.mxu0 0
      %561 = vmatpush1.bf16.msra.mxu0 0
      %562 = vmatprep.subr.bf16.mxu0 0
      %563 = vmatpush1.bf16.msra.mxu0 0
      %564 = vmatprep.subr.bf16.mxu0 0
      %565 = vmatpush1.bf16.msra.mxu0 0
      %566 = vmatprep.subr.bf16.mxu0 0
      %567 = vmatpush1.bf16.msra.mxu0 0
      %568 = vmatprep.subr.bf16.mxu0 0
      %569 = vmatpush1.bf16.msra.mxu0 0
      %570 = vmatprep.subr.bf16.mxu0 0
      %571 = vmatpush1.bf16.msra.mxu0 0
      %572 = vmatprep.subr.bf16.mxu0 0
      %573 = vmatpush1.bf16.msra.mxu0 0
      %574 = vmatprep.subr.bf16.mxu0 0
      %575 = vmatpush1.bf16.msra.mxu0 0
      %576 = vmatprep.mubr.bf16.mxu0 0
      %577 = vmatmul.mubr.bf16.gmra.mrb[0].mxu0 %v533
      %v578 = vpop.f32.mrb[0].mxu0
      %v579 = vadd.f32 0.0, %v578
      %v580 = vpop.f32.mrb[0].mxu0
      %v581 = vpop.f32.mrb[0].mxu0
      %v582 = vadd.f32 0.0, %v581
      %v583 = vpop.f32.mrb[0].mxu0
      %584 = vmatprep.mubr.bf16.mxu0 0
      %585 = vmatmul.mubr.bf16.gmra.mrb[0].mxu0 %v536
      %v586 = vpop.f32.mrb[0].mxu0
      %v587 = vadd.f32 0.0, %v586
      %v588 = vpop.f32.mrb[0].mxu0
      %v589 = vpop.f32.mrb[0].mxu0
      %v590 = vadd.f32 0.0, %v589
      %v591 = vpop.f32.mrb[0].mxu0
      %592 = vmatprep.mubr.bf16.mxu0 0
      %593 = vmatmul.mubr.bf16.gmra.mrb[0].mxu0 %v539
      %v594 = vpop.f32.mrb[0].mxu0
      %v595 = vadd.f32 0.0, %v594
      %v596 = vpop.f32.mrb[0].mxu0
      %v597 = vpop.f32.mrb[0].mxu0
      %v598 = vadd.f32 0.0, %v597
      %v599 = vpop.f32.mrb[0].mxu0
      %600 = vmatprep.mubr.bf16.mxu0 0
      %601 = vmatmul.mubr.bf16.gmra.mrb[0].mxu0 %v542
      %v602 = vpop.f32.mrb[0].mxu0
      %v603 = vadd.f32 0.0, %v602
      %v604 = vpop.f32.mrb[0].mxu0
      %v605 = vpop.f32.mrb[0].mxu0
      %v606 = vadd.f32 0.0, %v605
      %v607 = vpop.f32.mrb[0].mxu0
      %608 = vdwg.mxu0
      %v609 = vadd.f32 %v524, %v579
      %v610 = vadd.f32 %v525, %v582
      %v611 = vadd.f32 %v526, %v587
      %v612 = vadd.f32 %v527, %v590
      %v613 = vadd.f32 %v528, %v595
      %v614 = vadd.f32 %v529, %v598
      %v615 = vadd.f32 %v530, %v603
      %v616 = vadd.f32 %v531, %v606
      %617 = vst.msk [vmem:[#allocation2] sm:$0xff] %vm257, %v609
      %618 = vst.msk [vmem:[#allocation2 + $0x8] sm:$0xff] %vm257, %v610
      %619 = vst.msk [vmem:[#allocation2 + $0x10] sm:$0xff] %vm257, %v611
      %620 = vst.msk [vmem:[#allocation2 + $0x18] sm:$0xff] %vm257, %v612
      %621 = vst.msk [vmem:[#allocation2 + $0x20] sm:$0xff] %vm257, %v613
      %622 = vst.msk [vmem:[#allocation2 + $0x28] sm:$0xff] %vm257, %v614
      %623 = vst.msk [vmem:[#allocation2 + $0x30] sm:$0xff] %vm257, %v615
      %624 = vst.msk [vmem:[#allocation2 + $0x38] sm:$0xff] %vm257, %v616
      %s625 = scalar_lea.vmem %s238, 16
      %v626 = vld [vmem:[%s625] sm:$0xff]
      %v627 = vld [vmem:[%s625 + $0x10] sm:$0xff]
      %v628 = vld [vmem:[%s625 + $0x20] sm:$0xff]
      %v629 = vld [vmem:[%s625 + $0x30] sm:$0xff]
      %v630 = vld [vmem:[%s625 + $0x40] sm:$0xff]
      %v631 = vld [vmem:[%s625 + $0x50] sm:$0xff]
      %v632 = vld [vmem:[%s625 + $0x60] sm:$0xff]
      %v633 = vld [vmem:[%s625 + $0x70] sm:$0xff]
      %v634 = vpack.c.bf16 %v627, %v626
      %v635 = vpack.c.bf16 %v629, %v628
      %v636 = vpack.c.bf16 %v631, %v630
      %v637 = vpack.c.bf16 %v633, %v632
      %s638 = scalar_lea.vmem %s1, 96
      %v639 = vld [vmem:[%s638] sm:$0xff]
      %v640 = vld [vmem:[%s638 + $0x8] sm:$0xff]
      %v641 = vld [vmem:[%s638 + $0x10] sm:$0xff]
      %v642 = vld [vmem:[%s638 + $0x18] sm:$0xff]
      %v643 = vpack.c.bf16 %v640, %v639
      %v644 = vpack.c.bf16 %v642, %v641
      %v645 = vld [vmem:[#allocation2] sm:$0xff]
      %v646 = vld [vmem:[#allocation2 + $0x8] sm:$0xff]
      %v647 = vld [vmem:[#allocation2 + $0x10] sm:$0xff]
      %v648 = vld [vmem:[#allocation2 + $0x18] sm:$0xff]
      %v649 = vld [vmem:[#allocation2 + $0x20] sm:$0xff]
      %v650 = vld [vmem:[#allocation2 + $0x28] sm:$0xff]
      %v651 = vld [vmem:[#allocation2 + $0x30] sm:$0xff]
      %v652 = vld [vmem:[#allocation2 + $0x38] sm:$0xff]
      %v654 = vsel %vm257, %v634, 0
      %v657 = vsel %vm257, %v635, 0
      %v660 = vsel %vm257, %v636, 0
      %v663 = vsel %vm257, %v637, 0
      %665 = vmatprep.subr.bf16.mxu0 0
      %666 = vmatpush1.bf16.msra.mxu0 %v643
      %667 = vmatprep.subr.bf16.mxu0 0
      %668 = vmatpush1.bf16.msra.mxu0 %v644
      %669 = vmatprep.subr.bf16.mxu0 0
      %670 = vmatpush1.bf16.msra.mxu0 0
      %671 = vmatprep.subr.bf16.mxu0 0
      %672 = vmatpush1.bf16.msra.mxu0 0
      %673 = vmatprep.subr.bf16.mxu0 0
      %674 = vmatpush1.bf16.msra.mxu0 0
      %675 = vmatprep.subr.bf16.mxu0 0
      %676 = vmatpush1.bf16.msra.mxu0 0
      %677 = vmatprep.subr.bf16.mxu0 0
      %678 = vmatpush1.bf16.msra.mxu0 0
      %679 = vmatprep.subr.bf16.mxu0 0
      %680 = vmatpush1.bf16.msra.mxu0 0
      %681 = vmatprep.subr.bf16.mxu0 0
      %682 = vmatpush1.bf16.msra.mxu0 0
      %683 = vmatprep.subr.bf16.mxu0 0
      %684 = vmatpush1.bf16.msra.mxu0 0
      %685 = vmatprep.subr.bf16.mxu0 0
      %686 = vmatpush1.bf16.msra.mxu0 0
      %687 = vmatprep.subr.bf16.mxu0 0
      %688 = vmatpush1.bf16.msra.mxu0 0
      %689 = vmatprep.subr.bf16.mxu0 0
      %690 = vmatpush1.bf16.msra.mxu0 0
      %691 = vmatprep.subr.bf16.mxu0 0
      %692 = vmatpush1.bf16.msra.mxu0 0
      %693 = vmatprep.subr.bf16.mxu0 0
      %694 = vmatpush1.bf16.msra.mxu0 0
      %695 = vmatprep.subr.bf16.mxu0 0
      %696 = vmatpush1.bf16.msra.mxu0 0
      %697 = vmatprep.mubr.bf16.mxu0 0
      %698 = vmatmul.mubr.bf16.gmra.mrb[0].mxu0 %v654
      %v699 = vpop.f32.mrb[0].mxu0
      %v700 = vadd.f32 0.0, %v699
      %v701 = vpop.f32.mrb[0].mxu0
      %v702 = vpop.f32.mrb[0].mxu0
      %v703 = vadd.f32 0.0, %v702
      %v704 = vpop.f32.mrb[0].mxu0
      %705 = vmatprep.mubr.bf16.mxu0 0
      %706 = vmatmul.mubr.bf16.gmra.mrb[0].mxu0 %v657
      %v707 = vpop.f32.mrb[0].mxu0
      %v708 = vadd.f32 0.0, %v707
      %v709 = vpop.f32.mrb[0].mxu0
      %v710 = vpop.f32.mrb[0].mxu0
      %v711 = vadd.f32 0.0, %v710
      %v712 = vpop.f32.mrb[0].mxu0
      %713 = vmatprep.mubr.bf16.mxu0 0
      %714 = vmatmul.mubr.bf16.gmra.mrb[0].mxu0 %v660
      %v715 = vpop.f32.mrb[0].mxu0
      %v716 = vadd.f32 0.0, %v715
      %v717 = vpop.f32.mrb[0].mxu0
      %v718 = vpop.f32.mrb[0].mxu0
      %v719 = vadd.f32 0.0, %v718
      %v720 = vpop.f32.mrb[0].mxu0
      %721 = vmatprep.mubr.bf16.mxu0 0
      %722 = vmatmul.mubr.bf16.gmra.mrb[0].mxu0 %v663
      %v723 = vpop.f32.mrb[0].mxu0
      %v724 = vadd.f32 0.0, %v723
      %v725 = vpop.f32.mrb[0].mxu0
      %v726 = vpop.f32.mrb[0].mxu0
      %v727 = vadd.f32 0.0, %v726
      %v728 = vpop.f32.mrb[0].mxu0
      %729 = vdwg.mxu0
      %v730 = vadd.f32 %v645, %v700
      %v731 = vadd.f32 %v646, %v703
      %v732 = vadd.f32 %v647, %v708
      %v733 = vadd.f32 %v648, %v711
      %v734 = vadd.f32 %v649, %v716
      %v735 = vadd.f32 %v650, %v719
      %v736 = vadd.f32 %v651, %v724
      %v737 = vadd.f32 %v652, %v727
      %738 = vst.msk [vmem:[#allocation2] sm:$0xff] %vm257, %v730
      %739 = vst.msk [vmem:[#allocation2 + $0x8] sm:$0xff] %vm257, %v731
      %740 = vst.msk [vmem:[#allocation2 + $0x10] sm:$0xff] %vm257, %v732
      %741 = vst.msk [vmem:[#allocation2 + $0x18] sm:$0xff] %vm257, %v733
      %742 = vst.msk [vmem:[#allocation2 + $0x20] sm:$0xff] %vm257, %v734
      %743 = vst.msk [vmem:[#allocation2 + $0x28] sm:$0xff] %vm257, %v735
      %744 = vst.msk [vmem:[#allocation2 + $0x30] sm:$0xff] %vm257, %v736
      %745 = vst.msk [vmem:[#allocation2 + $0x38] sm:$0xff] %vm257, %v737
      %v746 = vld [vmem:[%s625 + $0x1] sm:$0xff]
      %v747 = vld [vmem:[%s625 + $0x11] sm:$0xff]
      %v748 = vld [vmem:[%s625 + $0x21] sm:$0xff]
      %v749 = vld [vmem:[%s625 + $0x31] sm:$0xff]
      %v750 = vld [vmem:[%s625 + $0x41] sm:$0xff]
      %v751 = vld [vmem:[%s625 + $0x51] sm:$0xff]
      %v752 = vld [vmem:[%s625 + $0x61] sm:$0xff]
      %v753 = vld [vmem:[%s625 + $0x71] sm:$0xff]
      %v754 = vpack.c.bf16 %v747, %v746
      %v755 = vpack.c.bf16 %v749, %v748
      %v756 = vpack.c.bf16 %v751, %v750
      %v757 = vpack.c.bf16 %v753, %v752
      %s758 = scalar_lea.vmem %s1, 128
      %v759 = vld [vmem:[%s758] sm:$0xff]
      %v760 = vld [vmem:[%s758 + $0x8] sm:$0xff]
      %v761 = vld [vmem:[%s758 + $0x10] sm:$0xff]
      %v762 = vld [vmem:[%s758 + $0x18] sm:$0xff]
      %v763 = vpack.c.bf16 %v760, %v759
      %v764 = vpack.c.bf16 %v762, %v761
      %v765 = vld [vmem:[#allocation2] sm:$0xff]
      %v766 = vld [vmem:[#allocation2 + $0x8] sm:$0xff]
      %v767 = vld [vmem:[#allocation2 + $0x10] sm:$0xff]
      %v768 = vld [vmem:[#allocation2 + $0x18] sm:$0xff]
      %v769 = vld [vmem:[#allocation2 + $0x20] sm:$0xff]
      %v770 = vld [vmem:[#allocation2 + $0x28] sm:$0xff]
      %v771 = vld [vmem:[#allocation2 + $0x30] sm:$0xff]
      %v772 = vld [vmem:[#allocation2 + $0x38] sm:$0xff]
      %v774 = vsel %vm257, %v754, 0
      %v777 = vsel %vm257, %v755, 0
      %v780 = vsel %vm257, %v756, 0
      %v783 = vsel %vm257, %v757, 0
      %785 = vmatprep.subr.bf16.mxu0 0
      %786 = vmatpush1.bf16.msra.mxu0 %v763
      %787 = vmatprep.subr.bf16.mxu0 0
      %788 = vmatpush1.bf16.msra.mxu0 %v764
      %789 = vmatprep.subr.bf16.mxu0 0
      %790 = vmatpush1.bf16.msra.mxu0 0
      %791 = vmatprep.subr.bf16.mxu0 0
      %792 = vmatpush1.bf16.msra.mxu0 0
      %793 = vmatprep.subr.bf16.mxu0 0
      %794 = vmatpush1.bf16.msra.mxu0 0
      %795 = vmatprep.subr.bf16.mxu0 0
      %796 = vmatpush1.bf16.msra.mxu0 0
      %797 = vmatprep.subr.bf16.mxu0 0
      %798 = vmatpush1.bf16.msra.mxu0 0
      %799 = vmatprep.subr.bf16.mxu0 0
      %800 = vmatpush1.bf16.msra.mxu0 0
      %801 = vmatprep.subr.bf16.mxu0 0
      %802 = vmatpush1.bf16.msra.mxu0 0
      %803 = vmatprep.subr.bf16.mxu0 0
      %804 = vmatpush1.bf16.msra.mxu0 0
      %805 = vmatprep.subr.bf16.mxu0 0
      %806 = vmatpush1.bf16.msra.mxu0 0
      %807 = vmatprep.subr.bf16.mxu0 0
      %808 = vmatpush1.bf16.msra.mxu0 0
      %809 = vmatprep.subr.bf16.mxu0 0
      %810 = vmatpush1.bf16.msra.mxu0 0
      %811 = vmatprep.subr.bf16.mxu0 0
      %812 = vmatpush1.bf16.msra.mxu0 0
      %813 = vmatprep.subr.bf16.mxu0 0
      %814 = vmatpush1.bf16.msra.mxu0 0
      %815 = vmatprep.subr.bf16.mxu0 0
      %816 = vmatpush1.bf16.msra.mxu0 0
      %817 = vmatprep.mubr.bf16.mxu0 0
      %818 = vmatmul.mubr.bf16.gmra.mrb[0].mxu0 %v774
      %v819 = vpop.f32.mrb[0].mxu0
      %v820 = vadd.f32 0.0, %v819
      %v821 = vpop.f32.mrb[0].mxu0
      %v822 = vpop.f32.mrb[0].mxu0
      %v823 = vadd.f32 0.0, %v822
      %v824 = vpop.f32.mrb[0].mxu0
      %825 = vmatprep.mubr.bf16.mxu0 0
      %826 = vmatmul.mubr.bf16.gmra.mrb[0].mxu0 %v777
      %v827 = vpop.f32.mrb[0].mxu0
      %v828 = vadd.f32 0.0, %v827
      %v829 = vpop.f32.mrb[0].mxu0
      %v830 = vpop.f32.mrb[0].mxu0
      %v831 = vadd.f32 0.0, %v830
      %v832 = vpop.f32.mrb[0].mxu0
      %833 = vmatprep.mubr.bf16.mxu0 0
      %834 = vmatmul.mubr.bf16.gmra.mrb[0].mxu0 %v780
      %v835 = vpop.f32.mrb[0].mxu0
      %v836 = vadd.f32 0.0, %v835
      %v837 = vpop.f32.mrb[0].mxu0
      %v838 = vpop.f32.mrb[0].mxu0
      %v839 = vadd.f32 0.0, %v838
      %v840 = vpop.f32.mrb[0].mxu0
      %841 = vmatprep.mubr.bf16.mxu0 0
      %842 = vmatmul.mubr.bf16.gmra.mrb[0].mxu0 %v783
      %v843 = vpop.f32.mrb[0].mxu0
      %v844 = vadd.f32 0.0, %v843
      %v845 = vpop.f32.mrb[0].mxu0
      %v846 = vpop.f32.mrb[0].mxu0
      %v847 = vadd.f32 0.0, %v846
      %v848 = vpop.f32.mrb[0].mxu0
      %849 = vdwg.mxu0
      %v850 = vadd.f32 %v765, %v820
      %v851 = vadd.f32 %v766, %v823
      %v852 = vadd.f32 %v767, %v828
      %v853 = vadd.f32 %v768, %v831
      %v854 = vadd.f32 %v769, %v836
      %v855 = vadd.f32 %v770, %v839
      %v856 = vadd.f32 %v771, %v844
      %v857 = vadd.f32 %v772, %v847
      %858 = vst.msk [vmem:[#allocation2] sm:$0xff] %vm257, %v850
      %859 = vst.msk [vmem:[#allocation2 + $0x8] sm:$0xff] %vm257, %v851
      %860 = vst.msk [vmem:[#allocation2 + $0x10] sm:$0xff] %vm257, %v852
      %861 = vst.msk [vmem:[#allocation2 + $0x18] sm:$0xff] %vm257, %v853
      %862 = vst.msk [vmem:[#allocation2 + $0x20] sm:$0xff] %vm257, %v854
      %863 = vst.msk [vmem:[#allocation2 + $0x28] sm:$0xff] %vm257, %v855
      %864 = vst.msk [vmem:[#allocation2 + $0x30] sm:$0xff] %vm257, %v856
      %865 = vst.msk [vmem:[#allocation2 + $0x38] sm:$0xff] %vm257, %v857
      %v866 = vld [vmem:[%s625 + $0x2] sm:$0xff]
      %v867 = vld [vmem:[%s625 + $0x12] sm:$0xff]
      %v868 = vld [vmem:[%s625 + $0x22] sm:$0xff]
      %v869 = vld [vmem:[%s625 + $0x32] sm:$0xff]
      %v870 = vld [vmem:[%s625 + $0x42] sm:$0xff]
      %v871 = vld [vmem:[%s625 + $0x52] sm:$0xff]
      %v872 = vld [vmem:[%s625 + $0x62] sm:$0xff]
      %v873 = vld [vmem:[%s625 + $0x72] sm:$0xff]
      %v874 = vpack.c.bf16 %v867, %v866
      %v875 = vpack.c.bf16 %v869, %v868
      %v876 = vpack.c.bf16 %v871, %v870
      %v877 = vpack.c.bf16 %v873, %v872
      %s878 = scalar_lea.vmem %s1, 160
      %v879 = vld [vmem:[%s878] sm:$0xff]
      %v880 = vld [vmem:[%s878 + $0x8] sm:$0xff]
      %v881 = vld [vmem:[%s878 + $0x10] sm:$0xff]
      %v882 = vld [vmem:[%s878 + $0x18] sm:$0xff]
      %v883 = vpack.c.bf16 %v880, %v879
      %v884 = vpack.c.bf16 %v882, %v881
      %v885 = vld [vmem:[#allocation2] sm:$0xff]
      %v886 = vld [vmem:[#allocation2 + $0x8] sm:$0xff]
      %v887 = vld [vmem:[#allocation2 + $0x10] sm:$0xff]
      %v888 = vld [vmem:[#allocation2 + $0x18] sm:$0xff]
      %v889 = vld [vmem:[#allocation2 + $0x20] sm:$0xff]
      %v890 = vld [vmem:[#allocation2 + $0x28] sm:$0xff]
      %v891 = vld [vmem:[#allocation2 + $0x30] sm:$0xff]
      %v892 = vld [vmem:[#allocation2 + $0x38] sm:$0xff]
      %v894 = vsel %vm257, %v874, 0
      %v897 = vsel %vm257, %v875, 0
      %v900 = vsel %vm257, %v876, 0
      %v903 = vsel %vm257, %v877, 0
      %905 = vmatprep.subr.bf16.mxu0 0
      %906 = vmatpush1.bf16.msra.mxu0 %v883
      %907 = vmatprep.subr.bf16.mxu0 0
      %908 = vmatpush1.bf16.msra.mxu0 %v884
      %909 = vmatprep.subr.bf16.mxu0 0
      %910 = vmatpush1.bf16.msra.mxu0 0
      %911 = vmatprep.subr.bf16.mxu0 0
      %912 = vmatpush1.bf16.msra.mxu0 0
      %913 = vmatprep.subr.bf16.mxu0 0
      %914 = vmatpush1.bf16.msra.mxu0 0
      %915 = vmatprep.subr.bf16.mxu0 0
      %916 = vmatpush1.bf16.msra.mxu0 0
      %917 = vmatprep.subr.bf16.mxu0 0
      %918 = vmatpush1.bf16.msra.mxu0 0
      %919 = vmatprep.subr.bf16.mxu0 0
      %920 = vmatpush1.bf16.msra.mxu0 0
      %921 = vmatprep.subr.bf16.mxu0 0
      %922 = vmatpush1.bf16.msra.mxu0 0
      %923 = vmatprep.subr.bf16.mxu0 0
      %924 = vmatpush1.bf16.msra.mxu0 0
      %925 = vmatprep.subr.bf16.mxu0 0
      %926 = vmatpush1.bf16.msra.mxu0 0
      %927 = vmatprep.subr.bf16.mxu0 0
      %928 = vmatpush1.bf16.msra.mxu0 0
      %929 = vmatprep.subr.bf16.mxu0 0
      %930 = vmatpush1.bf16.msra.mxu0 0
      %931 = vmatprep.subr.bf16.mxu0 0
      %932 = vmatpush1.bf16.msra.mxu0 0
      %933 = vmatprep.subr.bf16.mxu0 0
      %934 = vmatpush1.bf16.msra.mxu0 0
      %935 = vmatprep.subr.bf16.mxu0 0
      %936 = vmatpush1.bf16.msra.mxu0 0
      %937 = vmatprep.mubr.bf16.mxu0 0
      %938 = vmatmul.mubr.bf16.gmra.mrb[0].mxu0 %v894
      %v939 = vpop.f32.mrb[0].mxu0
      %v940 = vadd.f32 0.0, %v939
      %v941 = vpop.f32.mrb[0].mxu0
      %v942 = vpop.f32.mrb[0].mxu0
      %v943 = vadd.f32 0.0, %v942
      %v944 = vpop.f32.mrb[0].mxu0
      %945 = vmatprep.mubr.bf16.mxu0 0
      %946 = vmatmul.mubr.bf16.gmra.mrb[0].mxu0 %v897
      %v947 = vpop.f32.mrb[0].mxu0
      %v948 = vadd.f32 0.0, %v947
      %v949 = vpop.f32.mrb[0].mxu0
      %v950 = vpop.f32.mrb[0].mxu0
      %v951 = vadd.f32 0.0, %v950
      %v952 = vpop.f32.mrb[0].mxu0
      %953 = vmatprep.mubr.bf16.mxu0 0
      %954 = vmatmul.mubr.bf16.gmra.mrb[0].mxu0 %v900
      %v955 = vpop.f32.mrb[0].mxu0
      %v956 = vadd.f32 0.0, %v955
      %v957 = vpop.f32.mrb[0].mxu0
      %v958 = vpop.f32.mrb[0].mxu0
      %v959 = vadd.f32 0.0, %v958
      %v960 = vpop.f32.mrb[0].mxu0
      %961 = vmatprep.mubr.bf16.mxu0 0
      %962 = vmatmul.mubr.bf16.gmra.mrb[0].mxu0 %v903
      %v963 = vpop.f32.mrb[0].mxu0
      %v964 = vadd.f32 0.0, %v963
      %v965 = vpop.f32.mrb[0].mxu0
      %v966 = vpop.f32.mrb[0].mxu0
      %v967 = vadd.f32 0.0, %v966
      %v968 = vpop.f32.mrb[0].mxu0
      %969 = vdwg.mxu0
      %v970 = vadd.f32 %v885, %v940
      %v971 = vadd.f32 %v886, %v943
      %v972 = vadd.f32 %v887, %v948
      %v973 = vadd.f32 %v888, %v951
      %v974 = vadd.f32 %v889, %v956
      %v975 = vadd.f32 %v890, %v959
      %v976 = vadd.f32 %v891, %v964
      %v977 = vadd.f32 %v892, %v967
      %978 = vst.msk [vmem:[#allocation2] sm:$0xff] %vm257, %v970
      %979 = vst.msk [vmem:[#allocation2 + $0x8] sm:$0xff] %vm257, %v971
      %980 = vst.msk [vmem:[#allocation2 + $0x10] sm:$0xff] %vm257, %v972
      %981 = vst.msk [vmem:[#allocation2 + $0x18] sm:$0xff] %vm257, %v973
      %982 = vst.msk [vmem:[#allocation2 + $0x20] sm:$0xff] %vm257, %v974
      %983 = vst.msk [vmem:[#allocation2 + $0x28] sm:$0xff] %vm257, %v975
      %984 = vst.msk [vmem:[#allocation2 + $0x30] sm:$0xff] %vm257, %v976
      %985 = vst.msk [vmem:[#allocation2 + $0x38] sm:$0xff] %vm257, %v977
      %s986 = scalar_lea.vmem %s238, 32
      %v987 = vld [vmem:[%s986] sm:$0xff]
      %v988 = vld [vmem:[%s986 + $0x10] sm:$0xff]
      %v989 = vld [vmem:[%s986 + $0x20] sm:$0xff]
      %v990 = vld [vmem:[%s986 + $0x30] sm:$0xff]
      %v991 = vld [vmem:[%s986 + $0x40] sm:$0xff]
      %v992 = vld [vmem:[%s986 + $0x50] sm:$0xff]
      %v993 = vld [vmem:[%s986 + $0x60] sm:$0xff]
      %v994 = vld [vmem:[%s986 + $0x70] sm:$0xff]
      %v995 = vpack.c.bf16 %v988, %v987
      %v996 = vpack.c.bf16 %v990, %v989
      %v997 = vpack.c.bf16 %v992, %v991
      %v998 = vpack.c.bf16 %v994, %v993
      %s999 = scalar_lea.vmem %s1, 192
      %v1000 = vld [vmem:[%s999] sm:$0xff]
      %v1001 = vld [vmem:[%s999 + $0x8] sm:$0xff]
      %v1002 = vld [vmem:[%s999 + $0x10] sm:$0xff]
      %v1003 = vld [vmem:[%s999 + $0x18] sm:$0xff]
      %v1004 = vpack.c.bf16 %v1001, %v1000
      %v1005 = vpack.c.bf16 %v1003, %v1002
      %v1006 = vld [vmem:[#allocation2] sm:$0xff]
      %v1007 = vld [vmem:[#allocation2 + $0x8] sm:$0xff]
      %v1008 = vld [vmem:[#allocation2 + $0x10] sm:$0xff]
      %v1009 = vld [vmem:[#allocation2 + $0x18] sm:$0xff]
      %v1010 = vld [vmem:[#allocation2 + $0x20] sm:$0xff]
      %v1011 = vld [vmem:[#allocation2 + $0x28] sm:$0xff]
      %v1012 = vld [vmem:[#allocation2 + $0x30] sm:$0xff]
      %v1013 = vld [vmem:[#allocation2 + $0x38] sm:$0xff]
      %v1015 = vsel %vm257, %v995, 0
      %v1018 = vsel %vm257, %v996, 0
      %v1021 = vsel %vm257, %v997, 0
      %v1024 = vsel %vm257, %v998, 0
      %1026 = vmatprep.subr.bf16.mxu0 0
      %1027 = vmatpush1.bf16.msra.mxu0 %v1004
      %1028 = vmatprep.subr.bf16.mxu0 0
      %1029 = vmatpush1.bf16.msra.mxu0 %v1005
      %1030 = vmatprep.subr.bf16.mxu0 0
      %1031 = vmatpush1.bf16.msra.mxu0 0
      %1032 = vmatprep.subr.bf16.mxu0 0
      %1033 = vmatpush1.bf16.msra.mxu0 0
      %1034 = vmatprep.subr.bf16.mxu0 0
      %1035 = vmatpush1.bf16.msra.mxu0 0
      %1036 = vmatprep.subr.bf16.mxu0 0
      %1037 = vmatpush1.bf16.msra.mxu0 0
      %1038 = vmatprep.subr.bf16.mxu0 0
      %1039 = vmatpush1.bf16.msra.mxu0 0
      %1040 = vmatprep.subr.bf16.mxu0 0
      %1041 = vmatpush1.bf16.msra.mxu0 0
      %1042 = vmatprep.subr.bf16.mxu0 0
      %1043 = vmatpush1.bf16.msra.mxu0 0
      %1044 = vmatprep.subr.bf16.mxu0 0
      %1045 = vmatpush1.bf16.msra.mxu0 0
      %1046 = vmatprep.subr.bf16.mxu0 0
      %1047 = vmatpush1.bf16.msra.mxu0 0
      %1048 = vmatprep.subr.bf16.mxu0 0
      %1049 = vmatpush1.bf16.msra.mxu0 0
      %1050 = vmatprep.subr.bf16.mxu0 0
      %1051 = vmatpush1.bf16.msra.mxu0 0
      %1052 = vmatprep.subr.bf16.mxu0 0
      %1053 = vmatpush1.bf16.msra.mxu0 0
      %1054 = vmatprep.subr.bf16.mxu0 0
      %1055 = vmatpush1.bf16.msra.mxu0 0
      %1056 = vmatprep.subr.bf16.mxu0 0
      %1057 = vmatpush1.bf16.msra.mxu0 0
      %1058 = vmatprep.mubr.bf16.mxu0 0
      %1059 = vmatmul.mubr.bf16.gmra.mrb[0].mxu0 %v1015
      %v1060 = vpop.f32.mrb[0].mxu0
      %v1061 = vadd.f32 0.0, %v1060
      %v1062 = vpop.f32.mrb[0].mxu0
      %v1063 = vpop.f32.mrb[0].mxu0
      %v1064 = vadd.f32 0.0, %v1063
      %v1065 = vpop.f32.mrb[0].mxu0
      %1066 = vmatprep.mubr.bf16.mxu0 0
      %1067 = vmatmul.mubr.bf16.gmra.mrb[0].mxu0 %v1018
      %v1068 = vpop.f32.mrb[0].mxu0
      %v1069 = vadd.f32 0.0, %v1068
      %v1070 = vpop.f32.mrb[0].mxu0
      %v1071 = vpop.f32.mrb[0].mxu0
      %v1072 = vadd.f32 0.0, %v1071
      %v1073 = vpop.f32.mrb[0].mxu0
      %1074 = vmatprep.mubr.bf16.mxu0 0
      %1075 = vmatmul.mubr.bf16.gmra.mrb[0].mxu0 %v1021
      %v1076 = vpop.f32.mrb[0].mxu0
      %v1077 = vadd.f32 0.0, %v1076
      %v1078 = vpop.f32.mrb[0].mxu0
      %v1079 = vpop.f32.mrb[0].mxu0
      %v1080 = vadd.f32 0.0, %v1079
      %v1081 = vpop.f32.mrb[0].mxu0
      %1082 = vmatprep.mubr.bf16.mxu0 0
      %1083 = vmatmul.mubr.bf16.gmra.mrb[0].mxu0 %v1024
      %v1084 = vpop.f32.mrb[0].mxu0
      %v1085 = vadd.f32 0.0, %v1084
      %v1086 = vpop.f32.mrb[0].mxu0
      %v1087 = vpop.f32.mrb[0].mxu0
      %v1088 = vadd.f32 0.0, %v1087
      %v1089 = vpop.f32.mrb[0].mxu0
      %1090 = vdwg.mxu0
      %v1091 = vadd.f32 %v1006, %v1061
      %v1092 = vadd.f32 %v1007, %v1064
      %v1093 = vadd.f32 %v1008, %v1069
      %v1094 = vadd.f32 %v1009, %v1072
      %v1095 = vadd.f32 %v1010, %v1077
      %v1096 = vadd.f32 %v1011, %v1080
      %v1097 = vadd.f32 %v1012, %v1085
      %v1098 = vadd.f32 %v1013, %v1088
      %1099 = vst.msk [vmem:[#allocation2] sm:$0xff] %vm257, %v1091
      %1100 = vst.msk [vmem:[#allocation2 + $0x8] sm:$0xff] %vm257, %v1092
      %1101 = vst.msk [vmem:[#allocation2 + $0x10] sm:$0xff] %vm257, %v1093
      %1102 = vst.msk [vmem:[#allocation2 + $0x18] sm:$0xff] %vm257, %v1094
      %1103 = vst.msk [vmem:[#allocation2 + $0x20] sm:$0xff] %vm257, %v1095
      %1104 = vst.msk [vmem:[#allocation2 + $0x28] sm:$0xff] %vm257, %v1096
      %1105 = vst.msk [vmem:[#allocation2 + $0x30] sm:$0xff] %vm257, %v1097
      %1106 = vst.msk [vmem:[#allocation2 + $0x38] sm:$0xff] %vm257, %v1098
      %v1107 = vld [vmem:[%s986 + $0x1] sm:$0xff]
      %v1108 = vld [vmem:[%s986 + $0x11] sm:$0xff]
      %v1109 = vld [vmem:[%s986 + $0x21] sm:$0xff]
      %v1110 = vld [vmem:[%s986 + $0x31] sm:$0xff]
      %v1111 = vld [vmem:[%s986 + $0x41] sm:$0xff]
      %v1112 = vld [vmem:[%s986 + $0x51] sm:$0xff]
      %v1113 = vld [vmem:[%s986 + $0x61] sm:$0xff]
      %v1114 = vld [vmem:[%s986 + $0x71] sm:$0xff]
      %v1115 = vpack.c.bf16 %v1108, %v1107
      %v1116 = vpack.c.bf16 %v1110, %v1109
      %v1117 = vpack.c.bf16 %v1112, %v1111
      %v1118 = vpack.c.bf16 %v1114, %v1113
      %s1119 = scalar_lea.vmem %s1, 224
      %v1120 = vld [vmem:[%s1119] sm:$0xff]
      %v1121 = vld [vmem:[%s1119 + $0x8] sm:$0xff]
      %v1122 = vld [vmem:[%s1119 + $0x10] sm:$0xff]
      %v1123 = vld [vmem:[%s1119 + $0x18] sm:$0xff]
      %v1124 = vpack.c.bf16 %v1121, %v1120
      %v1125 = vpack.c.bf16 %v1123, %v1122
      %v1126 = vld [vmem:[#allocation2] sm:$0xff]
      %v1127 = vld [vmem:[#allocation2 + $0x8] sm:$0xff]
      %v1128 = vld [vmem:[#allocation2 + $0x10] sm:$0xff]
      %v1129 = vld [vmem:[#allocation2 + $0x18] sm:$0xff]
      %v1130 = vld [vmem:[#allocation2 + $0x20] sm:$0xff]
      %v1131 = vld [vmem:[#allocation2 + $0x28] sm:$0xff]
      %v1132 = vld [vmem:[#allocation2 + $0x30] sm:$0xff]
      %v1133 = vld [vmem:[#allocation2 + $0x38] sm:$0xff]
      %v1135 = vsel %vm257, %v1115, 0
      %v1138 = vsel %vm257, %v1116, 0
      %v1141 = vsel %vm257, %v1117, 0
      %v1144 = vsel %vm257, %v1118, 0
      %1146 = vmatprep.subr.bf16.mxu0 0
      %1147 = vmatpush1.bf16.msra.mxu0 %v1124
      %1148 = vmatprep.subr.bf16.mxu0 0
      %1149 = vmatpush1.bf16.msra.mxu0 %v1125
      %1150 = vmatprep.subr.bf16.mxu0 0
      %1151 = vmatpush1.bf16.msra.mxu0 0
      %1152 = vmatprep.subr.bf16.mxu0 0
      %1153 = vmatpush1.bf16.msra.mxu0 0
      %1154 = vmatprep.subr.bf16.mxu0 0
      %1155 = vmatpush1.bf16.msra.mxu0 0
      %1156 = vmatprep.subr.bf16.mxu0 0
      %1157 = vmatpush1.bf16.msra.mxu0 0
      %1158 = vmatprep.subr.bf16.mxu0 0
      %1159 = vmatpush1.bf16.msra.mxu0 0
      %1160 = vmatprep.subr.bf16.mxu0 0
      %1161 = vmatpush1.bf16.msra.mxu0 0
      %1162 = vmatprep.subr.bf16.mxu0 0
      %1163 = vmatpush1.bf16.msra.mxu0 0
      %1164 = vmatprep.subr.bf16.mxu0 0
      %1165 = vmatpush1.bf16.msra.mxu0 0
      %1166 = vmatprep.subr.bf16.mxu0 0
      %1167 = vmatpush1.bf16.msra.mxu0 0
      %1168 = vmatprep.subr.bf16.mxu0 0
      %1169 = vmatpush1.bf16.msra.mxu0 0
      %1170 = vmatprep.subr.bf16.mxu0 0
      %1171 = vmatpush1.bf16.msra.mxu0 0
      %1172 = vmatprep.subr.bf16.mxu0 0
      %1173 = vmatpush1.bf16.msra.mxu0 0
      %1174 = vmatprep.subr.bf16.mxu0 0
      %1175 = vmatpush1.bf16.msra.mxu0 0
      %1176 = vmatprep.subr.bf16.mxu0 0
      %1177 = vmatpush1.bf16.msra.mxu0 0
      %1178 = vmatprep.mubr.bf16.mxu0 0
      %1179 = vmatmul.mubr.bf16.gmra.mrb[0].mxu0 %v1135
      %v1180 = vpop.f32.mrb[0].mxu0
      %v1181 = vadd.f32 0.0, %v1180
      %v1182 = vpop.f32.mrb[0].mxu0
      %v1183 = vpop.f32.mrb[0].mxu0
      %v1184 = vadd.f32 0.0, %v1183
      %v1185 = vpop.f32.mrb[0].mxu0
      %1186 = vmatprep.mubr.bf16.mxu0 0
      %1187 = vmatmul.mubr.bf16.gmra.mrb[0].mxu0 %v1138
      %v1188 = vpop.f32.mrb[0].mxu0
      %v1189 = vadd.f32 0.0, %v1188
      %v1190 = vpop.f32.mrb[0].mxu0
      %v1191 = vpop.f32.mrb[0].mxu0
      %v1192 = vadd.f32 0.0, %v1191
      %v1193 = vpop.f32.mrb[0].mxu0
      %1194 = vmatprep.mubr.bf16.mxu0 0
      %1195 = vmatmul.mubr.bf16.gmra.mrb[0].mxu0 %v1141
      %v1196 = vpop.f32.mrb[0].mxu0
      %v1197 = vadd.f32 0.0, %v1196
      %v1198 = vpop.f32.mrb[0].mxu0
      %v1199 = vpop.f32.mrb[0].mxu0
      %v1200 = vadd.f32 0.0, %v1199
      %v1201 = vpop.f32.mrb[0].mxu0
      %1202 = vmatprep.mubr.bf16.mxu0 0
      %1203 = vmatmul.mubr.bf16.gmra.mrb[0].mxu0 %v1144
      %v1204 = vpop.f32.mrb[0].mxu0
      %v1205 = vadd.f32 0.0, %v1204
      %v1206 = vpop.f32.mrb[0].mxu0
      %v1207 = vpop.f32.mrb[0].mxu0
      %v1208 = vadd.f32 0.0, %v1207
      %v1209 = vpop.f32.mrb[0].mxu0
      %1210 = vdwg.mxu0
      %v1211 = vadd.f32 %v1126, %v1181
      %v1212 = vadd.f32 %v1127, %v1184
      %v1213 = vadd.f32 %v1128, %v1189
      %v1214 = vadd.f32 %v1129, %v1192
      %v1215 = vadd.f32 %v1130, %v1197
      %v1216 = vadd.f32 %v1131, %v1200
      %v1217 = vadd.f32 %v1132, %v1205
      %v1218 = vadd.f32 %v1133, %v1208
      %1219 = vst.msk [vmem:[#allocation2] sm:$0xff] %vm257, %v1211
      %1220 = vst.msk [vmem:[#allocation2 + $0x8] sm:$0xff] %vm257, %v1212
      %1221 = vst.msk [vmem:[#allocation2 + $0x10] sm:$0xff] %vm257, %v1213
      %1222 = vst.msk [vmem:[#allocation2 + $0x18] sm:$0xff] %vm257, %v1214
      %1223 = vst.msk [vmem:[#allocation2 + $0x20] sm:$0xff] %vm257, %v1215
      %1224 = vst.msk [vmem:[#allocation2 + $0x28] sm:$0xff] %vm257, %v1216
      %1225 = vst.msk [vmem:[#allocation2 + $0x30] sm:$0xff] %vm257, %v1217
      %1226 = vst.msk [vmem:[#allocation2 + $0x38] sm:$0xff] %vm257, %v1218
      %v1227 = vld [vmem:[%s986 + $0x2] sm:$0xff]
      %v1228 = vld [vmem:[%s986 + $0x12] sm:$0xff]
      %v1229 = vld [vmem:[%s986 + $0x22] sm:$0xff]
      %v1230 = vld [vmem:[%s986 + $0x32] sm:$0xff]
      %v1231 = vld [vmem:[%s986 + $0x42] sm:$0xff]
      %v1232 = vld [vmem:[%s986 + $0x52] sm:$0xff]
      %v1233 = vld [vmem:[%s986 + $0x62] sm:$0xff]
      %v1234 = vld [vmem:[%s986 + $0x72] sm:$0xff]
      %v1235 = vpack.c.bf16 %v1228, %v1227
      %v1236 = vpack.c.bf16 %v1230, %v1229
      %v1237 = vpack.c.bf16 %v1232, %v1231
      %v1238 = vpack.c.bf16 %v1234, %v1233
      %s1239 = scalar_lea.vmem %s1, 256
      %v1240 = vld [vmem:[%s1239] sm:$0xff]
      %v1241 = vld [vmem:[%s1239 + $0x8] sm:$0xff]
      %v1242 = vld [vmem:[%s1239 + $0x10] sm:$0xff]
      %v1243 = vld [vmem:[%s1239 + $0x18] sm:$0xff]
      %v1244 = vpack.c.bf16 %v1241, %v1240
      %v1245 = vpack.c.bf16 %v1243, %v1242
      %v1246 = vld [vmem:[#allocation2] sm:$0xff]
      %v1247 = vld [vmem:[#allocation2 + $0x8] sm:$0xff]
      %v1248 = vld [vmem:[#allocation2 + $0x10] sm:$0xff]
      %v1249 = vld [vmem:[#allocation2 + $0x18] sm:$0xff]
      %v1250 = vld [vmem:[#allocation2 + $0x20] sm:$0xff]
      %v1251 = vld [vmem:[#allocation2 + $0x28] sm:$0xff]
      %v1252 = vld [vmem:[#allocation2 + $0x30] sm:$0xff]
      %v1253 = vld [vmem:[#allocation2 + $0x38] sm:$0xff]
      %v1255 = vsel %vm257, %v1235, 0
      %v1258 = vsel %vm257, %v1236, 0
      %v1261 = vsel %vm257, %v1237, 0
      %v1264 = vsel %vm257, %v1238, 0
      %1266 = vmatprep.subr.bf16.mxu0 0
      %1267 = vmatpush1.bf16.msra.mxu0 %v1244
      %1268 = vmatprep.subr.bf16.mxu0 0
      %1269 = vmatpush1.bf16.msra.mxu0 %v1245
      %1270 = vmatprep.subr.bf16.mxu0 0
      %1271 = vmatpush1.bf16.msra.mxu0 0
      %1272 = vmatprep.subr.bf16.mxu0 0
      %1273 = vmatpush1.bf16.msra.mxu0 0
      %1274 = vmatprep.subr.bf16.mxu0 0
      %1275 = vmatpush1.bf16.msra.mxu0 0
      %1276 = vmatprep.subr.bf16.mxu0 0
      %1277 = vmatpush1.bf16.msra.mxu0 0
      %1278 = vmatprep.subr.bf16.mxu0 0
      %1279 = vmatpush1.bf16.msra.mxu0 0
      %1280 = vmatprep.subr.bf16.mxu0 0
      %1281 = vmatpush1.bf16.msra.mxu0 0
      %1282 = vmatprep.subr.bf16.mxu0 0
      %1283 = vmatpush1.bf16.msra.mxu0 0
      %1284 = vmatprep.subr.bf16.mxu0 0
      %1285 = vmatpush1.bf16.msra.mxu0 0
      %1286 = vmatprep.subr.bf16.mxu0 0
      %1287 = vmatpush1.bf16.msra.mxu0 0
      %1288 = vmatprep.subr.bf16.mxu0 0
      %1289 = vmatpush1.bf16.msra.mxu0 0
      %1290 = vmatprep.subr.bf16.mxu0 0
      %1291 = vmatpush1.bf16.msra.mxu0 0
      %1292 = vmatprep.subr.bf16.mxu0 0
      %1293 = vmatpush1.bf16.msra.mxu0 0
      %1294 = vmatprep.subr.bf16.mxu0 0
      %1295 = vmatpush1.bf16.msra.mxu0 0
      %1296 = vmatprep.subr.bf16.mxu0 0
      %1297 = vmatpush1.bf16.msra.mxu0 0
      %1298 = vmatprep.mubr.bf16.mxu0 0
      %1299 = vmatmul.mubr.bf16.gmra.mrb[0].mxu0 %v1255
      %v1300 = vpop.f32.mrb[0].mxu0
      %v1301 = vadd.f32 0.0, %v1300
      %v1302 = vpop.f32.mrb[0].mxu0
      %v1303 = vpop.f32.mrb[0].mxu0
      %v1304 = vadd.f32 0.0, %v1303
      %v1305 = vpop.f32.mrb[0].mxu0
      %1306 = vmatprep.mubr.bf16.mxu0 0
      %1307 = vmatmul.mubr.bf16.gmra.mrb[0].mxu0 %v1258
      %v1308 = vpop.f32.mrb[0].mxu0
      %v1309 = vadd.f32 0.0, %v1308
      %v1310 = vpop.f32.mrb[0].mxu0
      %v1311 = vpop.f32.mrb[0].mxu0
      %v1312 = vadd.f32 0.0, %v1311
      %v1313 = vpop.f32.mrb[0].mxu0
      %1314 = vmatprep.mubr.bf16.mxu0 0
      %1315 = vmatmul.mubr.bf16.gmra.mrb[0].mxu0 %v1261
      %v1316 = vpop.f32.mrb[0].mxu0
      %v1317 = vadd.f32 0.0, %v1316
      %v1318 = vpop.f32.mrb[0].mxu0
      %v1319 = vpop.f32.mrb[0].mxu0
      %v1320 = vadd.f32 0.0, %v1319
      %v1321 = vpop.f32.mrb[0].mxu0
      %1322 = vmatprep.mubr.bf16.mxu0 0
      %1323 = vmatmul.mubr.bf16.gmra.mrb[0].mxu0 %v1264
      %v1324 = vpop.f32.mrb[0].mxu0
      %v1325 = vadd.f32 0.0, %v1324
      %v1326 = vpop.f32.mrb[0].mxu0
      %v1327 = vpop.f32.mrb[0].mxu0
      %v1328 = vadd.f32 0.0, %v1327
      %v1329 = vpop.f32.mrb[0].mxu0
      %1330 = vdwg.mxu0
      %v1331 = vadd.f32 %v1246, %v1301
      %v1332 = vadd.f32 %v1247, %v1304
      %v1333 = vadd.f32 %v1248, %v1309
      %v1334 = vadd.f32 %v1249, %v1312
      %v1335 = vadd.f32 %v1250, %v1317
      %v1336 = vadd.f32 %v1251, %v1320
      %v1337 = vadd.f32 %v1252, %v1325
      %v1338 = vadd.f32 %v1253, %v1328
      %1339 = vst.msk [vmem:[#allocation2] sm:$0xff] %vm257, %v1331
      %1340 = vst.msk [vmem:[#allocation2 + $0x8] sm:$0xff] %vm257, %v1332
      %1341 = vst.msk [vmem:[#allocation2 + $0x10] sm:$0xff] %vm257, %v1333
      %1342 = vst.msk [vmem:[#allocation2 + $0x18] sm:$0xff] %vm257, %v1334
      %1343 = vst.msk [vmem:[#allocation2 + $0x20] sm:$0xff] %vm257, %v1335
      %1344 = vst.msk [vmem:[#allocation2 + $0x28] sm:$0xff] %vm257, %v1336
      %1345 = vst.msk [vmem:[#allocation2 + $0x30] sm:$0xff] %vm257, %v1337
      %1346 = vst.msk [vmem:[#allocation2 + $0x38] sm:$0xff] %vm257, %v1338
      %v1347 = vld [vmem:[#allocation2] sm:$0xff]
      %v1348 = vld [vmem:[#allocation2 + $0x8] sm:$0xff]
      %v1349 = vld [vmem:[#allocation2 + $0x10] sm:$0xff]
      %v1350 = vld [vmem:[#allocation2 + $0x18] sm:$0xff]
      %v1351 = vld [vmem:[#allocation2 + $0x20] sm:$0xff]
      %v1352 = vld [vmem:[#allocation2 + $0x28] sm:$0xff]
      %v1353 = vld [vmem:[#allocation2 + $0x30] sm:$0xff]
      %v1354 = vld [vmem:[#allocation2 + $0x38] sm:$0xff]
      %v1355 = vld [vmem:[%s2] sm:$0x1]
      %v1357 = vlaneseq
      %v1358 = vshrl.u32 %v1357, 7
      %v1359 = vsub.s32 0, %v1358
      %v1360 = vrot.slane %v1355, %v1359
      %v1362 = vadd.f32 %v1347, %v1360
      %v1363 = vadd.f32 %v1348, %v1360
      %v1364 = vadd.f32 %v1349, %v1360
      %v1365 = vadd.f32 %v1350, %v1360
      %v1366 = vadd.f32 %v1351, %v1360
      %v1367 = vadd.f32 %v1352, %v1360
      %v1368 = vadd.f32 %v1353, %v1360
      %v1369 = vadd.f32 %v1354, %v1360
      %v1370 = vld [vmem:[%s247] sm:$0xff]
      %v1371 = vld [vmem:[%s247 + $0x8] sm:$0xff]
      %v1372 = vld [vmem:[%s247 + $0x10] sm:$0xff]
      %v1373 = vld [vmem:[%s247 + $0x18] sm:$0xff]
      %v1374 = vld [vmem:[%s247 + $0x20] sm:$0xff]
      %v1375 = vld [vmem:[%s247 + $0x28] sm:$0xff]
      %v1376 = vld [vmem:[%s247 + $0x30] sm:$0xff]
      %v1377 = vld [vmem:[%s247 + $0x38] sm:$0xff]
      %v1378 = vadd.f32 %v1362, %v1370
      %v1379 = vadd.f32 %v1363, %v1371
      %v1380 = vadd.f32 %v1364, %v1372
      %v1381 = vadd.f32 %v1365, %v1373
      %v1382 = vadd.f32 %v1366, %v1374
      %v1383 = vadd.f32 %v1367, %v1375
      %v1384 = vadd.f32 %v1368, %v1376
      %v1385 = vadd.f32 %v1369, %v1377
      %1386 = vst.msk [vmem:[%s255] sm:$0xff] %vm257, %v1378
      %1387 = vst.msk [vmem:[%s255 + $0x8] sm:$0xff] %vm257, %v1379
      %1388 = vst.msk [vmem:[%s255 + $0x10] sm:$0xff] %vm257, %v1380
      %1389 = vst.msk [vmem:[%s255 + $0x18] sm:$0xff] %vm257, %v1381
      %1390 = vst.msk [vmem:[%s255 + $0x20] sm:$0xff] %vm257, %v1382
      %1391 = vst.msk [vmem:[%s255 + $0x28] sm:$0xff] %vm257, %v1383
      %1392 = vst.msk [vmem:[%s255 + $0x30] sm:$0xff] %vm257, %v1384
      %1393 = vst.msk [vmem:[%s255 + $0x38] sm:$0xff] %vm257, %v1385
      %p1394 = scmp.lt.s32.totalorder %s19, 1
      %s1395 = scalar_select %p1394, %s19, 1
      %p1396 = scmp.lt.s32.totalorder %s20, 0
      %s1397 = scalar_select %p1396, %s20, 0
      %s1398 = smul.addr %s1395, 8
      %s1399 = sadd.s32 %s1397, %s1398
      %s1400 = smul.addr %s1399, 8
      %s1401 = scalar_lea.vmem %s4, %s1400
      // Predicated region
      $region37: #{speech_recognition_forward.19} parent=35 // pred_check
        %p1402 = pneg %p145
      $region38: #{speech_recognition_forward.19} parent=35 // pred_check_branch
        %1404 = sbr.rel (%p1402) target = $region40
      $region39: #{speech_recognition_forward.19} parent=35 // pred_region
        _
      $region40: #{speech_recognition_forward.19} parent=35 // pred_fallthru
        _
    $region36: #{speech_recognition_forward.19} parent=5 // pred_fallthru
      _
    %p1405 = scmp.le.s32.totalorder 2, %s10
    // Predicated region
    $region41: #{speech_recognition_forward.19} parent=5 // pred_check
      %p1406 = pneg %p1405
    $region42: #{speech_recognition_forward.19} parent=5 // pred_check_branch
      %1408 = sbr.rel (%p1406) target = $region44
    $region43: #{speech_recognition_forward.19} parent=5 // pred_region
      %s1409 = ssub.s32 %s10, 2
      // Predicated region
      $region45: #{speech_recognition_forward.19} parent=43 // pred_check
        %p1410 = pneg %p151
      $region46: #{speech_recognition_forward.19} parent=43 // pred_check_branch
        %1412 = sbr.rel (%p1410) target = $region48
      $region47: #{speech_recognition_forward.19} parent=43 // pred_region
        %p1413 = scmp.lt.s32.totalorder %s21, 1
        %s1414 = scalar_select %p1413, %s21, 1
        %p1415 = scmp.lt.s32.totalorder %s22, 0
        %s1416 = scalar_select %p1415, %s22, 0
        %s1417 = smul.addr %s1414, 8
        %s1418 = sadd.s32 %s1416, %s1417
        %s1419 = smul.addr %s1418, 8
        %s1420 = scalar_lea.vmem %s4, %s1419
      $region48: #{speech_recognition_forward.19} parent=43 // pred_fallthru
        _
    $region44: #{speech_recognition_forward.19} parent=5 // pred_fallthru
      _
  $region6: #{speech_recognition_forward.19} parent=0 // loop_footer
    %s14 = sadd.s32 1, %s10
  $region7: #{speech_recognition_forward.19} parent=0 // loop_footer_branch
    %9 = sbr.rel target = $region3
  $region8: #{speech_recognition_forward.19} parent=0 // loop_exit
    _

// kernel: speech_recognition_forward.25
$region0: #{speech_recognition_forward.25}
  #allocation0 [shape = 'u32[]', space=smem, size = 0x4, offset = 0x4, fixed_abs, tag = 'smem constant byte address 0x4 - core index']
  #allocation1 [shape = 'u32[144,128]{1,0:T(1,128)}', space=vmem, size = 0x12000, scoped, tag = 'internal scratch']
  #allocation2 [shape = 'bf16[16,32]{1,0:T(16,128)(2,1)}', space=vmem, size = 0x1000, scoped, tag = 'scratch operand']
  %s0 = inlined_call_operand.vmem [shape: f32[16,32], index: 0, kind: input, shape index: {}]
  %s1 = inlined_call_operand.vmem [shape: f32[1,32], index: 1, kind: input, shape index: {}]
  %s2 = inlined_call_operand.vmem [shape: f32[1,32], index: 2, kind: input, shape index: {}]
  %s3 = inlined_call_operand.vmem [shape: f32[32,768], index: 3, kind: input, shape index: {}]
  %s4 = inlined_call_operand.vmem [shape: f32[1,768], index: 4, kind: input, shape index: {}]
  %s5 = inlined_call_operand.vmem [shape: f32[16,768], index: 5, kind: output, shape index: {}]
  %s6 = sld [smem:[#allocation0]]
  $region99: #{speech_recognition_forward.25} parent=0
    _
  %s8 = ssub.s32 1, %s6
  %s9 = scalar_select 0, %s8, %s6
  $region1: #{speech_recognition_forward.25} parent=0
    #allocation3 [shape = 'u8[65536]{0}', space=vmem, size = 0x10000, scoped, tag = 'input window, operand 3']
    #allocation4 [shape = 'u8[32768]{0}', space=vmem, size = 0x8000, scoped, tag = 'output window, operand 0']
    loop: start=0, step=1, limit=5
    $region2: #{speech_recognition_forward.25} parent=1 // loop_pre_header
      _
    $region3: #{speech_recognition_forward.25} parent=1 // loop_header
      %s11 = sphi 0, %s15
      %p12 = scmp.ge.s32.totalorder %s11, 5
      %s18 = sphi 0, %s30
      %s19 = sphi 0, %s26
      %s20 = sphi 0, %s18
      %s21 = sphi 0, %s19
      %s22 = sphi 0, %s20
      %s23 = sphi 0, %s21
      %s33 = sphi 0, %s35
      %s36 = sphi 0, %s33
      %s37 = sphi 0, %s36
      %s53 = sphi 0, %s37
      %s57 = sphi 0, %s57
      %s59 = sphi 0, %s57
      %s60 = sphi 0, %s59
      %s74 = sphi 0, %s60
      %s78 = sphi 0, %s78
      %s80 = sphi 0, %s78
      %s81 = sphi 0, %s80
      %s95 = sphi 0, %s81
      %s101 = sphi 0, %s103
      %s104 = sphi 0, %s101
      %s105 = sphi 0, %s104
      %s121 = sphi 0, %s105
      %s127 = sphi 0, %s129
      %s130 = sphi 0, %s127
      %s131 = sphi 0, %s130
      %s147 = sphi 0, %s131
      %s155 = sphi 0, %s157
      %s158 = sphi 0, %s155
      %s159 = sphi 0, %s158
      %s175 = sphi 0, %s159
    $region4: #{speech_recognition_forward.25} parent=1 // loop_header_branch
      %14 = sbr.rel (%p12) target = $region8
    $region5: #{speech_recognition_forward.25} parent=1 // loop_body
      %s16 = ssub.s32 %s11, 1
      %s17 = ssub.s32 %s11, 2
      %s24 = sadd.s32 1, %s19
      %p25 = scmp.ge.s32.totalorder %s24, 3
      %s26 = scalar_select %p25, 0, %s24
      %s27 = sadd.s32 1, %s18
      %s28 = scalar_select %p25, %s27, %s18
      %p29 = scmp.ge.s32.totalorder %s28, 1
      %s30 = scalar_select %p29, 0, %s28
      %s31 = ssub.s32 %s18, %s30
      %p32 = scmp.eq.s32.totalorder %s31, 0
      %s34 = sadd.s32 %s33, 1
      %s35 = scalar_select %p32, %s33, %s34
      %p38 = pneg %p32
      %p39 = scmp.eq.s32.totalorder %s11, 2
      %p40 = por %p38, %p39
      %p41 = scmp.ne.s32.totalorder %s33, %s36
      %p42 = scmp.eq.s32.totalorder %s11, 0
      %p43 = por %p41, %p42
      %p44 = scmp.ne.s32.totalorder %s33, %s36
      %p45 = scmp.eq.s32.totalorder %s16, 2
      %p46 = por %p44, %p45
      %p47 = scmp.ne.s32.totalorder %s36, %s37
      %p48 = scmp.eq.s32.totalorder %s16, 0
      %p49 = por %p47, %p48
      %p50 = scmp.ne.s32.totalorder %s36, %s37
      %p51 = scmp.eq.s32.totalorder %s17, 2
      %p52 = por %p50, %p51
      %p54 = scmp.ne.s32.totalorder %s37, %s53
      %p55 = scmp.eq.s32.totalorder %s17, 0
      %p56 = por %p54, %p55
      %s58 = sadd.s32 %s57, 1
      %p61 = scmp.eq.s32.totalorder %s11, 2
      %p62 = scmp.ne.s32.totalorder %s57, %s59
      %p63 = scmp.eq.s32.totalorder %s11, 0
      %p64 = por %p62, %p63
      %p65 = scmp.ne.s32.totalorder %s57, %s59
      %p66 = scmp.eq.s32.totalorder %s16, 2
      %p67 = por %p65, %p66
      %p68 = scmp.ne.s32.totalorder %s59, %s60
      %p69 = scmp.eq.s32.totalorder %s16, 0
      %p70 = por %p68, %p69
      %p71 = scmp.ne.s32.totalorder %s59, %s60
      %p72 = scmp.eq.s32.totalorder %s17, 2
      %p73 = por %p71, %p72
      %p75 = scmp.ne.s32.totalorder %s60, %s74
      %p76 = scmp.eq.s32.totalorder %s17, 0
      %p77 = por %p75, %p76
      %s79 = sadd.s32 %s78, 1
      %p82 = scmp.eq.s32.totalorder %s11, 2
      %p83 = scmp.ne.s32.totalorder %s78, %s80
      %p84 = scmp.eq.s32.totalorder %s11, 0
      %p85 = por %p83, %p84
      %p86 = scmp.ne.s32.totalorder %s78, %s80
      %p87 = scmp.eq.s32.totalorder %s16, 2
      %p88 = por %p86, %p87
      %p89 = scmp.ne.s32.totalorder %s80, %s81
      %p90 = scmp.eq.s32.totalorder %s16, 0
      %p91 = por %p89, %p90
      %p92 = scmp.ne.s32.totalorder %s80, %s81
      %p93 = scmp.eq.s32.totalorder %s17, 2
      %p94 = por %p92, %p93
      %p96 = scmp.ne.s32.totalorder %s81, %s95
      %p97 = scmp.eq.s32.totalorder %s17, 0
      %p98 = por %p96, %p97
      %s99 = ssub.s32 %s19, %s26
      %p100 = scmp.eq.s32.totalorder %s99, 0
      %s102 = sadd.s32 %s101, 1
      %s103 = scalar_select %p100, %s101, %s102
      %p106 = pneg %p100
      %p107 = scmp.eq.s32.totalorder %s11, 2
      %p108 = por %p106, %p107
      %p109 = scmp.ne.s32.totalorder %s101, %s104
      %p110 = scmp.eq.s32.totalorder %s11, 0
      %p111 = por %p109, %p110
      %p112 = scmp.ne.s32.totalorder %s101, %s104
      %p113 = scmp.eq.s32.totalorder %s16, 2
      %p114 = por %p112, %p113
      %p115 = scmp.ne.s32.totalorder %s104, %s105
      %p116 = scmp.eq.s32.totalorder %s16, 0
      %p117 = por %p115, %p116
      %p118 = scmp.ne.s32.totalorder %s104, %s105
      %p119 = scmp.eq.s32.totalorder %s17, 2
      %p120 = por %p118, %p119
      %p122 = scmp.ne.s32.totalorder %s105, %s121
      %p123 = scmp.eq.s32.totalorder %s17, 0
      %p124 = por %p122, %p123
      %s125 = ssub.s32 %s19, %s26
      %p126 = scmp.eq.s32.totalorder %s125, 0
      %s128 = sadd.s32 %s127, 1
      %s129 = scalar_select %p126, %s127, %s128
      %p132 = pneg %p126
      %p133 = scmp.eq.s32.totalorder %s11, 2
      %p134 = por %p132, %p133
      %p135 = scmp.ne.s32.totalorder %s127, %s130
      %p136 = scmp.eq.s32.totalorder %s11, 0
      %p137 = por %p135, %p136
      %p138 = scmp.ne.s32.totalorder %s127, %s130
      %p139 = scmp.eq.s32.totalorder %s16, 2
      %p140 = por %p138, %p139
      %p141 = scmp.ne.s32.totalorder %s130, %s131
      %p142 = scmp.eq.s32.totalorder %s16, 0
      %p143 = por %p141, %p142
      %p144 = scmp.ne.s32.totalorder %s130, %s131
      %p145 = scmp.eq.s32.totalorder %s17, 2
      %p146 = por %p144, %p145
      %p148 = scmp.ne.s32.totalorder %s131, %s147
      %p149 = scmp.eq.s32.totalorder %s17, 0
      %p150 = por %p148, %p149
      %s151 = ssub.s32 %s18, %s30
      %s152 = ssub.s32 %s19, %s26
      %s153 = sor.u32 %s151, %s152
      %p154 = scmp.eq.s32.totalorder %s153, 0
      %s156 = sadd.s32 %s155, 1
      %s157 = scalar_select %p154, %s155, %s156
      %p160 = pneg %p154
      %p161 = scmp.eq.s32.totalorder %s11, 2
      %p162 = por %p160, %p161
      %p163 = scmp.ne.s32.totalorder %s155, %s158
      %p164 = scmp.eq.s32.totalorder %s11, 0
      %p165 = por %p163, %p164
      %p166 = scmp.ne.s32.totalorder %s155, %s158
      %p167 = scmp.eq.s32.totalorder %s16, 2
      %p168 = por %p166, %p167
      %p169 = scmp.ne.s32.totalorder %s158, %s159
      %p170 = scmp.eq.s32.totalorder %s16, 0
      %p171 = por %p169, %p170
      %p172 = scmp.ne.s32.totalorder %s158, %s159
      %p173 = scmp.eq.s32.totalorder %s17, 2
      %p174 = por %p172, %p173
      %p176 = scmp.ne.s32.totalorder %s159, %s175
      %p177 = scmp.eq.s32.totalorder %s17, 0
      %p178 = por %p176, %p177
      %p179 = scmp.le.s32.totalorder 1, %s11
      %p180 = scmp.lt.s32.totalorder %s11, 4
      %p181 = pnand %p179, %p180
      %p182 = pneg %p181
      // Predicated region
      $region9: #{speech_recognition_forward.25} parent=5 // pred_check
        _
      $region10: #{speech_recognition_forward.25} parent=5 // pred_check_branch
        %184 = sbr.rel (%p181) target = $region12
      $region11: #{speech_recognition_forward.25} parent=5 // pred_region
        %s185 = ssub.s32 %s11, 1
        // Predicated region
        $region13: #{speech_recognition_forward.25} parent=11 // pred_check
          %p186 = pneg %p49
        $region14: #{speech_recognition_forward.25} parent=11 // pred_check_branch
          %188 = sbr.rel (%p186) target = $region16
        $region15: #{speech_recognition_forward.25} parent=11 // pred_region
          %s189 = smul.u32 2, %s20
          %p190 = scmp.lt.s32.totalorder %s189, 1
          %s191 = scalar_select %p190, %s189, 1
          %s192 = smul.addr %s191, 8
          %s193 = scalar_lea.vmem %s0, %s192
          %s194 = smul.u32 2, %s20
        $region16: #{speech_recognition_forward.25} parent=11 // pred_fallthru
          _
        // Predicated region
        $region17: #{speech_recognition_forward.25} parent=11 // pred_check
          %p195 = pneg %p70
        $region18: #{speech_recognition_forward.25} parent=11 // pred_check_branch
          %197 = sbr.rel (%p195) target = $region20
        $region19: #{speech_recognition_forward.25} parent=11 // pred_region
          _
        $region20: #{speech_recognition_forward.25} parent=11 // pred_fallthru
          _
        // Predicated region
        $region21: #{speech_recognition_forward.25} parent=11 // pred_check
          %p198 = pneg %p91
        $region22: #{speech_recognition_forward.25} parent=11 // pred_check_branch
          %200 = sbr.rel (%p198) target = $region24
        $region23: #{speech_recognition_forward.25} parent=11 // pred_region
          _
        $region24: #{speech_recognition_forward.25} parent=11 // pred_fallthru
          _
      $region12: #{speech_recognition_forward.25} parent=5 // pred_fallthru
        _
      %p201 = scmp.lt.s32.totalorder %s11, 3
      // Predicated region
      $region25: #{speech_recognition_forward.25} parent=5 // pred_check
        %p202 = pneg %p201
      $region26: #{speech_recognition_forward.25} parent=5 // pred_check_branch
        %204 = sbr.rel (%p202) target = $region28
      $region27: #{speech_recognition_forward.25} parent=5 // pred_region
        // Predicated region
        $region29: #{speech_recognition_forward.25} parent=27 // pred_check
          %p205 = pneg %p111
        $region30: #{speech_recognition_forward.25} parent=27 // pred_check_branch
          %207 = sbr.rel (%p205) target = $region32
        $region31: #{speech_recognition_forward.25} parent=27 // pred_region
          %s208 = sand.u32 %s101, 1
          %s209 = sand.u32 %s101, 1
          %s210 = smul.addr %s209, 64
          %s211 = scalar_lea.vmem [#allocation3], %s210
          %s212 = smul.u32 2, %s19
          %s213 = smul.addr %s212, 8
          %s214 = scalar_lea.vmem %s3, %s213
          // Predicated region
          $region33: #{speech_recognition_forward.25} parent=31 // pred_check
            _
          $region34: #{speech_recognition_forward.25} parent=31 // pred_check_branch
            %216 = sbr.rel (0) target = $region36
          $region35: #{speech_recognition_forward.25} parent=31 // pred_region
            // Predicated region
            $region37: #{speech_recognition_forward.25} parent=35 // pred_check
              _
            $region38: #{speech_recognition_forward.25} parent=35 // pred_check_branch
              %218 = sbr.rel (0) target = $region40
            $region39: #{speech_recognition_forward.25} parent=35 // pred_region
              loop: start=0, step=1, limit=1
              $region41: #{speech_recognition_forward.25} parent=39 // loop_pre_header
                _
              $region42: #{speech_recognition_forward.25} parent=39 // loop_header
                %s220 = sphi 0, %s224
                %p221 = scmp.ge.s32.totalorder %s220, 1
                %s225 = sphi %s214, %s214
                %s226 = sphi %s211, %s211
              $region43: #{speech_recognition_forward.25} parent=39 // loop_header_branch
                %223 = sbr.rel (%p221) target = $region47
              $region44: #{speech_recognition_forward.25} parent=39 // loop_body
                %v227 = vld [vmem:[%s225] sm:$0xff]
                %228 = vst [vmem:[%s226] sm:$0xff] %v227
                %v229 = vld [vmem:[%s225 + $0x8] sm:$0xff]
                %230 = vst [vmem:[%s226 + $0x8] sm:$0xff] %v229
                %v231 = vld [vmem:[%s225 + $0x30] sm:$0xff]
                %232 = vst [vmem:[%s226 + $0x10] sm:$0xff] %v231
                %v233 = vld [vmem:[%s225 + $0x38] sm:$0xff]
                %234 = vst [vmem:[%s226 + $0x18] sm:$0xff] %v233
                %v235 = vld [vmem:[%s225 + $0x60] sm:$0xff]
                %236 = vst [vmem:[%s226 + $0x20] sm:$0xff] %v235
                %v237 = vld [vmem:[%s225 + $0x68] sm:$0xff]
                %238 = vst [vmem:[%s226 + $0x28] sm:$0xff] %v237
                %v239 = vld [vmem:[%s225 + $0x90] sm:$0xff]
                %240 = vst [vmem:[%s226 + $0x30] sm:$0xff] %v239
                %v241 = vld [vmem:[%s225 + $0x98] sm:$0xff]
                %242 = vst [vmem:[%s226 + $0x38] sm:$0xff] %v241
              $region45: #{speech_recognition_forward.25} parent=39 // loop_footer
                %s224 = sadd.s32 1, %s220
              $region46: #{speech_recognition_forward.25} parent=39 // loop_footer_branch
                %219 = sbr.rel target = $region42
              $region47: #{speech_recognition_forward.25} parent=39 // loop_exit
                _
            $region40: #{speech_recognition_forward.25} parent=35 // pred_fallthru
              _
            // Predicated region
            $region48: #{speech_recognition_forward.25} parent=35 // pred_check
              _
            $region49: #{speech_recognition_forward.25} parent=35 // pred_check_branch
              %244 = sbr.rel target = $region51
            $region50: #{speech_recognition_forward.25} parent=35 // pred_region
              _
            $region51: #{speech_recognition_forward.25} parent=35 // pred_fallthru
              _
          $region36: #{speech_recognition_forward.25} parent=31 // pred_fallthru
            _
          %245 = vnop
        $region32: #{speech_recognition_forward.25} parent=27 // pred_fallthru
          _
        // Predicated region
        $region52: #{speech_recognition_forward.25} parent=27 // pred_check
          %p246 = pneg %p137
        $region53: #{speech_recognition_forward.25} parent=27 // pred_check_branch
          %248 = sbr.rel (%p246) target = $region55
        $region54: #{speech_recognition_forward.25} parent=27 // pred_region
          %s249 = smul.u32 2, %s19
          %p250 = scmp.lt.s32.totalorder %s249, 5
          %s251 = scalar_select %p250, %s249, 5
          %s252 = scalar_lea.vmem %s4, %s251
          %s253 = smul.u32 2, %s19
        $region55: #{speech_recognition_forward.25} parent=27 // pred_fallthru
          _
      $region28: #{speech_recognition_forward.25} parent=5 // pred_fallthru
        _
      %p254 = scmp.le.s32.totalorder 1, %s11
      %p255 = scmp.lt.s32.totalorder %s11, 4
      %p256 = pnand %p254, %p255
      %p257 = pneg %p256
      // Predicated region
      $region56: #{speech_recognition_forward.25} parent=5 // pred_check
        _
      $region57: #{speech_recognition_forward.25} parent=5 // pred_check_branch
        %259 = sbr.rel (%p256) target = $region59
      $region58: #{speech_recognition_forward.25} parent=5 // pred_region
        %s260 = ssub.s32 %s11, 1
        %s261 = sand.u32 %s104, 1
        %s262 = sand.u32 %s104, 1
        %s263 = smul.addr %s262, 64
        %s264 = scalar_lea.vmem [#allocation3], %s263
        // Predicated region
        $region60: #{speech_recognition_forward.25} parent=58 // pred_check
          %p265 = pneg %p117
        $region61: #{speech_recognition_forward.25} parent=58 // pred_check_branch
          %267 = sbr.rel (%p265) target = $region63
        $region62: #{speech_recognition_forward.25} parent=58 // pred_region
          _
        $region63: #{speech_recognition_forward.25} parent=58 // pred_fallthru
          _
        %s268 = smul.u32 2, %s20
        %p269 = scmp.lt.s32.totalorder %s268, 1
        %s270 = scalar_select %p269, %s268, 1
        %s271 = smul.addr %s270, 8
        %s272 = scalar_lea.vmem %s0, %s271
        %p273 = pneg %p49
        %p274 = pneg %p46
        %p275 = pneg %p70
        %p276 = pneg %p67
        %p277 = pneg %p91
        %p278 = pneg %p88
        %s279 = sand.u32 %s104, 1
        %s280 = sand.u32 %s104, 1
        %s281 = smul.addr %s280, 64
        %s282 = scalar_lea.vmem [#allocation3], %s281
        %p283 = pneg %p117
        %p284 = pneg %p114
        %s285 = smul.u32 2, %s21
        %p286 = scmp.lt.s32.totalorder %s285, 5
        %s287 = scalar_select %p286, %s285, 5
        %s288 = scalar_lea.vmem %s4, %s287
        %p289 = pneg %p143
        %p290 = pneg %p140
        %p291 = pneg %p171
        %p292 = pneg %p168
        %s293 = sand.u32 %s158, 1
        %s294 = sand.u32 %s158, 1
        %s295 = smul.addr %s294, 32
        %s296 = scalar_lea.vmem [#allocation4], %s295
        %s297 = smul.u32 2, %s20
        %p298 = scmp.lt.s32.totalorder %s297, 1
        %s299 = scalar_select %p298, %s297, 1
        %s300 = smul.addr %s299, 8
        %s301 = scalar_lea.vmem %s0, %s300
        %s302 = smul.u32 2, %s20
        %s303 = smul.u32 2, %s21
        %s304 = smul.u32 2, %s21
        %p305 = scmp.lt.s32.totalorder %s304, 5
        %s306 = scalar_select %p305, %s304, 5
        %s307 = scalar_lea.vmem %s4, %s306
        %s308 = smul.u32 2, %s21
        %s309 = smul.u32 2, %s20
        %s310 = smul.u32 2, %s21
        %p312 = scmp.eq.s32.totalorder %s21, 0
        // Predicated region
        $region64: #{speech_recognition_forward.25} parent=58 // pred_check
          %p313 = pneg %p312
        $region65: #{speech_recognition_forward.25} parent=58 // pred_check_branch
          %315 = sbr.rel (%p313) target = $region67
        $region66: #{speech_recognition_forward.25} parent=58 // pred_region
          %v316 = vld [vmem:[%s301] sm:$0xff]
          %v317 = vld [vmem:[%s301 + $0x8] sm:$0xff]
          %vm318 = vcmask 261120
          %v319 = vsel %vm318, %v316, 0.0
          %320 = vadd.xlane.f32.xlu0 %v319
          %v321 = vpop.xlane.xlu0 %320
          %v322 = vsel %vm318, %v317, 0.0
          %323 = vadd.xlane.f32.xlu0 %v322
          %v324 = vpop.xlane.xlu0 %323
          %v325 = vrcp.pop 32.0
          %v326 = vmul.f32 %v321, %v325
          %v327 = vmul.f32 %v324, %v325
          %v328 = vsub.f32 %v316, %v326
          %v329 = vsub.f32 %v317, %v327
          %v330 = vmul.f32 %v328, %v328
          %v331 = vmul.f32 %v329, %v329
          %v332 = vsel %vm318, %v330, 0.0
          %333 = vadd.xlane.f32.xlu0 %v332
          %v334 = vpop.xlane.xlu0 %333
          %v335 = vsel %vm318, %v331, 0.0
          %336 = vadd.xlane.f32.xlu0 %v335
          %v337 = vpop.xlane.xlu0 %336
          %v338 = vmul.f32 %v334, %v325
          %v339 = vmul.f32 %v337, %v325
          %v340 = vadd.f32 %v338, 1e-05
          %v341 = vadd.f32 %v339, 1e-05
          %v342 = vrsqrt.pop %v340
          %v343 = vrsqrt.pop %v341
          %v344 = vmul.f32 %v328, %v342
          %v345 = vmul.f32 %v329, %v343
          %v346 = vld [vmem:[%s1] sm:$0x1]
          %v348 = vlaneseq
          %v349 = vshrl.u32 %v348, 7
          %v350 = vsub.s32 0, %v349
          %v351 = vrot.slane %v346, %v350
          %v353 = vmul.f32 %v344, %v351
          %v354 = vmul.f32 %v345, %v351
          %v355 = vld [vmem:[%s2] sm:$0x1]
          %v357 = vlaneseq
          %v358 = vshrl.u32 %v357, 7
          %v359 = vsub.s32 0, %v358
          %v360 = vrot.slane %v355, %v359
          %v362 = vadd.f32 %v353, %v360
          %v363 = vadd.f32 %v354, %v360
          %v364 = vmul.f32 %v362, 0.5
          %v365 = vmul.f32 %v363, 0.5
          %v366 = vrcp.pop 1.4142135
          %v367 = vmul.f32 %v362, %v366
          %v368 = vmul.f32 %v363, %v366
          %v369 = verf.f32.pop %v367
          %v370 = verf.f32.pop %v368
          %v371 = vadd.f32 %v369, 1.0
          %v372 = vadd.f32 %v370, 1.0
          %v373 = vmul.f32 %v364, %v371
          %v374 = vmul.f32 %v365, %v372
          %v375 = vpack.c.bf16 %v374, %v373
          %376 = vst.msk [vmem:[#allocation2] sm:$0xff] %vm318, %v375
        $region67: #{speech_recognition_forward.25} parent=58 // pred_fallthru
          _
        %v377 = vld [vmem:[#allocation2] sm:$0xff]
        %v378 = vld [vmem:[%s264] sm:$0xff]
        %v379 = vld [vmem:[%s264 + $0x8] sm:$0xff]
        %v380 = vld [vmem:[%s264 + $0x10] sm:$0xff]
        %v381 = vld [vmem:[%s264 + $0x18] sm:$0xff]
        %v382 = vld [vmem:[%s264 + $0x20] sm:$0xff]
        %v383 = vld [vmem:[%s264 + $0x28] sm:$0xff]
        %v384 = vld [vmem:[%s264 + $0x30] sm:$0xff]
        %v385 = vld [vmem:[%s264 + $0x38] sm:$0xff]
        %v386 = vpack.c.bf16 %v380, %v378
        %v387 = vpack.c.bf16 %v381, %v379
        %v388 = vpack.c.bf16 %v384, %v382
        %v389 = vpack.c.bf16 %v385, %v383
        %v390 = vld [vmem:[%s307] sm:$0x3]
        %v392 = vlaneseq
        %v393 = vshrl.u32 %v392, 7
        %v394 = vsub.s32 0, %v393
        %v395 = vrot.slane %v390, %v394
        %v396 = vlaneseq
        %v397 = vshrl.u32 %v396, 7
        %v398 = vsub.s32 1, %v397
        %v399 = vrot.slane %v390, %v398
        %vm402 = vcmask 261120
        %v404 = vsel %vm402, %v377, 0
        %406 = vmatprep.subr.bf16.mxu0 %v387
        %407 = vmatpush1.bf16.msra.mxu0 %v386
        %408 = vmatprep.subr.bf16.mxu0 %v389
        %409 = vmatpush1.bf16.msra.mxu0 %v388
        %410 = vmatprep.subr.bf16.mxu0 0
        %411 = vmatpush1.bf16.msra.mxu0 0
        %412 = vmatprep.subr.bf16.mxu0 0
        %413 = vmatpush1.bf16.msra.mxu0 0
        %414 = vmatprep.subr.bf16.mxu0 0
        %415 = vmatpush1.bf16.msra.mxu0 0
        %416 = vmatprep.subr.bf16.mxu0 0
        %417 = vmatpush1.bf16.msra.mxu0 0
        %418 = vmatprep.subr.bf16.mxu0 0
        %419 = vmatpush1.bf16.msra.mxu0 0
        %420 = vmatprep.subr.bf16.mxu0 0
        %421 = vmatpush1.bf16.msra.mxu0 0
        %422 = vmatprep.subr.bf16.mxu0 0
        %423 = vmatpush1.bf16.msra.mxu0 0
        %424 = vmatprep.subr.bf16.mxu0 0
        %425 = vmatpush1.bf16.msra.mxu0 0
        %426 = vmatprep.subr.bf16.mxu0 0
        %427 = vmatpush1.bf16.msra.mxu0 0
        %428 = vmatprep.subr.bf16.mxu0 0
        %429 = vmatpush1.bf16.msra.mxu0 0
        %430 = vmatprep.subr.bf16.mxu0 0
        %431 = vmatpush1.bf16.msra.mxu0 0
        %432 = vmatprep.subr.bf16.mxu0 0
        %433 = vmatpush1.bf16.msra.mxu0 0
        %434 = vmatprep.subr.bf16.mxu0 0
        %435 = vmatpush1.bf16.msra.mxu0 0
        %436 = vmatprep.subr.bf16.mxu0 0
        %437 = vmatpush1.bf16.msra.mxu0 0
        %438 = vmatprep.mubr.bf16.mxu0 0
        %439 = vmatmul.mubr.bf16.gmra.mrb[0].mxu0 %v404
        %v440 = vpop.f32.mrb[0].mxu0
        %v441 = vadd.f32 %v395, %v440
        %v442 = vpop.f32.mrb[0].mxu0
        %v443 = vadd.f32 %v399, %v442
        %v444 = vpop.f32.mrb[0].mxu0
        %v445 = vadd.f32 %v395, %v444
        %v446 = vpop.f32.mrb[0].mxu0
        %v447 = vadd.f32 %v399, %v446
        %448 = vdwg.mxu0
        %449 = vst [vmem:[%s296] sm:$0xff] %v441
        %450 = vst [vmem:[%s296 + $0x8] sm:$0xff] %v443
        %451 = vst [vmem:[%s296 + $0x10] sm:$0xff] %v445
        %452 = vst [vmem:[%s296 + $0x18] sm:$0xff] %v447
        %s453 = sand.u32 %s158, 1
        %s454 = sand.u32 %s158, 1
        %s455 = smul.addr %s454, 32
        %s456 = scalar_lea.vmem [#allocation4], %s455
        // Predicated region
        $region68: #{speech_recognition_forward.25} parent=58 // pred_check
          %p457 = pneg %p168
        $region69: #{speech_recognition_forward.25} parent=58 // pred_check_branch
          %459 = sbr.rel (%p457) target = $region71
        $region70: #{speech_recognition_forward.25} parent=58 // pred_region
          %s460 = smul.u32 2, %s20
          %s461 = smul.u32 2, %s21
          %s462 = smul.addr %s460, 6
          %s463 = sadd.s32 %s461, %s462
          %s464 = smul.addr %s463, 8
          %s465 = scalar_lea.vmem %s5, %s464
          // Predicated region
          $region72: #{speech_recognition_forward.25} parent=70 // pred_check
            _
          $region73: #{speech_recognition_forward.25} parent=70 // pred_check_branch
            %467 = sbr.rel (0) target = $region75
          $region74: #{speech_recognition_forward.25} parent=70 // pred_region
            // Predicated region
            $region76: #{speech_recognition_forward.25} parent=74 // pred_check
              _
            $region77: #{speech_recognition_forward.25} parent=74 // pred_check_branch
              %469 = sbr.rel (0) target = $region79
            $region78: #{speech_recognition_forward.25} parent=74 // pred_region
              loop: start=0, step=1, limit=1
              $region80: #{speech_recognition_forward.25} parent=78 // loop_pre_header
                _
              $region81: #{speech_recognition_forward.25} parent=78 // loop_header
                %s471 = sphi 0, %s475
                %p472 = scmp.ge.s32.totalorder %s471, 1
                %s476 = sphi %s456, %s456
                %s477 = sphi %s465, %s465
              $region82: #{speech_recognition_forward.25} parent=78 // loop_header_branch
                %474 = sbr.rel (%p472) target = $region86
              $region83: #{speech_recognition_forward.25} parent=78 // loop_body
                %v478 = vld [vmem:[%s476] sm:$0xff]
                %479 = vst [vmem:[%s477] sm:$0xff] %v478
                %v480 = vld [vmem:[%s476 + $0x8] sm:$0xff]
                %481 = vst [vmem:[%s477 + $0x8] sm:$0xff] %v480
                %v482 = vld [vmem:[%s476 + $0x10] sm:$0xff]
                %483 = vst [vmem:[%s477 + $0x30] sm:$0xff] %v482
                %v484 = vld [vmem:[%s476 + $0x18] sm:$0xff]
                %485 = vst [vmem:[%s477 + $0x38] sm:$0xff] %v484
              $region84: #{speech_recognition_forward.25} parent=78 // loop_footer
                %s475 = sadd.s32 1, %s471
              $region85: #{speech_recognition_forward.25} parent=78 // loop_footer_branch
                %470 = sbr.rel target = $region81
              $region86: #{speech_recognition_forward.25} parent=78 // loop_exit
                _
            $region79: #{speech_recognition_forward.25} parent=74 // pred_fallthru
              _
            // Predicated region
            $region87: #{speech_recognition_forward.25} parent=74 // pred_check
              _
            $region88: #{speech_recognition_forward.25} parent=74 // pred_check_branch
              %487 = sbr.rel target = $region90
            $region89: #{speech_recognition_forward.25} parent=74 // pred_region
              _
            $region90: #{speech_recognition_forward.25} parent=74 // pred_fallthru
              _
          $region75: #{speech_recognition_forward.25} parent=70 // pred_fallthru
            _
          %488 = vnop
        $region71: #{speech_recognition_forward.25} parent=58 // pred_fallthru
          _
      $region59: #{speech_recognition_forward.25} parent=5 // pred_fallthru
        _
      %p489 = scmp.le.s32.totalorder 2, %s11
      // Predicated region
      $region91: #{speech_recognition_forward.25} parent=5 // pred_check
        %p490 = pneg %p489
      $region92: #{speech_recognition_forward.25} parent=5 // pred_check_branch
        %492 = sbr.rel (%p490) target = $region94
      $region93: #{speech_recognition_forward.25} parent=5 // pred_region
        %s493 = ssub.s32 %s11, 2
        // Predicated region
        $region95: #{speech_recognition_forward.25} parent=93 // pred_check
          %p494 = pneg %p174
        $region96: #{speech_recognition_forward.25} parent=93 // pred_check_branch
          %496 = sbr.rel (%p494) target = $region98
        $region97: #{speech_recognition_forward.25} parent=93 // pred_region
          %s497 = sand.u32 %s159, 1
          %s498 = sand.u32 %s159, 1
          %s499 = smul.addr %s498, 32
          %s500 = scalar_lea.vmem [#allocation4], %s499
        $region98: #{speech_recognition_forward.25} parent=93 // pred_fallthru
          _
      $region94: #{speech_recognition_forward.25} parent=5 // pred_fallthru
        _
    $region6: #{speech_recognition_forward.25} parent=1 // loop_footer
      %s15 = sadd.s32 1, %s11
    $region7: #{speech_recognition_forward.25} parent=1 // loop_footer_branch
      %10 = sbr.rel target = $region3
    $region8: #{speech_recognition_forward.25} parent=1 // loop_exit
      _

// kernel: speech_recognition_forward.27
$region0: #{speech_recognition_forward.27}
  #allocation0 [shape = 'u32[]', space=smem, size = 0x4, offset = 0x4, fixed_abs, tag = 'smem constant byte address 0x4 - core index']
  #allocation1 [shape = 'u32[144,128]{1,0:T(1,128)}', space=vmem, size = 0x12000, scoped, tag = 'internal scratch']
  #allocation2 [shape = 'bf16[16,64]{1,0:T(16,128)(2,1)}', space=vmem, size = 0x1000, scoped, tag = 'scratch operand']
  %s0 = inlined_call_operand.vmem [shape: f32[16,64], index: 0, kind: input, shape index: {}]
  %s1 = inlined_call_operand.vmem [shape: f32[1,64], index: 1, kind: input, shape index: {}]
  %s2 = inlined_call_operand.vmem [shape: f32[1,64], index: 2, kind: input, shape index: {}]
  %s3 = inlined_call_operand.vmem [shape: f32[64,768], index: 3, kind: input, shape index: {}]
  %s4 = inlined_call_operand.vmem [shape: f32[1,768], index: 4, kind: input, shape index: {}]
  %s5 = inlined_call_operand.vmem [shape: f32[16,768], index: 5, kind: output, shape index: {}]
  %s6 = sld [smem:[#allocation0]]
  $region99: #{speech_recognition_forward.27} parent=0
    _
  %s8 = ssub.s32 1, %s6
  %s9 = scalar_select 0, %s8, %s6
  $region1: #{speech_recognition_forward.27} parent=0
    #allocation3 [shape = 'u8[131072]{0}', space=vmem, size = 0x20000, scoped, tag = 'input window, operand 3']
    #allocation4 [shape = 'u8[32768]{0}', space=vmem, size = 0x8000, scoped, tag = 'output window, operand 0']
    loop: start=0, step=1, limit=5
    $region2: #{speech_recognition_forward.27} parent=1 // loop_pre_header
      _
    $region3: #{speech_recognition_forward.27} parent=1 // loop_header
      %s11 = sphi 0, %s15
      %p12 = scmp.ge.s32.totalorder %s11, 5
      %s18 = sphi 0, %s30
      %s19 = sphi 0, %s26
      %s20 = sphi 0, %s18
      %s21 = sphi 0, %s19
      %s22 = sphi 0, %s20
      %s23 = sphi 0, %s21
      %s33 = sphi 0, %s35
      %s36 = sphi 0, %s33
      %s37 = sphi 0, %s36
      %s53 = sphi 0, %s37
      %s57 = sphi 0, %s57
      %s59 = sphi 0, %s57
      %s60 = sphi 0, %s59
      %s74 = sphi 0, %s60
      %s78 = sphi 0, %s78
      %s80 = sphi 0, %s78
      %s81 = sphi 0, %s80
      %s95 = sphi 0, %s81
      %s101 = sphi 0, %s103
      %s104 = sphi 0, %s101
      %s105 = sphi 0, %s104
      %s121 = sphi 0, %s105
      %s127 = sphi 0, %s129
      %s130 = sphi 0, %s127
      %s131 = sphi 0, %s130
      %s147 = sphi 0, %s131
      %s155 = sphi 0, %s157
      %s158 = sphi 0, %s155
      %s159 = sphi 0, %s158
      %s175 = sphi 0, %s159
    $region4: #{speech_recognition_forward.27} parent=1 // loop_header_branch
      %14 = sbr.rel (%p12) target = $region8
    $region5: #{speech_recognition_forward.27} parent=1 // loop_body
      %s16 = ssub.s32 %s11, 1
      %s17 = ssub.s32 %s11, 2
      %s24 = sadd.s32 1, %s19
      %p25 = scmp.ge.s32.totalorder %s24, 3
      %s26 = scalar_select %p25, 0, %s24
      %s27 = sadd.s32 1, %s18
      %s28 = scalar_select %p25, %s27, %s18
      %p29 = scmp.ge.s32.totalorder %s28, 1
      %s30 = scalar_select %p29, 0, %s28
      %s31 = ssub.s32 %s18, %s30
      %p32 = scmp.eq.s32.totalorder %s31, 0
      %s34 = sadd.s32 %s33, 1
      %s35 = scalar_select %p32, %s33, %s34
      %p38 = pneg %p32
      %p39 = scmp.eq.s32.totalorder %s11, 2
      %p40 = por %p38, %p39
      %p41 = scmp.ne.s32.totalorder %s33, %s36
      %p42 = scmp.eq.s32.totalorder %s11, 0
      %p43 = por %p41, %p42
      %p44 = scmp.ne.s32.totalorder %s33, %s36
      %p45 = scmp.eq.s32.totalorder %s16, 2
      %p46 = por %p44, %p45
      %p47 = scmp.ne.s32.totalorder %s36, %s37
      %p48 = scmp.eq.s32.totalorder %s16, 0
      %p49 = por %p47, %p48
      %p50 = scmp.ne.s32.totalorder %s36, %s37
      %p51 = scmp.eq.s32.totalorder %s17, 2
      %p52 = por %p50, %p51
      %p54 = scmp.ne.s32.totalorder %s37, %s53
      %p55 = scmp.eq.s32.totalorder %s17, 0
      %p56 = por %p54, %p55
      %s58 = sadd.s32 %s57, 1
      %p61 = scmp.eq.s32.totalorder %s11, 2
      %p62 = scmp.ne.s32.totalorder %s57, %s59
      %p63 = scmp.eq.s32.totalorder %s11, 0
      %p64 = por %p62, %p63
      %p65 = scmp.ne.s32.totalorder %s57, %s59
      %p66 = scmp.eq.s32.totalorder %s16, 2
      %p67 = por %p65, %p66
      %p68 = scmp.ne.s32.totalorder %s59, %s60
      %p69 = scmp.eq.s32.totalorder %s16, 0
      %p70 = por %p68, %p69
      %p71 = scmp.ne.s32.totalorder %s59, %s60
      %p72 = scmp.eq.s32.totalorder %s17, 2
      %p73 = por %p71, %p72
      %p75 = scmp.ne.s32.totalorder %s60, %s74
      %p76 = scmp.eq.s32.totalorder %s17, 0
      %p77 = por %p75, %p76
      %s79 = sadd.s32 %s78, 1
      %p82 = scmp.eq.s32.totalorder %s11, 2
      %p83 = scmp.ne.s32.totalorder %s78, %s80
      %p84 = scmp.eq.s32.totalorder %s11, 0
      %p85 = por %p83, %p84
      %p86 = scmp.ne.s32.totalorder %s78, %s80
      %p87 = scmp.eq.s32.totalorder %s16, 2
      %p88 = por %p86, %p87
      %p89 = scmp.ne.s32.totalorder %s80, %s81
      %p90 = scmp.eq.s32.totalorder %s16, 0
      %p91 = por %p89, %p90
      %p92 = scmp.ne.s32.totalorder %s80, %s81
      %p93 = scmp.eq.s32.totalorder %s17, 2
      %p94 = por %p92, %p93
      %p96 = scmp.ne.s32.totalorder %s81, %s95
      %p97 = scmp.eq.s32.totalorder %s17, 0
      %p98 = por %p96, %p97
      %s99 = ssub.s32 %s19, %s26
      %p100 = scmp.eq.s32.totalorder %s99, 0
      %s102 = sadd.s32 %s101, 1
      %s103 = scalar_select %p100, %s101, %s102
      %p106 = pneg %p100
      %p107 = scmp.eq.s32.totalorder %s11, 2
      %p108 = por %p106, %p107
      %p109 = scmp.ne.s32.totalorder %s101, %s104
      %p110 = scmp.eq.s32.totalorder %s11, 0
      %p111 = por %p109, %p110
      %p112 = scmp.ne.s32.totalorder %s101, %s104
      %p113 = scmp.eq.s32.totalorder %s16, 2
      %p114 = por %p112, %p113
      %p115 = scmp.ne.s32.totalorder %s104, %s105
      %p116 = scmp.eq.s32.totalorder %s16, 0
      %p117 = por %p115, %p116
      %p118 = scmp.ne.s32.totalorder %s104, %s105
      %p119 = scmp.eq.s32.totalorder %s17, 2
      %p120 = por %p118, %p119
      %p122 = scmp.ne.s32.totalorder %s105, %s121
      %p123 = scmp.eq.s32.totalorder %s17, 0
      %p124 = por %p122, %p123
      %s125 = ssub.s32 %s19, %s26
      %p126 = scmp.eq.s32.totalorder %s125, 0
      %s128 = sadd.s32 %s127, 1
      %s129 = scalar_select %p126, %s127, %s128
      %p132 = pneg %p126
      %p133 = scmp.eq.s32.totalorder %s11, 2
      %p134 = por %p132, %p133
      %p135 = scmp.ne.s32.totalorder %s127, %s130
      %p136 = scmp.eq.s32.totalorder %s11, 0
      %p137 = por %p135, %p136
      %p138 = scmp.ne.s32.totalorder %s127, %s130
      %p139 = scmp.eq.s32.totalorder %s16, 2
      %p140 = por %p138, %p139
      %p141 = scmp.ne.s32.totalorder %s130, %s131
      %p142 = scmp.eq.s32.totalorder %s16, 0
      %p143 = por %p141, %p142
      %p144 = scmp.ne.s32.totalorder %s130, %s131
      %p145 = scmp.eq.s32.totalorder %s17, 2
      %p146 = por %p144, %p145
      %p148 = scmp.ne.s32.totalorder %s131, %s147
      %p149 = scmp.eq.s32.totalorder %s17, 0
      %p150 = por %p148, %p149
      %s151 = ssub.s32 %s18, %s30
      %s152 = ssub.s32 %s19, %s26
      %s153 = sor.u32 %s151, %s152
      %p154 = scmp.eq.s32.totalorder %s153, 0
      %s156 = sadd.s32 %s155, 1
      %s157 = scalar_select %p154, %s155, %s156
      %p160 = pneg %p154
      %p161 = scmp.eq.s32.totalorder %s11, 2
      %p162 = por %p160, %p161
      %p163 = scmp.ne.s32.totalorder %s155, %s158
      %p164 = scmp.eq.s32.totalorder %s11, 0
      %p165 = por %p163, %p164
      %p166 = scmp.ne.s32.totalorder %s155, %s158
      %p167 = scmp.eq.s32.totalorder %s16, 2
      %p168 = por %p166, %p167
      %p169 = scmp.ne.s32.totalorder %s158, %s159
      %p170 = scmp.eq.s32.totalorder %s16, 0
      %p171 = por %p169, %p170
      %p172 = scmp.ne.s32.totalorder %s158, %s159
      %p173 = scmp.eq.s32.totalorder %s17, 2
      %p174 = por %p172, %p173
      %p176 = scmp.ne.s32.totalorder %s159, %s175
      %p177 = scmp.eq.s32.totalorder %s17, 0
      %p178 = por %p176, %p177
      %p179 = scmp.le.s32.totalorder 1, %s11
      %p180 = scmp.lt.s32.totalorder %s11, 4
      %p181 = pnand %p179, %p180
      %p182 = pneg %p181
      // Predicated region
      $region9: #{speech_recognition_forward.27} parent=5 // pred_check
        _
      $region10: #{speech_recognition_forward.27} parent=5 // pred_check_branch
        %184 = sbr.rel (%p181) target = $region12
      $region11: #{speech_recognition_forward.27} parent=5 // pred_region
        %s185 = ssub.s32 %s11, 1
        // Predicated region
        $region13: #{speech_recognition_forward.27} parent=11 // pred_check
          %p186 = pneg %p49
        $region14: #{speech_recognition_forward.27} parent=11 // pred_check_branch
          %188 = sbr.rel (%p186) target = $region16
        $region15: #{speech_recognition_forward.27} parent=11 // pred_region
          %s189 = smul.u32 2, %s20
          %p190 = scmp.lt.s32.totalorder %s189, 1
          %s191 = scalar_select %p190, %s189, 1
          %s192 = smul.addr %s191, 8
          %s193 = scalar_lea.vmem %s0, %s192
          %s194 = smul.u32 2, %s20
        $region16: #{speech_recognition_forward.27} parent=11 // pred_fallthru
          _
        // Predicated region
        $region17: #{speech_recognition_forward.27} parent=11 // pred_check
          %p195 = pneg %p70
        $region18: #{speech_recognition_forward.27} parent=11 // pred_check_branch
          %197 = sbr.rel (%p195) target = $region20
        $region19: #{speech_recognition_forward.27} parent=11 // pred_region
          _
        $region20: #{speech_recognition_forward.27} parent=11 // pred_fallthru
          _
        // Predicated region
        $region21: #{speech_recognition_forward.27} parent=11 // pred_check
          %p198 = pneg %p91
        $region22: #{speech_recognition_forward.27} parent=11 // pred_check_branch
          %200 = sbr.rel (%p198) target = $region24
        $region23: #{speech_recognition_forward.27} parent=11 // pred_region
          _
        $region24: #{speech_recognition_forward.27} parent=11 // pred_fallthru
          _
      $region12: #{speech_recognition_forward.27} parent=5 // pred_fallthru
        _
      %p201 = scmp.lt.s32.totalorder %s11, 3
      // Predicated region
      $region25: #{speech_recognition_forward.27} parent=5 // pred_check
        %p202 = pneg %p201
      $region26: #{speech_recognition_forward.27} parent=5 // pred_check_branch
        %204 = sbr.rel (%p202) target = $region28
      $region27: #{speech_recognition_forward.27} parent=5 // pred_region
        // Predicated region
        $region29: #{speech_recognition_forward.27} parent=27 // pred_check
          %p205 = pneg %p111
        $region30: #{speech_recognition_forward.27} parent=27 // pred_check_branch
          %207 = sbr.rel (%p205) target = $region32
        $region31: #{speech_recognition_forward.27} parent=27 // pred_region
          %s208 = sand.u32 %s101, 1
          %s209 = sand.u32 %s101, 1
          %s210 = smul.addr %s209, 128
          %s211 = scalar_lea.vmem [#allocation3], %s210
          %s212 = smul.u32 2, %s19
          %s213 = smul.addr %s212, 8
          %s214 = scalar_lea.vmem %s3, %s213
          // Predicated region
          $region33: #{speech_recognition_forward.27} parent=31 // pred_check
            _
          $region34: #{speech_recognition_forward.27} parent=31 // pred_check_branch
            %216 = sbr.rel (0) target = $region36
          $region35: #{speech_recognition_forward.27} parent=31 // pred_region
            // Predicated region
            $region37: #{speech_recognition_forward.27} parent=35 // pred_check
              _
            $region38: #{speech_recognition_forward.27} parent=35 // pred_check_branch
              %218 = sbr.rel (0) target = $region40
            $region39: #{speech_recognition_forward.27} parent=35 // pred_region
              loop: start=0, step=1, limit=1
              $region41: #{speech_recognition_forward.27} parent=39 // loop_pre_header
                _
              $region42: #{speech_recognition_forward.27} parent=39 // loop_header
                %s220 = sphi 0, %s224
                %p221 = scmp.ge.s32.totalorder %s220, 1
                %s225 = sphi %s214, %s214
                %s226 = sphi %s211, %s211
              $region43: #{speech_recognition_forward.27} parent=39 // loop_header_branch
                %223 = sbr.rel (%p221) target = $region47
              $region44: #{speech_recognition_forward.27} parent=39 // loop_body
                %v227 = vld [vmem:[%s225] sm:$0xff]
                %228 = vst [vmem:[%s226] sm:$0xff] %v227
                %v229 = vld [vmem:[%s225 + $0x8] sm:$0xff]
                %230 = vst [vmem:[%s226 + $0x8] sm:$0xff] %v229
                %v231 = vld [vmem:[%s225 + $0x30] sm:$0xff]
                %232 = vst [vmem:[%s226 + $0x10] sm:$0xff] %v231
                %v233 = vld [vmem:[%s225 + $0x38] sm:$0xff]
                %234 = vst [vmem:[%s226 + $0x18] sm:$0xff] %v233
                %v235 = vld [vmem:[%s225 + $0x60] sm:$0xff]
                %236 = vst [vmem:[%s226 + $0x20] sm:$0xff] %v235
                %v237 = vld [vmem:[%s225 + $0x68] sm:$0xff]
                %238 = vst [vmem:[%s226 + $0x28] sm:$0xff] %v237
                %v239 = vld [vmem:[%s225 + $0x90] sm:$0xff]
                %240 = vst [vmem:[%s226 + $0x30] sm:$0xff] %v239
                %v241 = vld [vmem:[%s225 + $0x98] sm:$0xff]
                %242 = vst [vmem:[%s226 + $0x38] sm:$0xff] %v241
                %v243 = vld [vmem:[%s225 + $0xc0] sm:$0xff]
                %244 = vst [vmem:[%s226 + $0x40] sm:$0xff] %v243
                %v245 = vld [vmem:[%s225 + $0xc8] sm:$0xff]
                %246 = vst [vmem:[%s226 + $0x48] sm:$0xff] %v245
                %v247 = vld [vmem:[%s225 + $0xf0] sm:$0xff]
                %248 = vst [vmem:[%s226 + $0x50] sm:$0xff] %v247
                %v249 = vld [vmem:[%s225 + $0xf8] sm:$0xff]
                %250 = vst [vmem:[%s226 + $0x58] sm:$0xff] %v249
                %v251 = vld [vmem:[%s225 + $0x120] sm:$0xff]
                %252 = vst [vmem:[%s226 + $0x60] sm:$0xff] %v251
                %v253 = vld [vmem:[%s225 + $0x128] sm:$0xff]
                %254 = vst [vmem:[%s226 + $0x68] sm:$0xff] %v253
                %v255 = vld [vmem:[%s225 + $0x150] sm:$0xff]
                %256 = vst [vmem:[%s226 + $0x70] sm:$0xff] %v255
                %v257 = vld [vmem:[%s225 + $0x158] sm:$0xff]
                %258 = vst [vmem:[%s226 + $0x78] sm:$0xff] %v257
              $region45: #{speech_recognition_forward.27} parent=39 // loop_footer
                %s224 = sadd.s32 1, %s220
              $region46: #{speech_recognition_forward.27} parent=39 // loop_footer_branch
                %219 = sbr.rel target = $region42
              $region47: #{speech_recognition_forward.27} parent=39 // loop_exit
                _
            $region40: #{speech_recognition_forward.27} parent=35 // pred_fallthru
              _
            // Predicated region
            $region48: #{speech_recognition_forward.27} parent=35 // pred_check
              _
            $region49: #{speech_recognition_forward.27} parent=35 // pred_check_branch
              %260 = sbr.rel target = $region51
            $region50: #{speech_recognition_forward.27} parent=35 // pred_region
              _
            $region51: #{speech_recognition_forward.27} parent=35 // pred_fallthru
              _
          $region36: #{speech_recognition_forward.27} parent=31 // pred_fallthru
            _
          %261 = vnop
        $region32: #{speech_recognition_forward.27} parent=27 // pred_fallthru
          _
        // Predicated region
        $region52: #{speech_recognition_forward.27} parent=27 // pred_check
          %p262 = pneg %p137
        $region53: #{speech_recognition_forward.27} parent=27 // pred_check_branch
          %264 = sbr.rel (%p262) target = $region55
        $region54: #{speech_recognition_forward.27} parent=27 // pred_region
          %s265 = smul.u32 2, %s19
          %p266 = scmp.lt.s32.totalorder %s265, 5
          %s267 = scalar_select %p266, %s265, 5
          %s268 = scalar_lea.vmem %s4, %s267
          %s269 = smul.u32 2, %s19
        $region55: #{speech_recognition_forward.27} parent=27 // pred_fallthru
          _
      $region28: #{speech_recognition_forward.27} parent=5 // pred_fallthru
        _
      %p270 = scmp.le.s32.totalorder 1, %s11
      %p271 = scmp.lt.s32.totalorder %s11, 4
      %p272 = pnand %p270, %p271
      %p273 = pneg %p272
      // Predicated region
      $region56: #{speech_recognition_forward.27} parent=5 // pred_check
        _
      $region57: #{speech_recognition_forward.27} parent=5 // pred_check_branch
        %275 = sbr.rel (%p272) target = $region59
      $region58: #{speech_recognition_forward.27} parent=5 // pred_region
        %s276 = ssub.s32 %s11, 1
        %s277 = sand.u32 %s104, 1
        %s278 = sand.u32 %s104, 1
        %s279 = smul.addr %s278, 128
        %s280 = scalar_lea.vmem [#allocation3], %s279
        // Predicated region
        $region60: #{speech_recognition_forward.27} parent=58 // pred_check
          %p281 = pneg %p117
        $region61: #{speech_recognition_forward.27} parent=58 // pred_check_branch
          %283 = sbr.rel (%p281) target = $region63
        $region62: #{speech_recognition_forward.27} parent=58 // pred_region
          _
        $region63: #{speech_recognition_forward.27} parent=58 // pred_fallthru
          _
        %s284 = smul.u32 2, %s20
        %p285 = scmp.lt.s32.totalorder %s284, 1
        %s286 = scalar_select %p285, %s284, 1
        %s287 = smul.addr %s286, 8
        %s288 = scalar_lea.vmem %s0, %s287
        %p289 = pneg %p49
        %p290 = pneg %p46
        %p291 = pneg %p70
        %p292 = pneg %p67
        %p293 = pneg %p91
        %p294 = pneg %p88
        %s295 = sand.u32 %s104, 1
        %s296 = sand.u32 %s104, 1
        %s297 = smul.addr %s296, 128
        %s298 = scalar_lea.vmem [#allocation3], %s297
        %p299 = pneg %p117
        %p300 = pneg %p114
        %s301 = smul.u32 2, %s21
        %p302 = scmp.lt.s32.totalorder %s301, 5
        %s303 = scalar_select %p302, %s301, 5
        %s304 = scalar_lea.vmem %s4, %s303
        %p305 = pneg %p143
        %p306 = pneg %p140
        %p307 = pneg %p171
        %p308 = pneg %p168
        %s309 = sand.u32 %s158, 1
        %s310 = sand.u32 %s158, 1
        %s311 = smul.addr %s310, 32
        %s312 = scalar_lea.vmem [#allocation4], %s311
        %s313 = smul.u32 2, %s20
        %p314 = scmp.lt.s32.totalorder %s313, 1
        %s315 = scalar_select %p314, %s313, 1
        %s316 = smul.addr %s315, 8
        %s317 = scalar_lea.vmem %s0, %s316
        %s318 = smul.u32 2, %s20
        %s319 = smul.u32 2, %s21
        %s320 = smul.u32 2, %s21
        %p321 = scmp.lt.s32.totalorder %s320, 5
        %s322 = scalar_select %p321, %s320, 5
        %s323 = scalar_lea.vmem %s4, %s322
        %s324 = smul.u32 2, %s21
        %s325 = smul.u32 2, %s20
        %s326 = smul.u32 2, %s21
        %p328 = scmp.eq.s32.totalorder %s21, 0
        // Predicated region
        $region64: #{speech_recognition_forward.27} parent=58 // pred_check
          %p329 = pneg %p328
        $region65: #{speech_recognition_forward.27} parent=58 // pred_check_branch
          %331 = sbr.rel (%p329) target = $region67
        $region66: #{speech_recognition_forward.27} parent=58 // pred_region
          %v332 = vld [vmem:[%s317] sm:$0xff]
          %v333 = vld [vmem:[%s317 + $0x8] sm:$0xff]
          %vm334 = vcmask 523264
          %v335 = vsel %vm334, %v332, 0.0
          %336 = vadd.xlane.f32.xlu0 %v335
          %v337 = vpop.xlane.xlu0 %336
          %v338 = vsel %vm334, %v333, 0.0
          %339 = vadd.xlane.f32.xlu0 %v338
          %v340 = vpop.xlane.xlu0 %339
          %v341 = vrcp.pop 64.0
          %v342 = vmul.f32 %v337, %v341
          %v343 = vmul.f32 %v340, %v341
          %v344 = vsub.f32 %v332, %v342
          %v345 = vsub.f32 %v333, %v343
          %v346 = vmul.f32 %v344, %v344
          %v347 = vmul.f32 %v345, %v345
          %v348 = vsel %vm334, %v346, 0.0
          %349 = vadd.xlane.f32.xlu0 %v348
          %v350 = vpop.xlane.xlu0 %349
          %v351 = vsel %vm334, %v347, 0.0
          %352 = vadd.xlane.f32.xlu0 %v351
          %v353 = vpop.xlane.xlu0 %352
          %v354 = vmul.f32 %v350, %v341
          %v355 = vmul.f32 %v353, %v341
          %v356 = vadd.f32 %v354, 1e-05
          %v357 = vadd.f32 %v355, 1e-05
          %v358 = vrsqrt.pop %v356
          %v359 = vrsqrt.pop %v357
          %v360 = vmul.f32 %v344, %v358
          %v361 = vmul.f32 %v345, %v359
          %v362 = vld [vmem:[%s1] sm:$0x1]
          %v364 = vlaneseq
          %v365 = vshrl.u32 %v364, 7
          %v366 = vsub.s32 0, %v365
          %v367 = vrot.slane %v362, %v366
          %v369 = vmul.f32 %v360, %v367
          %v370 = vmul.f32 %v361, %v367
          %v371 = vld [vmem:[%s2] sm:$0x1]
          %v373 = vlaneseq
          %v374 = vshrl.u32 %v373, 7
          %v375 = vsub.s32 0, %v374
          %v376 = vrot.slane %v371, %v375
          %v378 = vadd.f32 %v369, %v376
          %v379 = vadd.f32 %v370, %v376
          %v380 = vmul.f32 %v378, 0.5
          %v381 = vmul.f32 %v379, 0.5
          %v382 = vrcp.pop 1.4142135
          %v383 = vmul.f32 %v378, %v382
          %v384 = vmul.f32 %v379, %v382
          %v385 = verf.f32.pop %v383
          %v386 = verf.f32.pop %v384
          %v387 = vadd.f32 %v385, 1.0
          %v388 = vadd.f32 %v386, 1.0
          %v389 = vmul.f32 %v380, %v387
          %v390 = vmul.f32 %v381, %v388
          %v391 = vpack.c.bf16 %v390, %v389
          %392 = vst.msk [vmem:[#allocation2] sm:$0xff] %vm334, %v391
        $region67: #{speech_recognition_forward.27} parent=58 // pred_fallthru
          _
        %v393 = vld [vmem:[#allocation2] sm:$0xff]
        %v394 = vld [vmem:[%s280] sm:$0xff]
        %v395 = vld [vmem:[%s280 + $0x8] sm:$0xff]
        %v396 = vld [vmem:[%s280 + $0x10] sm:$0xff]
        %v397 = vld [vmem:[%s280 + $0x18] sm:$0xff]
        %v398 = vld [vmem:[%s280 + $0x20] sm:$0xff]
        %v399 = vld [vmem:[%s280 + $0x28] sm:$0xff]
        %v400 = vld [vmem:[%s280 + $0x30] sm:$0xff]
        %v401 = vld [vmem:[%s280 + $0x38] sm:$0xff]
        %v402 = vld [vmem:[%s280 + $0x40] sm:$0xff]
        %v403 = vld [vmem:[%s280 + $0x48] sm:$0xff]
        %v404 = vld [vmem:[%s280 + $0x50] sm:$0xff]
        %v405 = vld [vmem:[%s280 + $0x58] sm:$0xff]
        %v406 = vld [vmem:[%s280 + $0x60] sm:$0xff]
        %v407 = vld [vmem:[%s280 + $0x68] sm:$0xff]
        %v408 = vld [vmem:[%s280 + $0x70] sm:$0xff]
        %v409 = vld [vmem:[%s280 + $0x78] sm:$0xff]
        %v410 = vpack.c.bf16 %v396, %v394
        %v411 = vpack.c.bf16 %v397, %v395
        %v412 = vpack.c.bf16 %v400, %v398
        %v413 = vpack.c.bf16 %v401, %v399
        %v414 = vpack.c.bf16 %v404, %v402
        %v415 = vpack.c.bf16 %v405, %v403
        %v416 = vpack.c.bf16 %v408, %v406
        %v417 = vpack.c.bf16 %v409, %v407
        %v418 = vld [vmem:[%s323] sm:$0x3]
        %v420 = vlaneseq
        %v421 = vshrl.u32 %v420, 7
        %v422 = vsub.s32 0, %v421
        %v423 = vrot.slane %v418, %v422
        %v424 = vlaneseq
        %v425 = vshrl.u32 %v424, 7
        %v426 = vsub.s32 1, %v425
        %v427 = vrot.slane %v418, %v426
        %vm430 = vcmask 523264
        %v432 = vsel %vm430, %v393, 0
        %434 = vmatprep.subr.bf16.mxu0 %v411
        %435 = vmatpush1.bf16.msra.mxu0 %v410
        %436 = vmatprep.subr.bf16.mxu0 %v413
        %437 = vmatpush1.bf16.msra.mxu0 %v412
        %438 = vmatprep.subr.bf16.mxu0 %v415
        %439 = vmatpush1.bf16.msra.mxu0 %v414
        %440 = vmatprep.subr.bf16.mxu0 %v417
        %441 = vmatpush1.bf16.msra.mxu0 %v416
        %442 = vmatprep.subr.bf16.mxu0 0
        %443 = vmatpush1.bf16.msra.mxu0 0
        %444 = vmatprep.subr.bf16.mxu0 0
        %445 = vmatpush1.bf16.msra.mxu0 0
        %446 = vmatprep.subr.bf16.mxu0 0
        %447 = vmatpush1.bf16.msra.mxu0 0
        %448 = vmatprep.subr.bf16.mxu0 0
        %449 = vmatpush1.bf16.msra.mxu0 0
        %450 = vmatprep.subr.bf16.mxu0 0
        %451 = vmatpush1.bf16.msra.mxu0 0
        %452 = vmatprep.subr.bf16.mxu0 0
        %453 = vmatpush1.bf16.msra.mxu0 0
        %454 = vmatprep.subr.bf16.mxu0 0
        %455 = vmatpush1.bf16.msra.mxu0 0
        %456 = vmatprep.subr.bf16.mxu0 0
        %457 = vmatpush1.bf16.msra.mxu0 0
        %458 = vmatprep.subr.bf16.mxu0 0
        %459 = vmatpush1.bf16.msra.mxu0 0
        %460 = vmatprep.subr.bf16.mxu0 0
        %461 = vmatpush1.bf16.msra.mxu0 0
        %462 = vmatprep.subr.bf16.mxu0 0
        %463 = vmatpush1.bf16.msra.mxu0 0
        %464 = vmatprep.subr.bf16.mxu0 0
        %465 = vmatpush1.bf16.msra.mxu0 0
        %466 = vmatprep.mubr.bf16.mxu0 0
        %467 = vmatmul.mubr.bf16.gmra.mrb[0].mxu0 %v432
        %v468 = vpop.f32.mrb[0].mxu0
        %v469 = vadd.f32 %v423, %v468
        %v470 = vpop.f32.mrb[0].mxu0
        %v471 = vadd.f32 %v427, %v470
        %v472 = vpop.f32.mrb[0].mxu0
        %v473 = vadd.f32 %v423, %v472
        %v474 = vpop.f32.mrb[0].mxu0
        %v475 = vadd.f32 %v427, %v474
        %476 = vdwg.mxu0
        %477 = vst [vmem:[%s312] sm:$0xff] %v469
        %478 = vst [vmem:[%s312 + $0x8] sm:$0xff] %v471
        %479 = vst [vmem:[%s312 + $0x10] sm:$0xff] %v473
        %480 = vst [vmem:[%s312 + $0x18] sm:$0xff] %v475
        %s481 = sand.u32 %s158, 1
        %s482 = sand.u32 %s158, 1
        %s483 = smul.addr %s482, 32
        %s484 = scalar_lea.vmem [#allocation4], %s483
        // Predicated region
        $region68: #{speech_recognition_forward.27} parent=58 // pred_check
          %p485 = pneg %p168
        $region69: #{speech_recognition_forward.27} parent=58 // pred_check_branch
          %487 = sbr.rel (%p485) target = $region71
        $region70: #{speech_recognition_forward.27} parent=58 // pred_region
          %s488 = smul.u32 2, %s20
          %s489 = smul.u32 2, %s21
          %s490 = smul.addr %s488, 6
          %s491 = sadd.s32 %s489, %s490
          %s492 = smul.addr %s491, 8
          %s493 = scalar_lea.vmem %s5, %s492
          // Predicated region
          $region72: #{speech_recognition_forward.27} parent=70 // pred_check
            _
          $region73: #{speech_recognition_forward.27} parent=70 // pred_check_branch
            %495 = sbr.rel (0) target = $region75
          $region74: #{speech_recognition_forward.27} parent=70 // pred_region
            // Predicated region
            $region76: #{speech_recognition_forward.27} parent=74 // pred_check
              _
            $region77: #{speech_recognition_forward.27} parent=74 // pred_check_branch
              %497 = sbr.rel (0) target = $region79
            $region78: #{speech_recognition_forward.27} parent=74 // pred_region
              loop: start=0, step=1, limit=1
              $region80: #{speech_recognition_forward.27} parent=78 // loop_pre_header
                _
              $region81: #{speech_recognition_forward.27} parent=78 // loop_header
                %s499 = sphi 0, %s503
                %p500 = scmp.ge.s32.totalorder %s499, 1
                %s504 = sphi %s484, %s484
                %s505 = sphi %s493, %s493
              $region82: #{speech_recognition_forward.27} parent=78 // loop_header_branch
                %502 = sbr.rel (%p500) target = $region86
              $region83: #{speech_recognition_forward.27} parent=78 // loop_body
                %v506 = vld [vmem:[%s504] sm:$0xff]
                %507 = vst [vmem:[%s505] sm:$0xff] %v506
                %v508 = vld [vmem:[%s504 + $0x8] sm:$0xff]
                %509 = vst [vmem:[%s505 + $0x8] sm:$0xff] %v508
                %v510 = vld [vmem:[%s504 + $0x10] sm:$0xff]
                %511 = vst [vmem:[%s505 + $0x30] sm:$0xff] %v510
                %v512 = vld [vmem:[%s504 + $0x18] sm:$0xff]
                %513 = vst [vmem:[%s505 + $0x38] sm:$0xff] %v512
              $region84: #{speech_recognition_forward.27} parent=78 // loop_footer
                %s503 = sadd.s32 1, %s499
              $region85: #{speech_recognition_forward.27} parent=78 // loop_footer_branch
                %498 = sbr.rel target = $region81
              $region86: #{speech_recognition_forward.27} parent=78 // loop_exit
                _
            $region79: #{speech_recognition_forward.27} parent=74 // pred_fallthru
              _
            // Predicated region
            $region87: #{speech_recognition_forward.27} parent=74 // pred_check
              _
            $region88: #{speech_recognition_forward.27} parent=74 // pred_check_branch
              %515 = sbr.rel target = $region90
            $region89: #{speech_recognition_forward.27} parent=74 // pred_region
              _
            $region90: #{speech_recognition_forward.27} parent=74 // pred_fallthru
              _
          $region75: #{speech_recognition_forward.27} parent=70 // pred_fallthru
            _
          %516 = vnop
        $region71: #{speech_recognition_forward.27} parent=58 // pred_fallthru
          _
      $region59: #{speech_recognition_forward.27} parent=5 // pred_fallthru
        _
      %p517 = scmp.le.s32.totalorder 2, %s11
      // Predicated region
      $region91: #{speech_recognition_forward.27} parent=5 // pred_check
        %p518 = pneg %p517
      $region92: #{speech_recognition_forward.27} parent=5 // pred_check_branch
        %520 = sbr.rel (%p518) target = $region94
      $region93: #{speech_recognition_forward.27} parent=5 // pred_region
        %s521 = ssub.s32 %s11, 2
        // Predicated region
        $region95: #{speech_recognition_forward.27} parent=93 // pred_check
          %p522 = pneg %p174
        $region96: #{speech_recognition_forward.27} parent=93 // pred_check_branch
          %524 = sbr.rel (%p522) target = $region98
        $region97: #{speech_recognition_forward.27} parent=93 // pred_region
          %s525 = sand.u32 %s159, 1
          %s526 = sand.u32 %s159, 1
          %s527 = smul.addr %s526, 32
          %s528 = scalar_lea.vmem [#allocation4], %s527
        $region98: #{speech_recognition_forward.27} parent=93 // pred_fallthru
          _
      $region94: #{speech_recognition_forward.27} parent=5 // pred_fallthru
        _
    $region6: #{speech_recognition_forward.27} parent=1 // loop_footer
      %s15 = sadd.s32 1, %s11
    $region7: #{speech_recognition_forward.27} parent=1 // loop_footer_branch
      %10 = sbr.rel target = $region3
    $region8: #{speech_recognition_forward.27} parent=1 // loop_exit
      _

// kernel: speech_recognition_forward.28
$region0: #{speech_recognition_forward.28}
  #allocation0 [shape = 'u32[]', space=smem, size = 0x4, offset = 0x4, fixed_abs, tag = 'smem constant byte address 0x4 - core index']
  #allocation1 [shape = 'u32[144,128]{1,0:T(1,128)}', space=vmem, size = 0x12000, scoped, tag = 'internal scratch']
  #allocation2 [shape = 'f32[8,128]{1,0:T(8,128)}', space=vmem, size = 0x1000, scoped, tag = 'scratch operand']
  %s0 = inlined_call_operand.vmem [shape: f32[2,8,768], index: 0, kind: input, shape index: {}]
  %s1 = inlined_call_operand.vmem [shape: f32[2,128,384], index: 1, kind: input, shape index: {}]
  %s2 = inlined_call_operand.vmem [shape: f32[2,1,384], index: 2, kind: input, shape index: {}]
  %s3 = inlined_call_operand.vmem [shape: f32[2,8,256], index: 3, kind: output, shape index: {}]
  %s4 = sld [smem:[#allocation0]]
  $region106: #{speech_recognition_forward.28} parent=0
    _
  %s6 = ssub.s32 1, %s4
  %s7 = scalar_select 0, %s6, %s4
  $region1: #{speech_recognition_forward.28} parent=0
    #allocation3 [shape = 'u8[49152]{0}', space=vmem, size = 0xc000, scoped, tag = 'input window, operand 0']
    #allocation4 [shape = 'u8[16384]{0}', space=vmem, size = 0x4000, scoped, tag = 'output window, operand 0']
    loop: start=0, step=1, limit=4
    $region2: #{speech_recognition_forward.28} parent=1 // loop_pre_header
      _
    $region3: #{speech_recognition_forward.28} parent=1 // loop_header
      %s9 = sphi 0, %s13
      %p10 = scmp.ge.s32.totalorder %s9, 4
      %s16 = sphi 0, %s28
      %s17 = sphi 0, %s24
      %s18 = sphi 0, %s16
      %s19 = sphi 0, %s17
      %s20 = sphi 0, %s18
      %s21 = sphi 0, %s19
      %s43 = sphi 0, %s45
      %s46 = sphi 0, %s43
      %s47 = sphi 0, %s46
      %s63 = sphi 0, %s47
      %s69 = sphi 0, %s71
      %s72 = sphi 0, %s69
      %s73 = sphi 0, %s72
      %s89 = sphi 0, %s73
      %s95 = sphi 0, %s97
      %s98 = sphi 0, %s95
      %s99 = sphi 0, %s98
      %s115 = sphi 0, %s99
      %s133 = sphi 0, %s135
      %s136 = sphi 0, %s133
      %s137 = sphi 0, %s136
      %s153 = sphi 0, %s137
    $region4: #{speech_recognition_forward.28} parent=1 // loop_header_branch
      %12 = sbr.rel (%p10) target = $region8
    $region5: #{speech_recognition_forward.28} parent=1 // loop_body
      %s14 = ssub.s32 %s9, 1
      %s15 = ssub.s32 %s9, 2
      %s22 = sadd.s32 1, %s17
      %p23 = scmp.ge.s32.totalorder %s22, 1
      %s24 = scalar_select %p23, 0, %s22
      %s25 = sadd.s32 1, %s16
      %s26 = scalar_select %p23, %s25, %s16
      %p27 = scmp.ge.s32.totalorder %s26, 2
      %s28 = scalar_select %p27, 0, %s26
      %s29 = ssub.s32 1, %s16
      %s30 = smul.u32 %s17, %s29
      %s31 = ssub.s32 0, %s17
      %s32 = smul.u32 %s31, %s16
      %s33 = sadd.s32 %s30, %s32
      %s34 = ssub.s32 1, %s28
      %s35 = smul.u32 %s24, %s34
      %s36 = ssub.s32 0, %s24
      %s37 = smul.u32 %s36, %s28
      %s38 = sadd.s32 %s35, %s37
      %s39 = ssub.s32 %s33, %s38
      %s40 = ssub.s32 %s16, %s28
      %s41 = sor.u32 %s39, %s40
      %p42 = scmp.eq.s32.totalorder %s41, 0
      %s44 = sadd.s32 %s43, 1
      %s45 = scalar_select %p42, %s43, %s44
      %p48 = pneg %p42
      %p49 = scmp.eq.s32.totalorder %s9, 1
      %p50 = por %p48, %p49
      %p51 = scmp.ne.s32.totalorder %s43, %s46
      %p52 = scmp.eq.s32.totalorder %s9, 0
      %p53 = por %p51, %p52
      %p54 = scmp.ne.s32.totalorder %s43, %s46
      %p55 = scmp.eq.s32.totalorder %s14, 1
      %p56 = por %p54, %p55
      %p57 = scmp.ne.s32.totalorder %s46, %s47
      %p58 = scmp.eq.s32.totalorder %s14, 0
      %p59 = por %p57, %p58
      %p60 = scmp.ne.s32.totalorder %s46, %s47
      %p61 = scmp.eq.s32.totalorder %s15, 1
      %p62 = por %p60, %p61
      %p64 = scmp.ne.s32.totalorder %s47, %s63
      %p65 = scmp.eq.s32.totalorder %s15, 0
      %p66 = por %p64, %p65
      %s67 = ssub.s32 %s16, %s28
      %p68 = scmp.eq.s32.totalorder %s67, 0
      %s70 = sadd.s32 %s69, 1
      %s71 = scalar_select %p68, %s69, %s70
      %p74 = pneg %p68
      %p75 = scmp.eq.s32.totalorder %s9, 1
      %p76 = por %p74, %p75
      %p77 = scmp.ne.s32.totalorder %s69, %s72
      %p78 = scmp.eq.s32.totalorder %s9, 0
      %p79 = por %p77, %p78
      %p80 = scmp.ne.s32.totalorder %s69, %s72
      %p81 = scmp.eq.s32.totalorder %s14, 1
      %p82 = por %p80, %p81
      %p83 = scmp.ne.s32.totalorder %s72, %s73
      %p84 = scmp.eq.s32.totalorder %s14, 0
      %p85 = por %p83, %p84
      %p86 = scmp.ne.s32.totalorder %s72, %s73
      %p87 = scmp.eq.s32.totalorder %s15, 1
      %p88 = por %p86, %p87
      %p90 = scmp.ne.s32.totalorder %s73, %s89
      %p91 = scmp.eq.s32.totalorder %s15, 0
      %p92 = por %p90, %p91
      %s93 = ssub.s32 %s16, %s28
      %p94 = scmp.eq.s32.totalorder %s93, 0
      %s96 = sadd.s32 %s95, 1
      %s97 = scalar_select %p94, %s95, %s96
      %p100 = pneg %p94
      %p101 = scmp.eq.s32.totalorder %s9, 1
      %p102 = por %p100, %p101
      %p103 = scmp.ne.s32.totalorder %s95, %s98
      %p104 = scmp.eq.s32.totalorder %s9, 0
      %p105 = por %p103, %p104
      %p106 = scmp.ne.s32.totalorder %s95, %s98
      %p107 = scmp.eq.s32.totalorder %s14, 1
      %p108 = por %p106, %p107
      %p109 = scmp.ne.s32.totalorder %s98, %s99
      %p110 = scmp.eq.s32.totalorder %s14, 0
      %p111 = por %p109, %p110
      %p112 = scmp.ne.s32.totalorder %s98, %s99
      %p113 = scmp.eq.s32.totalorder %s15, 1
      %p114 = por %p112, %p113
      %p116 = scmp.ne.s32.totalorder %s99, %s115
      %p117 = scmp.eq.s32.totalorder %s15, 0
      %p118 = por %p116, %p117
      %s119 = ssub.s32 1, %s16
      %s120 = smul.u32 %s17, %s119
      %s121 = ssub.s32 0, %s17
      %s122 = smul.u32 %s121, %s16
      %s123 = sadd.s32 %s120, %s122
      %s124 = ssub.s32 1, %s28
      %s125 = smul.u32 %s24, %s124
      %s126 = ssub.s32 0, %s24
      %s127 = smul.u32 %s126, %s28
      %s128 = sadd.s32 %s125, %s127
      %s129 = ssub.s32 %s123, %s128
      %s130 = ssub.s32 %s16, %s28
      %s131 = sor.u32 %s129, %s130
      %p132 = scmp.eq.s32.totalorder %s131, 0
      %s134 = sadd.s32 %s133, 1
      %s135 = scalar_select %p132, %s133, %s134
      %p138 = pneg %p132
      %p139 = scmp.eq.s32.totalorder %s9, 1
      %p140 = por %p138, %p139
      %p141 = scmp.ne.s32.totalorder %s133, %s136
      %p142 = scmp.eq.s32.totalorder %s9, 0
      %p143 = por %p141, %p142
      %p144 = scmp.ne.s32.totalorder %s133, %s136
      %p145 = scmp.eq.s32.totalorder %s14, 1
      %p146 = por %p144, %p145
      %p147 = scmp.ne.s32.totalorder %s136, %s137
      %p148 = scmp.eq.s32.totalorder %s14, 0
      %p149 = por %p147, %p148
      %p150 = scmp.ne.s32.totalorder %s136, %s137
      %p151 = scmp.eq.s32.totalorder %s15, 1
      %p152 = por %p150, %p151
      %p154 = scmp.ne.s32.totalorder %s137, %s153
      %p155 = scmp.eq.s32.totalorder %s15, 0
      %p156 = por %p154, %p155
      %p157 = scmp.le.s32.totalorder 1, %s9
      %p158 = scmp.lt.s32.totalorder %s9, 3
      %p159 = pnand %p157, %p158
      %p160 = pneg %p159
      // Predicated region
      $region9: #{speech_recognition_forward.28} parent=5 // pred_check
        _
      $region10: #{speech_recognition_forward.28} parent=5 // pred_check_branch
        %162 = sbr.rel (%p159) target = $region12
      $region11: #{speech_recognition_forward.28} parent=5 // pred_region
        %s163 = ssub.s32 %s9, 1
      $region12: #{speech_recognition_forward.28} parent=5 // pred_fallthru
        _
      %p164 = scmp.lt.s32.totalorder %s9, 2
      // Predicated region
      $region13: #{speech_recognition_forward.28} parent=5 // pred_check
        %p165 = pneg %p164
      $region14: #{speech_recognition_forward.28} parent=5 // pred_check_branch
        %167 = sbr.rel (%p165) target = $region16
      $region15: #{speech_recognition_forward.28} parent=5 // pred_region
        // Predicated region
        $region17: #{speech_recognition_forward.28} parent=15 // pred_check
          %p168 = pneg %p53
        $region18: #{speech_recognition_forward.28} parent=15 // pred_check_branch
          %170 = sbr.rel (%p168) target = $region20
        $region19: #{speech_recognition_forward.28} parent=15 // pred_region
          %s171 = sand.u32 %s43, 1
          %s172 = sand.u32 %s43, 1
          %s173 = smul.addr %s172, 48
          %s174 = scalar_lea.vmem [#allocation3], %s173
          %s175 = ssub.s32 1, %s16
          %s176 = smul.u32 %s17, %s175
          %s177 = ssub.s32 0, %s17
          %s178 = smul.u32 %s177, %s16
          %s179 = sadd.s32 %s176, %s178
          %s180 = smul.u32 2, %s179
          %s181 = smul.u32 3, %s16
          %s182 = smul.addr %s180, 6
          %s183 = sadd.s32 %s181, %s182
          %s184 = smul.addr %s183, 8
          %s185 = scalar_lea.vmem %s0, %s184
          // Predicated region
          $region21: #{speech_recognition_forward.28} parent=19 // pred_check
            _
          $region22: #{speech_recognition_forward.28} parent=19 // pred_check_branch
            %187 = sbr.rel (0) target = $region24
          $region23: #{speech_recognition_forward.28} parent=19 // pred_region
            // Predicated region
            $region25: #{speech_recognition_forward.28} parent=23 // pred_check
              _
            $region26: #{speech_recognition_forward.28} parent=23 // pred_check_branch
              %189 = sbr.rel (0) target = $region28
            $region27: #{speech_recognition_forward.28} parent=23 // pred_region
              loop: start=0, step=1, limit=1
              $region29: #{speech_recognition_forward.28} parent=27 // loop_pre_header
                _
              $region30: #{speech_recognition_forward.28} parent=27 // loop_header
                %s191 = sphi 0, %s195
                %p192 = scmp.ge.s32.totalorder %s191, 1
                %s196 = sphi %s185, %s185
                %s197 = sphi %s174, %s174
              $region31: #{speech_recognition_forward.28} parent=27 // loop_header_branch
                %194 = sbr.rel (%p192) target = $region35
              $region32: #{speech_recognition_forward.28} parent=27 // loop_body
                %v198 = vld [vmem:[%s196] sm:$0xff]
                %199 = vst [vmem:[%s197] sm:$0xff] %v198
                %v200 = vld [vmem:[%s196 + $0x8] sm:$0xff]
                %201 = vst [vmem:[%s197 + $0x8] sm:$0xff] %v200
                %v202 = vld [vmem:[%s196 + $0x10] sm:$0xff]
                %203 = vst [vmem:[%s197 + $0x10] sm:$0xff] %v202
                %v204 = vld [vmem:[%s196 + $0x30] sm:$0xff]
                %205 = vst [vmem:[%s197 + $0x18] sm:$0xff] %v204
                %v206 = vld [vmem:[%s196 + $0x38] sm:$0xff]
                %207 = vst [vmem:[%s197 + $0x20] sm:$0xff] %v206
                %v208 = vld [vmem:[%s196 + $0x40] sm:$0xff]
                %209 = vst [vmem:[%s197 + $0x28] sm:$0xff] %v208
              $region33: #{speech_recognition_forward.28} parent=27 // loop_footer
                %s195 = sadd.s32 1, %s191
              $region34: #{speech_recognition_forward.28} parent=27 // loop_footer_branch
                %190 = sbr.rel target = $region30
              $region35: #{speech_recognition_forward.28} parent=27 // loop_exit
                _
            $region28: #{speech_recognition_forward.28} parent=23 // pred_fallthru
              _
            // Predicated region
            $region36: #{speech_recognition_forward.28} parent=23 // pred_check
              _
            $region37: #{speech_recognition_forward.28} parent=23 // pred_check_branch
              %211 = sbr.rel target = $region39
            $region38: #{speech_recognition_forward.28} parent=23 // pred_region
              _
            $region39: #{speech_recognition_forward.28} parent=23 // pred_fallthru
              _
          $region24: #{speech_recognition_forward.28} parent=19 // pred_fallthru
            _
          %212 = vnop
        $region20: #{speech_recognition_forward.28} parent=15 // pred_fallthru
          _
        // Predicated region
        $region40: #{speech_recognition_forward.28} parent=15 // pred_check
          %p213 = pneg %p79
        $region41: #{speech_recognition_forward.28} parent=15 // pred_check_branch
          %215 = sbr.rel (%p213) target = $region43
        $region42: #{speech_recognition_forward.28} parent=15 // pred_region
          %p216 = scmp.lt.s32.totalorder %s16, 1
          %s217 = scalar_select %p216, %s16, 1
          %s218 = smul.addr %s217, 48
          %s219 = smul.addr %s218, 8
          %s220 = scalar_lea.vmem %s1, %s219
        $region43: #{speech_recognition_forward.28} parent=15 // pred_fallthru
          _
        // Predicated region
        $region44: #{speech_recognition_forward.28} parent=15 // pred_check
          %p221 = pneg %p105
        $region45: #{speech_recognition_forward.28} parent=15 // pred_check_branch
          %223 = sbr.rel (%p221) target = $region47
        $region46: #{speech_recognition_forward.28} parent=15 // pred_region
          %p224 = scmp.lt.s32.totalorder %s16, 1
          %s225 = scalar_select %p224, %s16, 1
          %s226 = smul.addr %s225, 3
          %s227 = scalar_lea.vmem %s2, %s226
        $region47: #{speech_recognition_forward.28} parent=15 // pred_fallthru
          _
      $region16: #{speech_recognition_forward.28} parent=5 // pred_fallthru
        _
      %p228 = scmp.le.s32.totalorder 1, %s9
      %p229 = scmp.lt.s32.totalorder %s9, 3
      %p230 = pnand %p228, %p229
      %p231 = pneg %p230
      // Predicated region
      $region48: #{speech_recognition_forward.28} parent=5 // pred_check
        _
      $region49: #{speech_recognition_forward.28} parent=5 // pred_check_branch
        %233 = sbr.rel (%p230) target = $region51
      $region50: #{speech_recognition_forward.28} parent=5 // pred_region
        %s234 = ssub.s32 %s9, 1
        %s235 = sand.u32 %s46, 1
        %s236 = sand.u32 %s46, 1
        %s237 = smul.addr %s236, 48
        %s238 = scalar_lea.vmem [#allocation3], %s237
        // Predicated region
        $region52: #{speech_recognition_forward.28} parent=50 // pred_check
          %p239 = pneg %p59
        $region53: #{speech_recognition_forward.28} parent=50 // pred_check_branch
          %241 = sbr.rel (%p239) target = $region55
        $region54: #{speech_recognition_forward.28} parent=50 // pred_region
          _
        $region55: #{speech_recognition_forward.28} parent=50 // pred_fallthru
          _
        %s242 = sand.u32 %s46, 1
        %s243 = sand.u32 %s46, 1
        %s244 = smul.addr %s243, 48
        %s245 = scalar_lea.vmem [#allocation3], %s244
        %p246 = pneg %p59
        %p247 = pneg %p56
        %p248 = scmp.lt.s32.totalorder %s18, 1
        %s249 = scalar_select %p248, %s18, 1
        %s250 = smul.addr %s249, 48
        %s251 = smul.addr %s250, 8
        %s252 = scalar_lea.vmem %s1, %s251
        %p253 = pneg %p85
        %p254 = pneg %p82
        %p255 = scmp.lt.s32.totalorder %s18, 1
        %s256 = scalar_select %p255, %s18, 1
        %s257 = smul.addr %s256, 3
        %s258 = scalar_lea.vmem %s2, %s257
        %p259 = pneg %p111
        %p260 = pneg %p108
        %p261 = pneg %p149
        %p262 = pneg %p146
        %s263 = sand.u32 %s136, 1
        %s264 = sand.u32 %s136, 1
        %s265 = smul.addr %s264, 16
        %s266 = scalar_lea.vmem [#allocation4], %s265
        %s267 = ssub.s32 1, %s18
        %s268 = smul.u32 %s19, %s267
        %s269 = ssub.s32 0, %s19
        %s270 = smul.u32 %s269, %s18
        %s271 = sadd.s32 %s268, %s270
        %s272 = smul.u32 2, %s271
        %s273 = smul.u32 3, %s18
        %p274 = scmp.lt.s32.totalorder %s18, 1
        %s275 = scalar_select %p274, %s18, 1
        %s276 = smul.addr %s275, 48
        %s277 = smul.addr %s276, 8
        %s278 = scalar_lea.vmem %s1, %s277
        %p279 = scmp.lt.s32.totalorder %s18, 1
        %s280 = scalar_select %p279, %s18, 1
        %s281 = smul.addr %s280, 3
        %s282 = scalar_lea.vmem %s2, %s281
        %s283 = ssub.s32 1, %s18
        %s284 = smul.u32 %s19, %s283
        %s285 = ssub.s32 0, %s19
        %s286 = smul.u32 %s285, %s18
        %s287 = sadd.s32 %s284, %s286
        %s288 = smul.u32 2, %s287
        %p290 = scmp.eq.s32.totalorder %s19, 0
        // Predicated region
        $region56: #{speech_recognition_forward.28} parent=50 // pred_check
          %p291 = pneg %p290
        $region57: #{speech_recognition_forward.28} parent=50 // pred_check_branch
          %293 = sbr.rel (%p291) target = $region59
        $region58: #{speech_recognition_forward.28} parent=50 // pred_region
          %294 = vst [vmem:[#allocation2] sm:$0xff] 0.0
        $region59: #{speech_recognition_forward.28} parent=50 // pred_fallthru
          _
        %v295 = vld [vmem:[%s278] sm:$0xff]
        %v296 = vld [vmem:[%s278 + $0x8] sm:$0xff]
        %v297 = vld [vmem:[%s278 + $0x10] sm:$0xff]
        %v298 = vld [vmem:[%s278 + $0x18] sm:$0xff]
        %v299 = vld [vmem:[%s278 + $0x20] sm:$0xff]
        %v300 = vld [vmem:[%s278 + $0x28] sm:$0xff]
        %v301 = vld [vmem:[%s278 + $0x30] sm:$0xff]
        %v302 = vld [vmem:[%s278 + $0x38] sm:$0xff]
        %v303 = vld [vmem:[%s278 + $0x40] sm:$0xff]
        %v304 = vld [vmem:[%s278 + $0x48] sm:$0xff]
        %v305 = vld [vmem:[%s278 + $0x50] sm:$0xff]
        %v306 = vld [vmem:[%s278 + $0x58] sm:$0xff]
        %v307 = vld [vmem:[%s278 + $0x60] sm:$0xff]
        %v308 = vld [vmem:[%s278 + $0x68] sm:$0xff]
        %v309 = vld [vmem:[%s278 + $0x70] sm:$0xff]
        %v310 = vld [vmem:[%s278 + $0x78] sm:$0xff]
        %v311 = vld [vmem:[%s278 + $0x80] sm:$0xff]
        %v312 = vld [vmem:[%s278 + $0x88] sm:$0xff]
        %v313 = vld [vmem:[%s278 + $0x90] sm:$0xff]
        %v314 = vld [vmem:[%s278 + $0x98] sm:$0xff]
        %v315 = vld [vmem:[%s278 + $0xa0] sm:$0xff]
        %v316 = vld [vmem:[%s278 + $0xa8] sm:$0xff]
        %v317 = vld [vmem:[%s278 + $0xb0] sm:$0xff]
        %v318 = vld [vmem:[%s278 + $0xb8] sm:$0xff]
        %v319 = vld [vmem:[%s278 + $0xc0] sm:$0xff]
        %v320 = vld [vmem:[%s278 + $0xc8] sm:$0xff]
        %v321 = vld [vmem:[%s278 + $0xd0] sm:$0xff]
        %v322 = vld [vmem:[%s278 + $0xd8] sm:$0xff]
        %v323 = vld [vmem:[%s278 + $0xe0] sm:$0xff]
        %v324 = vld [vmem:[%s278 + $0xe8] sm:$0xff]
        %v325 = vld [vmem:[%s278 + $0xf0] sm:$0xff]
        %v326 = vld [vmem:[%s278 + $0xf8] sm:$0xff]
        %v327 = vld [vmem:[%s278 + $0x100] sm:$0xff]
        %v328 = vld [vmem:[%s278 + $0x108] sm:$0xff]
        %v329 = vld [vmem:[%s278 + $0x110] sm:$0xff]
        %v330 = vld [vmem:[%s278 + $0x118] sm:$0xff]
        %v331 = vld [vmem:[%s278 + $0x120] sm:$0xff]
        %v332 = vld [vmem:[%s278 + $0x128] sm:$0xff]
        %v333 = vld [vmem:[%s278 + $0x130] sm:$0xff]
        %v334 = vld [vmem:[%s278 + $0x138] sm:$0xff]
        %v335 = vld [vmem:[%s278 + $0x140] sm:$0xff]
        %v336 = vld [vmem:[%s278 + $0x148] sm:$0xff]
        %v337 = vld [vmem:[%s278 + $0x150] sm:$0xff]
        %v338 = vld [vmem:[%s278 + $0x158] sm:$0xff]
        %v339 = vld [vmem:[%s278 + $0x160] sm:$0xff]
        %v340 = vld [vmem:[%s278 + $0x168] sm:$0xff]
        %v341 = vld [vmem:[%s278 + $0x170] sm:$0xff]
        %v342 = vld [vmem:[%s278 + $0x178] sm:$0xff]
        %v343 = vpack.c.bf16 %v298, %v295
        %v344 = vpack.c.bf16 %v299, %v296
        %v345 = vpack.c.bf16 %v300, %v297
        %v346 = vpack.c.bf16 %v304, %v301
        %v347 = vpack.c.bf16 %v305, %v302
        %v348 = vpack.c.bf16 %v306, %v303
        %v349 = vpack.c.bf16 %v310, %v307
        %v350 = vpack.c.bf16 %v311, %v308
        %v351 = vpack.c.bf16 %v312, %v309
        %v352 = vpack.c.bf16 %v316, %v313
        %v353 = vpack.c.bf16 %v317, %v314
        %v354 = vpack.c.bf16 %v318, %v315
        %v355 = vpack.c.bf16 %v322, %v319
        %v356 = vpack.c.bf16 %v323, %v320
        %v357 = vpack.c.bf16 %v324, %v321
        %v358 = vpack.c.bf16 %v328, %v325
        %v359 = vpack.c.bf16 %v329, %v326
        %v360 = vpack.c.bf16 %v330, %v327
        %v361 = vpack.c.bf16 %v334, %v331
        %v362 = vpack.c.bf16 %v335, %v332
        %v363 = vpack.c.bf16 %v336, %v333
        %v364 = vpack.c.bf16 %v340, %v337
        %v365 = vpack.c.bf16 %v341, %v338
        %v366 = vpack.c.bf16 %v342, %v339
        %v367 = vld [vmem:[%s282] sm:$0x7]
        %v368 = vld [vmem:[#allocation2] sm:$0xff]
        %s369 = smul.u32 %s18, 3
        %s370 = smul.addr %s369, 8
        %s371 = scalar_lea.vmem %s238, %s370 [#allocation3]
        %v372 = vld [vmem:[%s371] sm:$0xff]
        %v373 = vld [vmem:[%s371 + $0x8] sm:$0xff]
        %v374 = vld [vmem:[%s371 + $0x10] sm:$0xff]
        %v375 = vpack.c.bf16 %v368, %v368
        %v377 = vlaneseq
        %v378 = vshrl.u32 %v377, 7
        %v379 = vsub.s32 0, %v378
        %v380 = vrot.slane %v367, %v379
        %v381 = vlaneseq
        %v382 = vshrl.u32 %v381, 7
        %v383 = vsub.s32 1, %v382
        %v384 = vrot.slane %v367, %v383
        %v385 = vlaneseq
        %v386 = vshrl.u32 %v385, 7
        %v387 = vsub.s32 2, %v386
        %v388 = vrot.slane %v367, %v387
        %392 = vmatprep.subr.bf16.mxu0 %v344
        %393 = vmatpush1.bf16.msra.mxu0 %v343
        %394 = vmatprep.subr.bf16.mxu0 %v347
        %395 = vmatpush1.bf16.msra.mxu0 %v346
        %396 = vmatprep.subr.bf16.mxu0 %v350
        %397 = vmatpush1.bf16.msra.mxu0 %v349
        %398 = vmatprep.subr.bf16.mxu0 %v353
        %399 = vmatpush1.bf16.msra.mxu0 %v352
        %400 = vmatprep.subr.bf16.mxu0 %v356
        %401 = vmatpush1.bf16.msra.mxu0 %v355
        %402 = vmatprep.subr.bf16.mxu0 %v359
        %403 = vmatpush1.bf16.msra.mxu0 %v358
        %404 = vmatprep.subr.bf16.mxu0 %v362
        %405 = vmatpush1.bf16.msra.mxu0 %v361
        %406 = vmatprep.subr.bf16.mxu0 %v365
        %407 = vmatpush1.bf16.msra.mxu0 %v364
        %408 = vmatprep.subr.bf16.mxu0 0
        %409 = vmatpush1.bf16.msra.mxu0 0
        %410 = vmatprep.subr.bf16.mxu0 0
        %411 = vmatpush1.bf16.msra.mxu0 0
        %412 = vmatprep.subr.bf16.mxu0 0
        %413 = vmatpush1.bf16.msra.mxu0 0
        %414 = vmatprep.subr.bf16.mxu0 0
        %415 = vmatpush1.bf16.msra.mxu0 0
        %416 = vmatprep.subr.bf16.mxu0 0
        %417 = vmatpush1.bf16.msra.mxu0 0
        %418 = vmatprep.subr.bf16.mxu0 0
        %419 = vmatpush1.bf16.msra.mxu0 0
        %420 = vmatprep.subr.bf16.mxu0 0
        %421 = vmatpush1.bf16.msra.mxu0 0
        %422 = vmatprep.subr.bf16.mxu0 0
        %423 = vmatpush1.bf16.msra.mxu0 0
        %424 = vmatprep.mubr.bf16.mxu0 0
        %425 = vmatmul.mubr.bf16.gmra.mrb[0].mxu0 %v375
        %v426 = vpop.f32.mrb[0].mxu0
        %v427 = vadd.f32 %v380, %v426
        %v428 = vpop.f32.mrb[0].mxu0
        %v429 = vadd.f32 %v384, %v428
        %v430 = vpop.f32.mrb[0].mxu0
        %v431 = vpop.f32.mrb[0].mxu0
        %432 = vdwg.mxu0
        %433 = vmatprep.subr.bf16.mxu0 0
        %434 = vmatpush1.bf16.msra.mxu0 %v345
        %435 = vmatprep.subr.bf16.mxu0 0
        %436 = vmatpush1.bf16.msra.mxu0 %v348
        %437 = vmatprep.subr.bf16.mxu0 0
        %438 = vmatpush1.bf16.msra.mxu0 %v351
        %439 = vmatprep.subr.bf16.mxu0 0
        %440 = vmatpush1.bf16.msra.mxu0 %v354
        %441 = vmatprep.subr.bf16.mxu0 0
        %442 = vmatpush1.bf16.msra.mxu0 %v357
        %443 = vmatprep.subr.bf16.mxu0 0
        %444 = vmatpush1.bf16.msra.mxu0 %v360
        %445 = vmatprep.subr.bf16.mxu0 0
        %446 = vmatpush1.bf16.msra.mxu0 %v363
        %447 = vmatprep.subr.bf16.mxu0 0
        %448 = vmatpush1.bf16.msra.mxu0 %v366
        %449 = vmatprep.subr.bf16.mxu0 0
        %450 = vmatpush1.bf16.msra.mxu0 0
        %451 = vmatprep.subr.bf16.mxu0 0
        %452 = vmatpush1.bf16.msra.mxu0 0
        %453 = vmatprep.subr.bf16.mxu0 0
        %454 = vmatpush1.bf16.msra.mxu0 0
        %455 = vmatprep.subr.bf16.mxu0 0
        %456 = vmatpush1.bf16.msra.mxu0 0
        %457 = vmatprep.subr.bf16.mxu0 0
        %458 = vmatpush1.bf16.msra.mxu0 0
        %459 = vmatprep.subr.bf16.mxu0 0
        %460 = vmatpush1.bf16.msra.mxu0 0
        %461 = vmatprep.subr.bf16.mxu0 0
        %462 = vmatpush1.bf16.msra.mxu0 0
        %463 = vmatprep.subr.bf16.mxu0 0
        %464 = vmatpush1.bf16.msra.mxu0 0
        %465 = vmatprep.mubr.bf16.mxu0 0
        %466 = vmatmul.mubr.bf16.gmra.mrb[0].mxu0 %v375
        %v467 = vpop.f32.mrb[0].mxu0
        %v468 = vadd.f32 %v388, %v467
        %v469 = vpop.f32.mrb[0].mxu0
        %v470 = vpop.f32.mrb[0].mxu0
        %v471 = vpop.f32.mrb[0].mxu0
        %472 = vdwg.mxu0
        %v473 = vadd.f32 %v372, %v427
        %v474 = vxor.u32 %v473, 2147483648
        %v475 = vmul.f32 %v474, 1.442695
        %v476 = vpow.pop %v475
        %v477 = vadd.f32 %v476, 1.0
        %v478 = vrcp.pop %v477
        %v479 = vmul.f32 1.0, %v478
        %v480 = vadd.f32 %v373, %v429
        %v481 = vxor.u32 %v480, 2147483648
        %v482 = vmul.f32 %v481, 1.442695
        %v483 = vpow.pop %v482
        %v484 = vadd.f32 %v483, 1.0
        %v485 = vrcp.pop %v484
        %v486 = vmul.f32 1.0, %v485
        %v487 = vmul.f32 %v479, %v468
        %v488 = vadd.f32 %v374, %v487
        %v489 = vtanh.pop %v488
        %v490 = vsub.f32 1.0, %v486
        %v491 = vmul.f32 %v490, %v489
        %v492 = vmul.f32 %v486, %v368
        %v493 = vadd.f32 %v491, %v492
        %s494 = smul.u32 %s18, 8
        %s495 = scalar_lea.vmem %s266, %s494 [#allocation4]
        %496 = vst [vmem:[%s495] sm:$0xff] %v493
        %s497 = ssub.s32 1, %s18
        %s498 = smul.u32 %s497, 3
        %s499 = smul.addr %s498, 8
        %s500 = scalar_lea.vmem %s238, %s499 [#allocation3]
        %v501 = vld [vmem:[%s500] sm:$0xff]
        %v502 = vld [vmem:[%s500 + $0x8] sm:$0xff]
        %v503 = vld [vmem:[%s500 + $0x10] sm:$0xff]
        %v504 = vpack.c.bf16 %v493, %v493
        %505 = vmatprep.subr.bf16.mxu0 %v344
        %506 = vmatpush1.bf16.msra.mxu0 %v343
        %507 = vmatprep.subr.bf16.mxu0 %v347
        %508 = vmatpush1.bf16.msra.mxu0 %v346
        %509 = vmatprep.subr.bf16.mxu0 %v350
        %510 = vmatpush1.bf16.msra.mxu0 %v349
        %511 = vmatprep.subr.bf16.mxu0 %v353
        %512 = vmatpush1.bf16.msra.mxu0 %v352
        %513 = vmatprep.subr.bf16.mxu0 %v356
        %514 = vmatpush1.bf16.msra.mxu0 %v355
        %515 = vmatprep.subr.bf16.mxu0 %v359
        %516 = vmatpush1.bf16.msra.mxu0 %v358
        %517 = vmatprep.subr.bf16.mxu0 %v362
        %518 = vmatpush1.bf16.msra.mxu0 %v361
        %519 = vmatprep.subr.bf16.mxu0 %v365
        %520 = vmatpush1.bf16.msra.mxu0 %v364
        %521 = vmatprep.subr.bf16.mxu0 0
        %522 = vmatpush1.bf16.msra.mxu0 0
        %523 = vmatprep.subr.bf16.mxu0 0
        %524 = vmatpush1.bf16.msra.mxu0 0
        %525 = vmatprep.subr.bf16.mxu0 0
        %526 = vmatpush1.bf16.msra.mxu0 0
        %527 = vmatprep.subr.bf16.mxu0 0
        %528 = vmatpush1.bf16.msra.mxu0 0
        %529 = vmatprep.subr.bf16.mxu0 0
        %530 = vmatpush1.bf16.msra.mxu0 0
        %531 = vmatprep.subr.bf16.mxu0 0
        %532 = vmatpush1.bf16.msra.mxu0 0
        %533 = vmatprep.subr.bf16.mxu0 0
        %534 = vmatpush1.bf16.msra.mxu0 0
        %535 = vmatprep.subr.bf16.mxu0 0
        %536 = vmatpush1.bf16.msra.mxu0 0
        %537 = vmatprep.mubr.bf16.mxu0 0
        %538 = vmatmul.mubr.bf16.gmra.mrb[0].mxu0 %v504
        %v539 = vpop.f32.mrb[0].mxu0
        %v540 = vadd.f32 %v380, %v539
        %v541 = vpop.f32.mrb[0].mxu0
        %v542 = vadd.f32 %v384, %v541
        %v543 = vpop.f32.mrb[0].mxu0
        %v544 = vpop.f32.mrb[0].mxu0
        %545 = vdwg.mxu0
        %546 = vmatprep.subr.bf16.mxu0 0
        %547 = vmatpush1.bf16.msra.mxu0 %v345
        %548 = vmatprep.subr.bf16.mxu0 0
        %549 = vmatpush1.bf16.msra.mxu0 %v348
        %550 = vmatprep.subr.bf16.mxu0 0
        %551 = vmatpush1.bf16.msra.mxu0 %v351
        %552 = vmatprep.subr.bf16.mxu0 0
        %553 = vmatpush1.bf16.msra.mxu0 %v354
        %554 = vmatprep.subr.bf16.mxu0 0
        %555 = vmatpush1.bf16.msra.mxu0 %v357
        %556 = vmatprep.subr.bf16.mxu0 0
        %557 = vmatpush1.bf16.msra.mxu0 %v360
        %558 = vmatprep.subr.bf16.mxu0 0
        %559 = vmatpush1.bf16.msra.mxu0 %v363
        %560 = vmatprep.subr.bf16.mxu0 0
        %561 = vmatpush1.bf16.msra.mxu0 %v366
        %562 = vmatprep.subr.bf16.mxu0 0
        %563 = vmatpush1.bf16.msra.mxu0 0
        %564 = vmatprep.subr.bf16.mxu0 0
        %565 = vmatpush1.bf16.msra.mxu0 0
        %566 = vmatprep.subr.bf16.mxu0 0
        %567 = vmatpush1.bf16.msra.mxu0 0
        %568 = vmatprep.subr.bf16.mxu0 0
        %569 = vmatpush1.bf16.msra.mxu0 0
        %570 = vmatprep.subr.bf16.mxu0 0
        %571 = vmatpush1.bf16.msra.mxu0 0
        %572 = vmatprep.subr.bf16.mxu0 0
        %573 = vmatpush1.bf16.msra.mxu0 0
        %574 = vmatprep.subr.bf16.mxu0 0
        %575 = vmatpush1.bf16.msra.mxu0 0
        %576 = vmatprep.subr.bf16.mxu0 0
        %577 = vmatpush1.bf16.msra.mxu0 0
        %578 = vmatprep.mubr.bf16.mxu0 0
        %579 = vmatmul.mubr.bf16.gmra.mrb[0].mxu0 %v504
        %v580 = vpop.f32.mrb[0].mxu0
        %v581 = vadd.f32 %v388, %v580
        %v582 = vpop.f32.mrb[0].mxu0
        %v583 = vpop.f32.mrb[0].mxu0
        %v584 = vpop.f32.mrb[0].mxu0
        %585 = vdwg.mxu0
        %v586 = vadd.f32 %v501, %v540
        %v587 = vxor.u32 %v586, 2147483648
        %v588 = vmul.f32 %v587, 1.442695
        %v589 = vpow.pop %v588
        %v590 = vadd.f32 %v589, 1.0
        %v591 = vrcp.pop %v590
        %v592 = vmul.f32 1.0, %v591
        %v593 = vadd.f32 %v502, %v542
        %v594 = vxor.u32 %v593, 2147483648
        %v595 = vmul.f32 %v594, 1.442695
        %v596 = vpow.pop %v595
        %v597 = vadd.f32 %v596, 1.0
        %v598 = vrcp.pop %v597
        %v599 = vmul.f32 1.0, %v598
        %v600 = vmul.f32 %v592, %v581
        %v601 = vadd.f32 %v503, %v600
        %v602 = vtanh.pop %v601
        %v603 = vsub.f32 1.0, %v599
        %v604 = vmul.f32 %v603, %v602
        %v605 = vmul.f32 %v599, %v493
        %v606 = vadd.f32 %v604, %v605
        %s607 = smul.u32 %s497, 8
        %s608 = scalar_lea.vmem %s266, %s607 [#allocation4]
        %609 = vst [vmem:[%s608] sm:$0xff] %v606
        %610 = vst [vmem:[#allocation2] sm:$0xff] %v606
        %s611 = sand.u32 %s136, 1
        %s612 = sand.u32 %s136, 1
        %s613 = smul.addr %s612, 16
        %s614 = scalar_lea.vmem [#allocation4], %s613
        // Predicated region
        $region60: #{speech_recognition_forward.28} parent=50 // pred_check
          %p615 = pneg %p146
        $region61: #{speech_recognition_forward.28} parent=50 // pred_check_branch
          %617 = sbr.rel (%p615) target = $region63
        $region62: #{speech_recognition_forward.28} parent=50 // pred_region
          %s618 = ssub.s32 1, %s18
          %s619 = smul.u32 %s19, %s618
          %s620 = ssub.s32 0, %s19
          %s621 = smul.u32 %s620, %s18
          %s622 = sadd.s32 %s619, %s621
          %s623 = smul.u32 2, %s622
          %s624 = smul.addr %s623, 2
          %s625 = sadd.s32 %s18, %s624
          %s626 = smul.addr %s625, 8
          %s627 = scalar_lea.vmem %s3, %s626
          // Predicated region
          $region64: #{speech_recognition_forward.28} parent=62 // pred_check
            _
          $region65: #{speech_recognition_forward.28} parent=62 // pred_check_branch
            %629 = sbr.rel (0) target = $region67
          $region66: #{speech_recognition_forward.28} parent=62 // pred_region
            // Predicated region
            $region68: #{speech_recognition_forward.28} parent=66 // pred_check
              _
            $region69: #{speech_recognition_forward.28} parent=66 // pred_check_branch
              %631 = sbr.rel (0) target = $region71
            $region70: #{speech_recognition_forward.28} parent=66 // pred_region
              // Predicated region
              $region83: #{speech_recognition_forward.28} parent=70 // pred_check
                _
              $region84: #{speech_recognition_forward.28} parent=70 // pred_check_branch
                %648 = sbr.rel (0) target = $region86
              $region85: #{speech_recognition_forward.28} parent=70 // pred_region
                loop: start=0, step=1, limit=1
                $region87: #{speech_recognition_forward.28} parent=85 // loop_pre_header
                  _
                $region88: #{speech_recognition_forward.28} parent=85 // loop_header
                  %s650 = sphi 0, %s654
                  %p651 = scmp.ge.s32.totalorder %s650, 1
                  %s655 = sphi %s614, %s614
                  %s656 = sphi %s627, %s627
                $region89: #{speech_recognition_forward.28} parent=85 // loop_header_branch
                  %653 = sbr.rel (%p651) target = $region93
                $region90: #{speech_recognition_forward.28} parent=85 // loop_body
                  %v657 = vld [vmem:[%s655] sm:$0xff]
                  %658 = vst [vmem:[%s656] sm:$0xff] %v657
                  %v659 = vld [vmem:[%s655 + $0x8] sm:$0xff]
                  %660 = vst [vmem:[%s656 + $0x10] sm:$0xff] %v659
                $region91: #{speech_recognition_forward.28} parent=85 // loop_footer
                  %s654 = sadd.s32 1, %s650
                $region92: #{speech_recognition_forward.28} parent=85 // loop_footer_branch
                  %649 = sbr.rel target = $region88
                $region93: #{speech_recognition_forward.28} parent=85 // loop_exit
                  _
              $region86: #{speech_recognition_forward.28} parent=70 // pred_fallthru
                _
              // Predicated region
              $region94: #{speech_recognition_forward.28} parent=70 // pred_check
                _
              $region95: #{speech_recognition_forward.28} parent=70 // pred_check_branch
                %662 = sbr.rel target = $region97
              $region96: #{speech_recognition_forward.28} parent=70 // pred_region
                _
              $region97: #{speech_recognition_forward.28} parent=70 // pred_fallthru
                _
            $region71: #{speech_recognition_forward.28} parent=66 // pred_fallthru
              _
            // Predicated region
            $region72: #{speech_recognition_forward.28} parent=66 // pred_check
              _
            $region73: #{speech_recognition_forward.28} parent=66 // pred_check_branch
              %633 = sbr.rel target = $region75
            $region74: #{speech_recognition_forward.28} parent=66 // pred_region
              loop: start=0, step=1, limit=1
              $region76: #{speech_recognition_forward.28} parent=74 // loop_pre_header
                _
              $region77: #{speech_recognition_forward.28} parent=74 // loop_header
                %s636 = sphi 0, %s640
                %p637 = scmp.ge.s32.totalorder %s636, 1
                %s641 = sphi %s614, %s614
                %s642 = sphi %s627, %s627
              $region78: #{speech_recognition_forward.28} parent=74 // loop_header_branch
                %639 = sbr.rel (%p637) target = $region82
              $region79: #{speech_recognition_forward.28} parent=74 // loop_body
                %v643 = vld [vmem:[%s641] sm:$0xff]
                %644 = vst [vmem:[%s642] sm:$0xff] %v643
                %v645 = vld [vmem:[%s641 + $0x8] sm:$0xff]
                %646 = vst [vmem:[%s642 + $0x10] sm:$0xff] %v645
              $region80: #{speech_recognition_forward.28} parent=74 // loop_footer
                %s640 = sadd.s32 1, %s636
              $region81: #{speech_recognition_forward.28} parent=74 // loop_footer_branch
                %635 = sbr.rel target = $region77
              $region82: #{speech_recognition_forward.28} parent=74 // loop_exit
                _
            $region75: #{speech_recognition_forward.28} parent=66 // pred_fallthru
              _
          $region67: #{speech_recognition_forward.28} parent=62 // pred_fallthru
            _
          %663 = vnop
        $region63: #{speech_recognition_forward.28} parent=50 // pred_fallthru
          _
      $region51: #{speech_recognition_forward.28} parent=5 // pred_fallthru
        _
      %p664 = scmp.le.s32.totalorder 2, %s9
      // Predicated region
      $region98: #{speech_recognition_forward.28} parent=5 // pred_check
        %p665 = pneg %p664
      $region99: #{speech_recognition_forward.28} parent=5 // pred_check_branch
        %667 = sbr.rel (%p665) target = $region101
      $region100: #{speech_recognition_forward.28} parent=5 // pred_region
        %s668 = ssub.s32 %s9, 2
        // Predicated region
        $region102: #{speech_recognition_forward.28} parent=100 // pred_check
          %p669 = pneg %p152
        $region103: #{speech_recognition_forward.28} parent=100 // pred_check_branch
          %671 = sbr.rel (%p669) target = $region105
        $region104: #{speech_recognition_forward.28} parent=100 // pred_region
          %s672 = sand.u32 %s137, 1
          %s673 = sand.u32 %s137, 1
          %s674 = smul.addr %s673, 16
          %s675 = scalar_lea.vmem [#allocation4], %s674
        $region105: #{speech_recognition_forward.28} parent=100 // pred_fallthru
          _
      $region101: #{speech_recognition_forward.28} parent=5 // pred_fallthru
        _
    $region6: #{speech_recognition_forward.28} parent=1 // loop_footer
      %s13 = sadd.s32 1, %s9
    $region7: #{speech_recognition_forward.28} parent=1 // loop_footer_branch
      %8 = sbr.rel target = $region3
    $region8: #{speech_recognition_forward.28} parent=1 // loop_exit
      _

// kernel: speech_recognition_forward.26
$region0: #{speech_recognition_forward.26}
  #allocation0 [shape = 'u32[]', space=smem, size = 0x4, offset = 0x4, fixed_abs, tag = 'smem constant byte address 0x4 - core index']
  #allocation1 [shape = 'u32[144,128]{1,0:T(1,128)}', space=vmem, size = 0x12000, scoped, tag = 'internal scratch']
  #allocation2 [shape = 'f32[2,128]{1,0:T(2,128)}', space=vmem, size = 0x400, scoped, tag = 'scratch operand']
  %s0 = inlined_call_operand.vmem [shape: f32[8,2,768], index: 0, kind: input, shape index: {}]
  %s1 = inlined_call_operand.vmem [shape: f32[2,128,384], index: 1, kind: input, shape index: {}]
  %s2 = inlined_call_operand.vmem [shape: f32[2,1,384], index: 2, kind: input, shape index: {}]
  %s3 = inlined_call_operand.vmem [shape: f32[8,2,256], index: 3, kind: output, shape index: {}]
  %s4 = sld [smem:[#allocation0]]
  $region127: #{speech_recognition_forward.26} parent=0
    _
  %s6 = ssub.s32 1, %s4
  %s7 = scalar_select 0, %s6, %s4
  $region1: #{speech_recognition_forward.26} parent=0
    #allocation3 [shape = 'u8[49152]{0}', space=vmem, size = 0xc000, scoped, tag = 'input window, operand 0']
    #allocation4 [shape = 'u8[16384]{0}', space=vmem, size = 0x4000, scoped, tag = 'output window, operand 0']
    loop: start=0, step=1, limit=4
    $region2: #{speech_recognition_forward.26} parent=1 // loop_pre_header
      _
    $region3: #{speech_recognition_forward.26} parent=1 // loop_header
      %s9 = sphi 0, %s13
      %p10 = scmp.ge.s32.totalorder %s9, 4
      %s16 = sphi 0, %s28
      %s17 = sphi 0, %s24
      %s18 = sphi 0, %s16
      %s19 = sphi 0, %s17
      %s20 = sphi 0, %s18
      %s21 = sphi 0, %s19
      %s43 = sphi 0, %s45
      %s46 = sphi 0, %s43
      %s47 = sphi 0, %s46
      %s63 = sphi 0, %s47
      %s69 = sphi 0, %s71
      %s72 = sphi 0, %s69
      %s73 = sphi 0, %s72
      %s89 = sphi 0, %s73
      %s95 = sphi 0, %s97
      %s98 = sphi 0, %s95
      %s99 = sphi 0, %s98
      %s115 = sphi 0, %s99
      %s133 = sphi 0, %s135
      %s136 = sphi 0, %s133
      %s137 = sphi 0, %s136
      %s153 = sphi 0, %s137
    $region4: #{speech_recognition_forward.26} parent=1 // loop_header_branch
      %12 = sbr.rel (%p10) target = $region8
    $region5: #{speech_recognition_forward.26} parent=1 // loop_body
      %s14 = ssub.s32 %s9, 1
      %s15 = ssub.s32 %s9, 2
      %s22 = sadd.s32 1, %s17
      %p23 = scmp.ge.s32.totalorder %s22, 1
      %s24 = scalar_select %p23, 0, %s22
      %s25 = sadd.s32 1, %s16
      %s26 = scalar_select %p23, %s25, %s16
      %p27 = scmp.ge.s32.totalorder %s26, 2
      %s28 = scalar_select %p27, 0, %s26
      %s29 = ssub.s32 1, %s16
      %s30 = smul.u32 %s17, %s29
      %s31 = ssub.s32 0, %s17
      %s32 = smul.u32 %s31, %s16
      %s33 = sadd.s32 %s30, %s32
      %s34 = ssub.s32 1, %s28
      %s35 = smul.u32 %s24, %s34
      %s36 = ssub.s32 0, %s24
      %s37 = smul.u32 %s36, %s28
      %s38 = sadd.s32 %s35, %s37
      %s39 = ssub.s32 %s33, %s38
      %s40 = ssub.s32 %s16, %s28
      %s41 = sor.u32 %s39, %s40
      %p42 = scmp.eq.s32.totalorder %s41, 0
      %s44 = sadd.s32 %s43, 1
      %s45 = scalar_select %p42, %s43, %s44
      %p48 = pneg %p42
      %p49 = scmp.eq.s32.totalorder %s9, 1
      %p50 = por %p48, %p49
      %p51 = scmp.ne.s32.totalorder %s43, %s46
      %p52 = scmp.eq.s32.totalorder %s9, 0
      %p53 = por %p51, %p52
      %p54 = scmp.ne.s32.totalorder %s43, %s46
      %p55 = scmp.eq.s32.totalorder %s14, 1
      %p56 = por %p54, %p55
      %p57 = scmp.ne.s32.totalorder %s46, %s47
      %p58 = scmp.eq.s32.totalorder %s14, 0
      %p59 = por %p57, %p58
      %p60 = scmp.ne.s32.totalorder %s46, %s47
      %p61 = scmp.eq.s32.totalorder %s15, 1
      %p62 = por %p60, %p61
      %p64 = scmp.ne.s32.totalorder %s47, %s63
      %p65 = scmp.eq.s32.totalorder %s15, 0
      %p66 = por %p64, %p65
      %s67 = ssub.s32 %s16, %s28
      %p68 = scmp.eq.s32.totalorder %s67, 0
      %s70 = sadd.s32 %s69, 1
      %s71 = scalar_select %p68, %s69, %s70
      %p74 = pneg %p68
      %p75 = scmp.eq.s32.totalorder %s9, 1
      %p76 = por %p74, %p75
      %p77 = scmp.ne.s32.totalorder %s69, %s72
      %p78 = scmp.eq.s32.totalorder %s9, 0
      %p79 = por %p77, %p78
      %p80 = scmp.ne.s32.totalorder %s69, %s72
      %p81 = scmp.eq.s32.totalorder %s14, 1
      %p82 = por %p80, %p81
      %p83 = scmp.ne.s32.totalorder %s72, %s73
      %p84 = scmp.eq.s32.totalorder %s14, 0
      %p85 = por %p83, %p84
      %p86 = scmp.ne.s32.totalorder %s72, %s73
      %p87 = scmp.eq.s32.totalorder %s15, 1
      %p88 = por %p86, %p87
      %p90 = scmp.ne.s32.totalorder %s73, %s89
      %p91 = scmp.eq.s32.totalorder %s15, 0
      %p92 = por %p90, %p91
      %s93 = ssub.s32 %s16, %s28
      %p94 = scmp.eq.s32.totalorder %s93, 0
      %s96 = sadd.s32 %s95, 1
      %s97 = scalar_select %p94, %s95, %s96
      %p100 = pneg %p94
      %p101 = scmp.eq.s32.totalorder %s9, 1
      %p102 = por %p100, %p101
      %p103 = scmp.ne.s32.totalorder %s95, %s98
      %p104 = scmp.eq.s32.totalorder %s9, 0
      %p105 = por %p103, %p104
      %p106 = scmp.ne.s32.totalorder %s95, %s98
      %p107 = scmp.eq.s32.totalorder %s14, 1
      %p108 = por %p106, %p107
      %p109 = scmp.ne.s32.totalorder %s98, %s99
      %p110 = scmp.eq.s32.totalorder %s14, 0
      %p111 = por %p109, %p110
      %p112 = scmp.ne.s32.totalorder %s98, %s99
      %p113 = scmp.eq.s32.totalorder %s15, 1
      %p114 = por %p112, %p113
      %p116 = scmp.ne.s32.totalorder %s99, %s115
      %p117 = scmp.eq.s32.totalorder %s15, 0
      %p118 = por %p116, %p117
      %s119 = ssub.s32 1, %s16
      %s120 = smul.u32 %s17, %s119
      %s121 = ssub.s32 0, %s17
      %s122 = smul.u32 %s121, %s16
      %s123 = sadd.s32 %s120, %s122
      %s124 = ssub.s32 1, %s28
      %s125 = smul.u32 %s24, %s124
      %s126 = ssub.s32 0, %s24
      %s127 = smul.u32 %s126, %s28
      %s128 = sadd.s32 %s125, %s127
      %s129 = ssub.s32 %s123, %s128
      %s130 = ssub.s32 %s16, %s28
      %s131 = sor.u32 %s129, %s130
      %p132 = scmp.eq.s32.totalorder %s131, 0
      %s134 = sadd.s32 %s133, 1
      %s135 = scalar_select %p132, %s133, %s134
      %p138 = pneg %p132
      %p139 = scmp.eq.s32.totalorder %s9, 1
      %p140 = por %p138, %p139
      %p141 = scmp.ne.s32.totalorder %s133, %s136
      %p142 = scmp.eq.s32.totalorder %s9, 0
      %p143 = por %p141, %p142
      %p144 = scmp.ne.s32.totalorder %s133, %s136
      %p145 = scmp.eq.s32.totalorder %s14, 1
      %p146 = por %p144, %p145
      %p147 = scmp.ne.s32.totalorder %s136, %s137
      %p148 = scmp.eq.s32.totalorder %s14, 0
      %p149 = por %p147, %p148
      %p150 = scmp.ne.s32.totalorder %s136, %s137
      %p151 = scmp.eq.s32.totalorder %s15, 1
      %p152 = por %p150, %p151
      %p154 = scmp.ne.s32.totalorder %s137, %s153
      %p155 = scmp.eq.s32.totalorder %s15, 0
      %p156 = por %p154, %p155
      %p157 = scmp.le.s32.totalorder 1, %s9
      %p158 = scmp.lt.s32.totalorder %s9, 3
      %p159 = pnand %p157, %p158
      %p160 = pneg %p159
      // Predicated region
      $region9: #{speech_recognition_forward.26} parent=5 // pred_check
        _
      $region10: #{speech_recognition_forward.26} parent=5 // pred_check_branch
        %162 = sbr.rel (%p159) target = $region12
      $region11: #{speech_recognition_forward.26} parent=5 // pred_region
        %s163 = ssub.s32 %s9, 1
      $region12: #{speech_recognition_forward.26} parent=5 // pred_fallthru
        _
      %p164 = scmp.lt.s32.totalorder %s9, 2
      // Predicated region
      $region13: #{speech_recognition_forward.26} parent=5 // pred_check
        %p165 = pneg %p164
      $region14: #{speech_recognition_forward.26} parent=5 // pred_check_branch
        %167 = sbr.rel (%p165) target = $region16
      $region15: #{speech_recognition_forward.26} parent=5 // pred_region
        // Predicated region
        $region17: #{speech_recognition_forward.26} parent=15 // pred_check
          %p168 = pneg %p53
        $region18: #{speech_recognition_forward.26} parent=15 // pred_check_branch
          %170 = sbr.rel (%p168) target = $region20
        $region19: #{speech_recognition_forward.26} parent=15 // pred_region
          %s171 = sand.u32 %s43, 1
          %s172 = sand.u32 %s43, 1
          %s173 = smul.addr %s172, 48
          %s174 = scalar_lea.vmem [#allocation3], %s173
          %s175 = ssub.s32 1, %s16
          %s176 = smul.u32 %s17, %s175
          %s177 = ssub.s32 0, %s17
          %s178 = smul.u32 %s177, %s16
          %s179 = sadd.s32 %s176, %s178
          %s180 = smul.u32 8, %s179
          %s181 = smul.u32 3, %s16
          %s182 = smul.addr %s180, 6
          %s183 = sadd.s32 %s181, %s182
          %s184 = smul.addr %s183, 2
          %s185 = scalar_lea.vmem %s0, %s184
          // Predicated region
          $region21: #{speech_recognition_forward.26} parent=19 // pred_check
            _
          $region22: #{speech_recognition_forward.26} parent=19 // pred_check_branch
            %187 = sbr.rel (0) target = $region24
          $region23: #{speech_recognition_forward.26} parent=19 // pred_region
            // Predicated region
            $region25: #{speech_recognition_forward.26} parent=23 // pred_check
              _
            $region26: #{speech_recognition_forward.26} parent=23 // pred_check_branch
              %189 = sbr.rel target = $region28
            $region27: #{speech_recognition_forward.26} parent=23 // pred_region
              // Predicated region
              $region40: #{speech_recognition_forward.26} parent=27 // pred_check
                _
              $region41: #{speech_recognition_forward.26} parent=27 // pred_check_branch
                %218 = sbr.rel (0) target = $region43
              $region42: #{speech_recognition_forward.26} parent=27 // pred_region
                loop: start=0, step=1, limit=1
                $region44: #{speech_recognition_forward.26} parent=42 // loop_pre_header
                  _
                $region45: #{speech_recognition_forward.26} parent=42 // loop_header
                  %s220 = sphi 0, %s224
                  %p221 = scmp.ge.s32.totalorder %s220, 1
                  %s225 = sphi %s185, %s185
                  %s226 = sphi %s174, %s174
                $region46: #{speech_recognition_forward.26} parent=42 // loop_header_branch
                  %223 = sbr.rel (%p221) target = $region50
                $region47: #{speech_recognition_forward.26} parent=42 // loop_body
                  _
                $region48: #{speech_recognition_forward.26} parent=42 // loop_footer
                  %s224 = sadd.s32 1, %s220
                $region49: #{speech_recognition_forward.26} parent=42 // loop_footer_branch
                  %219 = sbr.rel target = $region45
                $region50: #{speech_recognition_forward.26} parent=42 // loop_exit
                  _
                loop: start=0, step=1, limit=1
                $region51: #{speech_recognition_forward.26} parent=42 // loop_pre_header
                  _
                $region52: #{speech_recognition_forward.26} parent=42 // loop_header
                  %s229 = sphi 0, %s233
                  %p230 = scmp.ge.s32.totalorder %s229, 1
                  %s234 = sphi %s185, %s185
                  %s235 = sphi %s174, %s174
                $region53: #{speech_recognition_forward.26} parent=42 // loop_header_branch
                  %232 = sbr.rel (%p230) target = $region57
                $region54: #{speech_recognition_forward.26} parent=42 // loop_body
                  %v236 = vld [vmem:[%s234] sm:$0x3f]
                  %237 = vst [vmem:[%s235] sm:$0x3f] %v236
                  %v238 = vld [vmem:[%s234 + $0xc] sm:$0x3f]
                  %239 = vst [vmem:[%s235 + $0x6] sm:$0x3f] %v238
                  %v240 = vld [vmem:[%s234 + $0x18] sm:$0x3f]
                  %241 = vst [vmem:[%s235 + $0xc] sm:$0x3f] %v240
                  %v242 = vld [vmem:[%s234 + $0x24] sm:$0x3f]
                  %243 = vst [vmem:[%s235 + $0x12] sm:$0x3f] %v242
                  %v244 = vld [vmem:[%s234 + $0x30] sm:$0x3f]
                  %245 = vst [vmem:[%s235 + $0x18] sm:$0x3f] %v244
                  %v246 = vld [vmem:[%s234 + $0x3c] sm:$0x3f]
                  %247 = vst [vmem:[%s235 + $0x1e] sm:$0x3f] %v246
                  %v248 = vld [vmem:[%s234 + $0x48] sm:$0x3f]
                  %249 = vst [vmem:[%s235 + $0x24] sm:$0x3f] %v248
                  %v250 = vld [vmem:[%s234 + $0x54] sm:$0x3f]
                  %251 = vst [vmem:[%s235 + $0x2a] sm:$0x3f] %v250
                $region55: #{speech_recognition_forward.26} parent=42 // loop_footer
                  %s233 = sadd.s32 1, %s229
                $region56: #{speech_recognition_forward.26} parent=42 // loop_footer_branch
                  %228 = sbr.rel target = $region52
                $region57: #{speech_recognition_forward.26} parent=42 // loop_exit
                  _
              $region43: #{speech_recognition_forward.26} parent=27 // pred_fallthru
                _
            $region28: #{speech_recognition_forward.26} parent=23 // pred_fallthru
              _
            // Predicated region
            $region29: #{speech_recognition_forward.26} parent=23 // pred_check
              _
            $region30: #{speech_recognition_forward.26} parent=23 // pred_check_branch
              %191 = sbr.rel (0) target = $region32
            $region31: #{speech_recognition_forward.26} parent=23 // pred_region
              loop: start=0, step=1, limit=1
              $region33: #{speech_recognition_forward.26} parent=31 // loop_pre_header
                _
              $region34: #{speech_recognition_forward.26} parent=31 // loop_header
                %s194 = sphi 0, %s198
                %p195 = scmp.ge.s32.totalorder %s194, 1
                %s199 = sphi %s185, %s185
                %s200 = sphi %s174, %s174
              $region35: #{speech_recognition_forward.26} parent=31 // loop_header_branch
                %197 = sbr.rel (%p195) target = $region39
              $region36: #{speech_recognition_forward.26} parent=31 // loop_body
                %v201 = vld [vmem:[%s199] sm:$0x3f]
                %202 = vst [vmem:[%s200] sm:$0x3f] %v201
                %v203 = vld [vmem:[%s199 + $0xc] sm:$0x3f]
                %204 = vst [vmem:[%s200 + $0x6] sm:$0x3f] %v203
                %v205 = vld [vmem:[%s199 + $0x18] sm:$0x3f]
                %206 = vst [vmem:[%s200 + $0xc] sm:$0x3f] %v205
                %v207 = vld [vmem:[%s199 + $0x24] sm:$0x3f]
                %208 = vst [vmem:[%s200 + $0x12] sm:$0x3f] %v207
                %v209 = vld [vmem:[%s199 + $0x30] sm:$0x3f]
                %210 = vst [vmem:[%s200 + $0x18] sm:$0x3f] %v209
                %v211 = vld [vmem:[%s199 + $0x3c] sm:$0x3f]
                %212 = vst [vmem:[%s200 + $0x1e] sm:$0x3f] %v211
                %v213 = vld [vmem:[%s199 + $0x48] sm:$0x3f]
                %214 = vst [vmem:[%s200 + $0x24] sm:$0x3f] %v213
                %v215 = vld [vmem:[%s199 + $0x54] sm:$0x3f]
                %216 = vst [vmem:[%s200 + $0x2a] sm:$0x3f] %v215
              $region37: #{speech_recognition_forward.26} parent=31 // loop_footer
                %s198 = sadd.s32 1, %s194
              $region38: #{speech_recognition_forward.26} parent=31 // loop_footer_branch
                %193 = sbr.rel target = $region34
              $region39: #{speech_recognition_forward.26} parent=31 // loop_exit
                _
            $region32: #{speech_recognition_forward.26} parent=23 // pred_fallthru
              _
          $region24: #{speech_recognition_forward.26} parent=19 // pred_fallthru
            _
          %252 = vnop
        $region20: #{speech_recognition_forward.26} parent=15 // pred_fallthru
          _
        // Predicated region
        $region58: #{speech_recognition_forward.26} parent=15 // pred_check
          %p253 = pneg %p79
        $region59: #{speech_recognition_forward.26} parent=15 // pred_check_branch
          %255 = sbr.rel (%p253) target = $region61
        $region60: #{speech_recognition_forward.26} parent=15 // pred_region
          %p256 = scmp.lt.s32.totalorder %s16, 1
          %s257 = scalar_select %p256, %s16, 1
          %s258 = smul.addr %s257, 48
          %s259 = smul.addr %s258, 8
          %s260 = scalar_lea.vmem %s1, %s259
        $region61: #{speech_recognition_forward.26} parent=15 // pred_fallthru
          _
        // Predicated region
        $region62: #{speech_recognition_forward.26} parent=15 // pred_check
          %p261 = pneg %p105
        $region63: #{speech_recognition_forward.26} parent=15 // pred_check_branch
          %263 = sbr.rel (%p261) target = $region65
        $region64: #{speech_recognition_forward.26} parent=15 // pred_region
          %p264 = scmp.lt.s32.totalorder %s16, 1
          %s265 = scalar_select %p264, %s16, 1
          %s266 = smul.addr %s265, 3
          %s267 = scalar_lea.vmem %s2, %s266
        $region65: #{speech_recognition_forward.26} parent=15 // pred_fallthru
          _
      $region16: #{speech_recognition_forward.26} parent=5 // pred_fallthru
        _
      %p268 = scmp.le.s32.totalorder 1, %s9
      %p269 = scmp.lt.s32.totalorder %s9, 3
      %p270 = pnand %p268, %p269
      %p271 = pneg %p270
      // Predicated region
      $region66: #{speech_recognition_forward.26} parent=5 // pred_check
        _
      $region67: #{speech_recognition_forward.26} parent=5 // pred_check_branch
        %273 = sbr.rel (%p270) target = $region69
      $region68: #{speech_recognition_forward.26} parent=5 // pred_region
        %s274 = ssub.s32 %s9, 1
        %s275 = sand.u32 %s46, 1
        %s276 = sand.u32 %s46, 1
        %s277 = smul.addr %s276, 48
        %s278 = scalar_lea.vmem [#allocation3], %s277
        // Predicated region
        $region70: #{speech_recognition_forward.26} parent=68 // pred_check
          %p279 = pneg %p59
        $region71: #{speech_recognition_forward.26} parent=68 // pred_check_branch
          %281 = sbr.rel (%p279) target = $region73
        $region72: #{speech_recognition_forward.26} parent=68 // pred_region
          _
        $region73: #{speech_recognition_forward.26} parent=68 // pred_fallthru
          _
        %s282 = sand.u32 %s46, 1
        %s283 = sand.u32 %s46, 1
        %s284 = smul.addr %s283, 48
        %s285 = scalar_lea.vmem [#allocation3], %s284
        %p286 = pneg %p59
        %p287 = pneg %p56
        %p288 = scmp.lt.s32.totalorder %s18, 1
        %s289 = scalar_select %p288, %s18, 1
        %s290 = smul.addr %s289, 48
        %s291 = smul.addr %s290, 8
        %s292 = scalar_lea.vmem %s1, %s291
        %p293 = pneg %p85
        %p294 = pneg %p82
        %p295 = scmp.lt.s32.totalorder %s18, 1
        %s296 = scalar_select %p295, %s18, 1
        %s297 = smul.addr %s296, 3
        %s298 = scalar_lea.vmem %s2, %s297
        %p299 = pneg %p111
        %p300 = pneg %p108
        %p301 = pneg %p149
        %p302 = pneg %p146
        %s303 = sand.u32 %s136, 1
        %s304 = sand.u32 %s136, 1
        %s305 = smul.addr %s304, 16
        %s306 = scalar_lea.vmem [#allocation4], %s305
        %s307 = ssub.s32 1, %s18
        %s308 = smul.u32 %s19, %s307
        %s309 = ssub.s32 0, %s19
        %s310 = smul.u32 %s309, %s18
        %s311 = sadd.s32 %s308, %s310
        %s312 = smul.u32 8, %s311
        %s313 = smul.u32 3, %s18
        %p314 = scmp.lt.s32.totalorder %s18, 1
        %s315 = scalar_select %p314, %s18, 1
        %s316 = smul.addr %s315, 48
        %s317 = smul.addr %s316, 8
        %s318 = scalar_lea.vmem %s1, %s317
        %p319 = scmp.lt.s32.totalorder %s18, 1
        %s320 = scalar_select %p319, %s18, 1
        %s321 = smul.addr %s320, 3
        %s322 = scalar_lea.vmem %s2, %s321
        %s323 = ssub.s32 1, %s18
        %s324 = smul.u32 %s19, %s323
        %s325 = ssub.s32 0, %s19
        %s326 = smul.u32 %s325, %s18
        %s327 = sadd.s32 %s324, %s326
        %s328 = smul.u32 8, %s327
        %p330 = scmp.eq.s32.totalorder %s19, 0
        // Predicated region
        $region74: #{speech_recognition_forward.26} parent=68 // pred_check
          %p331 = pneg %p330
        $region75: #{speech_recognition_forward.26} parent=68 // pred_check_branch
          %333 = sbr.rel (%p331) target = $region77
        $region76: #{speech_recognition_forward.26} parent=68 // pred_region
          %334 = vst [vmem:[#allocation2] sm:$0x3] 0.0
        $region77: #{speech_recognition_forward.26} parent=68 // pred_fallthru
          _
        %v335 = vld [vmem:[%s318] sm:$0xff]
        %v336 = vld [vmem:[%s318 + $0x8] sm:$0xff]
        %v337 = vld [vmem:[%s318 + $0x10] sm:$0xff]
        %v338 = vld [vmem:[%s318 + $0x18] sm:$0xff]
        %v339 = vld [vmem:[%s318 + $0x20] sm:$0xff]
        %v340 = vld [vmem:[%s318 + $0x28] sm:$0xff]
        %v341 = vld [vmem:[%s318 + $0x30] sm:$0xff]
        %v342 = vld [vmem:[%s318 + $0x38] sm:$0xff]
        %v343 = vld [vmem:[%s318 + $0x40] sm:$0xff]
        %v344 = vld [vmem:[%s318 + $0x48] sm:$0xff]
        %v345 = vld [vmem:[%s318 + $0x50] sm:$0xff]
        %v346 = vld [vmem:[%s318 + $0x58] sm:$0xff]
        %v347 = vld [vmem:[%s318 + $0x60] sm:$0xff]
        %v348 = vld [vmem:[%s318 + $0x68] sm:$0xff]
        %v349 = vld [vmem:[%s318 + $0x70] sm:$0xff]
        %v350 = vld [vmem:[%s318 + $0x78] sm:$0xff]
        %v351 = vld [vmem:[%s318 + $0x80] sm:$0xff]
        %v352 = vld [vmem:[%s318 + $0x88] sm:$0xff]
        %v353 = vld [vmem:[%s318 + $0x90] sm:$0xff]
        %v354 = vld [vmem:[%s318 + $0x98] sm:$0xff]
        %v355 = vld [vmem:[%s318 + $0xa0] sm:$0xff]
        %v356 = vld [vmem:[%s318 + $0xa8] sm:$0xff]
        %v357 = vld [vmem:[%s318 + $0xb0] sm:$0xff]
        %v358 = vld [vmem:[%s318 + $0xb8] sm:$0xff]
        %v359 = vld [vmem:[%s318 + $0xc0] sm:$0xff]
        %v360 = vld [vmem:[%s318 + $0xc8] sm:$0xff]
        %v361 = vld [vmem:[%s318 + $0xd0] sm:$0xff]
        %v362 = vld [vmem:[%s318 + $0xd8] sm:$0xff]
        %v363 = vld [vmem:[%s318 + $0xe0] sm:$0xff]
        %v364 = vld [vmem:[%s318 + $0xe8] sm:$0xff]
        %v365 = vld [vmem:[%s318 + $0xf0] sm:$0xff]
        %v366 = vld [vmem:[%s318 + $0xf8] sm:$0xff]
        %v367 = vld [vmem:[%s318 + $0x100] sm:$0xff]
        %v368 = vld [vmem:[%s318 + $0x108] sm:$0xff]
        %v369 = vld [vmem:[%s318 + $0x110] sm:$0xff]
        %v370 = vld [vmem:[%s318 + $0x118] sm:$0xff]
        %v371 = vld [vmem:[%s318 + $0x120] sm:$0xff]
        %v372 = vld [vmem:[%s318 + $0x128] sm:$0xff]
        %v373 = vld [vmem:[%s318 + $0x130] sm:$0xff]
        %v374 = vld [vmem:[%s318 + $0x138] sm:$0xff]
        %v375 = vld [vmem:[%s318 + $0x140] sm:$0xff]
        %v376 = vld [vmem:[%s318 + $0x148] sm:$0xff]
        %v377 = vld [vmem:[%s318 + $0x150] sm:$0xff]
        %v378 = vld [vmem:[%s318 + $0x158] sm:$0xff]
        %v379 = vld [vmem:[%s318 + $0x160] sm:$0xff]
        %v380 = vld [vmem:[%s318 + $0x168] sm:$0xff]
        %v381 = vld [vmem:[%s318 + $0x170] sm:$0xff]
        %v382 = vld [vmem:[%s318 + $0x178] sm:$0xff]
        %v383 = vpack.c.bf16 %v338, %v335
        %v384 = vpack.c.bf16 %v339, %v336
        %v385 = vpack.c.bf16 %v340, %v337
        %v386 = vpack.c.bf16 %v344, %v341
        %v387 = vpack.c.bf16 %v345, %v342
        %v388 = vpack.c.bf16 %v346, %v343
        %v389 = vpack.c.bf16 %v350, %v347
        %v390 = vpack.c.bf16 %v351, %v348
        %v391 = vpack.c.bf16 %v352, %v349
        %v392 = vpack.c.bf16 %v356, %v353
        %v393 = vpack.c.bf16 %v357, %v354
        %v394 = vpack.c.bf16 %v358, %v355
        %v395 = vpack.c.bf16 %v362, %v359
        %v396 = vpack.c.bf16 %v363, %v360
        %v397 = vpack.c.bf16 %v364, %v361
        %v398 = vpack.c.bf16 %v368, %v365
        %v399 = vpack.c.bf16 %v369, %v366
        %v400 = vpack.c.bf16 %v370, %v367
        %v401 = vpack.c.bf16 %v374, %v371
        %v402 = vpack.c.bf16 %v375, %v372
        %v403 = vpack.c.bf16 %v376, %v373
        %v404 = vpack.c.bf16 %v380, %v377
        %v405 = vpack.c.bf16 %v381, %v378
        %v406 = vpack.c.bf16 %v382, %v379
        %v407 = vld [vmem:[%s322] sm:$0x7]
        %v408 = vld [vmem:[#allocation2] sm:$0x3]
        %s409 = smul.u32 %s18, 7
        %s410 = smul.u32 %s409, 3
        %s411 = smul.addr %s410, 2
        %s412 = scalar_lea.vmem %s278, %s411 [#allocation3]
        %v413 = vld [vmem:[%s412] sm:$0x3f]
        %v414 = vpack.c.bf16 %v408, %v408
        %v416 = vlaneseq
        %v417 = vshrl.u32 %v416, 7
        %v418 = vsub.s32 0, %v417
        %v419 = vrot.slane %v407, %v418
        %v420 = vlaneseq
        %v421 = vshrl.u32 %v420, 7
        %v422 = vsub.s32 1, %v421
        %v423 = vrot.slane %v407, %v422
        %v424 = vlaneseq
        %v425 = vshrl.u32 %v424, 7
        %v426 = vsub.s32 2, %v425
        %v427 = vrot.slane %v407, %v426
        %431 = vmatprep.subr.bf16.mxu0 %v384
        %432 = vmatpush1.bf16.msra.mxu0 %v383
        %433 = vmatprep.subr.bf16.mxu0 %v387
        %434 = vmatpush1.bf16.msra.mxu0 %v386
        %435 = vmatprep.subr.bf16.mxu0 %v390
        %436 = vmatpush1.bf16.msra.mxu0 %v389
        %437 = vmatprep.subr.bf16.mxu0 %v393
        %438 = vmatpush1.bf16.msra.mxu0 %v392
        %439 = vmatprep.subr.bf16.mxu0 %v396
        %440 = vmatpush1.bf16.msra.mxu0 %v395
        %441 = vmatprep.subr.bf16.mxu0 %v399
        %442 = vmatpush1.bf16.msra.mxu0 %v398
        %443 = vmatprep.subr.bf16.mxu0 %v402
        %444 = vmatpush1.bf16.msra.mxu0 %v401
        %445 = vmatprep.subr.bf16.mxu0 %v405
        %446 = vmatpush1.bf16.msra.mxu0 %v404
        %447 = vmatprep.subr.bf16.mxu0 0
        %448 = vmatpush1.bf16.msra.mxu0 0
        %449 = vmatprep.subr.bf16.mxu0 0
        %450 = vmatpush1.bf16.msra.mxu0 0
        %451 = vmatprep.subr.bf16.mxu0 0
        %452 = vmatpush1.bf16.msra.mxu0 0
        %453 = vmatprep.subr.bf16.mxu0 0
        %454 = vmatpush1.bf16.msra.mxu0 0
        %455 = vmatprep.subr.bf16.mxu0 0
        %456 = vmatpush1.bf16.msra.mxu0 0
        %457 = vmatprep.subr.bf16.mxu0 0
        %458 = vmatpush1.bf16.msra.mxu0 0
        %459 = vmatprep.subr.bf16.mxu0 0
        %460 = vmatpush1.bf16.msra.mxu0 0
        %461 = vmatprep.subr.bf16.mxu0 0
        %462 = vmatpush1.bf16.msra.mxu0 0
        %463 = vmatprep.mubr.bf16.mxu0 0
        %464 = vmatmul.mubr.bf16.gmra.mrb[0].mxu0 %v414
        %v465 = vpop.f32.mrb[0].mxu0
        %v466 = vadd.f32 %v419, %v465
        %v467 = vpop.f32.mrb[0].mxu0
        %v468 = vadd.f32 %v423, %v467
        %v469 = vpop.f32.mrb[0].mxu0
        %v470 = vpop.f32.mrb[0].mxu0
        %471 = vdwg.mxu0
        %472 = vmatprep.subr.bf16.mxu0 0
        %473 = vmatpush1.bf16.msra.mxu0 %v385
        %474 = vmatprep.subr.bf16.mxu0 0
        %475 = vmatpush1.bf16.msra.mxu0 %v388
        %476 = vmatprep.subr.bf16.mxu0 0
        %477 = vmatpush1.bf16.msra.mxu0 %v391
        %478 = vmatprep.subr.bf16.mxu0 0
        %479 = vmatpush1.bf16.msra.mxu0 %v394
        %480 = vmatprep.subr.bf16.mxu0 0
        %481 = vmatpush1.bf16.msra.mxu0 %v397
        %482 = vmatprep.subr.bf16.mxu0 0
        %483 = vmatpush1.bf16.msra.mxu0 %v400
        %484 = vmatprep.subr.bf16.mxu0 0
        %485 = vmatpush1.bf16.msra.mxu0 %v403
        %486 = vmatprep.subr.bf16.mxu0 0
        %487 = vmatpush1.bf16.msra.mxu0 %v406
        %488 = vmatprep.subr.bf16.mxu0 0
        %489 = vmatpush1.bf16.msra.mxu0 0
        %490 = vmatprep.subr.bf16.mxu0 0
        %491 = vmatpush1.bf16.msra.mxu0 0
        %492 = vmatprep.subr.bf16.mxu0 0
        %493 = vmatpush1.bf16.msra.mxu0 0
        %494 = vmatprep.subr.bf16.mxu0 0
        %495 = vmatpush1.bf16.msra.mxu0 0
        %496 = vmatprep.subr.bf16.mxu0 0
        %497 = vmatpush1.bf16.msra.mxu0 0
        %498 = vmatprep.subr.bf16.mxu0 0
        %499 = vmatpush1.bf16.msra.mxu0 0
        %500 = vmatprep.subr.bf16.mxu0 0
        %501 = vmatpush1.bf16.msra.mxu0 0
        %502 = vmatprep.subr.bf16.mxu0 0
        %503 = vmatpush1.bf16.msra.mxu0 0
        %504 = vmatprep.mubr.bf16.mxu0 0
        %505 = vmatmul.mubr.bf16.gmra.mrb[0].mxu0 %v414
        %v506 = vpop.f32.mrb[0].mxu0
        %v507 = vadd.f32 %v427, %v506
        %v508 = vpop.f32.mrb[0].mxu0
        %v509 = vpop.f32.mrb[0].mxu0
        %v510 = vpop.f32.mrb[0].mxu0
        %511 = vdwg.mxu0
        %v512 = vadd.f32 %v413, %v466
        %v513 = vxor.u32 %v512, 2147483648
        %v514 = vmul.f32 %v513, 1.442695
        %v515 = vpow.pop %v514
        %v516 = vadd.f32 %v515, 1.0
        %v517 = vrcp.pop %v516
        %v518 = vmul.f32 1.0, %v517
        %v520 = vrot.slane %v413, 2
        %v522 = vadd.f32 %v520, %v468
        %v523 = vxor.u32 %v522, 2147483648
        %v524 = vmul.f32 %v523, 1.442695
        %v525 = vpow.pop %v524
        %v526 = vadd.f32 %v525, 1.0
        %v527 = vrcp.pop %v526
        %v528 = vmul.f32 1.0, %v527
        %v529 = vmul.f32 %v518, %v507
        %v530 = vrot.slane %v413, 4
        %v532 = vadd.f32 %v530, %v529
        %v533 = vtanh.pop %v532
        %v534 = vsub.f32 1.0, %v528
        %v535 = vmul.f32 %v534, %v533
        %v536 = vmul.f32 %v528, %v408
        %v537 = vadd.f32 %v535, %v536
        %s538 = smul.u32 %s409, 2
        %s539 = scalar_lea.vmem %s306, %s538 [#allocation4]
        %540 = vst [vmem:[%s539] sm:$0x3] %v537
        %s541 = ssub.s32 1, %s18
        %s542 = smul.u32 %s18, 6
        %s543 = sadd.s32 %s541, %s542
        %s544 = smul.u32 %s543, 3
        %s545 = smul.addr %s544, 2
        %s546 = scalar_lea.vmem %s278, %s545 [#allocation3]
        %v547 = vld [vmem:[%s546] sm:$0x3f]
        %v548 = vpack.c.bf16 %v537, %v537
        %549 = vmatprep.subr.bf16.mxu0 %v384
        %550 = vmatpush1.bf16.msra.mxu0 %v383
        %551 = vmatprep.subr.bf16.mxu0 %v387
        %552 = vmatpush1.bf16.msra.mxu0 %v386
        %553 = vmatprep.subr.bf16.mxu0 %v390
        %554 = vmatpush1.bf16.msra.mxu0 %v389
        %555 = vmatprep.subr.bf16.mxu0 %v393
        %556 = vmatpush1.bf16.msra.mxu0 %v392
        %557 = vmatprep.subr.bf16.mxu0 %v396
        %558 = vmatpush1.bf16.msra.mxu0 %v395
        %559 = vmatprep.subr.bf16.mxu0 %v399
        %560 = vmatpush1.bf16.msra.mxu0 %v398
        %561 = vmatprep.subr.bf16.mxu0 %v402
        %562 = vmatpush1.bf16.msra.mxu0 %v401
        %563 = vmatprep.subr.bf16.mxu0 %v405
        %564 = vmatpush1.bf16.msra.mxu0 %v404
        %565 = vmatprep.subr.bf16.mxu0 0
        %566 = vmatpush1.bf16.msra.mxu0 0
        %567 = vmatprep.subr.bf16.mxu0 0
        %568 = vmatpush1.bf16.msra.mxu0 0
        %569 = vmatprep.subr.bf16.mxu0 0
        %570 = vmatpush1.bf16.msra.mxu0 0
        %571 = vmatprep.subr.bf16.mxu0 0
        %572 = vmatpush1.bf16.msra.mxu0 0
        %573 = vmatprep.subr.bf16.mxu0 0
        %574 = vmatpush1.bf16.msra.mxu0 0
        %575 = vmatprep.subr.bf16.mxu0 0
        %576 = vmatpush1.bf16.msra.mxu0 0
        %577 = vmatprep.subr.bf16.mxu0 0
        %578 = vmatpush1.bf16.msra.mxu0 0
        %579 = vmatprep.subr.bf16.mxu0 0
        %580 = vmatpush1.bf16.msra.mxu0 0
        %581 = vmatprep.mubr.bf16.mxu0 0
        %582 = vmatmul.mubr.bf16.gmra.mrb[0].mxu0 %v548
        %v583 = vpop.f32.mrb[0].mxu0
        %v584 = vadd.f32 %v419, %v583
        %v585 = vpop.f32.mrb[0].mxu0
        %v586 = vadd.f32 %v423, %v585
        %v587 = vpop.f32.mrb[0].mxu0
        %v588 = vpop.f32.mrb[0].mxu0
        %589 = vdwg.mxu0
        %590 = vmatprep.subr.bf16.mxu0 0
        %591 = vmatpush1.bf16.msra.mxu0 %v385
        %592 = vmatprep.subr.bf16.mxu0 0
        %593 = vmatpush1.bf16.msra.mxu0 %v388
        %594 = vmatprep.subr.bf16.mxu0 0
        %595 = vmatpush1.bf16.msra.mxu0 %v391
        %596 = vmatprep.subr.bf16.mxu0 0
        %597 = vmatpush1.bf16.msra.mxu0 %v394
        %598 = vmatprep.subr.bf16.mxu0 0
        %599 = vmatpush1.bf16.msra.mxu0 %v397
        %600 = vmatprep.subr.bf16.mxu0 0
        %601 = vmatpush1.bf16.msra.mxu0 %v400
        %602 = vmatprep.subr.bf16.mxu0 0
        %603 = vmatpush1.bf16.msra.mxu0 %v403
        %604 = vmatprep.subr.bf16.mxu0 0
        %605 = vmatpush1.bf16.msra.mxu0 %v406
        %606 = vmatprep.subr.bf16.mxu0 0
        %607 = vmatpush1.bf16.msra.mxu0 0
        %608 = vmatprep.subr.bf16.mxu0 0
        %609 = vmatpush1.bf16.msra.mxu0 0
        %610 = vmatprep.subr.bf16.mxu0 0
        %611 = vmatpush1.bf16.msra.mxu0 0
        %612 = vmatprep.subr.bf16.mxu0 0
        %613 = vmatpush1.bf16.msra.mxu0 0
        %614 = vmatprep.subr.bf16.mxu0 0
        %615 = vmatpush1.bf16.msra.mxu0 0
        %616 = vmatprep.subr.bf16.mxu0 0
        %617 = vmatpush1.bf16.msra.mxu0 0
        %618 = vmatprep.subr.bf16.mxu0 0
        %619 = vmatpush1.bf16.msra.mxu0 0
        %620 = vmatprep.subr.bf16.mxu0 0
        %621 = vmatpush1.bf16.msra.mxu0 0
        %622 = vmatprep.mubr.bf16.mxu0 0
        %623 = vmatmul.mubr.bf16.gmra.mrb[0].mxu0 %v548
        %v624 = vpop.f32.mrb[0].mxu0
        %v625 = vadd.f32 %v427, %v624
        %v626 = vpop.f32.mrb[0].mxu0
        %v627 = vpop.f32.mrb[0].mxu0
        %v628 = vpop.f32.mrb[0].mxu0
        %629 = vdwg.mxu0
        %v630 = vadd.f32 %v547, %v584
        %v631 = vxor.u32 %v630, 2147483648
        %v632 = vmul.f32 %v631, 1.442695
        %v633 = vpow.pop %v632
        %v634 = vadd.f32 %v633, 1.0
        %v635 = vrcp.pop %v634
        %v636 = vmul.f32 1.0, %v635
        %v638 = vrot.slane %v547, 2
        %v640 = vadd.f32 %v638, %v586
        %v641 = vxor.u32 %v640, 2147483648
        %v642 = vmul.f32 %v641, 1.442695
        %v643 = vpow.pop %v642
        %v644 = vadd.f32 %v643, 1.0
        %v645 = vrcp.pop %v644
        %v646 = vmul.f32 1.0, %v645
        %v647 = vmul.f32 %v636, %v625
        %v648 = vrot.slane %v547, 4
        %v650 = vadd.f32 %v648, %v647
        %v651 = vtanh.pop %v650
        %v652 = vsub.f32 1.0, %v646
        %v653 = vmul.f32 %v652, %v651
        %v654 = vmul.f32 %v646, %v537
        %v655 = vadd.f32 %v653, %v654
        %s656 = smul.u32 %s543, 2
        %s657 = scalar_lea.vmem %s306, %s656 [#allocation4]
        %658 = vst [vmem:[%s657] sm:$0x3] %v655
        %s659 = smul.u32 %s541, 2
        %s660 = smul.u32 %s18, 5
        %s661 = sadd.s32 %s659, %s660
        %s662 = smul.u32 %s661, 3
        %s663 = smul.addr %s662, 2
        %s664 = scalar_lea.vmem %s278, %s663 [#allocation3]
        %v665 = vld [vmem:[%s664] sm:$0x3f]
        %v666 = vpack.c.bf16 %v655, %v655
        %667 = vmatprep.subr.bf16.mxu0 %v384
        %668 = vmatpush1.bf16.msra.mxu0 %v383
        %669 = vmatprep.subr.bf16.mxu0 %v387
        %670 = vmatpush1.bf16.msra.mxu0 %v386
        %671 = vmatprep.subr.bf16.mxu0 %v390
        %672 = vmatpush1.bf16.msra.mxu0 %v389
        %673 = vmatprep.subr.bf16.mxu0 %v393
        %674 = vmatpush1.bf16.msra.mxu0 %v392
        %675 = vmatprep.subr.bf16.mxu0 %v396
        %676 = vmatpush1.bf16.msra.mxu0 %v395
        %677 = vmatprep.subr.bf16.mxu0 %v399
        %678 = vmatpush1.bf16.msra.mxu0 %v398
        %679 = vmatprep.subr.bf16.mxu0 %v402
        %680 = vmatpush1.bf16.msra.mxu0 %v401
        %681 = vmatprep.subr.bf16.mxu0 %v405
        %682 = vmatpush1.bf16.msra.mxu0 %v404
        %683 = vmatprep.subr.bf16.mxu0 0
        %684 = vmatpush1.bf16.msra.mxu0 0
        %685 = vmatprep.subr.bf16.mxu0 0
        %686 = vmatpush1.bf16.msra.mxu0 0
        %687 = vmatprep.subr.bf16.mxu0 0
        %688 = vmatpush1.bf16.msra.mxu0 0
        %689 = vmatprep.subr.bf16.mxu0 0
        %690 = vmatpush1.bf16.msra.mxu0 0
        %691 = vmatprep.subr.bf16.mxu0 0
        %692 = vmatpush1.bf16.msra.mxu0 0
        %693 = vmatprep.subr.bf16.mxu0 0
        %694 = vmatpush1.bf16.msra.mxu0 0
        %695 = vmatprep.subr.bf16.mxu0 0
        %696 = vmatpush1.bf16.msra.mxu0 0
        %697 = vmatprep.subr.bf16.mxu0 0
        %698 = vmatpush1.bf16.msra.mxu0 0
        %699 = vmatprep.mubr.bf16.mxu0 0
        %700 = vmatmul.mubr.bf16.gmra.mrb[0].mxu0 %v666
        %v701 = vpop.f32.mrb[0].mxu0
        %v702 = vadd.f32 %v419, %v701
        %v703 = vpop.f32.mrb[0].mxu0
        %v704 = vadd.f32 %v423, %v703
        %v705 = vpop.f32.mrb[0].mxu0
        %v706 = vpop.f32.mrb[0].mxu0
        %707 = vdwg.mxu0
        %708 = vmatprep.subr.bf16.mxu0 0
        %709 = vmatpush1.bf16.msra.mxu0 %v385
        %710 = vmatprep.subr.bf16.mxu0 0
        %711 = vmatpush1.bf16.msra.mxu0 %v388
        %712 = vmatprep.subr.bf16.mxu0 0
        %713 = vmatpush1.bf16.msra.mxu0 %v391
        %714 = vmatprep.subr.bf16.mxu0 0
        %715 = vmatpush1.bf16.msra.mxu0 %v394
        %716 = vmatprep.subr.bf16.mxu0 0
        %717 = vmatpush1.bf16.msra.mxu0 %v397
        %718 = vmatprep.subr.bf16.mxu0 0
        %719 = vmatpush1.bf16.msra.mxu0 %v400
        %720 = vmatprep.subr.bf16.mxu0 0
        %721 = vmatpush1.bf16.msra.mxu0 %v403
        %722 = vmatprep.subr.bf16.mxu0 0
        %723 = vmatpush1.bf16.msra.mxu0 %v406
        %724 = vmatprep.subr.bf16.mxu0 0
        %725 = vmatpush1.bf16.msra.mxu0 0
        %726 = vmatprep.subr.bf16.mxu0 0
        %727 = vmatpush1.bf16.msra.mxu0 0
        %728 = vmatprep.subr.bf16.mxu0 0
        %729 = vmatpush1.bf16.msra.mxu0 0
        %730 = vmatprep.subr.bf16.mxu0 0
        %731 = vmatpush1.bf16.msra.mxu0 0
        %732 = vmatprep.subr.bf16.mxu0 0
        %733 = vmatpush1.bf16.msra.mxu0 0
        %734 = vmatprep.subr.bf16.mxu0 0
        %735 = vmatpush1.bf16.msra.mxu0 0
        %736 = vmatprep.subr.bf16.mxu0 0
        %737 = vmatpush1.bf16.msra.mxu0 0
        %738 = vmatprep.subr.bf16.mxu0 0
        %739 = vmatpush1.bf16.msra.mxu0 0
        %740 = vmatprep.mubr.bf16.mxu0 0
        %741 = vmatmul.mubr.bf16.gmra.mrb[0].mxu0 %v666
        %v742 = vpop.f32.mrb[0].mxu0
        %v743 = vadd.f32 %v427, %v742
        %v744 = vpop.f32.mrb[0].mxu0
        %v745 = vpop.f32.mrb[0].mxu0
        %v746 = vpop.f32.mrb[0].mxu0
        %747 = vdwg.mxu0
        %v748 = vadd.f32 %v665, %v702
        %v749 = vxor.u32 %v748, 2147483648
        %v750 = vmul.f32 %v749, 1.442695
        %v751 = vpow.pop %v750
        %v752 = vadd.f32 %v751, 1.0
        %v753 = vrcp.pop %v752
        %v754 = vmul.f32 1.0, %v753
        %v756 = vrot.slane %v665, 2
        %v758 = vadd.f32 %v756, %v704
        %v759 = vxor.u32 %v758, 2147483648
        %v760 = vmul.f32 %v759, 1.442695
        %v761 = vpow.pop %v760
        %v762 = vadd.f32 %v761, 1.0
        %v763 = vrcp.pop %v762
        %v764 = vmul.f32 1.0, %v763
        %v765 = vmul.f32 %v754, %v743
        %v766 = vrot.slane %v665, 4
        %v768 = vadd.f32 %v766, %v765
        %v769 = vtanh.pop %v768
        %v770 = vsub.f32 1.0, %v764
        %v771 = vmul.f32 %v770, %v769
        %v772 = vmul.f32 %v764, %v655
        %v773 = vadd.f32 %v771, %v772
        %s774 = smul.u32 %s661, 2
        %s775 = scalar_lea.vmem %s306, %s774 [#allocation4]
        %776 = vst [vmem:[%s775] sm:$0x3] %v773
        %s777 = smul.u32 %s541, 3
        %s778 = smul.u32 %s18, 4
        %s779 = sadd.s32 %s777, %s778
        %s780 = smul.u32 %s779, 3
        %s781 = smul.addr %s780, 2
        %s782 = scalar_lea.vmem %s278, %s781 [#allocation3]
        %v783 = vld [vmem:[%s782] sm:$0x3f]
        %v784 = vpack.c.bf16 %v773, %v773
        %785 = vmatprep.subr.bf16.mxu0 %v384
        %786 = vmatpush1.bf16.msra.mxu0 %v383
        %787 = vmatprep.subr.bf16.mxu0 %v387
        %788 = vmatpush1.bf16.msra.mxu0 %v386
        %789 = vmatprep.subr.bf16.mxu0 %v390
        %790 = vmatpush1.bf16.msra.mxu0 %v389
        %791 = vmatprep.subr.bf16.mxu0 %v393
        %792 = vmatpush1.bf16.msra.mxu0 %v392
        %793 = vmatprep.subr.bf16.mxu0 %v396
        %794 = vmatpush1.bf16.msra.mxu0 %v395
        %795 = vmatprep.subr.bf16.mxu0 %v399
        %796 = vmatpush1.bf16.msra.mxu0 %v398
        %797 = vmatprep.subr.bf16.mxu0 %v402
        %798 = vmatpush1.bf16.msra.mxu0 %v401
        %799 = vmatprep.subr.bf16.mxu0 %v405
        %800 = vmatpush1.bf16.msra.mxu0 %v404
        %801 = vmatprep.subr.bf16.mxu0 0
        %802 = vmatpush1.bf16.msra.mxu0 0
        %803 = vmatprep.subr.bf16.mxu0 0
        %804 = vmatpush1.bf16.msra.mxu0 0
        %805 = vmatprep.subr.bf16.mxu0 0
        %806 = vmatpush1.bf16.msra.mxu0 0
        %807 = vmatprep.subr.bf16.mxu0 0
        %808 = vmatpush1.bf16.msra.mxu0 0
        %809 = vmatprep.subr.bf16.mxu0 0
        %810 = vmatpush1.bf16.msra.mxu0 0
        %811 = vmatprep.subr.bf16.mxu0 0
        %812 = vmatpush1.bf16.msra.mxu0 0
        %813 = vmatprep.subr.bf16.mxu0 0
        %814 = vmatpush1.bf16.msra.mxu0 0
        %815 = vmatprep.subr.bf16.mxu0 0
        %816 = vmatpush1.bf16.msra.mxu0 0
        %817 = vmatprep.mubr.bf16.mxu0 0
        %818 = vmatmul.mubr.bf16.gmra.mrb[0].mxu0 %v784
        %v819 = vpop.f32.mrb[0].mxu0
        %v820 = vadd.f32 %v419, %v819
        %v821 = vpop.f32.mrb[0].mxu0
        %v822 = vadd.f32 %v423, %v821
        %v823 = vpop.f32.mrb[0].mxu0
        %v824 = vpop.f32.mrb[0].mxu0
        %825 = vdwg.mxu0
        %826 = vmatprep.subr.bf16.mxu0 0
        %827 = vmatpush1.bf16.msra.mxu0 %v385
        %828 = vmatprep.subr.bf16.mxu0 0
        %829 = vmatpush1.bf16.msra.mxu0 %v388
        %830 = vmatprep.subr.bf16.mxu0 0
        %831 = vmatpush1.bf16.msra.mxu0 %v391
        %832 = vmatprep.subr.bf16.mxu0 0
        %833 = vmatpush1.bf16.msra.mxu0 %v394
        %834 = vmatprep.subr.bf16.mxu0 0
        %835 = vmatpush1.bf16.msra.mxu0 %v397
        %836 = vmatprep.subr.bf16.mxu0 0
        %837 = vmatpush1.bf16.msra.mxu0 %v400
        %838 = vmatprep.subr.bf16.mxu0 0
        %839 = vmatpush1.bf16.msra.mxu0 %v403
        %840 = vmatprep.subr.bf16.mxu0 0
        %841 = vmatpush1.bf16.msra.mxu0 %v406
        %842 = vmatprep.subr.bf16.mxu0 0
        %843 = vmatpush1.bf16.msra.mxu0 0
        %844 = vmatprep.subr.bf16.mxu0 0
        %845 = vmatpush1.bf16.msra.mxu0 0
        %846 = vmatprep.subr.bf16.mxu0 0
        %847 = vmatpush1.bf16.msra.mxu0 0
        %848 = vmatprep.subr.bf16.mxu0 0
        %849 = vmatpush1.bf16.msra.mxu0 0
        %850 = vmatprep.subr.bf16.mxu0 0
        %851 = vmatpush1.bf16.msra.mxu0 0
        %852 = vmatprep.subr.bf16.mxu0 0
        %853 = vmatpush1.bf16.msra.mxu0 0
        %854 = vmatprep.subr.bf16.mxu0 0
        %855 = vmatpush1.bf16.msra.mxu0 0
        %856 = vmatprep.subr.bf16.mxu0 0
        %857 = vmatpush1.bf16.msra.mxu0 0
        %858 = vmatprep.mubr.bf16.mxu0 0
        %859 = vmatmul.mubr.bf16.gmra.mrb[0].mxu0 %v784
        %v860 = vpop.f32.mrb[0].mxu0
        %v861 = vadd.f32 %v427, %v860
        %v862 = vpop.f32.mrb[0].mxu0
        %v863 = vpop.f32.mrb[0].mxu0
        %v864 = vpop.f32.mrb[0].mxu0
        %865 = vdwg.mxu0
        %v866 = vadd.f32 %v783, %v820
        %v867 = vxor.u32 %v866, 2147483648
        %v868 = vmul.f32 %v867, 1.442695
        %v869 = vpow.pop %v868
        %v870 = vadd.f32 %v869, 1.0
        %v871 = vrcp.pop %v870
        %v872 = vmul.f32 1.0, %v871
        %v874 = vrot.slane %v783, 2
        %v876 = vadd.f32 %v874, %v822
        %v877 = vxor.u32 %v876, 2147483648
        %v878 = vmul.f32 %v877, 1.442695
        %v879 = vpow.pop %v878
        %v880 = vadd.f32 %v879, 1.0
        %v881 = vrcp.pop %v880
        %v882 = vmul.f32 1.0, %v881
        %v883 = vmul.f32 %v872, %v861
        %v884 = vrot.slane %v783, 4
        %v886 = vadd.f32 %v884, %v883
        %v887 = vtanh.pop %v886
        %v888 = vsub.f32 1.0, %v882
        %v889 = vmul.f32 %v888, %v887
        %v890 = vmul.f32 %v882, %v773
        %v891 = vadd.f32 %v889, %v890
        %s892 = smul.u32 %s779, 2
        %s893 = scalar_lea.vmem %s306, %s892 [#allocation4]
        %894 = vst [vmem:[%s893] sm:$0x3] %v891
        %s895 = smul.u32 %s541, 4
        %s896 = smul.u32 %s18, 3
        %s897 = sadd.s32 %s895, %s896
        %s898 = smul.u32 %s897, 3
        %s899 = smul.addr %s898, 2
        %s900 = scalar_lea.vmem %s278, %s899 [#allocation3]
        %v901 = vld [vmem:[%s900] sm:$0x3f]
        %v902 = vpack.c.bf16 %v891, %v891
        %903 = vmatprep.subr.bf16.mxu0 %v384
        %904 = vmatpush1.bf16.msra.mxu0 %v383
        %905 = vmatprep.subr.bf16.mxu0 %v387
        %906 = vmatpush1.bf16.msra.mxu0 %v386
        %907 = vmatprep.subr.bf16.mxu0 %v390
        %908 = vmatpush1.bf16.msra.mxu0 %v389
        %909 = vmatprep.subr.bf16.mxu0 %v393
        %910 = vmatpush1.bf16.msra.mxu0 %v392
        %911 = vmatprep.subr.bf16.mxu0 %v396
        %912 = vmatpush1.bf16.msra.mxu0 %v395
        %913 = vmatprep.subr.bf16.mxu0 %v399
        %914 = vmatpush1.bf16.msra.mxu0 %v398
        %915 = vmatprep.subr.bf16.mxu0 %v402
        %916 = vmatpush1.bf16.msra.mxu0 %v401
        %917 = vmatprep.subr.bf16.mxu0 %v405
        %918 = vmatpush1.bf16.msra.mxu0 %v404
        %919 = vmatprep.subr.bf16.mxu0 0
        %920 = vmatpush1.bf16.msra.mxu0 0
        %921 = vmatprep.subr.bf16.mxu0 0
        %922 = vmatpush1.bf16.msra.mxu0 0
        %923 = vmatprep.subr.bf16.mxu0 0
        %924 = vmatpush1.bf16.msra.mxu0 0
        %925 = vmatprep.subr.bf16.mxu0 0
        %926 = vmatpush1.bf16.msra.mxu0 0
        %927 = vmatprep.subr.bf16.mxu0 0
        %928 = vmatpush1.bf16.msra.mxu0 0
        %929 = vmatprep.subr.bf16.mxu0 0
        %930 = vmatpush1.bf16.msra.mxu0 0
        %931 = vmatprep.subr.bf16.mxu0 0
        %932 = vmatpush1.bf16.msra.mxu0 0
        %933 = vmatprep.subr.bf16.mxu0 0
        %934 = vmatpush1.bf16.msra.mxu0 0
        %935 = vmatprep.mubr.bf16.mxu0 0
        %936 = vmatmul.mubr.bf16.gmra.mrb[0].mxu0 %v902
        %v937 = vpop.f32.mrb[0].mxu0
        %v938 = vadd.f32 %v419, %v937
        %v939 = vpop.f32.mrb[0].mxu0
        %v940 = vadd.f32 %v423, %v939
        %v941 = vpop.f32.mrb[0].mxu0
        %v942 = vpop.f32.mrb[0].mxu0
        %943 = vdwg.mxu0
        %944 = vmatprep.subr.bf16.mxu0 0
        %945 = vmatpush1.bf16.msra.mxu0 %v385
        %946 = vmatprep.subr.bf16.mxu0 0
        %947 = vmatpush1.bf16.msra.mxu0 %v388
        %948 = vmatprep.subr.bf16.mxu0 0
        %949 = vmatpush1.bf16.msra.mxu0 %v391
        %950 = vmatprep.subr.bf16.mxu0 0
        %951 = vmatpush1.bf16.msra.mxu0 %v394
        %952 = vmatprep.subr.bf16.mxu0 0
        %953 = vmatpush1.bf16.msra.mxu0 %v397
        %954 = vmatprep.subr.bf16.mxu0 0
        %955 = vmatpush1.bf16.msra.mxu0 %v400
        %956 = vmatprep.subr.bf16.mxu0 0
        %957 = vmatpush1.bf16.msra.mxu0 %v403
        %958 = vmatprep.subr.bf16.mxu0 0
        %959 = vmatpush1.bf16.msra.mxu0 %v406
        %960 = vmatprep.subr.bf16.mxu0 0
        %961 = vmatpush1.bf16.msra.mxu0 0
        %962 = vmatprep.subr.bf16.mxu0 0
        %963 = vmatpush1.bf16.msra.mxu0 0
        %964 = vmatprep.subr.bf16.mxu0 0
        %965 = vmatpush1.bf16.msra.mxu0 0
        %966 = vmatprep.subr.bf16.mxu0 0
        %967 = vmatpush1.bf16.msra.mxu0 0
        %968 = vmatprep.subr.bf16.mxu0 0
        %969 = vmatpush1.bf16.msra.mxu0 0
        %970 = vmatprep.subr.bf16.mxu0 0
        %971 = vmatpush1.bf16.msra.mxu0 0
        %972 = vmatprep.subr.bf16.mxu0 0
        %973 = vmatpush1.bf16.msra.mxu0 0
        %974 = vmatprep.subr.bf16.mxu0 0
        %975 = vmatpush1.bf16.msra.mxu0 0
        %976 = vmatprep.mubr.bf16.mxu0 0
        %977 = vmatmul.mubr.bf16.gmra.mrb[0].mxu0 %v902
        %v978 = vpop.f32.mrb[0].mxu0
        %v979 = vadd.f32 %v427, %v978
        %v980 = vpop.f32.mrb[0].mxu0
        %v981 = vpop.f32.mrb[0].mxu0
        %v982 = vpop.f32.mrb[0].mxu0
        %983 = vdwg.mxu0
        %v984 = vadd.f32 %v901, %v938
        %v985 = vxor.u32 %v984, 2147483648
        %v986 = vmul.f32 %v985, 1.442695
        %v987 = vpow.pop %v986
        %v988 = vadd.f32 %v987, 1.0
        %v989 = vrcp.pop %v988
        %v990 = vmul.f32 1.0, %v989
        %v992 = vrot.slane %v901, 2
        %v994 = vadd.f32 %v992, %v940
        %v995 = vxor.u32 %v994, 2147483648
        %v996 = vmul.f32 %v995, 1.442695
        %v997 = vpow.pop %v996
        %v998 = vadd.f32 %v997, 1.0
        %v999 = vrcp.pop %v998
        %v1000 = vmul.f32 1.0, %v999
        %v1001 = vmul.f32 %v990, %v979
        %v1002 = vrot.slane %v901, 4
        %v1004 = vadd.f32 %v1002, %v1001
        %v1005 = vtanh.pop %v1004
        %v1006 = vsub.f32 1.0, %v1000
        %v1007 = vmul.f32 %v1006, %v1005
        %v1008 = vmul.f32 %v1000, %v891
        %v1009 = vadd.f32 %v1007, %v1008
        %s1010 = smul.u32 %s897, 2
        %s1011 = scalar_lea.vmem %s306, %s1010 [#allocation4]
        %1012 = vst [vmem:[%s1011] sm:$0x3] %v1009
        %s1013 = smul.u32 %s541, 5
        %s1014 = smul.u32 %s18, 2
        %s1015 = sadd.s32 %s1013, %s1014
        %s1016 = smul.u32 %s1015, 3
        %s1017 = smul.addr %s1016, 2
        %s1018 = scalar_lea.vmem %s278, %s1017 [#allocation3]
        %v1019 = vld [vmem:[%s1018] sm:$0x3f]
        %v1020 = vpack.c.bf16 %v1009, %v1009
        %1021 = vmatprep.subr.bf16.mxu0 %v384
        %1022 = vmatpush1.bf16.msra.mxu0 %v383
        %1023 = vmatprep.subr.bf16.mxu0 %v387
        %1024 = vmatpush1.bf16.msra.mxu0 %v386
        %1025 = vmatprep.subr.bf16.mxu0 %v390
        %1026 = vmatpush1.bf16.msra.mxu0 %v389
        %1027 = vmatprep.subr.bf16.mxu0 %v393
        %1028 = vmatpush1.bf16.msra.mxu0 %v392
        %1029 = vmatprep.subr.bf16.mxu0 %v396
        %1030 = vmatpush1.bf16.msra.mxu0 %v395
        %1031 = vmatprep.subr.bf16.mxu0 %v399
        %1032 = vmatpush1.bf16.msra.mxu0 %v398
        %1033 = vmatprep.subr.bf16.mxu0 %v402
        %1034 = vmatpush1.bf16.msra.mxu0 %v401
        %1035 = vmatprep.subr.bf16.mxu0 %v405
        %1036 = vmatpush1.bf16.msra.mxu0 %v404
        %1037 = vmatprep.subr.bf16.mxu0 0
        %1038 = vmatpush1.bf16.msra.mxu0 0
        %1039 = vmatprep.subr.bf16.mxu0 0
        %1040 = vmatpush1.bf16.msra.mxu0 0
        %1041 = vmatprep.subr.bf16.mxu0 0
        %1042 = vmatpush1.bf16.msra.mxu0 0
        %1043 = vmatprep.subr.bf16.mxu0 0
        %1044 = vmatpush1.bf16.msra.mxu0 0
        %1045 = vmatprep.subr.bf16.mxu0 0
        %1046 = vmatpush1.bf16.msra.mxu0 0
        %1047 = vmatprep.subr.bf16.mxu0 0
        %1048 = vmatpush1.bf16.msra.mxu0 0
        %1049 = vmatprep.subr.bf16.mxu0 0
        %1050 = vmatpush1.bf16.msra.mxu0 0
        %1051 = vmatprep.subr.bf16.mxu0 0
        %1052 = vmatpush1.bf16.msra.mxu0 0
        %1053 = vmatprep.mubr.bf16.mxu0 0
        %1054 = vmatmul.mubr.bf16.gmra.mrb[0].mxu0 %v1020
        %v1055 = vpop.f32.mrb[0].mxu0
        %v1056 = vadd.f32 %v419, %v1055
        %v1057 = vpop.f32.mrb[0].mxu0
        %v1058 = vadd.f32 %v423, %v1057
        %v1059 = vpop.f32.mrb[0].mxu0
        %v1060 = vpop.f32.mrb[0].mxu0
        %1061 = vdwg.mxu0
        %1062 = vmatprep.subr.bf16.mxu0 0
        %1063 = vmatpush1.bf16.msra.mxu0 %v385
        %1064 = vmatprep.subr.bf16.mxu0 0
        %1065 = vmatpush1.bf16.msra.mxu0 %v388
        %1066 = vmatprep.subr.bf16.mxu0 0
        %1067 = vmatpush1.bf16.msra.mxu0 %v391
        %1068 = vmatprep.subr.bf16.mxu0 0
        %1069 = vmatpush1.bf16.msra.mxu0 %v394
        %1070 = vmatprep.subr.bf16.mxu0 0
        %1071 = vmatpush1.bf16.msra.mxu0 %v397
        %1072 = vmatprep.subr.bf16.mxu0 0
        %1073 = vmatpush1.bf16.msra.mxu0 %v400
        %1074 = vmatprep.subr.bf16.mxu0 0
        %1075 = vmatpush1.bf16.msra.mxu0 %v403
        %1076 = vmatprep.subr.bf16.mxu0 0
        %1077 = vmatpush1.bf16.msra.mxu0 %v406
        %1078 = vmatprep.subr.bf16.mxu0 0
        %1079 = vmatpush1.bf16.msra.mxu0 0
        %1080 = vmatprep.subr.bf16.mxu0 0
        %1081 = vmatpush1.bf16.msra.mxu0 0
        %1082 = vmatprep.subr.bf16.mxu0 0
        %1083 = vmatpush1.bf16.msra.mxu0 0
        %1084 = vmatprep.subr.bf16.mxu0 0
        %1085 = vmatpush1.bf16.msra.mxu0 0
        %1086 = vmatprep.subr.bf16.mxu0 0
        %1087 = vmatpush1.bf16.msra.mxu0 0
        %1088 = vmatprep.subr.bf16.mxu0 0
        %1089 = vmatpush1.bf16.msra.mxu0 0
        %1090 = vmatprep.subr.bf16.mxu0 0
        %1091 = vmatpush1.bf16.msra.mxu0 0
        %1092 = vmatprep.subr.bf16.mxu0 0
        %1093 = vmatpush1.bf16.msra.mxu0 0
        %1094 = vmatprep.mubr.bf16.mxu0 0
        %1095 = vmatmul.mubr.bf16.gmra.mrb[0].mxu0 %v1020
        %v1096 = vpop.f32.mrb[0].mxu0
        %v1097 = vadd.f32 %v427, %v1096
        %v1098 = vpop.f32.mrb[0].mxu0
        %v1099 = vpop.f32.mrb[0].mxu0
        %v1100 = vpop.f32.mrb[0].mxu0
        %1101 = vdwg.mxu0
        %v1102 = vadd.f32 %v1019, %v1056
        %v1103 = vxor.u32 %v1102, 2147483648
        %v1104 = vmul.f32 %v1103, 1.442695
        %v1105 = vpow.pop %v1104
        %v1106 = vadd.f32 %v1105, 1.0
        %v1107 = vrcp.pop %v1106
        %v1108 = vmul.f32 1.0, %v1107
        %v1110 = vrot.slane %v1019, 2
        %v1112 = vadd.f32 %v1110, %v1058
        %v1113 = vxor.u32 %v1112, 2147483648
        %v1114 = vmul.f32 %v1113, 1.442695
        %v1115 = vpow.pop %v1114
        %v1116 = vadd.f32 %v1115, 1.0
        %v1117 = vrcp.pop %v1116
        %v1118 = vmul.f32 1.0, %v1117
        %v1119 = vmul.f32 %v1108, %v1097
        %v1120 = vrot.slane %v1019, 4
        %v1122 = vadd.f32 %v1120, %v1119
        %v1123 = vtanh.pop %v1122
        %v1124 = vsub.f32 1.0, %v1118
        %v1125 = vmul.f32 %v1124, %v1123
        %v1126 = vmul.f32 %v1118, %v1009
        %v1127 = vadd.f32 %v1125, %v1126
        %s1128 = smul.u32 %s1015, 2
        %s1129 = scalar_lea.vmem %s306, %s1128 [#allocation4]
        %1130 = vst [vmem:[%s1129] sm:$0x3] %v1127
        %s1131 = smul.u32 %s541, 6
        %s1132 = sadd.s32 %s1131, %s18
        %s1133 = smul.u32 %s1132, 3
        %s1134 = smul.addr %s1133, 2
        %s1135 = scalar_lea.vmem %s278, %s1134 [#allocation3]
        %v1136 = vld [vmem:[%s1135] sm:$0x3f]
        %v1137 = vpack.c.bf16 %v1127, %v1127
        %1138 = vmatprep.subr.bf16.mxu0 %v384
        %1139 = vmatpush1.bf16.msra.mxu0 %v383
        %1140 = vmatprep.subr.bf16.mxu0 %v387
        %1141 = vmatpush1.bf16.msra.mxu0 %v386
        %1142 = vmatprep.subr.bf16.mxu0 %v390
        %1143 = vmatpush1.bf16.msra.mxu0 %v389
        %1144 = vmatprep.subr.bf16.mxu0 %v393
        %1145 = vmatpush1.bf16.msra.mxu0 %v392
        %1146 = vmatprep.subr.bf16.mxu0 %v396
        %1147 = vmatpush1.bf16.msra.mxu0 %v395
        %1148 = vmatprep.subr.bf16.mxu0 %v399
        %1149 = vmatpush1.bf16.msra.mxu0 %v398
        %1150 = vmatprep.subr.bf16.mxu0 %v402
        %1151 = vmatpush1.bf16.msra.mxu0 %v401
        %1152 = vmatprep.subr.bf16.mxu0 %v405
        %1153 = vmatpush1.bf16.msra.mxu0 %v404
        %1154 = vmatprep.subr.bf16.mxu0 0
        %1155 = vmatpush1.bf16.msra.mxu0 0
        %1156 = vmatprep.subr.bf16.mxu0 0
        %1157 = vmatpush1.bf16.msra.mxu0 0
        %1158 = vmatprep.subr.bf16.mxu0 0
        %1159 = vmatpush1.bf16.msra.mxu0 0
        %1160 = vmatprep.subr.bf16.mxu0 0
        %1161 = vmatpush1.bf16.msra.mxu0 0
        %1162 = vmatprep.subr.bf16.mxu0 0
        %1163 = vmatpush1.bf16.msra.mxu0 0
        %1164 = vmatprep.subr.bf16.mxu0 0
        %1165 = vmatpush1.bf16.msra.mxu0 0
        %1166 = vmatprep.subr.bf16.mxu0 0
        %1167 = vmatpush1.bf16.msra.mxu0 0
        %1168 = vmatprep.subr.bf16.mxu0 0
        %1169 = vmatpush1.bf16.msra.mxu0 0
        %1170 = vmatprep.mubr.bf16.mxu0 0
        %1171 = vmatmul.mubr.bf16.gmra.mrb[0].mxu0 %v1137
        %v1172 = vpop.f32.mrb[0].mxu0
        %v1173 = vadd.f32 %v419, %v1172
        %v1174 = vpop.f32.mrb[0].mxu0
        %v1175 = vadd.f32 %v423, %v1174
        %v1176 = vpop.f32.mrb[0].mxu0
        %v1177 = vpop.f32.mrb[0].mxu0
        %1178 = vdwg.mxu0
        %1179 = vmatprep.subr.bf16.mxu0 0
        %1180 = vmatpush1.bf16.msra.mxu0 %v385
        %1181 = vmatprep.subr.bf16.mxu0 0
        %1182 = vmatpush1.bf16.msra.mxu0 %v388
        %1183 = vmatprep.subr.bf16.mxu0 0
        %1184 = vmatpush1.bf16.msra.mxu0 %v391
        %1185 = vmatprep.subr.bf16.mxu0 0
        %1186 = vmatpush1.bf16.msra.mxu0 %v394
        %1187 = vmatprep.subr.bf16.mxu0 0
        %1188 = vmatpush1.bf16.msra.mxu0 %v397
        %1189 = vmatprep.subr.bf16.mxu0 0
        %1190 = vmatpush1.bf16.msra.mxu0 %v400
        %1191 = vmatprep.subr.bf16.mxu0 0
        %1192 = vmatpush1.bf16.msra.mxu0 %v403
        %1193 = vmatprep.subr.bf16.mxu0 0
        %1194 = vmatpush1.bf16.msra.mxu0 %v406
        %1195 = vmatprep.subr.bf16.mxu0 0
        %1196 = vmatpush1.bf16.msra.mxu0 0
        %1197 = vmatprep.subr.bf16.mxu0 0
        %1198 = vmatpush1.bf16.msra.mxu0 0
        %1199 = vmatprep.subr.bf16.mxu0 0
        %1200 = vmatpush1.bf16.msra.mxu0 0
        %1201 = vmatprep.subr.bf16.mxu0 0
        %1202 = vmatpush1.bf16.msra.mxu0 0
        %1203 = vmatprep.subr.bf16.mxu0 0
        %1204 = vmatpush1.bf16.msra.mxu0 0
        %1205 = vmatprep.subr.bf16.mxu0 0
        %1206 = vmatpush1.bf16.msra.mxu0 0
        %1207 = vmatprep.subr.bf16.mxu0 0
        %1208 = vmatpush1.bf16.msra.mxu0 0
        %1209 = vmatprep.subr.bf16.mxu0 0
        %1210 = vmatpush1.bf16.msra.mxu0 0
        %1211 = vmatprep.mubr.bf16.mxu0 0
        %1212 = vmatmul.mubr.bf16.gmra.mrb[0].mxu0 %v1137
        %v1213 = vpop.f32.mrb[0].mxu0
        %v1214 = vadd.f32 %v427, %v1213
        %v1215 = vpop.f32.mrb[0].mxu0
        %v1216 = vpop.f32.mrb[0].mxu0
        %v1217 = vpop.f32.mrb[0].mxu0
        %1218 = vdwg.mxu0
        %v1219 = vadd.f32 %v1136, %v1173
        %v1220 = vxor.u32 %v1219, 2147483648
        %v1221 = vmul.f32 %v1220, 1.442695
        %v1222 = vpow.pop %v1221
        %v1223 = vadd.f32 %v1222, 1.0
        %v1224 = vrcp.pop %v1223
        %v1225 = vmul.f32 1.0, %v1224
        %v1227 = vrot.slane %v1136, 2
        %v1229 = vadd.f32 %v1227, %v1175
        %v1230 = vxor.u32 %v1229, 2147483648
        %v1231 = vmul.f32 %v1230, 1.442695
        %v1232 = vpow.pop %v1231
        %v1233 = vadd.f32 %v1232, 1.0
        %v1234 = vrcp.pop %v1233
        %v1235 = vmul.f32 1.0, %v1234
        %v1236 = vmul.f32 %v1225, %v1214
        %v1237 = vrot.slane %v1136, 4
        %v1239 = vadd.f32 %v1237, %v1236
        %v1240 = vtanh.pop %v1239
        %v1241 = vsub.f32 1.0, %v1235
        %v1242 = vmul.f32 %v1241, %v1240
        %v1243 = vmul.f32 %v1235, %v1127
        %v1244 = vadd.f32 %v1242, %v1243
        %s1245 = smul.u32 %s1132, 2
        %s1246 = scalar_lea.vmem %s306, %s1245 [#allocation4]
        %1247 = vst [vmem:[%s1246] sm:$0x3] %v1244
        %s1248 = smul.u32 %s541, 7
        %s1249 = smul.u32 %s1248, 3
        %s1250 = smul.addr %s1249, 2
        %s1251 = scalar_lea.vmem %s278, %s1250 [#allocation3]
        %v1252 = vld [vmem:[%s1251] sm:$0x3f]
        %v1253 = vpack.c.bf16 %v1244, %v1244
        %1254 = vmatprep.subr.bf16.mxu0 %v384
        %1255 = vmatpush1.bf16.msra.mxu0 %v383
        %1256 = vmatprep.subr.bf16.mxu0 %v387
        %1257 = vmatpush1.bf16.msra.mxu0 %v386
        %1258 = vmatprep.subr.bf16.mxu0 %v390
        %1259 = vmatpush1.bf16.msra.mxu0 %v389
        %1260 = vmatprep.subr.bf16.mxu0 %v393
        %1261 = vmatpush1.bf16.msra.mxu0 %v392
        %1262 = vmatprep.subr.bf16.mxu0 %v396
        %1263 = vmatpush1.bf16.msra.mxu0 %v395
        %1264 = vmatprep.subr.bf16.mxu0 %v399
        %1265 = vmatpush1.bf16.msra.mxu0 %v398
        %1266 = vmatprep.subr.bf16.mxu0 %v402
        %1267 = vmatpush1.bf16.msra.mxu0 %v401
        %1268 = vmatprep.subr.bf16.mxu0 %v405
        %1269 = vmatpush1.bf16.msra.mxu0 %v404
        %1270 = vmatprep.subr.bf16.mxu0 0
        %1271 = vmatpush1.bf16.msra.mxu0 0
        %1272 = vmatprep.subr.bf16.mxu0 0
        %1273 = vmatpush1.bf16.msra.mxu0 0
        %1274 = vmatprep.subr.bf16.mxu0 0
        %1275 = vmatpush1.bf16.msra.mxu0 0
        %1276 = vmatprep.subr.bf16.mxu0 0
        %1277 = vmatpush1.bf16.msra.mxu0 0
        %1278 = vmatprep.subr.bf16.mxu0 0
        %1279 = vmatpush1.bf16.msra.mxu0 0
        %1280 = vmatprep.subr.bf16.mxu0 0
        %1281 = vmatpush1.bf16.msra.mxu0 0
        %1282 = vmatprep.subr.bf16.mxu0 0
        %1283 = vmatpush1.bf16.msra.mxu0 0
        %1284 = vmatprep.subr.bf16.mxu0 0
        %1285 = vmatpush1.bf16.msra.mxu0 0
        %1286 = vmatprep.mubr.bf16.mxu0 0
        %1287 = vmatmul.mubr.bf16.gmra.mrb[0].mxu0 %v1253
        %v1288 = vpop.f32.mrb[0].mxu0
        %v1289 = vadd.f32 %v419, %v1288
        %v1290 = vpop.f32.mrb[0].mxu0
        %v1291 = vadd.f32 %v423, %v1290
        %v1292 = vpop.f32.mrb[0].mxu0
        %v1293 = vpop.f32.mrb[0].mxu0
        %1294 = vdwg.mxu0
        %1295 = vmatprep.subr.bf16.mxu0 0
        %1296 = vmatpush1.bf16.msra.mxu0 %v385
        %1297 = vmatprep.subr.bf16.mxu0 0
        %1298 = vmatpush1.bf16.msra.mxu0 %v388
        %1299 = vmatprep.subr.bf16.mxu0 0
        %1300 = vmatpush1.bf16.msra.mxu0 %v391
        %1301 = vmatprep.subr.bf16.mxu0 0
        %1302 = vmatpush1.bf16.msra.mxu0 %v394
        %1303 = vmatprep.subr.bf16.mxu0 0
        %1304 = vmatpush1.bf16.msra.mxu0 %v397
        %1305 = vmatprep.subr.bf16.mxu0 0
        %1306 = vmatpush1.bf16.msra.mxu0 %v400
        %1307 = vmatprep.subr.bf16.mxu0 0
        %1308 = vmatpush1.bf16.msra.mxu0 %v403
        %1309 = vmatprep.subr.bf16.mxu0 0
        %1310 = vmatpush1.bf16.msra.mxu0 %v406
        %1311 = vmatprep.subr.bf16.mxu0 0
        %1312 = vmatpush1.bf16.msra.mxu0 0
        %1313 = vmatprep.subr.bf16.mxu0 0
        %1314 = vmatpush1.bf16.msra.mxu0 0
        %1315 = vmatprep.subr.bf16.mxu0 0
        %1316 = vmatpush1.bf16.msra.mxu0 0
        %1317 = vmatprep.subr.bf16.mxu0 0
        %1318 = vmatpush1.bf16.msra.mxu0 0
        %1319 = vmatprep.subr.bf16.mxu0 0
        %1320 = vmatpush1.bf16.msra.mxu0 0
        %1321 = vmatprep.subr.bf16.mxu0 0
        %1322 = vmatpush1.bf16.msra.mxu0 0
        %1323 = vmatprep.subr.bf16.mxu0 0
        %1324 = vmatpush1.bf16.msra.mxu0 0
        %1325 = vmatprep.subr.bf16.mxu0 0
        %1326 = vmatpush1.bf16.msra.mxu0 0
        %1327 = vmatprep.mubr.bf16.mxu0 0
        %1328 = vmatmul.mubr.bf16.gmra.mrb[0].mxu0 %v1253
        %v1329 = vpop.f32.mrb[0].mxu0
        %v1330 = vadd.f32 %v427, %v1329
        %v1331 = vpop.f32.mrb[0].mxu0
        %v1332 = vpop.f32.mrb[0].mxu0
        %v1333 = vpop.f32.mrb[0].mxu0
        %1334 = vdwg.mxu0
        %v1335 = vadd.f32 %v1252, %v1289
        %v1336 = vxor.u32 %v1335, 2147483648
        %v1337 = vmul.f32 %v1336, 1.442695
        %v1338 = vpow.pop %v1337
        %v1339 = vadd.f32 %v1338, 1.0
        %v1340 = vrcp.pop %v1339
        %v1341 = vmul.f32 1.0, %v1340
        %v1343 = vrot.slane %v1252, 2
        %v1345 = vadd.f32 %v1343, %v1291
        %v1346 = vxor.u32 %v1345, 2147483648
        %v1347 = vmul.f32 %v1346, 1.442695
        %v1348 = vpow.pop %v1347
        %v1349 = vadd.f32 %v1348, 1.0
        %v1350 = vrcp.pop %v1349
        %v1351 = vmul.f32 1.0, %v1350
        %v1352 = vmul.f32 %v1341, %v1330
        %v1353 = vrot.slane %v1252, 4
        %v1355 = vadd.f32 %v1353, %v1352
        %v1356 = vtanh.pop %v1355
        %v1357 = vsub.f32 1.0, %v1351
        %v1358 = vmul.f32 %v1357, %v1356
        %v1359 = vmul.f32 %v1351, %v1244
        %v1360 = vadd.f32 %v1358, %v1359
        %s1361 = smul.u32 %s1248, 2
        %s1362 = scalar_lea.vmem %s306, %s1361 [#allocation4]
        %1363 = vst [vmem:[%s1362] sm:$0x3] %v1360
        %1364 = vst [vmem:[#allocation2] sm:$0x3] %v1360
        %s1365 = sand.u32 %s136, 1
        %s1366 = sand.u32 %s136, 1
        %s1367 = smul.addr %s1366, 16
        %s1368 = scalar_lea.vmem [#allocation4], %s1367
        // Predicated region
        $region78: #{speech_recognition_forward.26} parent=68 // pred_check
          %p1369 = pneg %p146
        $region79: #{speech_recognition_forward.26} parent=68 // pred_check_branch
          %1371 = sbr.rel (%p1369) target = $region81
        $region80: #{speech_recognition_forward.26} parent=68 // pred_region
          %s1372 = ssub.s32 1, %s18
          %s1373 = smul.u32 %s19, %s1372
          %s1374 = ssub.s32 0, %s19
          %s1375 = smul.u32 %s1374, %s18
          %s1376 = sadd.s32 %s1373, %s1375
          %s1377 = smul.u32 8, %s1376
          %s1378 = smul.addr %s1377, 2
          %s1379 = sadd.s32 %s18, %s1378
          %s1380 = smul.addr %s1379, 2
          %s1381 = scalar_lea.vmem %s3, %s1380
          // Predicated region
          $region82: #{speech_recognition_forward.26} parent=80 // pred_check
            _
          $region83: #{speech_recognition_forward.26} parent=80 // pred_check_branch
            %1383 = sbr.rel (0) target = $region85
          $region84: #{speech_recognition_forward.26} parent=80 // pred_region
            // Predicated region
            $region86: #{speech_recognition_forward.26} parent=84 // pred_check
              _
            $region87: #{speech_recognition_forward.26} parent=84 // pred_check_branch
              %1385 = sbr.rel target = $region89
            $region88: #{speech_recognition_forward.26} parent=84 // pred_region
              // Predicated region
              $region101: #{speech_recognition_forward.26} parent=88 // pred_check
                _
              $region102: #{speech_recognition_forward.26} parent=88 // pred_check_branch
                %1414 = sbr.rel (0) target = $region104
              $region103: #{speech_recognition_forward.26} parent=88 // pred_region
                loop: start=0, step=1, limit=1
                $region105: #{speech_recognition_forward.26} parent=103 // loop_pre_header
                  _
                $region106: #{speech_recognition_forward.26} parent=103 // loop_header
                  %s1416 = sphi 0, %s1420
                  %p1417 = scmp.ge.s32.totalorder %s1416, 1
                  %s1421 = sphi %s1368, %s1368
                  %s1422 = sphi %s1381, %s1381
                $region107: #{speech_recognition_forward.26} parent=103 // loop_header_branch
                  %1419 = sbr.rel (%p1417) target = $region111
                $region108: #{speech_recognition_forward.26} parent=103 // loop_body
                  _
                $region109: #{speech_recognition_forward.26} parent=103 // loop_footer
                  %s1420 = sadd.s32 1, %s1416
                $region110: #{speech_recognition_forward.26} parent=103 // loop_footer_branch
                  %1415 = sbr.rel target = $region106
                $region111: #{speech_recognition_forward.26} parent=103 // loop_exit
                  _
                loop: start=0, step=1, limit=1
                $region112: #{speech_recognition_forward.26} parent=103 // loop_pre_header
                  _
                $region113: #{speech_recognition_forward.26} parent=103 // loop_header
                  %s1425 = sphi 0, %s1429
                  %p1426 = scmp.ge.s32.totalorder %s1425, 1
                  %s1430 = sphi %s1368, %s1368
                  %s1431 = sphi %s1381, %s1381
                $region114: #{speech_recognition_forward.26} parent=103 // loop_header_branch
                  %1428 = sbr.rel (%p1426) target = $region118
                $region115: #{speech_recognition_forward.26} parent=103 // loop_body
                  %v1432 = vld [vmem:[%s1430] sm:$0x3]
                  %1433 = vst [vmem:[%s1431] sm:$0x3] %v1432
                  %v1434 = vld [vmem:[%s1430 + $0x2] sm:$0x3]
                  %1435 = vst [vmem:[%s1431 + $0x4] sm:$0x3] %v1434
                  %v1436 = vld [vmem:[%s1430 + $0x4] sm:$0x3]
                  %1437 = vst [vmem:[%s1431 + $0x8] sm:$0x3] %v1436
                  %v1438 = vld [vmem:[%s1430 + $0x6] sm:$0x3]
                  %1439 = vst [vmem:[%s1431 + $0xc] sm:$0x3] %v1438
                  %v1440 = vld [vmem:[%s1430 + $0x8] sm:$0x3]
                  %1441 = vst [vmem:[%s1431 + $0x10] sm:$0x3] %v1440
                  %v1442 = vld [vmem:[%s1430 + $0xa] sm:$0x3]
                  %1443 = vst [vmem:[%s1431 + $0x14] sm:$0x3] %v1442
                  %v1444 = vld [vmem:[%s1430 + $0xc] sm:$0x3]
                  %1445 = vst [vmem:[%s1431 + $0x18] sm:$0x3] %v1444
                  %v1446 = vld [vmem:[%s1430 + $0xe] sm:$0x3]
                  %1447 = vst [vmem:[%s1431 + $0x1c] sm:$0x3] %v1446
                $region116: #{speech_recognition_forward.26} parent=103 // loop_footer
                  %s1429 = sadd.s32 1, %s1425
                $region117: #{speech_recognition_forward.26} parent=103 // loop_footer_branch
                  %1424 = sbr.rel target = $region113
                $region118: #{speech_recognition_forward.26} parent=103 // loop_exit
                  _
              $region104: #{speech_recognition_forward.26} parent=88 // pred_fallthru
                _
            $region89: #{speech_recognition_forward.26} parent=84 // pred_fallthru
              _
            // Predicated region
            $region90: #{speech_recognition_forward.26} parent=84 // pred_check
              _
            $region91: #{speech_recognition_forward.26} parent=84 // pred_check_branch
              %1387 = sbr.rel (0) target = $region93
            $region92: #{speech_recognition_forward.26} parent=84 // pred_region
              loop: start=0, step=1, limit=1
              $region94: #{speech_recognition_forward.26} parent=92 // loop_pre_header
                _
              $region95: #{speech_recognition_forward.26} parent=92 // loop_header
                %s1390 = sphi 0, %s1394
                %p1391 = scmp.ge.s32.totalorder %s1390, 1
                %s1395 = sphi %s1368, %s1368
                %s1396 = sphi %s1381, %s1381
              $region96: #{speech_recognition_forward.26} parent=92 // loop_header_branch
                %1393 = sbr.rel (%p1391) target = $region100
              $region97: #{speech_recognition_forward.26} parent=92 // loop_body
                %v1397 = vld [vmem:[%s1395] sm:$0x3]
                %1398 = vst [vmem:[%s1396] sm:$0x3] %v1397
                %v1399 = vld [vmem:[%s1395 + $0x2] sm:$0x3]
                %1400 = vst [vmem:[%s1396 + $0x4] sm:$0x3] %v1399
                %v1401 = vld [vmem:[%s1395 + $0x4] sm:$0x3]
                %1402 = vst [vmem:[%s1396 + $0x8] sm:$0x3] %v1401
                %v1403 = vld [vmem:[%s1395 + $0x6] sm:$0x3]
                %1404 = vst [vmem:[%s1396 + $0xc] sm:$0x3] %v1403
                %v1405 = vld [vmem:[%s1395 + $0x8] sm:$0x3]
                %1406 = vst [vmem:[%s1396 + $0x10] sm:$0x3] %v1405
                %v1407 = vld [vmem:[%s1395 + $0xa] sm:$0x3]
                %1408 = vst [vmem:[%s1396 + $0x14] sm:$0x3] %v1407
                %v1409 = vld [vmem:[%s1395 + $0xc] sm:$0x3]
                %1410 = vst [vmem:[%s1396 + $0x18] sm:$0x3] %v1409
                %v1411 = vld [vmem:[%s1395 + $0xe] sm:$0x3]
                %1412 = vst [vmem:[%s1396 + $0x1c] sm:$0x3] %v1411
              $region98: #{speech_recognition_forward.26} parent=92 // loop_footer
                %s1394 = sadd.s32 1, %s1390
              $region99: #{speech_recognition_forward.26} parent=92 // loop_footer_branch
                %1389 = sbr.rel target = $region95
              $region100: #{speech_recognition_forward.26} parent=92 // loop_exit
                _
            $region93: #{speech_recognition_forward.26} parent=84 // pred_fallthru
              _
          $region85: #{speech_recognition_forward.26} parent=80 // pred_fallthru
            _
          %1448 = vnop
        $region81: #{speech_recognition_forward.26} parent=68 // pred_fallthru
          _
      $region69: #{speech_recognition_forward.26} parent=5 // pred_fallthru
        _
      %p1449 = scmp.le.s32.totalorder 2, %s9
      // Predicated region
      $region119: #{speech_recognition_forward.26} parent=5 // pred_check
        %p1450 = pneg %p1449
      $region120: #{speech_recognition_forward.26} parent=5 // pred_check_branch
        %1452 = sbr.rel (%p1450) target = $region122
      $region121: #{speech_recognition_forward.26} parent=5 // pred_region
        %s1453 = ssub.s32 %s9, 2
        // Predicated region
        $region123: #{speech_recognition_forward.26} parent=121 // pred_check
          %p1454 = pneg %p152
        $region124: #{speech_recognition_forward.26} parent=121 // pred_check_branch
          %1456 = sbr.rel (%p1454) target = $region126
        $region125: #{speech_recognition_forward.26} parent=121 // pred_region
          %s1457 = sand.u32 %s137, 1
          %s1458 = sand.u32 %s137, 1
          %s1459 = smul.addr %s1458, 16
          %s1460 = scalar_lea.vmem [#allocation4], %s1459
        $region126: #{speech_recognition_forward.26} parent=121 // pred_fallthru
          _
      $region122: #{speech_recognition_forward.26} parent=5 // pred_fallthru
        _
    $region6: #{speech_recognition_forward.26} parent=1 // loop_footer
      %s13 = sadd.s32 1, %s9
    $region7: #{speech_recognition_forward.26} parent=1 // loop_footer_branch
      %8 = sbr.rel target = $region3
    $region8: #{speech_recognition_forward.26} parent=1 // loop_exit
      _

// kernel: speech_recognition_forward.29
$region0: #{speech_recognition_forward.29}
  #allocation0 [shape = 'u32[]', space=smem, size = 0x4, offset = 0x4, fixed_abs, tag = 'smem constant byte address 0x4 - core index']
  #allocation1 [shape = 'u32[144,128]{1,0:T(1,128)}', space=vmem, size = 0x12000, scoped, tag = 'internal scratch']
  #allocation2 [shape = 'bf16[16,128]{1,0:T(16,128)(2,1)}', space=vmem, size = 0x1000, scoped, tag = 'scratch operand']
  %s0 = inlined_call_operand.vmem [shape: f32[16,64], index: 0, kind: input, shape index: {}]
  %s1 = inlined_call_operand.vmem [shape: f32[64,128], index: 1, kind: input, shape index: {}]
  %s2 = inlined_call_operand.vmem [shape: f32[1,128], index: 2, kind: input, shape index: {}]
  %s3 = inlined_call_operand.vmem [shape: f32[128,128], index: 3, kind: input, shape index: {}]
  %s4 = inlined_call_operand.vmem [shape: f32[1,128], index: 4, kind: input, shape index: {}]
  %s5 = inlined_call_operand.vmem [shape: f32[16,128], index: 5, kind: output, shape index: {}]
  %s6 = sld [smem:[#allocation0]]
  $region30: #{speech_recognition_forward.29} parent=0
    _
  %s8 = ssub.s32 1, %s6
  %s9 = scalar_select 0, %s8, %s6
  // Predicated region
  $region2: #{speech_recognition_forward.29} parent=0 // pred_check
    _
  $region3: #{speech_recognition_forward.29} parent=0 // pred_check_branch
    %11 = sbr.rel (0) target = $region5
  $region4: #{speech_recognition_forward.29} parent=0 // pred_region
    _
  $region5: #{speech_recognition_forward.29} parent=0 // pred_fallthru
    _
  // Predicated region
  $region6: #{speech_recognition_forward.29} parent=0 // pred_check
    _
  $region7: #{speech_recognition_forward.29} parent=0 // pred_check_branch
    %13 = sbr.rel (0) target = $region9
  $region8: #{speech_recognition_forward.29} parent=0 // pred_region
    _
  $region9: #{speech_recognition_forward.29} parent=0 // pred_fallthru
    _
  // Predicated region
  $region10: #{speech_recognition_forward.29} parent=0 // pred_check
    _
  $region11: #{speech_recognition_forward.29} parent=0 // pred_check_branch
    %15 = sbr.rel (0) target = $region13
  $region12: #{speech_recognition_forward.29} parent=0 // pred_region
    _
  $region13: #{speech_recognition_forward.29} parent=0 // pred_fallthru
    _
  // Predicated region
  $region14: #{speech_recognition_forward.29} parent=0 // pred_check
    _
  $region15: #{speech_recognition_forward.29} parent=0 // pred_check_branch
    %17 = sbr.rel (0) target = $region17
  $region16: #{speech_recognition_forward.29} parent=0 // pred_region
    _
  $region17: #{speech_recognition_forward.29} parent=0 // pred_fallthru
    _
  // Predicated region
  $region18: #{speech_recognition_forward.29} parent=0 // pred_check
    _
  $region19: #{speech_recognition_forward.29} parent=0 // pred_check_branch
    %19 = sbr.rel (0) target = $region21
  $region20: #{speech_recognition_forward.29} parent=0 // pred_region
    _
  $region21: #{speech_recognition_forward.29} parent=0 // pred_fallthru
    _
  %v21 = vld [vmem:[%s0] sm:$0xff]
  %v22 = vld [vmem:[%s0 + $0x8] sm:$0xff]
  %v23 = vpack.c.bf16 %v22, %v21
  %v24 = vld [vmem:[%s1] sm:$0xff]
  %v25 = vld [vmem:[%s1 + $0x8] sm:$0xff]
  %v26 = vld [vmem:[%s1 + $0x10] sm:$0xff]
  %v27 = vld [vmem:[%s1 + $0x18] sm:$0xff]
  %v28 = vld [vmem:[%s1 + $0x20] sm:$0xff]
  %v29 = vld [vmem:[%s1 + $0x28] sm:$0xff]
  %v30 = vld [vmem:[%s1 + $0x30] sm:$0xff]
  %v31 = vld [vmem:[%s1 + $0x38] sm:$0xff]
  %v32 = vpack.c.bf16 %v25, %v24
  %v33 = vpack.c.bf16 %v27, %v26
  %v34 = vpack.c.bf16 %v29, %v28
  %v35 = vpack.c.bf16 %v31, %v30
  %v36 = vld [vmem:[%s2] sm:$0x1]
  %v38 = vlaneseq
  %v39 = vshrl.u32 %v38, 7
  %v40 = vsub.s32 0, %v39
  %v41 = vrot.slane %v36, %v40
  %vm43 = vcmask 523264
  %v45 = vsel %vm43, %v23, 0
  %47 = vmatprep.subr.bf16.mxu0 0
  %48 = vmatpush1.bf16.msra.mxu0 %v32
  %49 = vmatprep.subr.bf16.mxu0 0
  %50 = vmatpush1.bf16.msra.mxu0 %v33
  %51 = vmatprep.subr.bf16.mxu0 0
  %52 = vmatpush1.bf16.msra.mxu0 %v34
  %53 = vmatprep.subr.bf16.mxu0 0
  %54 = vmatpush1.bf16.msra.mxu0 %v35
  %55 = vmatprep.subr.bf16.mxu0 0
  %56 = vmatpush1.bf16.msra.mxu0 0
  %57 = vmatprep.subr.bf16.mxu0 0
  %58 = vmatpush1.bf16.msra.mxu0 0
  %59 = vmatprep.subr.bf16.mxu0 0
  %60 = vmatpush1.bf16.msra.mxu0 0
  %61 = vmatprep.subr.bf16.mxu0 0
  %62 = vmatpush1.bf16.msra.mxu0 0
  %63 = vmatprep.subr.bf16.mxu0 0
  %64 = vmatpush1.bf16.msra.mxu0 0
  %65 = vmatprep.subr.bf16.mxu0 0
  %66 = vmatpush1.bf16.msra.mxu0 0
  %67 = vmatprep.subr.bf16.mxu0 0
  %68 = vmatpush1.bf16.msra.mxu0 0
  %69 = vmatprep.subr.bf16.mxu0 0
  %70 = vmatpush1.bf16.msra.mxu0 0
  %71 = vmatprep.subr.bf16.mxu0 0
  %72 = vmatpush1.bf16.msra.mxu0 0
  %73 = vmatprep.subr.bf16.mxu0 0
  %74 = vmatpush1.bf16.msra.mxu0 0
  %75 = vmatprep.subr.bf16.mxu0 0
  %76 = vmatpush1.bf16.msra.mxu0 0
  %77 = vmatprep.subr.bf16.mxu0 0
  %78 = vmatpush1.bf16.msra.mxu0 0
  %79 = vmatprep.mubr.bf16.mxu0 0
  %80 = vmatmul.mubr.bf16.gmra.mrb[0].mxu0 %v45
  %v81 = vpop.f32.mrb[0].mxu0
  %v82 = vadd.f32 %v41, %v81
  %v83 = vpop.f32.mrb[0].mxu0
  %v84 = vpop.f32.mrb[0].mxu0
  %v85 = vadd.f32 %v41, %v84
  %v86 = vpop.f32.mrb[0].mxu0
  %87 = vdwg.mxu0
  %v88 = vmul.f32 %v82, 0.5
  %v89 = vmul.f32 %v85, 0.5
  %v90 = vrcp.pop 1.4142135
  %v91 = vmul.f32 %v82, %v90
  %v92 = vmul.f32 %v85, %v90
  %v93 = verf.f32.pop %v91
  %v94 = verf.f32.pop %v92
  %v95 = vadd.f32 %v93, 1.0
  %v96 = vadd.f32 %v94, 1.0
  %v97 = vmul.f32 %v88, %v95
  %v98 = vmul.f32 %v89, %v96
  %v99 = vpack.c.bf16 %v98, %v97
  %100 = vst [vmem:[#allocation2] sm:$0xff] %v99
  %v101 = vld [vmem:[#allocation2] sm:$0xff]
  %v102 = vld [vmem:[%s3] sm:$0xff]
  %v103 = vld [vmem:[%s3 + $0x8] sm:$0xff]
  %v104 = vld [vmem:[%s3 + $0x10] sm:$0xff]
  %v105 = vld [vmem:[%s3 + $0x18] sm:$0xff]
  %v106 = vld [vmem:[%s3 + $0x20] sm:$0xff]
  %v107 = vld [vmem:[%s3 + $0x28] sm:$0xff]
  %v108 = vld [vmem:[%s3 + $0x30] sm:$0xff]
  %v109 = vld [vmem:[%s3 + $0x38] sm:$0xff]
  %v110 = vld [vmem:[%s3 + $0x40] sm:$0xff]
  %v111 = vld [vmem:[%s3 + $0x48] sm:$0xff]
  %v112 = vld [vmem:[%s3 + $0x50] sm:$0xff]
  %v113 = vld [vmem:[%s3 + $0x58] sm:$0xff]
  %v114 = vld [vmem:[%s3 + $0x60] sm:$0xff]
  %v115 = vld [vmem:[%s3 + $0x68] sm:$0xff]
  %v116 = vld [vmem:[%s3 + $0x70] sm:$0xff]
  %v117 = vld [vmem:[%s3 + $0x78] sm:$0xff]
  %v118 = vpack.c.bf16 %v103, %v102
  %v119 = vpack.c.bf16 %v105, %v104
  %v120 = vpack.c.bf16 %v107, %v106
  %v121 = vpack.c.bf16 %v109, %v108
  %v122 = vpack.c.bf16 %v111, %v110
  %v123 = vpack.c.bf16 %v113, %v112
  %v124 = vpack.c.bf16 %v115, %v114
  %v125 = vpack.c.bf16 %v117, %v116
  %v126 = vld [vmem:[%s4] sm:$0x1]
  %v128 = vlaneseq
  %v129 = vshrl.u32 %v128, 7
  %v130 = vsub.s32 0, %v129
  %v131 = vrot.slane %v126, %v130
  %133 = vmatprep.subr.bf16.mxu0 0
  %134 = vmatpush1.bf16.msra.mxu0 %v118
  %135 = vmatprep.subr.bf16.mxu0 0
  %136 = vmatpush1.bf16.msra.mxu0 %v119
  %137 = vmatprep.subr.bf16.mxu0 0
  %138 = vmatpush1.bf16.msra.mxu0 %v120
  %139 = vmatprep.subr.bf16.mxu0 0
  %140 = vmatpush1.bf16.msra.mxu0 %v121
  %141 = vmatprep.subr.bf16.mxu0 0
  %142 = vmatpush1.bf16.msra.mxu0 %v122
  %143 = vmatprep.subr.bf16.mxu0 0
  %144 = vmatpush1.bf16.msra.mxu0 %v123
  %145 = vmatprep.subr.bf16.mxu0 0
  %146 = vmatpush1.bf16.msra.mxu0 %v124
  %147 = vmatprep.subr.bf16.mxu0 0
  %148 = vmatpush1.bf16.msra.mxu0 %v125
  %149 = vmatprep.subr.bf16.mxu0 0
  %150 = vmatpush1.bf16.msra.mxu0 0
  %151 = vmatprep.subr.bf16.mxu0 0
  %152 = vmatpush1.bf16.msra.mxu0 0
  %153 = vmatprep.subr.bf16.mxu0 0
  %154 = vmatpush1.bf16.msra.mxu0 0
  %155 = vmatprep.subr.bf16.mxu0 0
  %156 = vmatpush1.bf16.msra.mxu0 0
  %157 = vmatprep.subr.bf16.mxu0 0
  %158 = vmatpush1.bf16.msra.mxu0 0
  %159 = vmatprep.subr.bf16.mxu0 0
  %160 = vmatpush1.bf16.msra.mxu0 0
  %161 = vmatprep.subr.bf16.mxu0 0
  %162 = vmatpush1.bf16.msra.mxu0 0
  %163 = vmatprep.subr.bf16.mxu0 0
  %164 = vmatpush1.bf16.msra.mxu0 0
  %165 = vmatprep.mubr.bf16.mxu0 0
  %166 = vmatmul.mubr.bf16.gmra.mrb[0].mxu0 %v101
  %v167 = vpop.f32.mrb[0].mxu0
  %v168 = vadd.f32 %v131, %v167
  %v169 = vpop.f32.mrb[0].mxu0
  %v170 = vpop.f32.mrb[0].mxu0
  %v171 = vadd.f32 %v131, %v170
  %v172 = vpop.f32.mrb[0].mxu0
  %173 = vdwg.mxu0
  %174 = vst [vmem:[%s5] sm:$0xff] %v168
  %175 = vst [vmem:[%s5 + $0x8] sm:$0xff] %v171
  // Predicated region
  $region22: #{speech_recognition_forward.29} parent=0 // pred_check
    _
  $region23: #{speech_recognition_forward.29} parent=0 // pred_check_branch
    %177 = sbr.rel (0) target = $region25
  $region24: #{speech_recognition_forward.29} parent=0 // pred_region
    _
  $region25: #{speech_recognition_forward.29} parent=0 // pred_fallthru
    _
  // Predicated region
  $region26: #{speech_recognition_forward.29} parent=0 // pred_check
    _
  $region27: #{speech_recognition_forward.29} parent=0 // pred_check_branch
    %179 = sbr.rel (0) target = $region29
  $region28: #{speech_recognition_forward.29} parent=0 // pred_region
    _
  $region29: #{speech_recognition_forward.29} parent=0 // pred_fallthru
    _

</llo_original>
